<compile_context>
chip_gen: v6e
topology: v6e:2x2x1
jax: 0.10.0
libtpu: 0.0.40
codegen_flags: <defaults>
</compile_context>

<pallas_src>
import numpy as np
import jax
import jax.numpy as jnp
from jax.experimental import pallas as pl
from jax.experimental.pallas import tpu as pltpu


# ---------------- in-kernel math helpers --------------------------------------
def _erf(x):
    # Abramowitz & Stegun 7.1.26, |abs err| < 1.5e-7 (matches torch exact-GELU).
    p = 0.3275911
    a1, a2, a3, a4, a5 = 0.254829592, -0.284496736, 1.421413741, -1.453152027, 1.061405429
    ax = jnp.abs(x)
    t = 1.0 / (1.0 + p * ax)
    poly = ((((a5 * t + a4) * t + a3) * t + a2) * t + a1) * t
    y = 1.0 - poly * jnp.exp(-ax * ax)          # exp lands on the EUP slot
    return jnp.where(x >= 0, y, -y)


def _gelu(x):
    return 0.5 * x * (1.0 + _erf(x * 0.7071067811865476))


def _sigmoid(x):
    return 1.0 / (1.0 + jnp.exp(-x))


# ---------------- bilinear (align_corners=True) helpers ------------------------
def _interp_taps(out_size, in_size):
    """Static per-output-row (i0, i1, frac) taps, torch align_corners=True."""
    taps = []
    for h in range(out_size):
        src = 0.0 if out_size == 1 else h * (in_size - 1) / (out_size - 1)
        i0 = min(int(src), in_size - 1)
        i1 = min(i0 + 1, in_size - 1)
        taps.append((i0, i1, float(src - i0)))
    return tuple(taps)


def _bilinear_matrix(out_size, in_size):
    R = np.zeros((out_size, in_size), np.float32)
    for h, (i0, i1, fr) in enumerate(_interp_taps(out_size, in_size)):
        R[h, i0] += 1.0 - fr
        R[h, i1] += fr
    return jnp.asarray(R)


# ---------------- the fused Pallas kernel --------------------------------------
def make_fused_kernel(H, W, C, h_taps):
    H1 = H - 2                 # conv1 valid spatial rows/cols
    W1 = W - 2
    H2 = H - 4                 # conv2 valid spatial rows/cols
    W2 = W - 4
    M1 = H1 * W + 8            # conv1 rows kept (flattened (H1,W)-grid + pad for conv2 reads)
    M2 = H2 * W                # conv2 rows (flattened (H2,W)-grid; cols >= W2 are junk)

    def kernel(x2_ref, xr_ref, w1_ref, s1_ref, b1_ref, w2_ref, s2_ref, b2_ref,
               sw1_ref, sw2_ref, mask_ref, rw_ref, o_ref, f1_ref, f3_ref):
        # ---- conv1 (3x3 valid) + folded BN + exact GELU ----
        # 9 shifted bf16 matmuls on the row-flattened image, f32 accumulation.
        acc = jnp.dot(x2_ref[0, 0:M1, :], w1_ref[0],
                      preferred_element_type=jnp.float32)
        for k in range(1, 9):
            s = (k // 3) * W + (k % 3)
            acc = acc + jnp.dot(x2_ref[0, s:s + M1, :], w1_ref[k],
                                preferred_element_type=jnp.float32)
        f1_ref[...] = _gelu(acc * s1_ref[...] + b1_ref[...]).astype(f1_ref.dtype)

        # ---- conv2 (3x3 valid) + folded BN + exact GELU ----
        acc = jnp.dot(f1_ref[0:M2, :], w2_ref[0],
                      preferred_element_type=jnp.float32)
        for k in range(1, 9):
            s = (k // 3) * W + (k % 3)
            acc = acc + jnp.dot(f1_ref[s:s + M2, :], w2_ref[k],
                                preferred_element_type=jnp.float32)
        f2 = _gelu(acc * s2_ref[...] + b2_ref[...])           # (M2, C) f32

        # ---- SE layer (fused): masked global average pool over the H2*W2 valid
        #      positions, fc -> relu -> fc -> sigmoid, channel-wise rescale.
        pooled = jnp.sum(f2 * mask_ref[...], axis=0, keepdims=True) * (1.0 / (H2 * W2))
        hid = jnp.maximum(
            jnp.dot(pooled, sw1_ref[...], preferred_element_type=jnp.float32), 0.0)
        gate = _sigmoid(
            jnp.dot(hid, sw2_ref[...], preferred_element_type=jnp.float32))   # (1, C)
        f3_ref[...] = f2 * gate

        # ---- separable bilinear upsample (align_corners=True) + residual add ----
        # W direction: one small (W, W2) @ (W2, C) matmul per valid spatial row.
        rw = rw_ref[...]
        urows = [jnp.dot(rw, f3_ref[i * W:i * W + W2, :],
                         preferred_element_type=jnp.float32) for i in range(H2)]
        xr = xr_ref[0]                                        # (H, W, C) f32 residual
        # H direction: static 2-tap lerp per output row, fused with the add.
        for h in range(H):
            i0, i1, fr = h_taps[h]
            if i0 == i1 or fr == 0.0:
                row = urows[i0]
            else:
                row = (1.0 - fr) * urows[i0] + fr * urows[i1]
            o_ref[0, h] = (row + xr[h]).astype(o_ref.dtype)

    return kernel


# ---------------- wrapper -------------------------------------------------------
def _const_index_map(n):
    return lambda b: (0,) * n


def residual_block_forward(x_nchw, params):
    B, C, H, W = x_nchw.shape
    if C != 64:
        raise ValueError("residual add / SELayer imply feature == hidden == 64")
    if H < 5 or W < 5:
        raise ValueError("spatial dims must be >= 5 (two valid 3x3 convs)")
    H2, W2 = H - 4, W - 4
    M1 = (H - 2) * W + 8
    M2 = H2 * W
    LP = H * W + 16

    # NCHW -> NHWC once at the boundary (channels on lanes inside the kernel).
    x_nhwc = jnp.transpose(x_nchw, (0, 2, 3, 1)).astype(jnp.float32)
    # Row-flattened, zero-padded, bf16 copy used by the conv matmuls.
    x_flat = jnp.pad(x_nhwc.reshape(B, H * W, C), ((0, 0), (0, 16), (0, 0)))
    x_flat = x_flat.astype(jnp.bfloat16)

    # Valid-column mask for the SE average pool (flattened (H2, W) grid).
    col = jnp.arange(M2, dtype=jnp.int32) % W
    mask = (col < W2).astype(jnp.float32).reshape(M2, 1)

    rw = _bilinear_matrix(W, W2)             # (W, W2) f32
    h_taps = _interp_taps(H, H2)             # static python taps for the H axis

    kernel = make_fused_kernel(H, W, C, h_taps)

    weights = (params["w1"], params["scale1"], params["bias1"],
               params["w2"], params["scale2"], params["bias2"],
               params["se_w1"], params["se_w2"])

    grid_spec = pltpu.PrefetchScalarGridSpec(
        num_scalar_prefetch=0,
        grid=(B,),
        in_specs=[
            pl.BlockSpec((1, LP, C), lambda b: (b, 0, 0)),          # x (flattened, bf16)
            pl.BlockSpec((1, H, W, C), lambda b: (b, 0, 0, 0)),     # x residual (f32)
        ] + [pl.BlockSpec(w.shape, _const_index_map(w.ndim)) for w in weights] + [
            pl.BlockSpec((M2, 1), _const_index_map(2)),             # SE pool mask
            pl.BlockSpec((W, W2), _const_index_map(2)),             # Rw interp matrix
        ],
        out_specs=pl.BlockSpec((1, H, W, C), lambda b: (b, 0, 0, 0)),
        scratch_shapes=[
            pltpu.VMEM((M1, 64), jnp.bfloat16),   # conv1 activations (+ pad rows)
            pltpu.VMEM((M2, 64), jnp.float32),    # SE-scaled conv2 activations
        ],
    )

    out_nhwc = pl.pallas_call(
        kernel,
        out_shape=jax.ShapeDtypeStruct((B, H, W, C), jnp.float32),
        grid_spec=grid_spec,
        input_output_aliases={1: 0},              # residual input buffer reused for output
        compiler_params=pltpu.CompilerParams(
            dimension_semantics=("parallel",),    # batch across TensorCores (v7x megacore)
            vmem_limit_bytes=32 * 1024 * 1024,
        ),
    )(x_flat, x_nhwc, *weights, mask, rw)

    return jnp.transpose(out_nhwc, (0, 3, 1, 2))  # NHWC -> NCHW


# ---------------- parameter construction ---------------------------------------
def init_params(key, feature=64, hidden=64, k=3, reduction=16, eps=1e-5):
    if feature != hidden:
        raise ValueError("module only type-checks when feature == hidden == 64")
    keys = jax.random.split(key, 14)

    def conv_w(kw, kb, cin, cout):
        w = jax.random.normal(kw, (cout, cin, k, k), jnp.float32) * (cin * k * k) ** -0.5
        b = jax.random.normal(kb, (cout,), jnp.float32) * 0.05
        return w, b

    w1, b1 = conv_w(keys[0], keys[1], feature, hidden)
    w2, b2 = conv_w(keys[2], keys[3], hidden, hidden)

    def bn(kg, kb, km, kv, c):
        g = 1.0 + 0.1 * jax.random.normal(kg, (c,), jnp.float32)
        be = 0.1 * jax.random.normal(kb, (c,), jnp.float32)
        m = 0.1 * jax.random.normal(km, (c,), jnp.float32)
        v = jax.random.uniform(kv, (c,), jnp.float32, minval=0.5, maxval=1.5)
        return g, be, m, v

    g1, be1, m1, v1 = bn(keys[4], keys[5], keys[6], keys[7], hidden)
    g2, be2, m2, v2 = bn(keys[8], keys[9], keys[10], keys[11], hidden)

    # fold conv bias + BatchNorm (eval mode) into per-channel scale/bias
    scale1 = g1 / jnp.sqrt(v1 + eps)
    bias1 = (b1 - m1) * scale1 + be1
    scale2 = g2 / jnp.sqrt(v2 + eps)
    bias2 = (b2 - m2) * scale2 + be2

    # conv weights packed (k*k, cin, cout) in (ky, kx) raster order, bf16 for the MXU
    w1_p = jnp.transpose(w1, (2, 3, 1, 0)).reshape(k * k, feature, hidden).astype(jnp.bfloat16)
    w2_p = jnp.transpose(w2, (2, 3, 1, 0)).reshape(k * k, hidden, hidden).astype(jnp.bfloat16)

    # SELayer: Linear(c, c//r, bias=False) -> ReLU -> Linear(c//r, c, bias=False) -> Sigmoid
    c = feature
    fc1 = jax.random.normal(keys[12], (c // reduction, c), jnp.float32) * c ** -0.5
    fc2 = jax.random.normal(keys[13], (c, c // reduction), jnp.float32) * (c // reduction) ** -0.5

    return dict(
        w1=w1_p, scale1=scale1.reshape(1, hidden), bias1=bias1.reshape(1, hidden),
        w2=w2_p, scale2=scale2.reshape(1, hidden), bias2=bias2.reshape(1, hidden),
        se_w1=fc1.T, se_w2=fc2.T,   # kernel consumes (in, out) layout
    )


if __name__ == "__main__":
    key = jax.random.PRNGKey(0)
    pkey, xkey = jax.random.split(key)
    feature = 64  # residual add / SELayer imply feature == hidden == 64
    params = init_params(pkey, feature=feature)
    x = jax.random.normal(xkey, (2, feature, 16, 16), jnp.float32)

    fwd = jax.jit(residual_block_forward)
    out = fwd(x, params)
    jax.block_until_ready(out)
    assert out.shape == x.shape and out.dtype == jnp.float32
    assert bool(jnp.all(jnp.isfinite(out)))
    print("KERNEL_OK")
</pallas_src>

<mosaic_0001>
module attributes {stable_mosaic.version = 11 : i64} {
  func.func @kernel(%arg0: i32, %arg1: memref<1x272x64xbf16, #tpu.memory_space<vmem>>, %arg2: memref<1x16x16x64xf32, #tpu.memory_space<vmem>>, %arg3: memref<9x64x64xbf16, #tpu.memory_space<vmem>>, %arg4: memref<1x64xf32, #tpu.memory_space<vmem>>, %arg5: memref<1x64xf32, #tpu.memory_space<vmem>>, %arg6: memref<9x64x64xbf16, #tpu.memory_space<vmem>>, %arg7: memref<1x64xf32, #tpu.memory_space<vmem>>, %arg8: memref<1x64xf32, #tpu.memory_space<vmem>>, %arg9: memref<64x4xf32, #tpu.memory_space<vmem>>, %arg10: memref<4x64xf32, #tpu.memory_space<vmem>>, %arg11: memref<192x1xf32, #tpu.memory_space<vmem>>, %arg12: memref<16x12xf32, #tpu.memory_space<vmem>>, %arg13: memref<1x16x16x64xf32, #tpu.memory_space<vmem>>, %arg14: memref<232x64xbf16, #tpu.memory_space<vmem>>, %arg15: memref<192x64xf32, #tpu.memory_space<vmem>>) attributes {dimension_semantics = [#tpu.dimension_semantics<parallel>], iteration_bounds = array<i64: 2>, scalar_prefetch = 0 : i64, scratch_operands = 2 : i64, tpu.core_type = #tpu.core_type<tc>, window_params = [{transform_indices = @transform_0, window_bounds = array<i64: 1, 272, 64>}, {transform_indices = @transform_1, window_bounds = array<i64: 1, 16, 16, 64>}, {pipeline_mode = #tpu.pipeline_mode<synchronous>, transform_indices = @transform_2, window_bounds = array<i64: 9, 64, 64>}, {pipeline_mode = #tpu.pipeline_mode<synchronous>, transform_indices = @transform_3, window_bounds = array<i64: 1, 64>}, {pipeline_mode = #tpu.pipeline_mode<synchronous>, transform_indices = @transform_4, window_bounds = array<i64: 1, 64>}, {pipeline_mode = #tpu.pipeline_mode<synchronous>, transform_indices = @transform_5, window_bounds = array<i64: 9, 64, 64>}, {pipeline_mode = #tpu.pipeline_mode<synchronous>, transform_indices = @transform_6, window_bounds = array<i64: 1, 64>}, {pipeline_mode = #tpu.pipeline_mode<synchronous>, transform_indices = @transform_7, window_bounds = array<i64: 1, 64>}, {pipeline_mode = #tpu.pipeline_mode<synchronous>, transform_indices = @transform_8, window_bounds = array<i64: 64, 4>}, {pipeline_mode = #tpu.pipeline_mode<synchronous>, transform_indices = @transform_9, window_bounds = array<i64: 4, 64>}, {pipeline_mode = #tpu.pipeline_mode<synchronous>, transform_indices = @transform_10, window_bounds = array<i64: 192, 1>}, {pipeline_mode = #tpu.pipeline_mode<synchronous>, transform_indices = @transform_11, window_bounds = array<i64: 16, 12>}, {transform_indices = @transform_12, window_bounds = array<i64: 1, 16, 16, 64>}]} {
    %c0 = arith.constant 0 : index
    %c0_0 = arith.constant 0 : index
    %c0_1 = arith.constant 0 : index
    %0 = vector.load %arg1[%c0, %c0_0, %c0_1] : memref<1x272x64xbf16, #tpu.memory_space<vmem>>, vector<1x232x64xbf16>
    %1 = vector.shape_cast %0 : vector<1x232x64xbf16> to vector<232x64xbf16>
    %c0_2 = arith.constant 0 : index
    %c0_3 = arith.constant 0 : index
    %c0_4 = arith.constant 0 : index
    %2 = vector.load %arg3[%c0_2, %c0_3, %c0_4] : memref<9x64x64xbf16, #tpu.memory_space<vmem>>, vector<1x64x64xbf16>
    %3 = vector.shape_cast %2 : vector<1x64x64xbf16> to vector<64x64xbf16>
    %cst = arith.constant dense<0.000000e+00> : vector<232x64xf32>
    %4 = tpu.matmul %1, %3, %cst {dimension_numbers = #tpu.dot_dimension_numbers<[1], [0], [0], [1], [0, 0, 1, 1], [], []>} : vector<232x64xbf16>, vector<64x64xbf16>, vector<232x64xf32> -> vector<232x64xf32>
    %c0_5 = arith.constant 0 : index
    %c1 = arith.constant 1 : index
    %c0_6 = arith.constant 0 : index
    %5 = vector.load %arg1[%c0_5, %c1, %c0_6] : memref<1x272x64xbf16, #tpu.memory_space<vmem>>, vector<1x232x64xbf16>
    %6 = vector.shape_cast %5 : vector<1x232x64xbf16> to vector<232x64xbf16>
    %c1_7 = arith.constant 1 : index
    %c0_8 = arith.constant 0 : index
    %c0_9 = arith.constant 0 : index
    %7 = vector.load %arg3[%c1_7, %c0_8, %c0_9] : memref<9x64x64xbf16, #tpu.memory_space<vmem>>, vector<1x64x64xbf16>
    %8 = vector.shape_cast %7 : vector<1x64x64xbf16> to vector<64x64xbf16>
    %cst_10 = arith.constant dense<0.000000e+00> : vector<232x64xf32>
    %9 = tpu.matmul %6, %8, %cst_10 {dimension_numbers = #tpu.dot_dimension_numbers<[1], [0], [0], [1], [0, 0, 1, 1], [], []>} : vector<232x64xbf16>, vector<64x64xbf16>, vector<232x64xf32> -> vector<232x64xf32>
    %10 = arith.addf %4, %9 : vector<232x64xf32>
    %c0_11 = arith.constant 0 : index
    %c2 = arith.constant 2 : index
    %c0_12 = arith.constant 0 : index
    %11 = vector.load %arg1[%c0_11, %c2, %c0_12] : memref<1x272x64xbf16, #tpu.memory_space<vmem>>, vector<1x232x64xbf16>
    %12 = vector.shape_cast %11 : vector<1x232x64xbf16> to vector<232x64xbf16>
    %c2_13 = arith.constant 2 : index
    %c0_14 = arith.constant 0 : index
    %c0_15 = arith.constant 0 : index
    %13 = vector.load %arg3[%c2_13, %c0_14, %c0_15] : memref<9x64x64xbf16, #tpu.memory_space<vmem>>, vector<1x64x64xbf16>
    %14 = vector.shape_cast %13 : vector<1x64x64xbf16> to vector<64x64xbf16>
    %cst_16 = arith.constant dense<0.000000e+00> : vector<232x64xf32>
    %15 = tpu.matmul %12, %14, %cst_16 {dimension_numbers = #tpu.dot_dimension_numbers<[1], [0], [0], [1], [0, 0, 1, 1], [], []>} : vector<232x64xbf16>, vector<64x64xbf16>, vector<232x64xf32> -> vector<232x64xf32>
    %16 = arith.addf %10, %15 : vector<232x64xf32>
    %c0_17 = arith.constant 0 : index
    %c16 = arith.constant 16 : index
    %c0_18 = arith.constant 0 : index
    %17 = vector.load %arg1[%c0_17, %c16, %c0_18] : memref<1x272x64xbf16, #tpu.memory_space<vmem>>, vector<1x232x64xbf16>
    %18 = vector.shape_cast %17 : vector<1x232x64xbf16> to vector<232x64xbf16>
    %c3 = arith.constant 3 : index
    %c0_19 = arith.constant 0 : index
    %c0_20 = arith.constant 0 : index
    %19 = vector.load %arg3[%c3, %c0_19, %c0_20] : memref<9x64x64xbf16, #tpu.memory_space<vmem>>, vector<1x64x64xbf16>
    %20 = vector.shape_cast %19 : vector<1x64x64xbf16> to vector<64x64xbf16>
    %cst_21 = arith.constant dense<0.000000e+00> : vector<232x64xf32>
    %21 = tpu.matmul %18, %20, %cst_21 {dimension_numbers = #tpu.dot_dimension_numbers<[1], [0], [0], [1], [0, 0, 1, 1], [], []>} : vector<232x64xbf16>, vector<64x64xbf16>, vector<232x64xf32> -> vector<232x64xf32>
    %22 = arith.addf %16, %21 : vector<232x64xf32>
    %c0_22 = arith.constant 0 : index
    %c17 = arith.constant 17 : index
    %c0_23 = arith.constant 0 : index
    %23 = vector.load %arg1[%c0_22, %c17, %c0_23] : memref<1x272x64xbf16, #tpu.memory_space<vmem>>, vector<1x232x64xbf16>
    %24 = vector.shape_cast %23 : vector<1x232x64xbf16> to vector<232x64xbf16>
    %c4 = arith.constant 4 : index
    %c0_24 = arith.constant 0 : index
    %c0_25 = arith.constant 0 : index
    %25 = vector.load %arg3[%c4, %c0_24, %c0_25] : memref<9x64x64xbf16, #tpu.memory_space<vmem>>, vector<1x64x64xbf16>
    %26 = vector.shape_cast %25 : vector<1x64x64xbf16> to vector<64x64xbf16>
    %cst_26 = arith.constant dense<0.000000e+00> : vector<232x64xf32>
    %27 = tpu.matmul %24, %26, %cst_26 {dimension_numbers = #tpu.dot_dimension_numbers<[1], [0], [0], [1], [0, 0, 1, 1], [], []>} : vector<232x64xbf16>, vector<64x64xbf16>, vector<232x64xf32> -> vector<232x64xf32>
    %28 = arith.addf %22, %27 : vector<232x64xf32>
    %c0_27 = arith.constant 0 : index
    %c18 = arith.constant 18 : index
    %c0_28 = arith.constant 0 : index
    %29 = vector.load %arg1[%c0_27, %c18, %c0_28] : memref<1x272x64xbf16, #tpu.memory_space<vmem>>, vector<1x232x64xbf16>
    %30 = vector.shape_cast %29 : vector<1x232x64xbf16> to vector<232x64xbf16>
    %c5 = arith.constant 5 : index
    %c0_29 = arith.constant 0 : index
    %c0_30 = arith.constant 0 : index
    %31 = vector.load %arg3[%c5, %c0_29, %c0_30] : memref<9x64x64xbf16, #tpu.memory_space<vmem>>, vector<1x64x64xbf16>
    %32 = vector.shape_cast %31 : vector<1x64x64xbf16> to vector<64x64xbf16>
    %cst_31 = arith.constant dense<0.000000e+00> : vector<232x64xf32>
    %33 = tpu.matmul %30, %32, %cst_31 {dimension_numbers = #tpu.dot_dimension_numbers<[1], [0], [0], [1], [0, 0, 1, 1], [], []>} : vector<232x64xbf16>, vector<64x64xbf16>, vector<232x64xf32> -> vector<232x64xf32>
    %34 = arith.addf %28, %33 : vector<232x64xf32>
    %c0_32 = arith.constant 0 : index
    %c32 = arith.constant 32 : index
    %c0_33 = arith.constant 0 : index
    %35 = vector.load %arg1[%c0_32, %c32, %c0_33] : memref<1x272x64xbf16, #tpu.memory_space<vmem>>, vector<1x232x64xbf16>
    %36 = vector.shape_cast %35 : vector<1x232x64xbf16> to vector<232x64xbf16>
    %c6 = arith.constant 6 : index
    %c0_34 = arith.constant 0 : index
    %c0_35 = arith.constant 0 : index
    %37 = vector.load %arg3[%c6, %c0_34, %c0_35] : memref<9x64x64xbf16, #tpu.memory_space<vmem>>, vector<1x64x64xbf16>
    %38 = vector.shape_cast %37 : vector<1x64x64xbf16> to vector<64x64xbf16>
    %cst_36 = arith.constant dense<0.000000e+00> : vector<232x64xf32>
    %39 = tpu.matmul %36, %38, %cst_36 {dimension_numbers = #tpu.dot_dimension_numbers<[1], [0], [0], [1], [0, 0, 1, 1], [], []>} : vector<232x64xbf16>, vector<64x64xbf16>, vector<232x64xf32> -> vector<232x64xf32>
    %40 = arith.addf %34, %39 : vector<232x64xf32>
    %c0_37 = arith.constant 0 : index
    %c33 = arith.constant 33 : index
    %c0_38 = arith.constant 0 : index
    %41 = vector.load %arg1[%c0_37, %c33, %c0_38] : memref<1x272x64xbf16, #tpu.memory_space<vmem>>, vector<1x232x64xbf16>
    %42 = vector.shape_cast %41 : vector<1x232x64xbf16> to vector<232x64xbf16>
    %c7 = arith.constant 7 : index
    %c0_39 = arith.constant 0 : index
    %c0_40 = arith.constant 0 : index
    %43 = vector.load %arg3[%c7, %c0_39, %c0_40] : memref<9x64x64xbf16, #tpu.memory_space<vmem>>, vector<1x64x64xbf16>
    %44 = vector.shape_cast %43 : vector<1x64x64xbf16> to vector<64x64xbf16>
    %cst_41 = arith.constant dense<0.000000e+00> : vector<232x64xf32>
    %45 = tpu.matmul %42, %44, %cst_41 {dimension_numbers = #tpu.dot_dimension_numbers<[1], [0], [0], [1], [0, 0, 1, 1], [], []>} : vector<232x64xbf16>, vector<64x64xbf16>, vector<232x64xf32> -> vector<232x64xf32>
    %46 = arith.addf %40, %45 : vector<232x64xf32>
    %c0_42 = arith.constant 0 : index
    %c34 = arith.constant 34 : index
    %c0_43 = arith.constant 0 : index
    %47 = vector.load %arg1[%c0_42, %c34, %c0_43] : memref<1x272x64xbf16, #tpu.memory_space<vmem>>, vector<1x232x64xbf16>
    %48 = vector.shape_cast %47 : vector<1x232x64xbf16> to vector<232x64xbf16>
    %c8 = arith.constant 8 : index
    %c0_44 = arith.constant 0 : index
    %c0_45 = arith.constant 0 : index
    %49 = vector.load %arg3[%c8, %c0_44, %c0_45] : memref<9x64x64xbf16, #tpu.memory_space<vmem>>, vector<1x64x64xbf16>
    %50 = vector.shape_cast %49 : vector<1x64x64xbf16> to vector<64x64xbf16>
    %cst_46 = arith.constant dense<0.000000e+00> : vector<232x64xf32>
    %51 = tpu.matmul %48, %50, %cst_46 {dimension_numbers = #tpu.dot_dimension_numbers<[1], [0], [0], [1], [0, 0, 1, 1], [], []>} : vector<232x64xbf16>, vector<64x64xbf16>, vector<232x64xf32> -> vector<232x64xf32>
    %52 = arith.addf %46, %51 : vector<232x64xf32>
    %c0_47 = arith.constant 0 : index
    %c0_48 = arith.constant 0 : index
    %53 = vector.load %arg4[%c0_47, %c0_48] : memref<1x64xf32, #tpu.memory_space<vmem>>, vector<1x64xf32>
    %54 = vector.broadcast %53 : vector<1x64xf32> to vector<232x64xf32>
    %55 = arith.mulf %52, %54 : vector<232x64xf32>
    %c0_49 = arith.constant 0 : index
    %c0_50 = arith.constant 0 : index
    %56 = vector.load %arg5[%c0_49, %c0_50] : memref<1x64xf32, #tpu.memory_space<vmem>>, vector<1x64xf32>
    %57 = vector.broadcast %56 : vector<1x64xf32> to vector<232x64xf32>
    %58 = arith.addf %55, %57 : vector<232x64xf32>
    %cst_51 = arith.constant 5.000000e-01 : f32
    %59 = vector.broadcast %cst_51 : f32 to vector<232x64xf32>
    %60 = arith.mulf %59, %58 : vector<232x64xf32>
    %cst_52 = arith.constant 0.707106769 : f32
    %61 = vector.broadcast %cst_52 : f32 to vector<232x64xf32>
    %62 = arith.mulf %58, %61 : vector<232x64xf32>
    %63 = math.absf %62 : vector<232x64xf32>
    %cst_53 = arith.constant 0.327591091 : f32
    %64 = vector.broadcast %cst_53 : f32 to vector<232x64xf32>
    %65 = arith.mulf %64, %63 : vector<232x64xf32>
    %cst_54 = arith.constant 1.000000e+00 : f32
    %66 = vector.broadcast %cst_54 : f32 to vector<232x64xf32>
    %67 = arith.addf %66, %65 : vector<232x64xf32>
    %cst_55 = arith.constant 1.000000e+00 : f32
    %68 = vector.broadcast %cst_55 : f32 to vector<232x64xf32>
    %69 = arith.divf %68, %67 : vector<232x64xf32>
    %cst_56 = arith.constant 1.06140542 : f32
    %70 = vector.broadcast %cst_56 : f32 to vector<232x64xf32>
    %71 = arith.mulf %70, %69 : vector<232x64xf32>
    %cst_57 = arith.constant -1.45315206 : f32
    %72 = vector.broadcast %cst_57 : f32 to vector<232x64xf32>
    %73 = arith.addf %71, %72 : vector<232x64xf32>
    %74 = arith.mulf %73, %69 : vector<232x64xf32>
    %cst_58 = arith.constant 1.42141378 : f32
    %75 = vector.broadcast %cst_58 : f32 to vector<232x64xf32>
    %76 = arith.addf %74, %75 : vector<232x64xf32>
    %77 = arith.mulf %76, %69 : vector<232x64xf32>
    %cst_59 = arith.constant -0.284496725 : f32
    %78 = vector.broadcast %cst_59 : f32 to vector<232x64xf32>
    %79 = arith.addf %77, %78 : vector<232x64xf32>
    %80 = arith.mulf %79, %69 : vector<232x64xf32>
    %cst_60 = arith.constant 0.254829586 : f32
    %81 = vector.broadcast %cst_60 : f32 to vector<232x64xf32>
    %82 = arith.addf %80, %81 : vector<232x64xf32>
    %83 = arith.mulf %82, %69 : vector<232x64xf32>
    %cst_61 = arith.constant 0.000000e+00 : f32
    %84 = vector.broadcast %cst_61 : f32 to vector<232x64xf32>
    %85 = arith.subf %84, %63 : vector<232x64xf32>
    %86 = arith.mulf %85, %63 : vector<232x64xf32>
    %87 = math.exp %86 : vector<232x64xf32>
    %88 = arith.mulf %83, %87 : vector<232x64xf32>
    %cst_62 = arith.constant 1.000000e+00 : f32
    %89 = vector.broadcast %cst_62 : f32 to vector<232x64xf32>
    %90 = arith.subf %89, %88 : vector<232x64xf32>
    %cst_63 = arith.constant 0.000000e+00 : f32
    %91 = vector.broadcast %cst_63 : f32 to vector<232x64xf32>
    %92 = arith.cmpf oge, %62, %91 : vector<232x64xf32>
    %cst_64 = arith.constant 0.000000e+00 : f32
    %93 = vector.broadcast %cst_64 : f32 to vector<232x64xf32>
    %94 = arith.subf %93, %90 : vector<232x64xf32>
    %95 = arith.select %92, %90, %94 : vector<232x64xi1>, vector<232x64xf32>
    %cst_65 = arith.constant 1.000000e+00 : f32
    %96 = vector.broadcast %cst_65 : f32 to vector<232x64xf32>
    %97 = arith.addf %96, %95 : vector<232x64xf32>
    %98 = arith.mulf %60, %97 : vector<232x64xf32>
    %99 = arith.truncf %98 : vector<232x64xf32> to vector<232x64xbf16>
    %c0_66 = arith.constant 0 : index
    %c0_67 = arith.constant 0 : index
    %100 = vector.load %arg14[%c0_66, %c0_67] : memref<232x64xbf16, #tpu.memory_space<vmem>>, vector<232x64xbf16>
    tpu.vector_store %arg14[%c0_66, %c0_67], %99 {strides = array<i32>} : memref<232x64xbf16, #tpu.memory_space<vmem>>, vector<232x64xbf16>,
    %c0_68 = arith.constant 0 : index
    %c0_69 = arith.constant 0 : index
    %101 = vector.load %arg14[%c0_68, %c0_69] : memref<232x64xbf16, #tpu.memory_space<vmem>>, vector<192x64xbf16>
    %c0_70 = arith.constant 0 : index
    %c0_71 = arith.constant 0 : index
    %c0_72 = arith.constant 0 : index
    %102 = vector.load %arg6[%c0_70, %c0_71, %c0_72] : memref<9x64x64xbf16, #tpu.memory_space<vmem>>, vector<1x64x64xbf16>
    %103 = vector.shape_cast %102 : vector<1x64x64xbf16> to vector<64x64xbf16>
    %cst_73 = arith.constant dense<0.000000e+00> : vector<192x64xf32>
    %104 = tpu.matmul %101, %103, %cst_73 {dimension_numbers = #tpu.dot_dimension_numbers<[1], [0], [0], [1], [0, 0, 1, 1], [], []>} : vector<192x64xbf16>, vector<64x64xbf16>, vector<192x64xf32> -> vector<192x64xf32>
    %c1_74 = arith.constant 1 : index
    %c0_75 = arith.constant 0 : index
    %105 = vector.load %arg14[%c1_74, %c0_75] : memref<232x64xbf16, #tpu.memory_space<vmem>>, vector<192x64xbf16>
    %c1_76 = arith.constant 1 : index
    %c0_77 = arith.constant 0 : index
    %c0_78 = arith.constant 0 : index
    %106 = vector.load %arg6[%c1_76, %c0_77, %c0_78] : memref<9x64x64xbf16, #tpu.memory_space<vmem>>, vector<1x64x64xbf16>
    %107 = vector.shape_cast %106 : vector<1x64x64xbf16> to vector<64x64xbf16>
    %cst_79 = arith.constant dense<0.000000e+00> : vector<192x64xf32>
    %108 = tpu.matmul %105, %107, %cst_79 {dimension_numbers = #tpu.dot_dimension_numbers<[1], [0], [0], [1], [0, 0, 1, 1], [], []>} : vector<192x64xbf16>, vector<64x64xbf16>, vector<192x64xf32> -> vector<192x64xf32>
    %109 = arith.addf %104, %108 : vector<192x64xf32>
    %c2_80 = arith.constant 2 : index
    %c0_81 = arith.constant 0 : index
    %110 = vector.load %arg14[%c2_80, %c0_81] : memref<232x64xbf16, #tpu.memory_space<vmem>>, vector<192x64xbf16>
    %c2_82 = arith.constant 2 : index
    %c0_83 = arith.constant 0 : index
    %c0_84 = arith.constant 0 : index
    %111 = vector.load %arg6[%c2_82, %c0_83, %c0_84] : memref<9x64x64xbf16, #tpu.memory_space<vmem>>, vector<1x64x64xbf16>
    %112 = vector.shape_cast %111 : vector<1x64x64xbf16> to vector<64x64xbf16>
    %cst_85 = arith.constant dense<0.000000e+00> : vector<192x64xf32>
    %113 = tpu.matmul %110, %112, %cst_85 {dimension_numbers = #tpu.dot_dimension_numbers<[1], [0], [0], [1], [0, 0, 1, 1], [], []>} : vector<192x64xbf16>, vector<64x64xbf16>, vector<192x64xf32> -> vector<192x64xf32>
    %114 = arith.addf %109, %113 : vector<192x64xf32>
    %c16_86 = arith.constant 16 : index
    %c0_87 = arith.constant 0 : index
    %115 = vector.load %arg14[%c16_86, %c0_87] : memref<232x64xbf16, #tpu.memory_space<vmem>>, vector<192x64xbf16>
    %c3_88 = arith.constant 3 : index
    %c0_89 = arith.constant 0 : index
    %c0_90 = arith.constant 0 : index
    %116 = vector.load %arg6[%c3_88, %c0_89, %c0_90] : memref<9x64x64xbf16, #tpu.memory_space<vmem>>, vector<1x64x64xbf16>
    %117 = vector.shape_cast %116 : vector<1x64x64xbf16> to vector<64x64xbf16>
    %cst_91 = arith.constant dense<0.000000e+00> : vector<192x64xf32>
    %118 = tpu.matmul %115, %117, %cst_91 {dimension_numbers = #tpu.dot_dimension_numbers<[1], [0], [0], [1], [0, 0, 1, 1], [], []>} : vector<192x64xbf16>, vector<64x64xbf16>, vector<192x64xf32> -> vector<192x64xf32>
    %119 = arith.addf %114, %118 : vector<192x64xf32>
    %c17_92 = arith.constant 17 : index
    %c0_93 = arith.constant 0 : index
    %120 = vector.load %arg14[%c17_92, %c0_93] : memref<232x64xbf16, #tpu.memory_space<vmem>>, vector<192x64xbf16>
    %c4_94 = arith.constant 4 : index
    %c0_95 = arith.constant 0 : index
    %c0_96 = arith.constant 0 : index
    %121 = vector.load %arg6[%c4_94, %c0_95, %c0_96] : memref<9x64x64xbf16, #tpu.memory_space<vmem>>, vector<1x64x64xbf16>
    %122 = vector.shape_cast %121 : vector<1x64x64xbf16> to vector<64x64xbf16>
    %cst_97 = arith.constant dense<0.000000e+00> : vector<192x64xf32>
    %123 = tpu.matmul %120, %122, %cst_97 {dimension_numbers = #tpu.dot_dimension_numbers<[1], [0], [0], [1], [0, 0, 1, 1], [], []>} : vector<192x64xbf16>, vector<64x64xbf16>, vector<192x64xf32> -> vector<192x64xf32>
    %124 = arith.addf %119, %123 : vector<192x64xf32>
    %c18_98 = arith.constant 18 : index
    %c0_99 = arith.constant 0 : index
    %125 = vector.load %arg14[%c18_98, %c0_99] : memref<232x64xbf16, #tpu.memory_space<vmem>>, vector<192x64xbf16>
    %c5_100 = arith.constant 5 : index
    %c0_101 = arith.constant 0 : index
    %c0_102 = arith.constant 0 : index
    %126 = vector.load %arg6[%c5_100, %c0_101, %c0_102] : memref<9x64x64xbf16, #tpu.memory_space<vmem>>, vector<1x64x64xbf16>
    %127 = vector.shape_cast %126 : vector<1x64x64xbf16> to vector<64x64xbf16>
    %cst_103 = arith.constant dense<0.000000e+00> : vector<192x64xf32>
    %128 = tpu.matmul %125, %127, %cst_103 {dimension_numbers = #tpu.dot_dimension_numbers<[1], [0], [0], [1], [0, 0, 1, 1], [], []>} : vector<192x64xbf16>, vector<64x64xbf16>, vector<192x64xf32> -> vector<192x64xf32>
    %129 = arith.addf %124, %128 : vector<192x64xf32>
    %c32_104 = arith.constant 32 : index
    %c0_105 = arith.constant 0 : index
    %130 = vector.load %arg14[%c32_104, %c0_105] : memref<232x64xbf16, #tpu.memory_space<vmem>>, vector<192x64xbf16>
    %c6_106 = arith.constant 6 : index
    %c0_107 = arith.constant 0 : index
    %c0_108 = arith.constant 0 : index
    %131 = vector.load %arg6[%c6_106, %c0_107, %c0_108] : memref<9x64x64xbf16, #tpu.memory_space<vmem>>, vector<1x64x64xbf16>
    %132 = vector.shape_cast %131 : vector<1x64x64xbf16> to vector<64x64xbf16>
    %cst_109 = arith.constant dense<0.000000e+00> : vector<192x64xf32>
    %133 = tpu.matmul %130, %132, %cst_109 {dimension_numbers = #tpu.dot_dimension_numbers<[1], [0], [0], [1], [0, 0, 1, 1], [], []>} : vector<192x64xbf16>, vector<64x64xbf16>, vector<192x64xf32> -> vector<192x64xf32>
    %134 = arith.addf %129, %133 : vector<192x64xf32>
    %c33_110 = arith.constant 33 : index
    %c0_111 = arith.constant 0 : index
    %135 = vector.load %arg14[%c33_110, %c0_111] : memref<232x64xbf16, #tpu.memory_space<vmem>>, vector<192x64xbf16>
    %c7_112 = arith.constant 7 : index
    %c0_113 = arith.constant 0 : index
    %c0_114 = arith.constant 0 : index
    %136 = vector.load %arg6[%c7_112, %c0_113, %c0_114] : memref<9x64x64xbf16, #tpu.memory_space<vmem>>, vector<1x64x64xbf16>
    %137 = vector.shape_cast %136 : vector<1x64x64xbf16> to vector<64x64xbf16>
    %cst_115 = arith.constant dense<0.000000e+00> : vector<192x64xf32>
    %138 = tpu.matmul %135, %137, %cst_115 {dimension_numbers = #tpu.dot_dimension_numbers<[1], [0], [0], [1], [0, 0, 1, 1], [], []>} : vector<192x64xbf16>, vector<64x64xbf16>, vector<192x64xf32> -> vector<192x64xf32>
    %139 = arith.addf %134, %138 : vector<192x64xf32>
    %c34_116 = arith.constant 34 : index
    %c0_117 = arith.constant 0 : index
    %140 = vector.load %arg14[%c34_116, %c0_117] : memref<232x64xbf16, #tpu.memory_space<vmem>>, vector<192x64xbf16>
    %c8_118 = arith.constant 8 : index
    %c0_119 = arith.constant 0 : index
    %c0_120 = arith.constant 0 : index
    %141 = vector.load %arg6[%c8_118, %c0_119, %c0_120] : memref<9x64x64xbf16, #tpu.memory_space<vmem>>, vector<1x64x64xbf16>
    %142 = vector.shape_cast %141 : vector<1x64x64xbf16> to vector<64x64xbf16>
    %cst_121 = arith.constant dense<0.000000e+00> : vector<192x64xf32>
    %143 = tpu.matmul %140, %142, %cst_121 {dimension_numbers = #tpu.dot_dimension_numbers<[1], [0], [0], [1], [0, 0, 1, 1], [], []>} : vector<192x64xbf16>, vector<64x64xbf16>, vector<192x64xf32> -> vector<192x64xf32>
    %144 = arith.addf %139, %143 : vector<192x64xf32>
    %c0_122 = arith.constant 0 : index
    %c0_123 = arith.constant 0 : index
    %145 = vector.load %arg7[%c0_122, %c0_123] : memref<1x64xf32, #tpu.memory_space<vmem>>, vector<1x64xf32>
    %146 = vector.broadcast %145 : vector<1x64xf32> to vector<192x64xf32>
    %147 = arith.mulf %144, %146 : vector<192x64xf32>
    %c0_124 = arith.constant 0 : index
    %c0_125 = arith.constant 0 : index
    %148 = vector.load %arg8[%c0_124, %c0_125] : memref<1x64xf32, #tpu.memory_space<vmem>>, vector<1x64xf32>
    %149 = vector.broadcast %148 : vector<1x64xf32> to vector<192x64xf32>
    %150 = arith.addf %147, %149 : vector<192x64xf32>
    %cst_126 = arith.constant 5.000000e-01 : f32
    %151 = vector.broadcast %cst_126 : f32 to vector<192x64xf32>
    %152 = arith.mulf %151, %150 : vector<192x64xf32>
    %cst_127 = arith.constant 0.707106769 : f32
    %153 = vector.broadcast %cst_127 : f32 to vector<192x64xf32>
    %154 = arith.mulf %150, %153 : vector<192x64xf32>
    %155 = math.absf %154 : vector<192x64xf32>
    %cst_128 = arith.constant 0.327591091 : f32
    %156 = vector.broadcast %cst_128 : f32 to vector<192x64xf32>
    %157 = arith.mulf %156, %155 : vector<192x64xf32>
    %cst_129 = arith.constant 1.000000e+00 : f32
    %158 = vector.broadcast %cst_129 : f32 to vector<192x64xf32>
    %159 = arith.addf %158, %157 : vector<192x64xf32>
    %cst_130 = arith.constant 1.000000e+00 : f32
    %160 = vector.broadcast %cst_130 : f32 to vector<192x64xf32>
    %161 = arith.divf %160, %159 : vector<192x64xf32>
    %cst_131 = arith.constant 1.06140542 : f32
    %162 = vector.broadcast %cst_131 : f32 to vector<192x64xf32>
    %163 = arith.mulf %162, %161 : vector<192x64xf32>
    %cst_132 = arith.constant -1.45315206 : f32
    %164 = vector.broadcast %cst_132 : f32 to vector<192x64xf32>
    %165 = arith.addf %163, %164 : vector<192x64xf32>
    %166 = arith.mulf %165, %161 : vector<192x64xf32>
    %cst_133 = arith.constant 1.42141378 : f32
    %167 = vector.broadcast %cst_133 : f32 to vector<192x64xf32>
    %168 = arith.addf %166, %167 : vector<192x64xf32>
    %169 = arith.mulf %168, %161 : vector<192x64xf32>
    %cst_134 = arith.constant -0.284496725 : f32
    %170 = vector.broadcast %cst_134 : f32 to vector<192x64xf32>
    %171 = arith.addf %169, %170 : vector<192x64xf32>
    %172 = arith.mulf %171, %161 : vector<192x64xf32>
    %cst_135 = arith.constant 0.254829586 : f32
    %173 = vector.broadcast %cst_135 : f32 to vector<192x64xf32>
    %174 = arith.addf %172, %173 : vector<192x64xf32>
    %175 = arith.mulf %174, %161 : vector<192x64xf32>
    %cst_136 = arith.constant 0.000000e+00 : f32
    %176 = vector.broadcast %cst_136 : f32 to vector<192x64xf32>
    %177 = arith.subf %176, %155 : vector<192x64xf32>
    %178 = arith.mulf %177, %155 : vector<192x64xf32>
    %179 = math.exp %178 : vector<192x64xf32>
    %180 = arith.mulf %175, %179 : vector<192x64xf32>
    %cst_137 = arith.constant 1.000000e+00 : f32
    %181 = vector.broadcast %cst_137 : f32 to vector<192x64xf32>
    %182 = arith.subf %181, %180 : vector<192x64xf32>
    %cst_138 = arith.constant 0.000000e+00 : f32
    %183 = vector.broadcast %cst_138 : f32 to vector<192x64xf32>
    %184 = arith.cmpf oge, %154, %183 : vector<192x64xf32>
    %cst_139 = arith.constant 0.000000e+00 : f32
    %185 = vector.broadcast %cst_139 : f32 to vector<192x64xf32>
    %186 = arith.subf %185, %182 : vector<192x64xf32>
    %187 = arith.select %184, %182, %186 : vector<192x64xi1>, vector<192x64xf32>
    %cst_140 = arith.constant 1.000000e+00 : f32
    %188 = vector.broadcast %cst_140 : f32 to vector<192x64xf32>
    %189 = arith.addf %188, %187 : vector<192x64xf32>
    %190 = arith.mulf %152, %189 : vector<192x64xf32>
    %c0_141 = arith.constant 0 : index
    %c0_142 = arith.constant 0 : index
    %191 = vector.load %arg11[%c0_141, %c0_142] : memref<192x1xf32, #tpu.memory_space<vmem>>, vector<192x1xf32>
    %192 = vector.broadcast %191 : vector<192x1xf32> to vector<192x64xf32>
    %193 = arith.mulf %190, %192 : vector<192x64xf32>
    %cst_143 = arith.constant dense<0.000000e+00> : vector<64xf32>
    %194 = vector.multi_reduction <add>, %193, %cst_143 [0] : vector<192x64xf32> to vector<64xf32>
    %195 = vector.shape_cast %194 : vector<64xf32> to vector<1x64xf32>
    %cst_144 = arith.constant 0.0069444445 : f32
    %196 = vector.broadcast %cst_144 : f32 to vector<1x64xf32>
    %197 = arith.mulf %195, %196 : vector<1x64xf32>
    %c0_145 = arith.constant 0 : index
    %c0_146 = arith.constant 0 : index
    %198 = vector.load %arg9[%c0_145, %c0_146] : memref<64x4xf32, #tpu.memory_space<vmem>>, vector<64x4xf32>
    %cst_147 = arith.constant dense<0.000000e+00> : vector<1x4xf32>
    %199 = tpu.matmul %197, %198, %cst_147 {dimension_numbers = #tpu.dot_dimension_numbers<[1], [0], [0], [1], [0, 0, 1, 1], [], []>} : vector<1x64xf32>, vector<64x4xf32>, vector<1x4xf32> -> vector<1x4xf32>
    %cst_148 = arith.constant 0.000000e+00 : f32
    %200 = vector.broadcast %cst_148 : f32 to vector<1x4xf32>
    %201 = arith.maximumf %199, %200 : vector<1x4xf32>
    %c0_149 = arith.constant 0 : index
    %c0_150 = arith.constant 0 : index
    %202 = vector.load %arg10[%c0_149, %c0_150] : memref<4x64xf32, #tpu.memory_space<vmem>>, vector<4x64xf32>
    %cst_151 = arith.constant dense<0.000000e+00> : vector<1x64xf32>
    %203 = tpu.matmul %201, %202, %cst_151 {dimension_numbers = #tpu.dot_dimension_numbers<[1], [0], [0], [1], [0, 0, 1, 1], [], []>} : vector<1x4xf32>, vector<4x64xf32>, vector<1x64xf32> -> vector<1x64xf32>
    %cst_152 = arith.constant 0.000000e+00 : f32
    %204 = vector.broadcast %cst_152 : f32 to vector<1x64xf32>
    %205 = arith.subf %204, %203 : vector<1x64xf32>
    %206 = math.exp %205 : vector<1x64xf32>
    %cst_153 = arith.constant 1.000000e+00 : f32
    %207 = vector.broadcast %cst_153 : f32 to vector<1x64xf32>
    %208 = arith.addf %207, %206 : vector<1x64xf32>
    %cst_154 = arith.constant 1.000000e+00 : f32
    %209 = vector.broadcast %cst_154 : f32 to vector<1x64xf32>
    %210 = arith.divf %209, %208 : vector<1x64xf32>
    %211 = vector.broadcast %210 : vector<1x64xf32> to vector<192x64xf32>
    %212 = arith.mulf %190, %211 : vector<192x64xf32>
    %c0_155 = arith.constant 0 : index
    %c0_156 = arith.constant 0 : index
    %213 = vector.load %arg15[%c0_155, %c0_156] : memref<192x64xf32, #tpu.memory_space<vmem>>, vector<192x64xf32>
    tpu.vector_store %arg15[%c0_155, %c0_156], %212 {strides = array<i32>} : memref<192x64xf32, #tpu.memory_space<vmem>>, vector<192x64xf32>,
    %c0_157 = arith.constant 0 : index
    %c0_158 = arith.constant 0 : index
    %214 = vector.load %arg12[%c0_157, %c0_158] : memref<16x12xf32, #tpu.memory_space<vmem>>, vector<16x12xf32>
    %c0_159 = arith.constant 0 : index
    %c0_160 = arith.constant 0 : index
    %215 = vector.load %arg15[%c0_159, %c0_160] : memref<192x64xf32, #tpu.memory_space<vmem>>, vector<12x64xf32>
    %cst_161 = arith.constant dense<0.000000e+00> : vector<16x64xf32>
    %216 = tpu.matmul %214, %215, %cst_161 {dimension_numbers = #tpu.dot_dimension_numbers<[1], [0], [0], [1], [0, 0, 1, 1], [], []>} : vector<16x12xf32>, vector<12x64xf32>, vector<16x64xf32> -> vector<16x64xf32>
    %c16_162 = arith.constant 16 : index
    %c0_163 = arith.constant 0 : index
    %217 = vector.load %arg15[%c16_162, %c0_163] : memref<192x64xf32, #tpu.memory_space<vmem>>, vector<12x64xf32>
    %cst_164 = arith.constant dense<0.000000e+00> : vector<16x64xf32>
    %218 = tpu.matmul %214, %217, %cst_164 {dimension_numbers = #tpu.dot_dimension_numbers<[1], [0], [0], [1], [0, 0, 1, 1], [], []>} : vector<16x12xf32>, vector<12x64xf32>, vector<16x64xf32> -> vector<16x64xf32>
    %c32_165 = arith.constant 32 : index
    %c0_166 = arith.constant 0 : index
    %219 = vector.load %arg15[%c32_165, %c0_166] : memref<192x64xf32, #tpu.memory_space<vmem>>, vector<12x64xf32>
    %cst_167 = arith.constant dense<0.000000e+00> : vector<16x64xf32>
    %220 = tpu.matmul %214, %219, %cst_167 {dimension_numbers = #tpu.dot_dimension_numbers<[1], [0], [0], [1], [0, 0, 1, 1], [], []>} : vector<16x12xf32>, vector<12x64xf32>, vector<16x64xf32> -> vector<16x64xf32>
    %c48 = arith.constant 48 : index
    %c0_168 = arith.constant 0 : index
    %221 = vector.load %arg15[%c48, %c0_168] : memref<192x64xf32, #tpu.memory_space<vmem>>, vector<12x64xf32>
    %cst_169 = arith.constant dense<0.000000e+00> : vector<16x64xf32>
    %222 = tpu.matmul %214, %221, %cst_169 {dimension_numbers = #tpu.dot_dimension_numbers<[1], [0], [0], [1], [0, 0, 1, 1], [], []>} : vector<16x12xf32>, vector<12x64xf32>, vector<16x64xf32> -> vector<16x64xf32>
    %c64 = arith.constant 64 : index
    %c0_170 = arith.constant 0 : index
    %223 = vector.load %arg15[%c64, %c0_170] : memref<192x64xf32, #tpu.memory_space<vmem>>, vector<12x64xf32>
    %cst_171 = arith.constant dense<0.000000e+00> : vector<16x64xf32>
    %224 = tpu.matmul %214, %223, %cst_171 {dimension_numbers = #tpu.dot_dimension_numbers<[1], [0], [0], [1], [0, 0, 1, 1], [], []>} : vector<16x12xf32>, vector<12x64xf32>, vector<16x64xf32> -> vector<16x64xf32>
    %c80 = arith.constant 80 : index
    %c0_172 = arith.constant 0 : index
    %225 = vector.load %arg15[%c80, %c0_172] : memref<192x64xf32, #tpu.memory_space<vmem>>, vector<12x64xf32>
    %cst_173 = arith.constant dense<0.000000e+00> : vector<16x64xf32>
    %226 = tpu.matmul %214, %225, %cst_173 {dimension_numbers = #tpu.dot_dimension_numbers<[1], [0], [0], [1], [0, 0, 1, 1], [], []>} : vector<16x12xf32>, vector<12x64xf32>, vector<16x64xf32> -> vector<16x64xf32>
    %c96 = arith.constant 96 : index
    %c0_174 = arith.constant 0 : index
    %227 = vector.load %arg15[%c96, %c0_174] : memref<192x64xf32, #tpu.memory_space<vmem>>, vector<12x64xf32>
    %cst_175 = arith.constant dense<0.000000e+00> : vector<16x64xf32>
    %228 = tpu.matmul %214, %227, %cst_175 {dimension_numbers = #tpu.dot_dimension_numbers<[1], [0], [0], [1], [0, 0, 1, 1], [], []>} : vector<16x12xf32>, vector<12x64xf32>, vector<16x64xf32> -> vector<16x64xf32>
    %c112 = arith.constant 112 : index
    %c0_176 = arith.constant 0 : index
    %229 = vector.load %arg15[%c112, %c0_176] : memref<192x64xf32, #tpu.memory_space<vmem>>, vector<12x64xf32>
    %cst_177 = arith.constant dense<0.000000e+00> : vector<16x64xf32>
    %230 = tpu.matmul %214, %229, %cst_177 {dimension_numbers = #tpu.dot_dimension_numbers<[1], [0], [0], [1], [0, 0, 1, 1], [], []>} : vector<16x12xf32>, vector<12x64xf32>, vector<16x64xf32> -> vector<16x64xf32>
    %c128 = arith.constant 128 : index
    %c0_178 = arith.constant 0 : index
    %231 = vector.load %arg15[%c128, %c0_178] : memref<192x64xf32, #tpu.memory_space<vmem>>, vector<12x64xf32>
    %cst_179 = arith.constant dense<0.000000e+00> : vector<16x64xf32>
    %232 = tpu.matmul %214, %231, %cst_179 {dimension_numbers = #tpu.dot_dimension_numbers<[1], [0], [0], [1], [0, 0, 1, 1], [], []>} : vector<16x12xf32>, vector<12x64xf32>, vector<16x64xf32> -> vector<16x64xf32>
    %c144 = arith.constant 144 : index
    %c0_180 = arith.constant 0 : index
    %233 = vector.load %arg15[%c144, %c0_180] : memref<192x64xf32, #tpu.memory_space<vmem>>, vector<12x64xf32>
    %cst_181 = arith.constant dense<0.000000e+00> : vector<16x64xf32>
    %234 = tpu.matmul %214, %233, %cst_181 {dimension_numbers = #tpu.dot_dimension_numbers<[1], [0], [0], [1], [0, 0, 1, 1], [], []>} : vector<16x12xf32>, vector<12x64xf32>, vector<16x64xf32> -> vector<16x64xf32>
    %c160 = arith.constant 160 : index
    %c0_182 = arith.constant 0 : index
    %235 = vector.load %arg15[%c160, %c0_182] : memref<192x64xf32, #tpu.memory_space<vmem>>, vector<12x64xf32>
    %cst_183 = arith.constant dense<0.000000e+00> : vector<16x64xf32>
    %236 = tpu.matmul %214, %235, %cst_183 {dimension_numbers = #tpu.dot_dimension_numbers<[1], [0], [0], [1], [0, 0, 1, 1], [], []>} : vector<16x12xf32>, vector<12x64xf32>, vector<16x64xf32> -> vector<16x64xf32>
    %c176 = arith.constant 176 : index
    %c0_184 = arith.constant 0 : index
    %237 = vector.load %arg15[%c176, %c0_184] : memref<192x64xf32, #tpu.memory_space<vmem>>, vector<12x64xf32>
    %cst_185 = arith.constant dense<0.000000e+00> : vector<16x64xf32>
    %238 = tpu.matmul %214, %237, %cst_185 {dimension_numbers = #tpu.dot_dimension_numbers<[1], [0], [0], [1], [0, 0, 1, 1], [], []>} : vector<16x12xf32>, vector<12x64xf32>, vector<16x64xf32> -> vector<16x64xf32>
    %c0_186 = arith.constant 0 : index
    %c0_187 = arith.constant 0 : index
    %c0_188 = arith.constant 0 : index
    %c0_189 = arith.constant 0 : index
    %239 = vector.load %arg2[%c0_186, %c0_187, %c0_188, %c0_189] : memref<1x16x16x64xf32, #tpu.memory_space<vmem>>, vector<1x16x16x64xf32>
    %240 = vector.shape_cast %239 : vector<1x16x16x64xf32> to vector<16x16x64xf32>
    %241 = vector.extract_strided_slice %240 {offsets = [0, 0, 0], sizes = [1, 16, 64], strides = [1, 1, 1]} : vector<16x16x64xf32> to vector<1x16x64xf32>
    %242 = vector.shape_cast %241 : vector<1x16x64xf32> to vector<16x64xf32>
    %243 = arith.addf %216, %242 : vector<16x64xf32>
    %c0_190 = arith.constant 0 : index
    %c0_191 = arith.constant 0 : index
    %c0_192 = arith.constant 0 : index
    %c0_193 = arith.constant 0 : index
    %244 = vector.load %arg13[%c0_190, %c0_191, %c0_192, %c0_193] : memref<1x16x16x64xf32, #tpu.memory_space<vmem>>, vector<1x1x16x64xf32>
    %245 = vector.shape_cast %244 : vector<1x1x16x64xf32> to vector<16x64xf32>
    %246 = vector.shape_cast %243 : vector<16x64xf32> to vector<1x1x16x64xf32>
    tpu.vector_store %arg13[%c0_190, %c0_191, %c0_192, %c0_193], %246 {strides = array<i32>} : memref<1x16x16x64xf32, #tpu.memory_space<vmem>>, vector<1x1x16x64xf32>,
    %cst_194 = arith.constant 0.266666681 : f32
    %247 = vector.broadcast %cst_194 : f32 to vector<16x64xf32>
    %248 = arith.mulf %247, %216 : vector<16x64xf32>
    %cst_195 = arith.constant 0.733333349 : f32
    %249 = vector.broadcast %cst_195 : f32 to vector<16x64xf32>
    %250 = arith.mulf %249, %218 : vector<16x64xf32>
    %251 = arith.addf %248, %250 : vector<16x64xf32>
    %252 = vector.extract_strided_slice %240 {offsets = [1, 0, 0], sizes = [1, 16, 64], strides = [1, 1, 1]} : vector<16x16x64xf32> to vector<1x16x64xf32>
    %253 = vector.shape_cast %252 : vector<1x16x64xf32> to vector<16x64xf32>
    %254 = arith.addf %251, %253 : vector<16x64xf32>
    %c0_196 = arith.constant 0 : index
    %c1_197 = arith.constant 1 : index
    %c0_198 = arith.constant 0 : index
    %c0_199 = arith.constant 0 : index
    %255 = vector.load %arg13[%c0_196, %c1_197, %c0_198, %c0_199] : memref<1x16x16x64xf32, #tpu.memory_space<vmem>>, vector<1x1x16x64xf32>
    %256 = vector.shape_cast %255 : vector<1x1x16x64xf32> to vector<16x64xf32>
    %257 = vector.shape_cast %254 : vector<16x64xf32> to vector<1x1x16x64xf32>
    tpu.vector_store %arg13[%c0_196, %c1_197, %c0_198, %c0_199], %257 {strides = array<i32>} : memref<1x16x16x64xf32, #tpu.memory_space<vmem>>, vector<1x1x16x64xf32>,
    %cst_200 = arith.constant 0.533333361 : f32
    %258 = vector.broadcast %cst_200 : f32 to vector<16x64xf32>
    %259 = arith.mulf %258, %218 : vector<16x64xf32>
    %cst_201 = arith.constant 0.466666669 : f32
    %260 = vector.broadcast %cst_201 : f32 to vector<16x64xf32>
    %261 = arith.mulf %260, %220 : vector<16x64xf32>
    %262 = arith.addf %259, %261 : vector<16x64xf32>
    %263 = vector.extract_strided_slice %240 {offsets = [2, 0, 0], sizes = [1, 16, 64], strides = [1, 1, 1]} : vector<16x16x64xf32> to vector<1x16x64xf32>
    %264 = vector.shape_cast %263 : vector<1x16x64xf32> to vector<16x64xf32>
    %265 = arith.addf %262, %264 : vector<16x64xf32>
    %c0_202 = arith.constant 0 : index
    %c2_203 = arith.constant 2 : index
    %c0_204 = arith.constant 0 : index
    %c0_205 = arith.constant 0 : index
    %266 = vector.load %arg13[%c0_202, %c2_203, %c0_204, %c0_205] : memref<1x16x16x64xf32, #tpu.memory_space<vmem>>, vector<1x1x16x64xf32>
    %267 = vector.shape_cast %266 : vector<1x1x16x64xf32> to vector<16x64xf32>
    %268 = vector.shape_cast %265 : vector<16x64xf32> to vector<1x1x16x64xf32>
    tpu.vector_store %arg13[%c0_202, %c2_203, %c0_204, %c0_205], %268 {strides = array<i32>} : memref<1x16x16x64xf32, #tpu.memory_space<vmem>>, vector<1x1x16x64xf32>,
    %cst_206 = arith.constant 8.000000e-01 : f32
    %269 = vector.broadcast %cst_206 : f32 to vector<16x64xf32>
    %270 = arith.mulf %269, %220 : vector<16x64xf32>
    %cst_207 = arith.constant 2.000000e-01 : f32
    %271 = vector.broadcast %cst_207 : f32 to vector<16x64xf32>
    %272 = arith.mulf %271, %222 : vector<16x64xf32>
    %273 = arith.addf %270, %272 : vector<16x64xf32>
    %274 = vector.extract_strided_slice %240 {offsets = [3, 0, 0], sizes = [1, 16, 64], strides = [1, 1, 1]} : vector<16x16x64xf32> to vector<1x16x64xf32>
    %275 = vector.shape_cast %274 : vector<1x16x64xf32> to vector<16x64xf32>
    %276 = arith.addf %273, %275 : vector<16x64xf32>
    %c0_208 = arith.constant 0 : index
    %c3_209 = arith.constant 3 : index
    %c0_210 = arith.constant 0 : index
    %c0_211 = arith.constant 0 : index
    %277 = vector.load %arg13[%c0_208, %c3_209, %c0_210, %c0_211] : memref<1x16x16x64xf32, #tpu.memory_space<vmem>>, vector<1x1x16x64xf32>
    %278 = vector.shape_cast %277 : vector<1x1x16x64xf32> to vector<16x64xf32>
    %279 = vector.shape_cast %276 : vector<16x64xf32> to vector<1x1x16x64xf32>
    tpu.vector_store %arg13[%c0_208, %c3_209, %c0_210, %c0_211], %279 {strides = array<i32>} : memref<1x16x16x64xf32, #tpu.memory_space<vmem>>, vector<1x1x16x64xf32>,
    %cst_212 = arith.constant 0.0666666701 : f32
    %280 = vector.broadcast %cst_212 : f32 to vector<16x64xf32>
    %281 = arith.mulf %280, %220 : vector<16x64xf32>
    %cst_213 = arith.constant 0.933333337 : f32
    %282 = vector.broadcast %cst_213 : f32 to vector<16x64xf32>
    %283 = arith.mulf %282, %222 : vector<16x64xf32>
    %284 = arith.addf %281, %283 : vector<16x64xf32>
    %285 = vector.extract_strided_slice %240 {offsets = [4, 0, 0], sizes = [1, 16, 64], strides = [1, 1, 1]} : vector<16x16x64xf32> to vector<1x16x64xf32>
    %286 = vector.shape_cast %285 : vector<1x16x64xf32> to vector<16x64xf32>
    %287 = arith.addf %284, %286 : vector<16x64xf32>
    %c0_214 = arith.constant 0 : index
    %c4_215 = arith.constant 4 : index
    %c0_216 = arith.constant 0 : index
    %c0_217 = arith.constant 0 : index
    %288 = vector.load %arg13[%c0_214, %c4_215, %c0_216, %c0_217] : memref<1x16x16x64xf32, #tpu.memory_space<vmem>>, vector<1x1x16x64xf32>
    %289 = vector.shape_cast %288 : vector<1x1x16x64xf32> to vector<16x64xf32>
    %290 = vector.shape_cast %287 : vector<16x64xf32> to vector<1x1x16x64xf32>
    tpu.vector_store %arg13[%c0_214, %c4_215, %c0_216, %c0_217], %290 {strides = array<i32>} : memref<1x16x16x64xf32, #tpu.memory_space<vmem>>, vector<1x1x16x64xf32>,
    %cst_218 = arith.constant 0.333333343 : f32
    %291 = vector.broadcast %cst_218 : f32 to vector<16x64xf32>
    %292 = arith.mulf %291, %222 : vector<16x64xf32>
    %cst_219 = arith.constant 0.666666686 : f32
    %293 = vector.broadcast %cst_219 : f32 to vector<16x64xf32>
    %294 = arith.mulf %293, %224 : vector<16x64xf32>
    %295 = arith.addf %292, %294 : vector<16x64xf32>
    %296 = vector.extract_strided_slice %240 {offsets = [5, 0, 0], sizes = [1, 16, 64], strides = [1, 1, 1]} : vector<16x16x64xf32> to vector<1x16x64xf32>
    %297 = vector.shape_cast %296 : vector<1x16x64xf32> to vector<16x64xf32>
    %298 = arith.addf %295, %297 : vector<16x64xf32>
    %c0_220 = arith.constant 0 : index
    %c5_221 = arith.constant 5 : index
    %c0_222 = arith.constant 0 : index
    %c0_223 = arith.constant 0 : index
    %299 = vector.load %arg13[%c0_220, %c5_221, %c0_222, %c0_223] : memref<1x16x16x64xf32, #tpu.memory_space<vmem>>, vector<1x1x16x64xf32>
    %300 = vector.shape_cast %299 : vector<1x1x16x64xf32> to vector<16x64xf32>
    %301 = vector.shape_cast %298 : vector<16x64xf32> to vector<1x1x16x64xf32>
    tpu.vector_store %arg13[%c0_220, %c5_221, %c0_222, %c0_223], %301 {strides = array<i32>} : memref<1x16x16x64xf32, #tpu.memory_space<vmem>>, vector<1x1x16x64xf32>,
    %cst_224 = arith.constant 6.000000e-01 : f32
    %302 = vector.broadcast %cst_224 : f32 to vector<16x64xf32>
    %303 = arith.mulf %302, %224 : vector<16x64xf32>
    %cst_225 = arith.constant 4.000000e-01 : f32
    %304 = vector.broadcast %cst_225 : f32 to vector<16x64xf32>
    %305 = arith.mulf %304, %226 : vector<16x64xf32>
    %306 = arith.addf %303, %305 : vector<16x64xf32>
    %307 = vector.extract_strided_slice %240 {offsets = [6, 0, 0], sizes = [1, 16, 64], strides = [1, 1, 1]} : vector<16x16x64xf32> to vector<1x16x64xf32>
    %308 = vector.shape_cast %307 : vector<1x16x64xf32> to vector<16x64xf32>
    %309 = arith.addf %306, %308 : vector<16x64xf32>
    %c0_226 = arith.constant 0 : index
    %c6_227 = arith.constant 6 : index
    %c0_228 = arith.constant 0 : index
    %c0_229 = arith.constant 0 : index
    %310 = vector.load %arg13[%c0_226, %c6_227, %c0_228, %c0_229] : memref<1x16x16x64xf32, #tpu.memory_space<vmem>>, vector<1x1x16x64xf32>
    %311 = vector.shape_cast %310 : vector<1x1x16x64xf32> to vector<16x64xf32>
    %312 = vector.shape_cast %309 : vector<16x64xf32> to vector<1x1x16x64xf32>
    tpu.vector_store %arg13[%c0_226, %c6_227, %c0_228, %c0_229], %312 {strides = array<i32>} : memref<1x16x16x64xf32, #tpu.memory_space<vmem>>, vector<1x1x16x64xf32>,
    %cst_230 = arith.constant 0.866666674 : f32
    %313 = vector.broadcast %cst_230 : f32 to vector<16x64xf32>
    %314 = arith.mulf %313, %226 : vector<16x64xf32>
    %cst_231 = arith.constant 0.13333334 : f32
    %315 = vector.broadcast %cst_231 : f32 to vector<16x64xf32>
    %316 = arith.mulf %315, %228 : vector<16x64xf32>
    %317 = arith.addf %314, %316 : vector<16x64xf32>
    %318 = vector.extract_strided_slice %240 {offsets = [7, 0, 0], sizes = [1, 16, 64], strides = [1, 1, 1]} : vector<16x16x64xf32> to vector<1x16x64xf32>
    %319 = vector.shape_cast %318 : vector<1x16x64xf32> to vector<16x64xf32>
    %320 = arith.addf %317, %319 : vector<16x64xf32>
    %c0_232 = arith.constant 0 : index
    %c7_233 = arith.constant 7 : index
    %c0_234 = arith.constant 0 : index
    %c0_235 = arith.constant 0 : index
    %321 = vector.load %arg13[%c0_232, %c7_233, %c0_234, %c0_235] : memref<1x16x16x64xf32, #tpu.memory_space<vmem>>, vector<1x1x16x64xf32>
    %322 = vector.shape_cast %321 : vector<1x1x16x64xf32> to vector<16x64xf32>
    %323 = vector.shape_cast %320 : vector<16x64xf32> to vector<1x1x16x64xf32>
    tpu.vector_store %arg13[%c0_232, %c7_233, %c0_234, %c0_235], %323 {strides = array<i32>} : memref<1x16x16x64xf32, #tpu.memory_space<vmem>>, vector<1x1x16x64xf32>,
    %cst_236 = arith.constant 0.13333334 : f32
    %324 = vector.broadcast %cst_236 : f32 to vector<16x64xf32>
    %325 = arith.mulf %324, %226 : vector<16x64xf32>
    %cst_237 = arith.constant 0.866666674 : f32
    %326 = vector.broadcast %cst_237 : f32 to vector<16x64xf32>
    %327 = arith.mulf %326, %228 : vector<16x64xf32>
    %328 = arith.addf %325, %327 : vector<16x64xf32>
    %329 = vector.extract_strided_slice %240 {offsets = [8, 0, 0], sizes = [1, 16, 64], strides = [1, 1, 1]} : vector<16x16x64xf32> to vector<1x16x64xf32>
    %330 = vector.shape_cast %329 : vector<1x16x64xf32> to vector<16x64xf32>
    %331 = arith.addf %328, %330 : vector<16x64xf32>
    %c0_238 = arith.constant 0 : index
    %c8_239 = arith.constant 8 : index
    %c0_240 = arith.constant 0 : index
    %c0_241 = arith.constant 0 : index
    %332 = vector.load %arg13[%c0_238, %c8_239, %c0_240, %c0_241] : memref<1x16x16x64xf32, #tpu.memory_space<vmem>>, vector<1x1x16x64xf32>
    %333 = vector.shape_cast %332 : vector<1x1x16x64xf32> to vector<16x64xf32>
    %334 = vector.shape_cast %331 : vector<16x64xf32> to vector<1x1x16x64xf32>
    tpu.vector_store %arg13[%c0_238, %c8_239, %c0_240, %c0_241], %334 {strides = array<i32>} : memref<1x16x16x64xf32, #tpu.memory_space<vmem>>, vector<1x1x16x64xf32>,
    %cst_242 = arith.constant 4.000000e-01 : f32
    %335 = vector.broadcast %cst_242 : f32 to vector<16x64xf32>
    %336 = arith.mulf %335, %228 : vector<16x64xf32>
    %cst_243 = arith.constant 6.000000e-01 : f32
    %337 = vector.broadcast %cst_243 : f32 to vector<16x64xf32>
    %338 = arith.mulf %337, %230 : vector<16x64xf32>
    %339 = arith.addf %336, %338 : vector<16x64xf32>
    %340 = vector.extract_strided_slice %240 {offsets = [9, 0, 0], sizes = [1, 16, 64], strides = [1, 1, 1]} : vector<16x16x64xf32> to vector<1x16x64xf32>
    %341 = vector.shape_cast %340 : vector<1x16x64xf32> to vector<16x64xf32>
    %342 = arith.addf %339, %341 : vector<16x64xf32>
    %c0_244 = arith.constant 0 : index
    %c9 = arith.constant 9 : index
    %c0_245 = arith.constant 0 : index
    %c0_246 = arith.constant 0 : index
    %343 = vector.load %arg13[%c0_244, %c9, %c0_245, %c0_246] : memref<1x16x16x64xf32, #tpu.memory_space<vmem>>, vector<1x1x16x64xf32>
    %344 = vector.shape_cast %343 : vector<1x1x16x64xf32> to vector<16x64xf32>
    %345 = vector.shape_cast %342 : vector<16x64xf32> to vector<1x1x16x64xf32>
    tpu.vector_store %arg13[%c0_244, %c9, %c0_245, %c0_246], %345 {strides = array<i32>} : memref<1x16x16x64xf32, #tpu.memory_space<vmem>>, vector<1x1x16x64xf32>,
    %cst_247 = arith.constant 0.666666686 : f32
    %346 = vector.broadcast %cst_247 : f32 to vector<16x64xf32>
    %347 = arith.mulf %346, %230 : vector<16x64xf32>
    %cst_248 = arith.constant 0.333333343 : f32
    %348 = vector.broadcast %cst_248 : f32 to vector<16x64xf32>
    %349 = arith.mulf %348, %232 : vector<16x64xf32>
    %350 = arith.addf %347, %349 : vector<16x64xf32>
    %351 = vector.extract_strided_slice %240 {offsets = [10, 0, 0], sizes = [1, 16, 64], strides = [1, 1, 1]} : vector<16x16x64xf32> to vector<1x16x64xf32>
    %352 = vector.shape_cast %351 : vector<1x16x64xf32> to vector<16x64xf32>
    %353 = arith.addf %350, %352 : vector<16x64xf32>
    %c0_249 = arith.constant 0 : index
    %c10 = arith.constant 10 : index
    %c0_250 = arith.constant 0 : index
    %c0_251 = arith.constant 0 : index
    %354 = vector.load %arg13[%c0_249, %c10, %c0_250, %c0_251] : memref<1x16x16x64xf32, #tpu.memory_space<vmem>>, vector<1x1x16x64xf32>
    %355 = vector.shape_cast %354 : vector<1x1x16x64xf32> to vector<16x64xf32>
    %356 = vector.shape_cast %353 : vector<16x64xf32> to vector<1x1x16x64xf32>
    tpu.vector_store %arg13[%c0_249, %c10, %c0_250, %c0_251], %356 {strides = array<i32>} : memref<1x16x16x64xf32, #tpu.memory_space<vmem>>, vector<1x1x16x64xf32>,
    %cst_252 = arith.constant 0.933333337 : f32
    %357 = vector.broadcast %cst_252 : f32 to vector<16x64xf32>
    %358 = arith.mulf %357, %232 : vector<16x64xf32>
    %cst_253 = arith.constant 0.0666666701 : f32
    %359 = vector.broadcast %cst_253 : f32 to vector<16x64xf32>
    %360 = arith.mulf %359, %234 : vector<16x64xf32>
    %361 = arith.addf %358, %360 : vector<16x64xf32>
    %362 = vector.extract_strided_slice %240 {offsets = [11, 0, 0], sizes = [1, 16, 64], strides = [1, 1, 1]} : vector<16x16x64xf32> to vector<1x16x64xf32>
    %363 = vector.shape_cast %362 : vector<1x16x64xf32> to vector<16x64xf32>
    %364 = arith.addf %361, %363 : vector<16x64xf32>
    %c0_254 = arith.constant 0 : index
    %c11 = arith.constant 11 : index
    %c0_255 = arith.constant 0 : index
    %c0_256 = arith.constant 0 : index
    %365 = vector.load %arg13[%c0_254, %c11, %c0_255, %c0_256] : memref<1x16x16x64xf32, #tpu.memory_space<vmem>>, vector<1x1x16x64xf32>
    %366 = vector.shape_cast %365 : vector<1x1x16x64xf32> to vector<16x64xf32>
    %367 = vector.shape_cast %364 : vector<16x64xf32> to vector<1x1x16x64xf32>
    tpu.vector_store %arg13[%c0_254, %c11, %c0_255, %c0_256], %367 {strides = array<i32>} : memref<1x16x16x64xf32, #tpu.memory_space<vmem>>, vector<1x1x16x64xf32>,
    %cst_257 = arith.constant 2.000000e-01 : f32
    %368 = vector.broadcast %cst_257 : f32 to vector<16x64xf32>
    %369 = arith.mulf %368, %232 : vector<16x64xf32>
    %cst_258 = arith.constant 8.000000e-01 : f32
    %370 = vector.broadcast %cst_258 : f32 to vector<16x64xf32>
    %371 = arith.mulf %370, %234 : vector<16x64xf32>
    %372 = arith.addf %369, %371 : vector<16x64xf32>
    %373 = vector.extract_strided_slice %240 {offsets = [12, 0, 0], sizes = [1, 16, 64], strides = [1, 1, 1]} : vector<16x16x64xf32> to vector<1x16x64xf32>
    %374 = vector.shape_cast %373 : vector<1x16x64xf32> to vector<16x64xf32>
    %375 = arith.addf %372, %374 : vector<16x64xf32>
    %c0_259 = arith.constant 0 : index
    %c12 = arith.constant 12 : index
    %c0_260 = arith.constant 0 : index
    %c0_261 = arith.constant 0 : index
    %376 = vector.load %arg13[%c0_259, %c12, %c0_260, %c0_261] : memref<1x16x16x64xf32, #tpu.memory_space<vmem>>, vector<1x1x16x64xf32>
    %377 = vector.shape_cast %376 : vector<1x1x16x64xf32> to vector<16x64xf32>
    %378 = vector.shape_cast %375 : vector<16x64xf32> to vector<1x1x16x64xf32>
    tpu.vector_store %arg13[%c0_259, %c12, %c0_260, %c0_261], %378 {strides = array<i32>} : memref<1x16x16x64xf32, #tpu.memory_space<vmem>>, vector<1x1x16x64xf32>,
    %cst_262 = arith.constant 0.466666669 : f32
    %379 = vector.broadcast %cst_262 : f32 to vector<16x64xf32>
    %380 = arith.mulf %379, %234 : vector<16x64xf32>
    %cst_263 = arith.constant 0.533333361 : f32
    %381 = vector.broadcast %cst_263 : f32 to vector<16x64xf32>
    %382 = arith.mulf %381, %236 : vector<16x64xf32>
    %383 = arith.addf %380, %382 : vector<16x64xf32>
    %384 = vector.extract_strided_slice %240 {offsets = [13, 0, 0], sizes = [1, 16, 64], strides = [1, 1, 1]} : vector<16x16x64xf32> to vector<1x16x64xf32>
    %385 = vector.shape_cast %384 : vector<1x16x64xf32> to vector<16x64xf32>
    %386 = arith.addf %383, %385 : vector<16x64xf32>
    %c0_264 = arith.constant 0 : index
    %c13 = arith.constant 13 : index
    %c0_265 = arith.constant 0 : index
    %c0_266 = arith.constant 0 : index
    %387 = vector.load %arg13[%c0_264, %c13, %c0_265, %c0_266] : memref<1x16x16x64xf32, #tpu.memory_space<vmem>>, vector<1x1x16x64xf32>
    %388 = vector.shape_cast %387 : vector<1x1x16x64xf32> to vector<16x64xf32>
    %389 = vector.shape_cast %386 : vector<16x64xf32> to vector<1x1x16x64xf32>
    tpu.vector_store %arg13[%c0_264, %c13, %c0_265, %c0_266], %389 {strides = array<i32>} : memref<1x16x16x64xf32, #tpu.memory_space<vmem>>, vector<1x1x16x64xf32>,
    %cst_267 = arith.constant 0.733333349 : f32
    %390 = vector.broadcast %cst_267 : f32 to vector<16x64xf32>
    %391 = arith.mulf %390, %236 : vector<16x64xf32>
    %cst_268 = arith.constant 0.266666681 : f32
    %392 = vector.broadcast %cst_268 : f32 to vector<16x64xf32>
    %393 = arith.mulf %392, %238 : vector<16x64xf32>
    %394 = arith.addf %391, %393 : vector<16x64xf32>
    %395 = vector.extract_strided_slice %240 {offsets = [14, 0, 0], sizes = [1, 16, 64], strides = [1, 1, 1]} : vector<16x16x64xf32> to vector<1x16x64xf32>
    %396 = vector.shape_cast %395 : vector<1x16x64xf32> to vector<16x64xf32>
    %397 = arith.addf %394, %396 : vector<16x64xf32>
    %c0_269 = arith.constant 0 : index
    %c14 = arith.constant 14 : index
    %c0_270 = arith.constant 0 : index
    %c0_271 = arith.constant 0 : index
    %398 = vector.load %arg13[%c0_269, %c14, %c0_270, %c0_271] : memref<1x16x16x64xf32, #tpu.memory_space<vmem>>, vector<1x1x16x64xf32>
    %399 = vector.shape_cast %398 : vector<1x1x16x64xf32> to vector<16x64xf32>
    %400 = vector.shape_cast %397 : vector<16x64xf32> to vector<1x1x16x64xf32>
    tpu.vector_store %arg13[%c0_269, %c14, %c0_270, %c0_271], %400 {strides = array<i32>} : memref<1x16x16x64xf32, #tpu.memory_space<vmem>>, vector<1x1x16x64xf32>,
    %401 = vector.extract_strided_slice %240 {offsets = [15, 0, 0], sizes = [1, 16, 64], strides = [1, 1, 1]} : vector<16x16x64xf32> to vector<1x16x64xf32>
    %402 = vector.shape_cast %401 : vector<1x16x64xf32> to vector<16x64xf32>
    %403 = arith.addf %238, %402 : vector<16x64xf32>
    %c0_272 = arith.constant 0 : index
    %c15 = arith.constant 15 : index
    %c0_273 = arith.constant 0 : index
    %c0_274 = arith.constant 0 : index
    %404 = vector.load %arg13[%c0_272, %c15, %c0_273, %c0_274] : memref<1x16x16x64xf32, #tpu.memory_space<vmem>>, vector<1x1x16x64xf32>
    %405 = vector.shape_cast %404 : vector<1x1x16x64xf32> to vector<16x64xf32>
    %406 = vector.shape_cast %403 : vector<16x64xf32> to vector<1x1x16x64xf32>
    tpu.vector_store %arg13[%c0_272, %c15, %c0_273, %c0_274], %406 {strides = array<i32>} : memref<1x16x16x64xf32, #tpu.memory_space<vmem>>, vector<1x1x16x64xf32>,
    return
  }
  func.func @transform_0(%arg0: i32) -> (i32, i32, i32) {
    %c0_i32 = arith.constant 0 : i32
    %c0_i32_0 = arith.constant 0 : i32
    %c0_i32_1 = arith.constant 0 : i32
    return %arg0, %c0_i32, %c0_i32_0 : i32, i32, i32
  }
  func.func @transform_1(%arg0: i32) -> (i32, i32, i32, i32) {
    %c0_i32 = arith.constant 0 : i32
    %c0_i32_0 = arith.constant 0 : i32
    %c0_i32_1 = arith.constant 0 : i32
    %c0_i32_2 = arith.constant 0 : i32
    return %arg0, %c0_i32, %c0_i32_0, %c0_i32_1 : i32, i32, i32, i32
  }
  func.func @transform_2(%arg0: i32) -> (i32, i32, i32) {
    %c0_i32 = arith.constant 0 : i32
    %c0_i32_0 = arith.constant 0 : i32
    %c0_i32_1 = arith.constant 0 : i32
    %c0_i32_2 = arith.constant 0 : i32
    return %c0_i32, %c0_i32_0, %c0_i32_1 : i32, i32, i32
  }
  func.func @transform_3(%arg0: i32) -> (i32, i32) {
    %c0_i32 = arith.constant 0 : i32
    %c0_i32_0 = arith.constant 0 : i32
    %c0_i32_1 = arith.constant 0 : i32
    return %c0_i32, %c0_i32_0 : i32, i32
  }
  func.func @transform_4(%arg0: i32) -> (i32, i32) {
    %c0_i32 = arith.constant 0 : i32
    %c0_i32_0 = arith.constant 0 : i32
    %c0_i32_1 = arith.constant 0 : i32
    return %c0_i32, %c0_i32_0 : i32, i32
  }
  func.func @transform_5(%arg0: i32) -> (i32, i32, i32) {
    %c0_i32 = arith.constant 0 : i32
    %c0_i32_0 = arith.constant 0 : i32
    %c0_i32_1 = arith.constant 0 : i32
    %c0_i32_2 = arith.constant 0 : i32
    return %c0_i32, %c0_i32_0, %c0_i32_1 : i32, i32, i32
  }
  func.func @transform_6(%arg0: i32) -> (i32, i32) {
    %c0_i32 = arith.constant 0 : i32
    %c0_i32_0 = arith.constant 0 : i32
    %c0_i32_1 = arith.constant 0 : i32
    return %c0_i32, %c0_i32_0 : i32, i32
  }
  func.func @transform_7(%arg0: i32) -> (i32, i32) {
    %c0_i32 = arith.constant 0 : i32
    %c0_i32_0 = arith.constant 0 : i32
    %c0_i32_1 = arith.constant 0 : i32
    return %c0_i32, %c0_i32_0 : i32, i32
  }
  func.func @transform_8(%arg0: i32) -> (i32, i32) {
    %c0_i32 = arith.constant 0 : i32
    %c0_i32_0 = arith.constant 0 : i32
    %c0_i32_1 = arith.constant 0 : i32
    return %c0_i32, %c0_i32_0 : i32, i32
  }
  func.func @transform_9(%arg0: i32) -> (i32, i32) {
    %c0_i32 = arith.constant 0 : i32
    %c0_i32_0 = arith.constant 0 : i32
    %c0_i32_1 = arith.constant 0 : i32
    return %c0_i32, %c0_i32_0 : i32, i32
  }
  func.func @transform_10(%arg0: i32) -> (i32, i32) {
    %c0_i32 = arith.constant 0 : i32
    %c0_i32_0 = arith.constant 0 : i32
    %c0_i32_1 = arith.constant 0 : i32
    return %c0_i32, %c0_i32_0 : i32, i32
  }
  func.func @transform_11(%arg0: i32) -> (i32, i32) {
    %c0_i32 = arith.constant 0 : i32
    %c0_i32_0 = arith.constant 0 : i32
    %c0_i32_1 = arith.constant 0 : i32
    return %c0_i32, %c0_i32_0 : i32, i32
  }
  func.func @transform_12(%arg0: i32) -> (i32, i32, i32, i32) {
    %c0_i32 = arith.constant 0 : i32
    %c0_i32_0 = arith.constant 0 : i32
    %c0_i32_1 = arith.constant 0 : i32
    %c0_i32_2 = arith.constant 0 : i32
    return %arg0, %c0_i32, %c0_i32_0, %c0_i32_1 : i32, i32, i32, i32
  }
}

</mosaic_0001>

<llo_original>
// kernel: residual_block_forward.1
$region0: #{residual_block_forward.1}
  #allocation0 [shape = 'u32[]', space=smem, size = 0x4, offset = 0x4, fixed_abs, tag = 'smem constant byte address 0x4 - core index']
  #allocation1 [shape = 'u32[144,128]{1,0:T(1,128)}', space=vmem, size = 0x12000, scoped, tag = 'internal scratch']
  #allocation2 [shape = 'bf16[232,64]{1,0:T(8,128)(2,1)}', space=vmem, size = 0xe800, scoped, tag = 'scratch operand']
  #allocation3 [shape = 'f32[192,64]{1,0:T(8,128)}', space=vmem, size = 0x18000, scoped, tag = 'scratch operand']
  %s0 = inlined_call_operand.vmem [shape: bf16[2,272,64], index: 0, kind: input, shape index: {}]
  %s1 = inlined_call_operand.vmem [shape: f32[2,16,16,64], index: 1, kind: input, shape index: {}, may-alias: {1,12}]
  %s2 = inlined_call_operand.vmem [shape: bf16[9,64,64], index: 2, kind: input, shape index: {}]
  %s3 = inlined_call_operand.vmem [shape: f32[1,64], index: 3, kind: input, shape index: {}]
  %s4 = inlined_call_operand.vmem [shape: f32[1,64], index: 4, kind: input, shape index: {}]
  %s5 = inlined_call_operand.vmem [shape: bf16[9,64,64], index: 5, kind: input, shape index: {}]
  %s6 = inlined_call_operand.vmem [shape: f32[1,64], index: 6, kind: input, shape index: {}]
  %s7 = inlined_call_operand.vmem [shape: f32[1,64], index: 7, kind: input, shape index: {}]
  %s8 = inlined_call_operand.vmem [shape: f32[64,4], index: 8, kind: input, shape index: {}]
  %s9 = inlined_call_operand.vmem [shape: f32[4,64], index: 9, kind: input, shape index: {}]
  %s10 = inlined_call_operand.vmem [shape: f32[192,1], index: 10, kind: input, shape index: {}]
  %s11 = inlined_call_operand.vmem [shape: f32[16,12], index: 11, kind: input, shape index: {}]
  %s12 = inlined_call_operand.vmem [shape: f32[2,16,16,64], index: 12, kind: output, shape index: {}, may-alias: {1,12}]
  %s13 = sld [smem:[#allocation0]]
  $region81: #{residual_block_forward.1} parent=0
    _
  %s15 = ssub.s32 1, %s13
  %s16 = scalar_select 0, %s15, %s13
  loop: start=0, step=1, limit=4
  $region2: #{residual_block_forward.1} parent=0 // loop_pre_header
    _
  $region3: #{residual_block_forward.1} parent=0 // loop_header
    %s18 = sphi 0, %s22
    %p19 = scmp.ge.s32.totalorder %s18, 4
    %s28 = sphi 0, %s30
    %s31 = sphi 0, %s28
    %s32 = sphi 0, %s31
    %s48 = sphi 0, %s32
    %s54 = sphi 0, %s56
    %s57 = sphi 0, %s54
    %s58 = sphi 0, %s57
    %s74 = sphi 0, %s58
    %s78 = sphi 0, %s78
    %s80 = sphi 0, %s78
    %s81 = sphi 0, %s80
    %s95 = sphi 0, %s81
    %s99 = sphi 0, %s99
    %s101 = sphi 0, %s99
    %s102 = sphi 0, %s101
    %s116 = sphi 0, %s102
    %s120 = sphi 0, %s120
    %s122 = sphi 0, %s120
    %s123 = sphi 0, %s122
    %s137 = sphi 0, %s123
    %s141 = sphi 0, %s141
    %s143 = sphi 0, %s141
    %s144 = sphi 0, %s143
    %s158 = sphi 0, %s144
    %s162 = sphi 0, %s162
    %s164 = sphi 0, %s162
    %s165 = sphi 0, %s164
    %s179 = sphi 0, %s165
    %s183 = sphi 0, %s183
    %s185 = sphi 0, %s183
    %s186 = sphi 0, %s185
    %s200 = sphi 0, %s186
    %s204 = sphi 0, %s204
    %s206 = sphi 0, %s204
    %s207 = sphi 0, %s206
    %s221 = sphi 0, %s207
    %s225 = sphi 0, %s225
    %s227 = sphi 0, %s225
    %s228 = sphi 0, %s227
    %s242 = sphi 0, %s228
    %s246 = sphi 0, %s246
    %s248 = sphi 0, %s246
    %s249 = sphi 0, %s248
    %s263 = sphi 0, %s249
    %s267 = sphi 0, %s267
    %s269 = sphi 0, %s267
    %s270 = sphi 0, %s269
    %s284 = sphi 0, %s270
    %s290 = sphi 0, %s292
    %s293 = sphi 0, %s290
    %s294 = sphi 0, %s293
    %s310 = sphi 0, %s294
  $region4: #{residual_block_forward.1} parent=0 // loop_header_branch
    %21 = sbr.rel (%p19) target = $region8
  $region5: #{residual_block_forward.1} parent=0 // loop_body
    %s23 = ssub.s32 %s18, 1
    %s24 = ssub.s32 %s18, 2
    %s25 = sadd.s32 %s18, 1
    %s26 = ssub.s32 %s18, %s25
    %p27 = scmp.eq.s32.totalorder %s26, 0
    %s29 = sadd.s32 %s28, 1
    %s30 = scalar_select %p27, %s28, %s29
    %p33 = pneg %p27
    %p34 = scmp.eq.s32.totalorder %s18, 1
    %p35 = por %p33, %p34
    %p36 = scmp.ne.s32.totalorder %s28, %s31
    %p37 = scmp.eq.s32.totalorder %s18, 0
    %p38 = por %p36, %p37
    %p39 = scmp.ne.s32.totalorder %s28, %s31
    %p40 = scmp.eq.s32.totalorder %s23, 1
    %p41 = por %p39, %p40
    %p42 = scmp.ne.s32.totalorder %s31, %s32
    %p43 = scmp.eq.s32.totalorder %s23, 0
    %p44 = por %p42, %p43
    %p45 = scmp.ne.s32.totalorder %s31, %s32
    %p46 = scmp.eq.s32.totalorder %s24, 1
    %p47 = por %p45, %p46
    %p49 = scmp.ne.s32.totalorder %s32, %s48
    %p50 = scmp.eq.s32.totalorder %s24, 0
    %p51 = por %p49, %p50
    %s52 = ssub.s32 %s18, %s25
    %p53 = scmp.eq.s32.totalorder %s52, 0
    %s55 = sadd.s32 %s54, 1
    %s56 = scalar_select %p53, %s54, %s55
    %p59 = pneg %p53
    %p60 = scmp.eq.s32.totalorder %s18, 1
    %p61 = por %p59, %p60
    %p62 = scmp.ne.s32.totalorder %s54, %s57
    %p63 = scmp.eq.s32.totalorder %s18, 0
    %p64 = por %p62, %p63
    %p65 = scmp.ne.s32.totalorder %s54, %s57
    %p66 = scmp.eq.s32.totalorder %s23, 1
    %p67 = por %p65, %p66
    %p68 = scmp.ne.s32.totalorder %s57, %s58
    %p69 = scmp.eq.s32.totalorder %s23, 0
    %p70 = por %p68, %p69
    %p71 = scmp.ne.s32.totalorder %s57, %s58
    %p72 = scmp.eq.s32.totalorder %s24, 1
    %p73 = por %p71, %p72
    %p75 = scmp.ne.s32.totalorder %s58, %s74
    %p76 = scmp.eq.s32.totalorder %s24, 0
    %p77 = por %p75, %p76
    %s79 = sadd.s32 %s78, 1
    %p82 = scmp.eq.s32.totalorder %s18, 1
    %p83 = scmp.ne.s32.totalorder %s78, %s80
    %p84 = scmp.eq.s32.totalorder %s18, 0
    %p85 = por %p83, %p84
    %p86 = scmp.ne.s32.totalorder %s78, %s80
    %p87 = scmp.eq.s32.totalorder %s23, 1
    %p88 = por %p86, %p87
    %p89 = scmp.ne.s32.totalorder %s80, %s81
    %p90 = scmp.eq.s32.totalorder %s23, 0
    %p91 = por %p89, %p90
    %p92 = scmp.ne.s32.totalorder %s80, %s81
    %p93 = scmp.eq.s32.totalorder %s24, 1
    %p94 = por %p92, %p93
    %p96 = scmp.ne.s32.totalorder %s81, %s95
    %p97 = scmp.eq.s32.totalorder %s24, 0
    %p98 = por %p96, %p97
    %s100 = sadd.s32 %s99, 1
    %p103 = scmp.eq.s32.totalorder %s18, 1
    %p104 = scmp.ne.s32.totalorder %s99, %s101
    %p105 = scmp.eq.s32.totalorder %s18, 0
    %p106 = por %p104, %p105
    %p107 = scmp.ne.s32.totalorder %s99, %s101
    %p108 = scmp.eq.s32.totalorder %s23, 1
    %p109 = por %p107, %p108
    %p110 = scmp.ne.s32.totalorder %s101, %s102
    %p111 = scmp.eq.s32.totalorder %s23, 0
    %p112 = por %p110, %p111
    %p113 = scmp.ne.s32.totalorder %s101, %s102
    %p114 = scmp.eq.s32.totalorder %s24, 1
    %p115 = por %p113, %p114
    %p117 = scmp.ne.s32.totalorder %s102, %s116
    %p118 = scmp.eq.s32.totalorder %s24, 0
    %p119 = por %p117, %p118
    %s121 = sadd.s32 %s120, 1
    %p124 = scmp.eq.s32.totalorder %s18, 1
    %p125 = scmp.ne.s32.totalorder %s120, %s122
    %p126 = scmp.eq.s32.totalorder %s18, 0
    %p127 = por %p125, %p126
    %p128 = scmp.ne.s32.totalorder %s120, %s122
    %p129 = scmp.eq.s32.totalorder %s23, 1
    %p130 = por %p128, %p129
    %p131 = scmp.ne.s32.totalorder %s122, %s123
    %p132 = scmp.eq.s32.totalorder %s23, 0
    %p133 = por %p131, %p132
    %p134 = scmp.ne.s32.totalorder %s122, %s123
    %p135 = scmp.eq.s32.totalorder %s24, 1
    %p136 = por %p134, %p135
    %p138 = scmp.ne.s32.totalorder %s123, %s137
    %p139 = scmp.eq.s32.totalorder %s24, 0
    %p140 = por %p138, %p139
    %s142 = sadd.s32 %s141, 1
    %p145 = scmp.eq.s32.totalorder %s18, 1
    %p146 = scmp.ne.s32.totalorder %s141, %s143
    %p147 = scmp.eq.s32.totalorder %s18, 0
    %p148 = por %p146, %p147
    %p149 = scmp.ne.s32.totalorder %s141, %s143
    %p150 = scmp.eq.s32.totalorder %s23, 1
    %p151 = por %p149, %p150
    %p152 = scmp.ne.s32.totalorder %s143, %s144
    %p153 = scmp.eq.s32.totalorder %s23, 0
    %p154 = por %p152, %p153
    %p155 = scmp.ne.s32.totalorder %s143, %s144
    %p156 = scmp.eq.s32.totalorder %s24, 1
    %p157 = por %p155, %p156
    %p159 = scmp.ne.s32.totalorder %s144, %s158
    %p160 = scmp.eq.s32.totalorder %s24, 0
    %p161 = por %p159, %p160
    %s163 = sadd.s32 %s162, 1
    %p166 = scmp.eq.s32.totalorder %s18, 1
    %p167 = scmp.ne.s32.totalorder %s162, %s164
    %p168 = scmp.eq.s32.totalorder %s18, 0
    %p169 = por %p167, %p168
    %p170 = scmp.ne.s32.totalorder %s162, %s164
    %p171 = scmp.eq.s32.totalorder %s23, 1
    %p172 = por %p170, %p171
    %p173 = scmp.ne.s32.totalorder %s164, %s165
    %p174 = scmp.eq.s32.totalorder %s23, 0
    %p175 = por %p173, %p174
    %p176 = scmp.ne.s32.totalorder %s164, %s165
    %p177 = scmp.eq.s32.totalorder %s24, 1
    %p178 = por %p176, %p177
    %p180 = scmp.ne.s32.totalorder %s165, %s179
    %p181 = scmp.eq.s32.totalorder %s24, 0
    %p182 = por %p180, %p181
    %s184 = sadd.s32 %s183, 1
    %p187 = scmp.eq.s32.totalorder %s18, 1
    %p188 = scmp.ne.s32.totalorder %s183, %s185
    %p189 = scmp.eq.s32.totalorder %s18, 0
    %p190 = por %p188, %p189
    %p191 = scmp.ne.s32.totalorder %s183, %s185
    %p192 = scmp.eq.s32.totalorder %s23, 1
    %p193 = por %p191, %p192
    %p194 = scmp.ne.s32.totalorder %s185, %s186
    %p195 = scmp.eq.s32.totalorder %s23, 0
    %p196 = por %p194, %p195
    %p197 = scmp.ne.s32.totalorder %s185, %s186
    %p198 = scmp.eq.s32.totalorder %s24, 1
    %p199 = por %p197, %p198
    %p201 = scmp.ne.s32.totalorder %s186, %s200
    %p202 = scmp.eq.s32.totalorder %s24, 0
    %p203 = por %p201, %p202
    %s205 = sadd.s32 %s204, 1
    %p208 = scmp.eq.s32.totalorder %s18, 1
    %p209 = scmp.ne.s32.totalorder %s204, %s206
    %p210 = scmp.eq.s32.totalorder %s18, 0
    %p211 = por %p209, %p210
    %p212 = scmp.ne.s32.totalorder %s204, %s206
    %p213 = scmp.eq.s32.totalorder %s23, 1
    %p214 = por %p212, %p213
    %p215 = scmp.ne.s32.totalorder %s206, %s207
    %p216 = scmp.eq.s32.totalorder %s23, 0
    %p217 = por %p215, %p216
    %p218 = scmp.ne.s32.totalorder %s206, %s207
    %p219 = scmp.eq.s32.totalorder %s24, 1
    %p220 = por %p218, %p219
    %p222 = scmp.ne.s32.totalorder %s207, %s221
    %p223 = scmp.eq.s32.totalorder %s24, 0
    %p224 = por %p222, %p223
    %s226 = sadd.s32 %s225, 1
    %p229 = scmp.eq.s32.totalorder %s18, 1
    %p230 = scmp.ne.s32.totalorder %s225, %s227
    %p231 = scmp.eq.s32.totalorder %s18, 0
    %p232 = por %p230, %p231
    %p233 = scmp.ne.s32.totalorder %s225, %s227
    %p234 = scmp.eq.s32.totalorder %s23, 1
    %p235 = por %p233, %p234
    %p236 = scmp.ne.s32.totalorder %s227, %s228
    %p237 = scmp.eq.s32.totalorder %s23, 0
    %p238 = por %p236, %p237
    %p239 = scmp.ne.s32.totalorder %s227, %s228
    %p240 = scmp.eq.s32.totalorder %s24, 1
    %p241 = por %p239, %p240
    %p243 = scmp.ne.s32.totalorder %s228, %s242
    %p244 = scmp.eq.s32.totalorder %s24, 0
    %p245 = por %p243, %p244
    %s247 = sadd.s32 %s246, 1
    %p250 = scmp.eq.s32.totalorder %s18, 1
    %p251 = scmp.ne.s32.totalorder %s246, %s248
    %p252 = scmp.eq.s32.totalorder %s18, 0
    %p253 = por %p251, %p252
    %p254 = scmp.ne.s32.totalorder %s246, %s248
    %p255 = scmp.eq.s32.totalorder %s23, 1
    %p256 = por %p254, %p255
    %p257 = scmp.ne.s32.totalorder %s248, %s249
    %p258 = scmp.eq.s32.totalorder %s23, 0
    %p259 = por %p257, %p258
    %p260 = scmp.ne.s32.totalorder %s248, %s249
    %p261 = scmp.eq.s32.totalorder %s24, 1
    %p262 = por %p260, %p261
    %p264 = scmp.ne.s32.totalorder %s249, %s263
    %p265 = scmp.eq.s32.totalorder %s24, 0
    %p266 = por %p264, %p265
    %s268 = sadd.s32 %s267, 1
    %p271 = scmp.eq.s32.totalorder %s18, 1
    %p272 = scmp.ne.s32.totalorder %s267, %s269
    %p273 = scmp.eq.s32.totalorder %s18, 0
    %p274 = por %p272, %p273
    %p275 = scmp.ne.s32.totalorder %s267, %s269
    %p276 = scmp.eq.s32.totalorder %s23, 1
    %p277 = por %p275, %p276
    %p278 = scmp.ne.s32.totalorder %s269, %s270
    %p279 = scmp.eq.s32.totalorder %s23, 0
    %p280 = por %p278, %p279
    %p281 = scmp.ne.s32.totalorder %s269, %s270
    %p282 = scmp.eq.s32.totalorder %s24, 1
    %p283 = por %p281, %p282
    %p285 = scmp.ne.s32.totalorder %s270, %s284
    %p286 = scmp.eq.s32.totalorder %s24, 0
    %p287 = por %p285, %p286
    %s288 = ssub.s32 %s18, %s25
    %p289 = scmp.eq.s32.totalorder %s288, 0
    %s291 = sadd.s32 %s290, 1
    %s292 = scalar_select %p289, %s290, %s291
    %p295 = pneg %p289
    %p296 = scmp.eq.s32.totalorder %s18, 1
    %p297 = por %p295, %p296
    %p298 = scmp.ne.s32.totalorder %s290, %s293
    %p299 = scmp.eq.s32.totalorder %s18, 0
    %p300 = por %p298, %p299
    %p301 = scmp.ne.s32.totalorder %s290, %s293
    %p302 = scmp.eq.s32.totalorder %s23, 1
    %p303 = por %p301, %p302
    %p304 = scmp.ne.s32.totalorder %s293, %s294
    %p305 = scmp.eq.s32.totalorder %s23, 0
    %p306 = por %p304, %p305
    %p307 = scmp.ne.s32.totalorder %s293, %s294
    %p308 = scmp.eq.s32.totalorder %s24, 1
    %p309 = por %p307, %p308
    %p311 = scmp.ne.s32.totalorder %s294, %s310
    %p312 = scmp.eq.s32.totalorder %s24, 0
    %p313 = por %p311, %p312
    %p314 = scmp.le.s32.totalorder 1, %s18
    %p315 = scmp.lt.s32.totalorder %s18, 3
    %p316 = pnand %p314, %p315
    %p317 = pneg %p316
    // Predicated region
    $region9: #{residual_block_forward.1} parent=5 // pred_check
      _
    $region10: #{residual_block_forward.1} parent=5 // pred_check_branch
      %319 = sbr.rel (%p316) target = $region12
    $region11: #{residual_block_forward.1} parent=5 // pred_region
      %s320 = ssub.s32 %s18, 1
      // Predicated region
      $region13: #{residual_block_forward.1} parent=11 // pred_check
        %p321 = pneg %p91
      $region14: #{residual_block_forward.1} parent=11 // pred_check_branch
        %323 = sbr.rel (%p321) target = $region16
      $region15: #{residual_block_forward.1} parent=11 // pred_region
        _
      $region16: #{residual_block_forward.1} parent=11 // pred_fallthru
        _
      // Predicated region
      $region17: #{residual_block_forward.1} parent=11 // pred_check
        %p324 = pneg %p112
      $region18: #{residual_block_forward.1} parent=11 // pred_check_branch
        %326 = sbr.rel (%p324) target = $region20
      $region19: #{residual_block_forward.1} parent=11 // pred_region
        _
      $region20: #{residual_block_forward.1} parent=11 // pred_fallthru
        _
      // Predicated region
      $region21: #{residual_block_forward.1} parent=11 // pred_check
        %p327 = pneg %p133
      $region22: #{residual_block_forward.1} parent=11 // pred_check_branch
        %329 = sbr.rel (%p327) target = $region24
      $region23: #{residual_block_forward.1} parent=11 // pred_region
        _
      $region24: #{residual_block_forward.1} parent=11 // pred_fallthru
        _
      // Predicated region
      $region25: #{residual_block_forward.1} parent=11 // pred_check
        %p330 = pneg %p154
      $region26: #{residual_block_forward.1} parent=11 // pred_check_branch
        %332 = sbr.rel (%p330) target = $region28
      $region27: #{residual_block_forward.1} parent=11 // pred_region
        _
      $region28: #{residual_block_forward.1} parent=11 // pred_fallthru
        _
      // Predicated region
      $region29: #{residual_block_forward.1} parent=11 // pred_check
        %p333 = pneg %p175
      $region30: #{residual_block_forward.1} parent=11 // pred_check_branch
        %335 = sbr.rel (%p333) target = $region32
      $region31: #{residual_block_forward.1} parent=11 // pred_region
        _
      $region32: #{residual_block_forward.1} parent=11 // pred_fallthru
        _
      // Predicated region
      $region33: #{residual_block_forward.1} parent=11 // pred_check
        %p336 = pneg %p196
      $region34: #{residual_block_forward.1} parent=11 // pred_check_branch
        %338 = sbr.rel (%p336) target = $region36
      $region35: #{residual_block_forward.1} parent=11 // pred_region
        _
      $region36: #{residual_block_forward.1} parent=11 // pred_fallthru
        _
      // Predicated region
      $region37: #{residual_block_forward.1} parent=11 // pred_check
        %p339 = pneg %p217
      $region38: #{residual_block_forward.1} parent=11 // pred_check_branch
        %341 = sbr.rel (%p339) target = $region40
      $region39: #{residual_block_forward.1} parent=11 // pred_region
        _
      $region40: #{residual_block_forward.1} parent=11 // pred_fallthru
        _
      // Predicated region
      $region41: #{residual_block_forward.1} parent=11 // pred_check
        %p342 = pneg %p238
      $region42: #{residual_block_forward.1} parent=11 // pred_check_branch
        %344 = sbr.rel (%p342) target = $region44
      $region43: #{residual_block_forward.1} parent=11 // pred_region
        _
      $region44: #{residual_block_forward.1} parent=11 // pred_fallthru
        _
      // Predicated region
      $region45: #{residual_block_forward.1} parent=11 // pred_check
        %p345 = pneg %p259
      $region46: #{residual_block_forward.1} parent=11 // pred_check_branch
        %347 = sbr.rel (%p345) target = $region48
      $region47: #{residual_block_forward.1} parent=11 // pred_region
        _
      $region48: #{residual_block_forward.1} parent=11 // pred_fallthru
        _
      // Predicated region
      $region49: #{residual_block_forward.1} parent=11 // pred_check
        %p348 = pneg %p280
      $region50: #{residual_block_forward.1} parent=11 // pred_check_branch
        %350 = sbr.rel (%p348) target = $region52
      $region51: #{residual_block_forward.1} parent=11 // pred_region
        _
      $region52: #{residual_block_forward.1} parent=11 // pred_fallthru
        _
    $region12: #{residual_block_forward.1} parent=5 // pred_fallthru
      _
    %p351 = scmp.lt.s32.totalorder %s18, 2
    // Predicated region
    $region53: #{residual_block_forward.1} parent=5 // pred_check
      %p352 = pneg %p351
    $region54: #{residual_block_forward.1} parent=5 // pred_check_branch
      %354 = sbr.rel (%p352) target = $region56
    $region55: #{residual_block_forward.1} parent=5 // pred_region
      // Predicated region
      $region57: #{residual_block_forward.1} parent=55 // pred_check
        %p355 = pneg %p38
      $region58: #{residual_block_forward.1} parent=55 // pred_check_branch
        %357 = sbr.rel (%p355) target = $region60
      $region59: #{residual_block_forward.1} parent=55 // pred_region
        %p358 = scmp.lt.s32.totalorder %s18, 1
        %s359 = scalar_select %p358, %s18, 1
        %s360 = smul.addr %s359, 34
        %s361 = smul.addr %s360, 4
        %s362 = scalar_lea.vmem %s0, %s361
      $region60: #{residual_block_forward.1} parent=55 // pred_fallthru
        _
      // Predicated region
      $region61: #{residual_block_forward.1} parent=55 // pred_check
        %p363 = pneg %p64
      $region62: #{residual_block_forward.1} parent=55 // pred_check_branch
        %365 = sbr.rel (%p363) target = $region64
      $region63: #{residual_block_forward.1} parent=55 // pred_region
        %p366 = scmp.lt.s32.totalorder %s18, 1
        %s367 = scalar_select %p366, %s18, 1
        %s368 = smul.addr %s367, 32
        %s369 = smul.addr %s368, 8
        %s370 = scalar_lea.vmem %s1, %s369
      $region64: #{residual_block_forward.1} parent=55 // pred_fallthru
        _
    $region56: #{residual_block_forward.1} parent=5 // pred_fallthru
      _
    %p371 = scmp.le.s32.totalorder 1, %s18
    %p372 = scmp.lt.s32.totalorder %s18, 3
    %p373 = pnand %p371, %p372
    %p374 = pneg %p373
    // Predicated region
    $region65: #{residual_block_forward.1} parent=5 // pred_check
      _
    $region66: #{residual_block_forward.1} parent=5 // pred_check_branch
      %376 = sbr.rel (%p373) target = $region68
    $region67: #{residual_block_forward.1} parent=5 // pred_region
      %s377 = ssub.s32 %s18, 1
      %p378 = scmp.lt.s32.totalorder %s23, 1
      %s379 = scalar_select %p378, %s23, 1
      %s380 = smul.addr %s379, 34
      %s381 = smul.addr %s380, 4
      %s382 = scalar_lea.vmem %s0, %s381
      %p383 = pneg %p44
      %p384 = pneg %p41
      %p385 = scmp.lt.s32.totalorder %s23, 1
      %s386 = scalar_select %p385, %s23, 1
      %s387 = smul.addr %s386, 32
      %s388 = smul.addr %s387, 8
      %s389 = scalar_lea.vmem %s1, %s388
      %p390 = pneg %p70
      %p391 = pneg %p67
      %p392 = pneg %p91
      %p393 = pneg %p88
      %p394 = pneg %p112
      %p395 = pneg %p109
      %p396 = pneg %p133
      %p397 = pneg %p130
      %p398 = pneg %p154
      %p399 = pneg %p151
      %p400 = pneg %p175
      %p401 = pneg %p172
      %p402 = pneg %p196
      %p403 = pneg %p193
      %p404 = pneg %p217
      %p405 = pneg %p214
      %p406 = pneg %p238
      %p407 = pneg %p235
      %p408 = pneg %p259
      %p409 = pneg %p256
      %p410 = pneg %p280
      %p411 = pneg %p277
      %p412 = pneg %p306
      %p413 = pneg %p303
      %p414 = scmp.lt.s32.totalorder %s23, 1
      %s415 = scalar_select %p414, %s23, 1
      %s416 = smul.addr %s415, 32
      %s417 = smul.addr %s416, 8
      %s418 = scalar_lea.vmem %s12, %s417
      %p419 = scmp.lt.s32.totalorder %s23, 1
      %s420 = scalar_select %p419, %s23, 1
      %s421 = smul.addr %s420, 34
      %s422 = smul.addr %s421, 4
      %s423 = scalar_lea.vmem %s0, %s422
      %p424 = scmp.lt.s32.totalorder %s23, 1
      %s425 = scalar_select %p424, %s23, 1
      %s426 = smul.addr %s425, 32
      %s427 = smul.addr %s426, 8
      %s428 = scalar_lea.vmem %s1, %s427
      %p429 = scmp.lt.s32.totalorder %s23, 1
      %s430 = scalar_select %p429, %s23, 1
      %s431 = smul.addr %s430, 32
      %s432 = smul.addr %s431, 8
      %s433 = scalar_lea.vmem %s12, %s432
      %v435 = vld [vmem:[%s423] sm:$0xf]
      %v436 = vld [vmem:[%s423 + $0x4] sm:$0xf]
      %v437 = vld [vmem:[%s423 + $0x8] sm:$0xf]
      %v438 = vld [vmem:[%s423 + $0xc] sm:$0xf]
      %v439 = vld [vmem:[%s423 + $0x10] sm:$0xf]
      %v440 = vld [vmem:[%s423 + $0x14] sm:$0xf]
      %v441 = vld [vmem:[%s423 + $0x18] sm:$0xf]
      %v442 = vld [vmem:[%s423 + $0x1c] sm:$0xf]
      %v443 = vld [vmem:[%s423 + $0x20] sm:$0xf]
      %v444 = vld [vmem:[%s423 + $0x24] sm:$0xf]
      %v445 = vld [vmem:[%s423 + $0x28] sm:$0xf]
      %v446 = vld [vmem:[%s423 + $0x2c] sm:$0xf]
      %v447 = vld [vmem:[%s423 + $0x30] sm:$0xf]
      %v448 = vld [vmem:[%s423 + $0x34] sm:$0xf]
      %v449 = vld [vmem:[%s423 + $0x38] sm:$0xf]
      %v450 = vld [vmem:[%s423 + $0x3c] sm:$0xf]
      %v451 = vld [vmem:[%s423 + $0x40] sm:$0xf]
      %v452 = vld [vmem:[%s423 + $0x44] sm:$0xf]
      %v453 = vld [vmem:[%s423 + $0x48] sm:$0xf]
      %v454 = vld [vmem:[%s423 + $0x4c] sm:$0xf]
      %v455 = vld [vmem:[%s423 + $0x50] sm:$0xf]
      %v456 = vld [vmem:[%s423 + $0x54] sm:$0xf]
      %v457 = vld [vmem:[%s423 + $0x58] sm:$0xf]
      %v458 = vld [vmem:[%s423 + $0x5c] sm:$0xf]
      %v459 = vld [vmem:[%s423 + $0x60] sm:$0xf]
      %v460 = vld [vmem:[%s423 + $0x64] sm:$0xf]
      %v461 = vld [vmem:[%s423 + $0x68] sm:$0xf]
      %v462 = vld [vmem:[%s423 + $0x6c] sm:$0xf]
      %v463 = vld [vmem:[%s423 + $0x70] sm:$0xf]
      %v464 = vld [vmem:[%s2] sm:$0xf]
      %v465 = vld [vmem:[%s2 + $0x4] sm:$0xf]
      %v466 = vld [vmem:[%s2 + $0x8] sm:$0xf]
      %v467 = vld [vmem:[%s2 + $0xc] sm:$0xf]
      %v468 = vld [vmem:[%s2 + $0x10] sm:$0xf]
      %v469 = vld [vmem:[%s2 + $0x14] sm:$0xf]
      %v470 = vld [vmem:[%s2 + $0x18] sm:$0xf]
      %v471 = vld [vmem:[%s2 + $0x1c] sm:$0xf]
      %v472 = vld [vmem:[%s423 + $0x74] sm:$0x1]
      %s473 = scalar_lea.vmem %s2, 32
      %v474 = vld [vmem:[%s473] sm:$0xf]
      %v475 = vld [vmem:[%s473 + $0x4] sm:$0xf]
      %v476 = vld [vmem:[%s473 + $0x8] sm:$0xf]
      %v477 = vld [vmem:[%s473 + $0xc] sm:$0xf]
      %v478 = vld [vmem:[%s473 + $0x10] sm:$0xf]
      %v479 = vld [vmem:[%s473 + $0x14] sm:$0xf]
      %v480 = vld [vmem:[%s473 + $0x18] sm:$0xf]
      %v481 = vld [vmem:[%s473 + $0x1c] sm:$0xf]
      %v512 = vunpack.c.l.b16 %v435
      %v513 = vunpack.c.l.b16 %v436
      %v514 = vunpack.c.l.b16 %v437
      %v515 = vunpack.c.l.b16 %v438
      %v516 = vunpack.c.l.b16 %v439
      %v517 = vunpack.c.l.b16 %v440
      %v518 = vunpack.c.l.b16 %v441
      %v519 = vunpack.c.l.b16 %v442
      %v520 = vunpack.c.l.b16 %v443
      %v521 = vunpack.c.l.b16 %v444
      %v522 = vunpack.c.l.b16 %v445
      %v523 = vunpack.c.l.b16 %v446
      %v524 = vunpack.c.l.b16 %v447
      %v525 = vunpack.c.l.b16 %v448
      %v526 = vunpack.c.l.b16 %v449
      %v527 = vunpack.c.l.b16 %v450
      %v528 = vunpack.c.l.b16 %v451
      %v529 = vunpack.c.l.b16 %v452
      %v530 = vunpack.c.l.b16 %v453
      %v531 = vunpack.c.l.b16 %v454
      %v532 = vunpack.c.l.b16 %v455
      %v533 = vunpack.c.l.b16 %v456
      %v534 = vunpack.c.l.b16 %v457
      %v535 = vunpack.c.l.b16 %v458
      %v536 = vunpack.c.l.b16 %v459
      %v537 = vunpack.c.l.b16 %v460
      %v538 = vunpack.c.l.b16 %v461
      %v539 = vunpack.c.l.b16 %v462
      %v540 = vunpack.c.l.b16 %v463
      %v541 = vunpack.c.l.b16 %v472
      %v542 = vpack.c.b16 %v513, %v512
      %v543 = vpack.c.b16 %v515, %v514
      %v544 = vpack.c.b16 %v517, %v516
      %v545 = vpack.c.b16 %v519, %v518
      %v546 = vpack.c.b16 %v521, %v520
      %v547 = vpack.c.b16 %v523, %v522
      %v548 = vpack.c.b16 %v525, %v524
      %v549 = vpack.c.b16 %v527, %v526
      %v550 = vpack.c.b16 %v529, %v528
      %v551 = vpack.c.b16 %v531, %v530
      %v552 = vpack.c.b16 %v533, %v532
      %v553 = vpack.c.b16 %v535, %v534
      %v554 = vpack.c.b16 %v537, %v536
      %v555 = vpack.c.b16 %v539, %v538
      %v556 = vpack.c.b16 %v541, %v540
      %vm557 = vsmask.f32 7424
      %v559 = vshrl.u32 %v542, 16
      %v561 = vshll.u32 %v542, 16
      %v563 = vrot.slane %v561, 1
      %v564 = vor.u32 %v559, %v563
      %v566 = vshll.u32 %v543, 16
      %v568 = vrot.slane %v566, 1
      %v569 = vsel %vm557, %v564, %v568
      %v570 = vshrl.u32 %v543, 16
      %v572 = vor.u32 %v570, %v568
      %v574 = vshll.u32 %v544, 16
      %v576 = vrot.slane %v574, 1
      %v577 = vsel %vm557, %v572, %v576
      %v578 = vshrl.u32 %v544, 16
      %v580 = vor.u32 %v578, %v576
      %v582 = vshll.u32 %v545, 16
      %v584 = vrot.slane %v582, 1
      %v585 = vsel %vm557, %v580, %v584
      %v586 = vshrl.u32 %v545, 16
      %v588 = vor.u32 %v586, %v584
      %v590 = vshll.u32 %v546, 16
      %v592 = vrot.slane %v590, 1
      %v593 = vsel %vm557, %v588, %v592
      %v594 = vshrl.u32 %v546, 16
      %v596 = vor.u32 %v594, %v592
      %v598 = vshll.u32 %v547, 16
      %v600 = vrot.slane %v598, 1
      %v601 = vsel %vm557, %v596, %v600
      %v602 = vshrl.u32 %v547, 16
      %v604 = vor.u32 %v602, %v600
      %v606 = vshll.u32 %v548, 16
      %v608 = vrot.slane %v606, 1
      %v609 = vsel %vm557, %v604, %v608
      %v610 = vshrl.u32 %v548, 16
      %v612 = vor.u32 %v610, %v608
      %v614 = vshll.u32 %v549, 16
      %v616 = vrot.slane %v614, 1
      %v617 = vsel %vm557, %v612, %v616
      %v618 = vshrl.u32 %v549, 16
      %v620 = vor.u32 %v618, %v616
      %v622 = vshll.u32 %v550, 16
      %v624 = vrot.slane %v622, 1
      %v625 = vsel %vm557, %v620, %v624
      %v626 = vshrl.u32 %v550, 16
      %v628 = vor.u32 %v626, %v624
      %v630 = vshll.u32 %v551, 16
      %v632 = vrot.slane %v630, 1
      %v633 = vsel %vm557, %v628, %v632
      %v634 = vshrl.u32 %v551, 16
      %v636 = vor.u32 %v634, %v632
      %v638 = vshll.u32 %v552, 16
      %v640 = vrot.slane %v638, 1
      %v641 = vsel %vm557, %v636, %v640
      %v642 = vshrl.u32 %v552, 16
      %v644 = vor.u32 %v642, %v640
      %v646 = vshll.u32 %v553, 16
      %v648 = vrot.slane %v646, 1
      %v649 = vsel %vm557, %v644, %v648
      %v650 = vshrl.u32 %v553, 16
      %v652 = vor.u32 %v650, %v648
      %v654 = vshll.u32 %v554, 16
      %v656 = vrot.slane %v654, 1
      %v657 = vsel %vm557, %v652, %v656
      %v658 = vshrl.u32 %v554, 16
      %v660 = vor.u32 %v658, %v656
      %v662 = vshll.u32 %v555, 16
      %v664 = vrot.slane %v662, 1
      %v665 = vsel %vm557, %v660, %v664
      %v666 = vshrl.u32 %v555, 16
      %v668 = vor.u32 %v666, %v664
      %v670 = vshll.u32 %v556, 16
      %v672 = vrot.slane %v670, 1
      %v673 = vsel %vm557, %v668, %v672
      %v674 = vshrl.u32 %v556, 16
      %v676 = vor.u32 %v674, %v672
      %v685 = vunpack.c.l.b16 %v474
      %v686 = vunpack.c.l.b16 %v475
      %v687 = vunpack.c.l.b16 %v476
      %v688 = vunpack.c.l.b16 %v477
      %v689 = vunpack.c.l.b16 %v478
      %v690 = vunpack.c.l.b16 %v479
      %v691 = vunpack.c.l.b16 %v480
      %v692 = vunpack.c.l.b16 %v481
      %v693 = vpack.c.b16 %v686, %v685
      %v694 = vpack.c.b16 %v688, %v687
      %v695 = vpack.c.b16 %v690, %v689
      %v696 = vpack.c.b16 %v692, %v691
      %vm701 = vcmask 523264
      %v703 = vsel %vm701, %v569, 0
      %v706 = vsel %vm701, %v577, 0
      %v709 = vsel %vm701, %v585, 0
      %v712 = vsel %vm701, %v593, 0
      %v715 = vsel %vm701, %v601, 0
      %v718 = vsel %vm701, %v609, 0
      %v721 = vsel %vm701, %v617, 0
      %v724 = vsel %vm701, %v625, 0
      %v727 = vsel %vm701, %v633, 0
      %v730 = vsel %vm701, %v641, 0
      %v733 = vsel %vm701, %v649, 0
      %v736 = vsel %vm701, %v657, 0
      %v739 = vsel %vm701, %v665, 0
      %v742 = vsel %vm701, %v673, 0
      %v745 = vsel %vm701, %v676, 0
      %747 = vmatprep.subr.bf16.mxu0 0
      %748 = vmatpush1.bf16.msra.mxu0 0
      %749 = vmatprep.subr.bf16.mxu0 0
      %750 = vmatpush1.bf16.msra.mxu0 0
      %751 = vmatprep.subr.bf16.mxu0 0
      %752 = vmatpush1.bf16.msra.mxu0 0
      %753 = vmatprep.subr.bf16.mxu0 0
      %754 = vmatpush1.bf16.msra.mxu0 0
      %755 = vmatprep.subr.bf16.mxu0 0
      %756 = vmatpush1.bf16.msra.mxu0 %v696
      %757 = vmatprep.subr.bf16.mxu0 0
      %758 = vmatpush1.bf16.msra.mxu0 %v695
      %759 = vmatprep.subr.bf16.mxu0 0
      %760 = vmatpush1.bf16.msra.mxu0 %v694
      %761 = vmatprep.subr.bf16.mxu0 0
      %762 = vmatpush1.bf16.msra.mxu0 %v693
      %763 = vmatprep.subr.bf16.mxu0 0
      %764 = vmatpush2.bf16.msra.mxu0 0
      %765 = vmatprep.subr.bf16.mxu0 0
      %766 = vmatpush2.bf16.msra.mxu0 0
      %767 = vmatprep.subr.bf16.mxu0 0
      %768 = vmatpush2.bf16.msra.mxu0 0
      %769 = vmatprep.subr.bf16.mxu0 0
      %770 = vmatpush2.bf16.msra.mxu0 0
      %771 = vmatprep.subr.bf16.mxu0 0
      %772 = vmatpush2.bf16.msra.mxu0 0
      %773 = vmatprep.subr.bf16.mxu0 0
      %774 = vmatpush2.bf16.msra.mxu0 0
      %775 = vmatprep.subr.bf16.mxu0 0
      %776 = vmatpush2.bf16.msra.mxu0 0
      %777 = vmatprep.subr.bf16.mxu0 0
      %778 = vmatpush2.bf16.msra.mxu0 0
      %779 = vmatprep.mubr.bf16.mxu0 0
      %780 = vmatmul.mubr.bf16.gmra.mxu0 %v703
      %v781 = vpop.f32.mrf.mxu0
      %v782 = vadd.f32 0.0, %v781
      %v783 = vpop.f32.mrf.mxu0
      %v784 = vpop.f32.mrf.mxu0
      %v785 = vadd.f32 0.0, %v784
      %v786 = vpop.f32.mrf.mxu0
      %787 = vmatprep.mubr.bf16.mxu0 0
      %788 = vmatmul.mubr.bf16.gmra.mxu0 %v706
      %v789 = vpop.f32.mrf.mxu0
      %v790 = vadd.f32 0.0, %v789
      %v791 = vpop.f32.mrf.mxu0
      %v792 = vpop.f32.mrf.mxu0
      %v793 = vadd.f32 0.0, %v792
      %v794 = vpop.f32.mrf.mxu0
      %795 = vmatprep.mubr.bf16.mxu0 0
      %796 = vmatmul.mubr.bf16.gmra.mxu0 %v709
      %v797 = vpop.f32.mrf.mxu0
      %v798 = vadd.f32 0.0, %v797
      %v799 = vpop.f32.mrf.mxu0
      %v800 = vpop.f32.mrf.mxu0
      %v801 = vadd.f32 0.0, %v800
      %v802 = vpop.f32.mrf.mxu0
      %803 = vmatprep.mubr.bf16.mxu0 0
      %804 = vmatmul.mubr.bf16.gmra.mxu0 %v712
      %v805 = vpop.f32.mrf.mxu0
      %v806 = vadd.f32 0.0, %v805
      %v807 = vpop.f32.mrf.mxu0
      %v808 = vpop.f32.mrf.mxu0
      %v809 = vadd.f32 0.0, %v808
      %v810 = vpop.f32.mrf.mxu0
      %811 = vmatprep.mubr.bf16.mxu0 0
      %812 = vmatmul.mubr.bf16.gmra.mxu0 %v715
      %v813 = vpop.f32.mrf.mxu0
      %v814 = vadd.f32 0.0, %v813
      %v815 = vpop.f32.mrf.mxu0
      %v816 = vpop.f32.mrf.mxu0
      %v817 = vadd.f32 0.0, %v816
      %v818 = vpop.f32.mrf.mxu0
      %819 = vmatprep.mubr.bf16.mxu0 0
      %820 = vmatmul.mubr.bf16.gmra.mxu0 %v718
      %v821 = vpop.f32.mrf.mxu0
      %v822 = vadd.f32 0.0, %v821
      %v823 = vpop.f32.mrf.mxu0
      %v824 = vpop.f32.mrf.mxu0
      %v825 = vadd.f32 0.0, %v824
      %v826 = vpop.f32.mrf.mxu0
      %827 = vmatprep.mubr.bf16.mxu0 0
      %828 = vmatmul.mubr.bf16.gmra.mxu0 %v721
      %v829 = vpop.f32.mrf.mxu0
      %v830 = vadd.f32 0.0, %v829
      %v831 = vpop.f32.mrf.mxu0
      %v832 = vpop.f32.mrf.mxu0
      %v833 = vadd.f32 0.0, %v832
      %v834 = vpop.f32.mrf.mxu0
      %835 = vmatprep.mubr.bf16.mxu0 0
      %836 = vmatmul.mubr.bf16.gmra.mxu0 %v724
      %v837 = vpop.f32.mrf.mxu0
      %v838 = vadd.f32 0.0, %v837
      %v839 = vpop.f32.mrf.mxu0
      %v840 = vpop.f32.mrf.mxu0
      %v841 = vadd.f32 0.0, %v840
      %v842 = vpop.f32.mrf.mxu0
      %843 = vmatprep.mubr.bf16.mxu0 0
      %844 = vmatmul.mubr.bf16.gmra.mxu0 %v727
      %v845 = vpop.f32.mrf.mxu0
      %v846 = vadd.f32 0.0, %v845
      %v847 = vpop.f32.mrf.mxu0
      %v848 = vpop.f32.mrf.mxu0
      %v849 = vadd.f32 0.0, %v848
      %v850 = vpop.f32.mrf.mxu0
      %851 = vmatprep.mubr.bf16.mxu0 0
      %852 = vmatmul.mubr.bf16.gmra.mxu0 %v730
      %v853 = vpop.f32.mrf.mxu0
      %v854 = vadd.f32 0.0, %v853
      %v855 = vpop.f32.mrf.mxu0
      %v856 = vpop.f32.mrf.mxu0
      %v857 = vadd.f32 0.0, %v856
      %v858 = vpop.f32.mrf.mxu0
      %859 = vmatprep.mubr.bf16.mxu0 0
      %860 = vmatmul.mubr.bf16.gmra.mxu0 %v733
      %v861 = vpop.f32.mrf.mxu0
      %v862 = vadd.f32 0.0, %v861
      %v863 = vpop.f32.mrf.mxu0
      %v864 = vpop.f32.mrf.mxu0
      %v865 = vadd.f32 0.0, %v864
      %v866 = vpop.f32.mrf.mxu0
      %867 = vmatprep.mubr.bf16.mxu0 0
      %868 = vmatmul.mubr.bf16.gmra.mxu0 %v736
      %v869 = vpop.f32.mrf.mxu0
      %v870 = vadd.f32 0.0, %v869
      %v871 = vpop.f32.mrf.mxu0
      %v872 = vpop.f32.mrf.mxu0
      %v873 = vadd.f32 0.0, %v872
      %v874 = vpop.f32.mrf.mxu0
      %875 = vmatprep.mubr.bf16.mxu0 0
      %876 = vmatmul.mubr.bf16.gmra.mxu0 %v739
      %v877 = vpop.f32.mrf.mxu0
      %v878 = vadd.f32 0.0, %v877
      %v879 = vpop.f32.mrf.mxu0
      %v880 = vpop.f32.mrf.mxu0
      %v881 = vadd.f32 0.0, %v880
      %v882 = vpop.f32.mrf.mxu0
      %883 = vmatprep.mubr.bf16.mxu0 0
      %884 = vmatmul.mubr.bf16.gmra.mxu0 %v742
      %v885 = vpop.f32.mrf.mxu0
      %v886 = vadd.f32 0.0, %v885
      %v887 = vpop.f32.mrf.mxu0
      %v888 = vpop.f32.mrf.mxu0
      %v889 = vadd.f32 0.0, %v888
      %v890 = vpop.f32.mrf.mxu0
      %891 = vmatprep.mubr.bf16.mxu0 0
      %892 = vmatmul.mubr.bf16.gmra.mxu0 %v745
      %v893 = vpop.f32.mrf.mxu0
      %v894 = vadd.f32 0.0, %v893
      %v895 = vpop.f32.mrf.mxu0
      %v896 = vpop.f32.mrf.mxu0
      %v897 = vpop.f32.mrf.mxu0
      %898 = vdwg.mxu0
      %v899 = vpack.c.b16 %v540, %v540
      %v908 = vunpack.c.l.b16 %v464
      %v909 = vunpack.c.l.b16 %v465
      %v910 = vunpack.c.l.b16 %v466
      %v911 = vunpack.c.l.b16 %v467
      %v912 = vunpack.c.l.b16 %v468
      %v913 = vunpack.c.l.b16 %v469
      %v914 = vunpack.c.l.b16 %v470
      %v915 = vunpack.c.l.b16 %v471
      %v916 = vpack.c.b16 %v909, %v908
      %v917 = vpack.c.b16 %v911, %v910
      %v918 = vpack.c.b16 %v913, %v912
      %v919 = vpack.c.b16 %v915, %v914
      %v924 = vsel %vm701, %v542, 0
      %v926 = vsel %vm701, %v543, 0
      %v928 = vsel %vm701, %v544, 0
      %v930 = vsel %vm701, %v545, 0
      %v932 = vsel %vm701, %v546, 0
      %v934 = vsel %vm701, %v547, 0
      %v936 = vsel %vm701, %v548, 0
      %v938 = vsel %vm701, %v549, 0
      %v940 = vsel %vm701, %v550, 0
      %v942 = vsel %vm701, %v551, 0
      %v944 = vsel %vm701, %v552, 0
      %v946 = vsel %vm701, %v553, 0
      %v948 = vsel %vm701, %v554, 0
      %v950 = vsel %vm701, %v555, 0
      %v953 = vsel %vm701, %v899, 0
      %955 = vmatprep.subr.bf16.mxu0 0
      %956 = vmatpush1.bf16.msra.mxu0 0
      %957 = vmatprep.subr.bf16.mxu0 0
      %958 = vmatpush1.bf16.msra.mxu0 0
      %959 = vmatprep.subr.bf16.mxu0 0
      %960 = vmatpush1.bf16.msra.mxu0 0
      %961 = vmatprep.subr.bf16.mxu0 0
      %962 = vmatpush1.bf16.msra.mxu0 0
      %963 = vmatprep.subr.bf16.mxu0 0
      %964 = vmatpush1.bf16.msra.mxu0 %v919
      %965 = vmatprep.subr.bf16.mxu0 0
      %966 = vmatpush1.bf16.msra.mxu0 %v918
      %967 = vmatprep.subr.bf16.mxu0 0
      %968 = vmatpush1.bf16.msra.mxu0 %v917
      %969 = vmatprep.subr.bf16.mxu0 0
      %970 = vmatpush1.bf16.msra.mxu0 %v916
      %971 = vmatprep.subr.bf16.mxu0 0
      %972 = vmatpush2.bf16.msra.mxu0 0
      %973 = vmatprep.subr.bf16.mxu0 0
      %974 = vmatpush2.bf16.msra.mxu0 0
      %975 = vmatprep.subr.bf16.mxu0 0
      %976 = vmatpush2.bf16.msra.mxu0 0
      %977 = vmatprep.subr.bf16.mxu0 0
      %978 = vmatpush2.bf16.msra.mxu0 0
      %979 = vmatprep.subr.bf16.mxu0 0
      %980 = vmatpush2.bf16.msra.mxu0 0
      %981 = vmatprep.subr.bf16.mxu0 0
      %982 = vmatpush2.bf16.msra.mxu0 0
      %983 = vmatprep.subr.bf16.mxu0 0
      %984 = vmatpush2.bf16.msra.mxu0 0
      %985 = vmatprep.subr.bf16.mxu0 0
      %986 = vmatpush2.bf16.msra.mxu0 0
      %987 = vmatprep.mubr.bf16.mxu0 0
      %988 = vmatmul.mubr.bf16.gmra.mxu0 %v924
      %v989 = vpop.f32.mrf.mxu0
      %v990 = vadd.f32 %v782, %v989
      %v991 = vpop.f32.mrf.mxu0
      %v992 = vpop.f32.mrf.mxu0
      %v993 = vadd.f32 %v785, %v992
      %v994 = vpop.f32.mrf.mxu0
      %995 = vmatprep.mubr.bf16.mxu0 0
      %996 = vmatmul.mubr.bf16.gmra.mxu0 %v926
      %v997 = vpop.f32.mrf.mxu0
      %v998 = vadd.f32 %v790, %v997
      %v999 = vpop.f32.mrf.mxu0
      %v1000 = vpop.f32.mrf.mxu0
      %v1001 = vadd.f32 %v793, %v1000
      %v1002 = vpop.f32.mrf.mxu0
      %1003 = vmatprep.mubr.bf16.mxu0 0
      %1004 = vmatmul.mubr.bf16.gmra.mxu0 %v928
      %v1005 = vpop.f32.mrf.mxu0
      %v1006 = vadd.f32 %v798, %v1005
      %v1007 = vpop.f32.mrf.mxu0
      %v1008 = vpop.f32.mrf.mxu0
      %v1009 = vadd.f32 %v801, %v1008
      %v1010 = vpop.f32.mrf.mxu0
      %1011 = vmatprep.mubr.bf16.mxu0 0
      %1012 = vmatmul.mubr.bf16.gmra.mxu0 %v930
      %v1013 = vpop.f32.mrf.mxu0
      %v1014 = vadd.f32 %v806, %v1013
      %v1015 = vpop.f32.mrf.mxu0
      %v1016 = vpop.f32.mrf.mxu0
      %v1017 = vadd.f32 %v809, %v1016
      %v1018 = vpop.f32.mrf.mxu0
      %1019 = vmatprep.mubr.bf16.mxu0 0
      %1020 = vmatmul.mubr.bf16.gmra.mxu0 %v932
      %v1021 = vpop.f32.mrf.mxu0
      %v1022 = vadd.f32 %v814, %v1021
      %v1023 = vpop.f32.mrf.mxu0
      %v1024 = vpop.f32.mrf.mxu0
      %v1025 = vadd.f32 %v817, %v1024
      %v1026 = vpop.f32.mrf.mxu0
      %1027 = vmatprep.mubr.bf16.mxu0 0
      %1028 = vmatmul.mubr.bf16.gmra.mxu0 %v934
      %v1029 = vpop.f32.mrf.mxu0
      %v1030 = vadd.f32 %v822, %v1029
      %v1031 = vpop.f32.mrf.mxu0
      %v1032 = vpop.f32.mrf.mxu0
      %v1033 = vadd.f32 %v825, %v1032
      %v1034 = vpop.f32.mrf.mxu0
      %1035 = vmatprep.mubr.bf16.mxu0 0
      %1036 = vmatmul.mubr.bf16.gmra.mxu0 %v936
      %v1037 = vpop.f32.mrf.mxu0
      %v1038 = vadd.f32 %v830, %v1037
      %v1039 = vpop.f32.mrf.mxu0
      %v1040 = vpop.f32.mrf.mxu0
      %v1041 = vadd.f32 %v833, %v1040
      %v1042 = vpop.f32.mrf.mxu0
      %1043 = vmatprep.mubr.bf16.mxu0 0
      %1044 = vmatmul.mubr.bf16.gmra.mxu0 %v938
      %v1045 = vpop.f32.mrf.mxu0
      %v1046 = vadd.f32 %v838, %v1045
      %v1047 = vpop.f32.mrf.mxu0
      %v1048 = vpop.f32.mrf.mxu0
      %v1049 = vadd.f32 %v841, %v1048
      %v1050 = vpop.f32.mrf.mxu0
      %1051 = vmatprep.mubr.bf16.mxu0 0
      %1052 = vmatmul.mubr.bf16.gmra.mxu0 %v940
      %v1053 = vpop.f32.mrf.mxu0
      %v1054 = vadd.f32 %v846, %v1053
      %v1055 = vpop.f32.mrf.mxu0
      %v1056 = vpop.f32.mrf.mxu0
      %v1057 = vadd.f32 %v849, %v1056
      %v1058 = vpop.f32.mrf.mxu0
      %1059 = vmatprep.mubr.bf16.mxu0 0
      %1060 = vmatmul.mubr.bf16.gmra.mxu0 %v942
      %v1061 = vpop.f32.mrf.mxu0
      %v1062 = vadd.f32 %v854, %v1061
      %v1063 = vpop.f32.mrf.mxu0
      %v1064 = vpop.f32.mrf.mxu0
      %v1065 = vadd.f32 %v857, %v1064
      %v1066 = vpop.f32.mrf.mxu0
      %1067 = vmatprep.mubr.bf16.mxu0 0
      %1068 = vmatmul.mubr.bf16.gmra.mxu0 %v944
      %v1069 = vpop.f32.mrf.mxu0
      %v1070 = vadd.f32 %v862, %v1069
      %v1071 = vpop.f32.mrf.mxu0
      %v1072 = vpop.f32.mrf.mxu0
      %v1073 = vadd.f32 %v865, %v1072
      %v1074 = vpop.f32.mrf.mxu0
      %1075 = vmatprep.mubr.bf16.mxu0 0
      %1076 = vmatmul.mubr.bf16.gmra.mxu0 %v946
      %v1077 = vpop.f32.mrf.mxu0
      %v1078 = vadd.f32 %v870, %v1077
      %v1079 = vpop.f32.mrf.mxu0
      %v1080 = vpop.f32.mrf.mxu0
      %v1081 = vadd.f32 %v873, %v1080
      %v1082 = vpop.f32.mrf.mxu0
      %1083 = vmatprep.mubr.bf16.mxu0 0
      %1084 = vmatmul.mubr.bf16.gmra.mxu0 %v948
      %v1085 = vpop.f32.mrf.mxu0
      %v1086 = vadd.f32 %v878, %v1085
      %v1087 = vpop.f32.mrf.mxu0
      %v1088 = vpop.f32.mrf.mxu0
      %v1089 = vadd.f32 %v881, %v1088
      %v1090 = vpop.f32.mrf.mxu0
      %1091 = vmatprep.mubr.bf16.mxu0 0
      %1092 = vmatmul.mubr.bf16.gmra.mxu0 %v950
      %v1093 = vpop.f32.mrf.mxu0
      %v1094 = vadd.f32 %v886, %v1093
      %v1095 = vpop.f32.mrf.mxu0
      %v1096 = vpop.f32.mrf.mxu0
      %v1097 = vadd.f32 %v889, %v1096
      %v1098 = vpop.f32.mrf.mxu0
      %1099 = vmatprep.mubr.bf16.mxu0 0
      %1100 = vmatmul.mubr.bf16.gmra.mxu0 %v953
      %v1101 = vpop.f32.mrf.mxu0
      %v1102 = vadd.f32 %v894, %v1101
      %v1103 = vpop.f32.mrf.mxu0
      %v1104 = vpop.f32.mrf.mxu0
      %v1105 = vpop.f32.mrf.mxu0
      %1106 = vdwg.mxu0
      %v1107 = vld [vmem:[%s423] sm:$0xe]
      %s1108 = scalar_lea.vmem %s2, 64
      %v1109 = vld [vmem:[%s1108] sm:$0xf]
      %v1110 = vld [vmem:[%s1108 + $0x4] sm:$0xf]
      %v1111 = vld [vmem:[%s1108 + $0x8] sm:$0xf]
      %v1112 = vld [vmem:[%s1108 + $0xc] sm:$0xf]
      %v1113 = vld [vmem:[%s1108 + $0x10] sm:$0xf]
      %v1114 = vld [vmem:[%s1108 + $0x14] sm:$0xf]
      %v1115 = vld [vmem:[%s1108 + $0x18] sm:$0xf]
      %v1116 = vld [vmem:[%s1108 + $0x1c] sm:$0xf]
      %v1118 = vunpack.c.l.b16 %v1107
      %v1119 = vpack.c.b16 %v513, %v1118
      %vm1120 = vcmask 1046528
      %v1121 = vrot.slane %v1119, 1
      %v1122 = vrot.slane %v543, 1
      %v1123 = vsel %vm1120, %v1121, %v1122
      %v1124 = vrot.slane %v544, 1
      %v1125 = vsel %vm1120, %v1122, %v1124
      %v1126 = vrot.slane %v545, 1
      %v1127 = vsel %vm1120, %v1124, %v1126
      %v1128 = vrot.slane %v546, 1
      %v1129 = vsel %vm1120, %v1126, %v1128
      %v1130 = vrot.slane %v547, 1
      %v1131 = vsel %vm1120, %v1128, %v1130
      %v1132 = vrot.slane %v548, 1
      %v1133 = vsel %vm1120, %v1130, %v1132
      %v1134 = vrot.slane %v549, 1
      %v1135 = vsel %vm1120, %v1132, %v1134
      %v1136 = vrot.slane %v550, 1
      %v1137 = vsel %vm1120, %v1134, %v1136
      %v1138 = vrot.slane %v551, 1
      %v1139 = vsel %vm1120, %v1136, %v1138
      %v1140 = vrot.slane %v552, 1
      %v1141 = vsel %vm1120, %v1138, %v1140
      %v1142 = vrot.slane %v553, 1
      %v1143 = vsel %vm1120, %v1140, %v1142
      %v1144 = vrot.slane %v554, 1
      %v1145 = vsel %vm1120, %v1142, %v1144
      %v1146 = vrot.slane %v555, 1
      %v1147 = vsel %vm1120, %v1144, %v1146
      %v1148 = vrot.slane %v556, 1
      %v1149 = vsel %vm1120, %v1146, %v1148
      %v1158 = vunpack.c.l.b16 %v1109
      %v1159 = vunpack.c.l.b16 %v1110
      %v1160 = vunpack.c.l.b16 %v1111
      %v1161 = vunpack.c.l.b16 %v1112
      %v1162 = vunpack.c.l.b16 %v1113
      %v1163 = vunpack.c.l.b16 %v1114
      %v1164 = vunpack.c.l.b16 %v1115
      %v1165 = vunpack.c.l.b16 %v1116
      %v1166 = vpack.c.b16 %v1159, %v1158
      %v1167 = vpack.c.b16 %v1161, %v1160
      %v1168 = vpack.c.b16 %v1163, %v1162
      %v1169 = vpack.c.b16 %v1165, %v1164
      %v1175 = vsel %vm701, %v1123, 0
      %v1178 = vsel %vm701, %v1125, 0
      %v1181 = vsel %vm701, %v1127, 0
      %v1184 = vsel %vm701, %v1129, 0
      %v1187 = vsel %vm701, %v1131, 0
      %v1190 = vsel %vm701, %v1133, 0
      %v1193 = vsel %vm701, %v1135, 0
      %v1196 = vsel %vm701, %v1137, 0
      %v1199 = vsel %vm701, %v1139, 0
      %v1202 = vsel %vm701, %v1141, 0
      %v1205 = vsel %vm701, %v1143, 0
      %v1208 = vsel %vm701, %v1145, 0
      %v1211 = vsel %vm701, %v1147, 0
      %v1214 = vsel %vm701, %v1149, 0
      %v1217 = vsel %vm701, %v1148, 0
      %1219 = vmatprep.subr.bf16.mxu0 0
      %1220 = vmatpush1.bf16.msra.mxu0 0
      %1221 = vmatprep.subr.bf16.mxu0 0
      %1222 = vmatpush1.bf16.msra.mxu0 0
      %1223 = vmatprep.subr.bf16.mxu0 0
      %1224 = vmatpush1.bf16.msra.mxu0 0
      %1225 = vmatprep.subr.bf16.mxu0 0
      %1226 = vmatpush1.bf16.msra.mxu0 0
      %1227 = vmatprep.subr.bf16.mxu0 0
      %1228 = vmatpush1.bf16.msra.mxu0 %v1169
      %1229 = vmatprep.subr.bf16.mxu0 0
      %1230 = vmatpush1.bf16.msra.mxu0 %v1168
      %1231 = vmatprep.subr.bf16.mxu0 0
      %1232 = vmatpush1.bf16.msra.mxu0 %v1167
      %1233 = vmatprep.subr.bf16.mxu0 0
      %1234 = vmatpush1.bf16.msra.mxu0 %v1166
      %1235 = vmatprep.subr.bf16.mxu0 0
      %1236 = vmatpush2.bf16.msra.mxu0 0
      %1237 = vmatprep.subr.bf16.mxu0 0
      %1238 = vmatpush2.bf16.msra.mxu0 0
      %1239 = vmatprep.subr.bf16.mxu0 0
      %1240 = vmatpush2.bf16.msra.mxu0 0
      %1241 = vmatprep.subr.bf16.mxu0 0
      %1242 = vmatpush2.bf16.msra.mxu0 0
      %1243 = vmatprep.subr.bf16.mxu0 0
      %1244 = vmatpush2.bf16.msra.mxu0 0
      %1245 = vmatprep.subr.bf16.mxu0 0
      %1246 = vmatpush2.bf16.msra.mxu0 0
      %1247 = vmatprep.subr.bf16.mxu0 0
      %1248 = vmatpush2.bf16.msra.mxu0 0
      %1249 = vmatprep.subr.bf16.mxu0 0
      %1250 = vmatpush2.bf16.msra.mxu0 0
      %1251 = vmatprep.mubr.bf16.mxu0 0
      %1252 = vmatmul.mubr.bf16.gmra.mxu0 %v1175
      %v1253 = vpop.f32.mrf.mxu0
      %v1254 = vadd.f32 0.0, %v1253
      %v1255 = vpop.f32.mrf.mxu0
      %v1256 = vpop.f32.mrf.mxu0
      %v1257 = vadd.f32 0.0, %v1256
      %v1258 = vpop.f32.mrf.mxu0
      %1259 = vmatprep.mubr.bf16.mxu0 0
      %1260 = vmatmul.mubr.bf16.gmra.mxu0 %v1178
      %v1261 = vpop.f32.mrf.mxu0
      %v1262 = vadd.f32 0.0, %v1261
      %v1263 = vpop.f32.mrf.mxu0
      %v1264 = vpop.f32.mrf.mxu0
      %v1265 = vadd.f32 0.0, %v1264
      %v1266 = vpop.f32.mrf.mxu0
      %1267 = vmatprep.mubr.bf16.mxu0 0
      %1268 = vmatmul.mubr.bf16.gmra.mxu0 %v1181
      %v1269 = vpop.f32.mrf.mxu0
      %v1270 = vadd.f32 0.0, %v1269
      %v1271 = vpop.f32.mrf.mxu0
      %v1272 = vpop.f32.mrf.mxu0
      %v1273 = vadd.f32 0.0, %v1272
      %v1274 = vpop.f32.mrf.mxu0
      %1275 = vmatprep.mubr.bf16.mxu0 0
      %1276 = vmatmul.mubr.bf16.gmra.mxu0 %v1184
      %v1277 = vpop.f32.mrf.mxu0
      %v1278 = vadd.f32 0.0, %v1277
      %v1279 = vpop.f32.mrf.mxu0
      %v1280 = vpop.f32.mrf.mxu0
      %v1281 = vadd.f32 0.0, %v1280
      %v1282 = vpop.f32.mrf.mxu0
      %1283 = vmatprep.mubr.bf16.mxu0 0
      %1284 = vmatmul.mubr.bf16.gmra.mxu0 %v1187
      %v1285 = vpop.f32.mrf.mxu0
      %v1286 = vadd.f32 0.0, %v1285
      %v1287 = vpop.f32.mrf.mxu0
      %v1288 = vpop.f32.mrf.mxu0
      %v1289 = vadd.f32 0.0, %v1288
      %v1290 = vpop.f32.mrf.mxu0
      %1291 = vmatprep.mubr.bf16.mxu0 0
      %1292 = vmatmul.mubr.bf16.gmra.mxu0 %v1190
      %v1293 = vpop.f32.mrf.mxu0
      %v1294 = vadd.f32 0.0, %v1293
      %v1295 = vpop.f32.mrf.mxu0
      %v1296 = vpop.f32.mrf.mxu0
      %v1297 = vadd.f32 0.0, %v1296
      %v1298 = vpop.f32.mrf.mxu0
      %1299 = vmatprep.mubr.bf16.mxu0 0
      %1300 = vmatmul.mubr.bf16.gmra.mxu0 %v1193
      %v1301 = vpop.f32.mrf.mxu0
      %v1302 = vadd.f32 0.0, %v1301
      %v1303 = vpop.f32.mrf.mxu0
      %v1304 = vpop.f32.mrf.mxu0
      %v1305 = vadd.f32 0.0, %v1304
      %v1306 = vpop.f32.mrf.mxu0
      %1307 = vmatprep.mubr.bf16.mxu0 0
      %1308 = vmatmul.mubr.bf16.gmra.mxu0 %v1196
      %v1309 = vpop.f32.mrf.mxu0
      %v1310 = vadd.f32 0.0, %v1309
      %v1311 = vpop.f32.mrf.mxu0
      %v1312 = vpop.f32.mrf.mxu0
      %v1313 = vadd.f32 0.0, %v1312
      %v1314 = vpop.f32.mrf.mxu0
      %1315 = vmatprep.mubr.bf16.mxu0 0
      %1316 = vmatmul.mubr.bf16.gmra.mxu0 %v1199
      %v1317 = vpop.f32.mrf.mxu0
      %v1318 = vadd.f32 0.0, %v1317
      %v1319 = vpop.f32.mrf.mxu0
      %v1320 = vpop.f32.mrf.mxu0
      %v1321 = vadd.f32 0.0, %v1320
      %v1322 = vpop.f32.mrf.mxu0
      %1323 = vmatprep.mubr.bf16.mxu0 0
      %1324 = vmatmul.mubr.bf16.gmra.mxu0 %v1202
      %v1325 = vpop.f32.mrf.mxu0
      %v1326 = vadd.f32 0.0, %v1325
      %v1327 = vpop.f32.mrf.mxu0
      %v1328 = vpop.f32.mrf.mxu0
      %v1329 = vadd.f32 0.0, %v1328
      %v1330 = vpop.f32.mrf.mxu0
      %1331 = vmatprep.mubr.bf16.mxu0 0
      %1332 = vmatmul.mubr.bf16.gmra.mxu0 %v1205
      %v1333 = vpop.f32.mrf.mxu0
      %v1334 = vadd.f32 0.0, %v1333
      %v1335 = vpop.f32.mrf.mxu0
      %v1336 = vpop.f32.mrf.mxu0
      %v1337 = vadd.f32 0.0, %v1336
      %v1338 = vpop.f32.mrf.mxu0
      %1339 = vmatprep.mubr.bf16.mxu0 0
      %1340 = vmatmul.mubr.bf16.gmra.mxu0 %v1208
      %v1341 = vpop.f32.mrf.mxu0
      %v1342 = vadd.f32 0.0, %v1341
      %v1343 = vpop.f32.mrf.mxu0
      %v1344 = vpop.f32.mrf.mxu0
      %v1345 = vadd.f32 0.0, %v1344
      %v1346 = vpop.f32.mrf.mxu0
      %1347 = vmatprep.mubr.bf16.mxu0 0
      %1348 = vmatmul.mubr.bf16.gmra.mxu0 %v1211
      %v1349 = vpop.f32.mrf.mxu0
      %v1350 = vadd.f32 0.0, %v1349
      %v1351 = vpop.f32.mrf.mxu0
      %v1352 = vpop.f32.mrf.mxu0
      %v1353 = vadd.f32 0.0, %v1352
      %v1354 = vpop.f32.mrf.mxu0
      %1355 = vmatprep.mubr.bf16.mxu0 0
      %1356 = vmatmul.mubr.bf16.gmra.mxu0 %v1214
      %v1357 = vpop.f32.mrf.mxu0
      %v1358 = vadd.f32 0.0, %v1357
      %v1359 = vpop.f32.mrf.mxu0
      %v1360 = vpop.f32.mrf.mxu0
      %v1361 = vadd.f32 0.0, %v1360
      %v1362 = vpop.f32.mrf.mxu0
      %1363 = vmatprep.mubr.bf16.mxu0 0
      %1364 = vmatmul.mubr.bf16.gmra.mxu0 %v1217
      %v1365 = vpop.f32.mrf.mxu0
      %v1366 = vadd.f32 0.0, %v1365
      %v1367 = vpop.f32.mrf.mxu0
      %v1368 = vpop.f32.mrf.mxu0
      %v1369 = vpop.f32.mrf.mxu0
      %1370 = vdwg.mxu0
      %v1371 = vadd.f32 %v990, %v1254
      %v1372 = vadd.f32 %v993, %v1257
      %v1373 = vadd.f32 %v998, %v1262
      %v1374 = vadd.f32 %v1001, %v1265
      %v1375 = vadd.f32 %v1006, %v1270
      %v1376 = vadd.f32 %v1009, %v1273
      %v1377 = vadd.f32 %v1014, %v1278
      %v1378 = vadd.f32 %v1017, %v1281
      %v1379 = vadd.f32 %v1022, %v1286
      %v1380 = vadd.f32 %v1025, %v1289
      %v1381 = vadd.f32 %v1030, %v1294
      %v1382 = vadd.f32 %v1033, %v1297
      %v1383 = vadd.f32 %v1038, %v1302
      %v1384 = vadd.f32 %v1041, %v1305
      %v1385 = vadd.f32 %v1046, %v1310
      %v1386 = vadd.f32 %v1049, %v1313
      %v1387 = vadd.f32 %v1054, %v1318
      %v1388 = vadd.f32 %v1057, %v1321
      %v1389 = vadd.f32 %v1062, %v1326
      %v1390 = vadd.f32 %v1065, %v1329
      %v1391 = vadd.f32 %v1070, %v1334
      %v1392 = vadd.f32 %v1073, %v1337
      %v1393 = vadd.f32 %v1078, %v1342
      %v1394 = vadd.f32 %v1081, %v1345
      %v1395 = vadd.f32 %v1086, %v1350
      %v1396 = vadd.f32 %v1089, %v1353
      %v1397 = vadd.f32 %v1094, %v1358
      %v1398 = vadd.f32 %v1097, %v1361
      %v1399 = vadd.f32 %v1102, %v1366
      %v1400 = vld [vmem:[%s423 + $0x8] sm:$0xf]
      %v1401 = vld [vmem:[%s423 + $0xc] sm:$0xf]
      %v1402 = vld [vmem:[%s423 + $0x10] sm:$0xf]
      %v1403 = vld [vmem:[%s423 + $0x14] sm:$0xf]
      %v1404 = vld [vmem:[%s423 + $0x18] sm:$0xf]
      %v1405 = vld [vmem:[%s423 + $0x1c] sm:$0xf]
      %v1406 = vld [vmem:[%s423 + $0x20] sm:$0xf]
      %v1407 = vld [vmem:[%s423 + $0x24] sm:$0xf]
      %v1408 = vld [vmem:[%s423 + $0x28] sm:$0xf]
      %v1409 = vld [vmem:[%s423 + $0x2c] sm:$0xf]
      %v1410 = vld [vmem:[%s423 + $0x30] sm:$0xf]
      %v1411 = vld [vmem:[%s423 + $0x34] sm:$0xf]
      %v1412 = vld [vmem:[%s423 + $0x38] sm:$0xf]
      %v1413 = vld [vmem:[%s423 + $0x3c] sm:$0xf]
      %v1414 = vld [vmem:[%s423 + $0x40] sm:$0xf]
      %v1415 = vld [vmem:[%s423 + $0x44] sm:$0xf]
      %v1416 = vld [vmem:[%s423 + $0x48] sm:$0xf]
      %v1417 = vld [vmem:[%s423 + $0x4c] sm:$0xf]
      %v1418 = vld [vmem:[%s423 + $0x50] sm:$0xf]
      %v1419 = vld [vmem:[%s423 + $0x54] sm:$0xf]
      %v1420 = vld [vmem:[%s423 + $0x58] sm:$0xf]
      %v1421 = vld [vmem:[%s423 + $0x5c] sm:$0xf]
      %v1422 = vld [vmem:[%s423 + $0x60] sm:$0xf]
      %v1423 = vld [vmem:[%s423 + $0x64] sm:$0xf]
      %v1424 = vld [vmem:[%s423 + $0x68] sm:$0xf]
      %v1425 = vld [vmem:[%s423 + $0x6c] sm:$0xf]
      %v1426 = vld [vmem:[%s423 + $0x70] sm:$0xf]
      %v1427 = vld [vmem:[%s423 + $0x74] sm:$0xf]
      %v1428 = vld [vmem:[%s423 + $0x78] sm:$0xf]
      %s1429 = scalar_lea.vmem %s2, 96
      %v1430 = vld [vmem:[%s1429] sm:$0xf]
      %v1431 = vld [vmem:[%s1429 + $0x4] sm:$0xf]
      %v1432 = vld [vmem:[%s1429 + $0x8] sm:$0xf]
      %v1433 = vld [vmem:[%s1429 + $0xc] sm:$0xf]
      %v1434 = vld [vmem:[%s1429 + $0x10] sm:$0xf]
      %v1435 = vld [vmem:[%s1429 + $0x14] sm:$0xf]
      %v1436 = vld [vmem:[%s1429 + $0x18] sm:$0xf]
      %v1437 = vld [vmem:[%s1429 + $0x1c] sm:$0xf]
      %v1467 = vunpack.c.l.b16 %v1400
      %v1468 = vunpack.c.l.b16 %v1401
      %v1469 = vunpack.c.l.b16 %v1402
      %v1470 = vunpack.c.l.b16 %v1403
      %v1471 = vunpack.c.l.b16 %v1404
      %v1472 = vunpack.c.l.b16 %v1405
      %v1473 = vunpack.c.l.b16 %v1406
      %v1474 = vunpack.c.l.b16 %v1407
      %v1475 = vunpack.c.l.b16 %v1408
      %v1476 = vunpack.c.l.b16 %v1409
      %v1477 = vunpack.c.l.b16 %v1410
      %v1478 = vunpack.c.l.b16 %v1411
      %v1479 = vunpack.c.l.b16 %v1412
      %v1480 = vunpack.c.l.b16 %v1413
      %v1481 = vunpack.c.l.b16 %v1414
      %v1482 = vunpack.c.l.b16 %v1415
      %v1483 = vunpack.c.l.b16 %v1416
      %v1484 = vunpack.c.l.b16 %v1417
      %v1485 = vunpack.c.l.b16 %v1418
      %v1486 = vunpack.c.l.b16 %v1419
      %v1487 = vunpack.c.l.b16 %v1420
      %v1488 = vunpack.c.l.b16 %v1421
      %v1489 = vunpack.c.l.b16 %v1422
      %v1490 = vunpack.c.l.b16 %v1423
      %v1491 = vunpack.c.l.b16 %v1424
      %v1492 = vunpack.c.l.b16 %v1425
      %v1493 = vunpack.c.l.b16 %v1426
      %v1494 = vunpack.c.l.b16 %v1427
      %v1495 = vunpack.c.l.b16 %v1428
      %v1496 = vpack.c.b16 %v1468, %v1467
      %v1497 = vpack.c.b16 %v1470, %v1469
      %v1498 = vpack.c.b16 %v1472, %v1471
      %v1499 = vpack.c.b16 %v1474, %v1473
      %v1500 = vpack.c.b16 %v1476, %v1475
      %v1501 = vpack.c.b16 %v1478, %v1477
      %v1502 = vpack.c.b16 %v1480, %v1479
      %v1503 = vpack.c.b16 %v1482, %v1481
      %v1504 = vpack.c.b16 %v1484, %v1483
      %v1505 = vpack.c.b16 %v1486, %v1485
      %v1506 = vpack.c.b16 %v1488, %v1487
      %v1507 = vpack.c.b16 %v1490, %v1489
      %v1508 = vpack.c.b16 %v1492, %v1491
      %v1509 = vpack.c.b16 %v1494, %v1493
      %v1510 = vpack.c.b16 %v1495, %v1495
      %v1519 = vunpack.c.l.b16 %v1430
      %v1520 = vunpack.c.l.b16 %v1431
      %v1521 = vunpack.c.l.b16 %v1432
      %v1522 = vunpack.c.l.b16 %v1433
      %v1523 = vunpack.c.l.b16 %v1434
      %v1524 = vunpack.c.l.b16 %v1435
      %v1525 = vunpack.c.l.b16 %v1436
      %v1526 = vunpack.c.l.b16 %v1437
      %v1527 = vpack.c.b16 %v1520, %v1519
      %v1528 = vpack.c.b16 %v1522, %v1521
      %v1529 = vpack.c.b16 %v1524, %v1523
      %v1530 = vpack.c.b16 %v1526, %v1525
      %v1536 = vsel %vm701, %v1496, 0
      %v1539 = vsel %vm701, %v1497, 0
      %v1542 = vsel %vm701, %v1498, 0
      %v1545 = vsel %vm701, %v1499, 0
      %v1548 = vsel %vm701, %v1500, 0
      %v1551 = vsel %vm701, %v1501, 0
      %v1554 = vsel %vm701, %v1502, 0
      %v1557 = vsel %vm701, %v1503, 0
      %v1560 = vsel %vm701, %v1504, 0
      %v1563 = vsel %vm701, %v1505, 0
      %v1566 = vsel %vm701, %v1506, 0
      %v1569 = vsel %vm701, %v1507, 0
      %v1572 = vsel %vm701, %v1508, 0
      %v1575 = vsel %vm701, %v1509, 0
      %v1578 = vsel %vm701, %v1510, 0
      %1580 = vmatprep.subr.bf16.mxu0 0
      %1581 = vmatpush1.bf16.msra.mxu0 0
      %1582 = vmatprep.subr.bf16.mxu0 0
      %1583 = vmatpush1.bf16.msra.mxu0 0
      %1584 = vmatprep.subr.bf16.mxu0 0
      %1585 = vmatpush1.bf16.msra.mxu0 0
      %1586 = vmatprep.subr.bf16.mxu0 0
      %1587 = vmatpush1.bf16.msra.mxu0 0
      %1588 = vmatprep.subr.bf16.mxu0 0
      %1589 = vmatpush1.bf16.msra.mxu0 %v1530
      %1590 = vmatprep.subr.bf16.mxu0 0
      %1591 = vmatpush1.bf16.msra.mxu0 %v1529
      %1592 = vmatprep.subr.bf16.mxu0 0
      %1593 = vmatpush1.bf16.msra.mxu0 %v1528
      %1594 = vmatprep.subr.bf16.mxu0 0
      %1595 = vmatpush1.bf16.msra.mxu0 %v1527
      %1596 = vmatprep.subr.bf16.mxu0 0
      %1597 = vmatpush2.bf16.msra.mxu0 0
      %1598 = vmatprep.subr.bf16.mxu0 0
      %1599 = vmatpush2.bf16.msra.mxu0 0
      %1600 = vmatprep.subr.bf16.mxu0 0
      %1601 = vmatpush2.bf16.msra.mxu0 0
      %1602 = vmatprep.subr.bf16.mxu0 0
      %1603 = vmatpush2.bf16.msra.mxu0 0
      %1604 = vmatprep.subr.bf16.mxu0 0
      %1605 = vmatpush2.bf16.msra.mxu0 0
      %1606 = vmatprep.subr.bf16.mxu0 0
      %1607 = vmatpush2.bf16.msra.mxu0 0
      %1608 = vmatprep.subr.bf16.mxu0 0
      %1609 = vmatpush2.bf16.msra.mxu0 0
      %1610 = vmatprep.subr.bf16.mxu0 0
      %1611 = vmatpush2.bf16.msra.mxu0 0
      %1612 = vmatprep.mubr.bf16.mxu0 0
      %1613 = vmatmul.mubr.bf16.gmra.mxu0 %v1536
      %v1614 = vpop.f32.mrf.mxu0
      %v1615 = vadd.f32 0.0, %v1614
      %v1616 = vpop.f32.mrf.mxu0
      %v1617 = vpop.f32.mrf.mxu0
      %v1618 = vadd.f32 0.0, %v1617
      %v1619 = vpop.f32.mrf.mxu0
      %1620 = vmatprep.mubr.bf16.mxu0 0
      %1621 = vmatmul.mubr.bf16.gmra.mxu0 %v1539
      %v1622 = vpop.f32.mrf.mxu0
      %v1623 = vadd.f32 0.0, %v1622
      %v1624 = vpop.f32.mrf.mxu0
      %v1625 = vpop.f32.mrf.mxu0
      %v1626 = vadd.f32 0.0, %v1625
      %v1627 = vpop.f32.mrf.mxu0
      %1628 = vmatprep.mubr.bf16.mxu0 0
      %1629 = vmatmul.mubr.bf16.gmra.mxu0 %v1542
      %v1630 = vpop.f32.mrf.mxu0
      %v1631 = vadd.f32 0.0, %v1630
      %v1632 = vpop.f32.mrf.mxu0
      %v1633 = vpop.f32.mrf.mxu0
      %v1634 = vadd.f32 0.0, %v1633
      %v1635 = vpop.f32.mrf.mxu0
      %1636 = vmatprep.mubr.bf16.mxu0 0
      %1637 = vmatmul.mubr.bf16.gmra.mxu0 %v1545
      %v1638 = vpop.f32.mrf.mxu0
      %v1639 = vadd.f32 0.0, %v1638
      %v1640 = vpop.f32.mrf.mxu0
      %v1641 = vpop.f32.mrf.mxu0
      %v1642 = vadd.f32 0.0, %v1641
      %v1643 = vpop.f32.mrf.mxu0
      %1644 = vmatprep.mubr.bf16.mxu0 0
      %1645 = vmatmul.mubr.bf16.gmra.mxu0 %v1548
      %v1646 = vpop.f32.mrf.mxu0
      %v1647 = vadd.f32 0.0, %v1646
      %v1648 = vpop.f32.mrf.mxu0
      %v1649 = vpop.f32.mrf.mxu0
      %v1650 = vadd.f32 0.0, %v1649
      %v1651 = vpop.f32.mrf.mxu0
      %1652 = vmatprep.mubr.bf16.mxu0 0
      %1653 = vmatmul.mubr.bf16.gmra.mxu0 %v1551
      %v1654 = vpop.f32.mrf.mxu0
      %v1655 = vadd.f32 0.0, %v1654
      %v1656 = vpop.f32.mrf.mxu0
      %v1657 = vpop.f32.mrf.mxu0
      %v1658 = vadd.f32 0.0, %v1657
      %v1659 = vpop.f32.mrf.mxu0
      %1660 = vmatprep.mubr.bf16.mxu0 0
      %1661 = vmatmul.mubr.bf16.gmra.mxu0 %v1554
      %v1662 = vpop.f32.mrf.mxu0
      %v1663 = vadd.f32 0.0, %v1662
      %v1664 = vpop.f32.mrf.mxu0
      %v1665 = vpop.f32.mrf.mxu0
      %v1666 = vadd.f32 0.0, %v1665
      %v1667 = vpop.f32.mrf.mxu0
      %1668 = vmatprep.mubr.bf16.mxu0 0
      %1669 = vmatmul.mubr.bf16.gmra.mxu0 %v1557
      %v1670 = vpop.f32.mrf.mxu0
      %v1671 = vadd.f32 0.0, %v1670
      %v1672 = vpop.f32.mrf.mxu0
      %v1673 = vpop.f32.mrf.mxu0
      %v1674 = vadd.f32 0.0, %v1673
      %v1675 = vpop.f32.mrf.mxu0
      %1676 = vmatprep.mubr.bf16.mxu0 0
      %1677 = vmatmul.mubr.bf16.gmra.mxu0 %v1560
      %v1678 = vpop.f32.mrf.mxu0
      %v1679 = vadd.f32 0.0, %v1678
      %v1680 = vpop.f32.mrf.mxu0
      %v1681 = vpop.f32.mrf.mxu0
      %v1682 = vadd.f32 0.0, %v1681
      %v1683 = vpop.f32.mrf.mxu0
      %1684 = vmatprep.mubr.bf16.mxu0 0
      %1685 = vmatmul.mubr.bf16.gmra.mxu0 %v1563
      %v1686 = vpop.f32.mrf.mxu0
      %v1687 = vadd.f32 0.0, %v1686
      %v1688 = vpop.f32.mrf.mxu0
      %v1689 = vpop.f32.mrf.mxu0
      %v1690 = vadd.f32 0.0, %v1689
      %v1691 = vpop.f32.mrf.mxu0
      %1692 = vmatprep.mubr.bf16.mxu0 0
      %1693 = vmatmul.mubr.bf16.gmra.mxu0 %v1566
      %v1694 = vpop.f32.mrf.mxu0
      %v1695 = vadd.f32 0.0, %v1694
      %v1696 = vpop.f32.mrf.mxu0
      %v1697 = vpop.f32.mrf.mxu0
      %v1698 = vadd.f32 0.0, %v1697
      %v1699 = vpop.f32.mrf.mxu0
      %1700 = vmatprep.mubr.bf16.mxu0 0
      %1701 = vmatmul.mubr.bf16.gmra.mxu0 %v1569
      %v1702 = vpop.f32.mrf.mxu0
      %v1703 = vadd.f32 0.0, %v1702
      %v1704 = vpop.f32.mrf.mxu0
      %v1705 = vpop.f32.mrf.mxu0
      %v1706 = vadd.f32 0.0, %v1705
      %v1707 = vpop.f32.mrf.mxu0
      %1708 = vmatprep.mubr.bf16.mxu0 0
      %1709 = vmatmul.mubr.bf16.gmra.mxu0 %v1572
      %v1710 = vpop.f32.mrf.mxu0
      %v1711 = vadd.f32 0.0, %v1710
      %v1712 = vpop.f32.mrf.mxu0
      %v1713 = vpop.f32.mrf.mxu0
      %v1714 = vadd.f32 0.0, %v1713
      %v1715 = vpop.f32.mrf.mxu0
      %1716 = vmatprep.mubr.bf16.mxu0 0
      %1717 = vmatmul.mubr.bf16.gmra.mxu0 %v1575
      %v1718 = vpop.f32.mrf.mxu0
      %v1719 = vadd.f32 0.0, %v1718
      %v1720 = vpop.f32.mrf.mxu0
      %v1721 = vpop.f32.mrf.mxu0
      %v1722 = vadd.f32 0.0, %v1721
      %v1723 = vpop.f32.mrf.mxu0
      %1724 = vmatprep.mubr.bf16.mxu0 0
      %1725 = vmatmul.mubr.bf16.gmra.mxu0 %v1578
      %v1726 = vpop.f32.mrf.mxu0
      %v1727 = vadd.f32 0.0, %v1726
      %v1728 = vpop.f32.mrf.mxu0
      %v1729 = vpop.f32.mrf.mxu0
      %v1730 = vpop.f32.mrf.mxu0
      %1731 = vdwg.mxu0
      %v1732 = vadd.f32 %v1371, %v1615
      %v1733 = vadd.f32 %v1372, %v1618
      %v1734 = vadd.f32 %v1373, %v1623
      %v1735 = vadd.f32 %v1374, %v1626
      %v1736 = vadd.f32 %v1375, %v1631
      %v1737 = vadd.f32 %v1376, %v1634
      %v1738 = vadd.f32 %v1377, %v1639
      %v1739 = vadd.f32 %v1378, %v1642
      %v1740 = vadd.f32 %v1379, %v1647
      %v1741 = vadd.f32 %v1380, %v1650
      %v1742 = vadd.f32 %v1381, %v1655
      %v1743 = vadd.f32 %v1382, %v1658
      %v1744 = vadd.f32 %v1383, %v1663
      %v1745 = vadd.f32 %v1384, %v1666
      %v1746 = vadd.f32 %v1385, %v1671
      %v1747 = vadd.f32 %v1386, %v1674
      %v1748 = vadd.f32 %v1387, %v1679
      %v1749 = vadd.f32 %v1388, %v1682
      %v1750 = vadd.f32 %v1389, %v1687
      %v1751 = vadd.f32 %v1390, %v1690
      %v1752 = vadd.f32 %v1391, %v1695
      %v1753 = vadd.f32 %v1392, %v1698
      %v1754 = vadd.f32 %v1393, %v1703
      %v1755 = vadd.f32 %v1394, %v1706
      %v1756 = vadd.f32 %v1395, %v1711
      %v1757 = vadd.f32 %v1396, %v1714
      %v1758 = vadd.f32 %v1397, %v1719
      %v1759 = vadd.f32 %v1398, %v1722
      %v1760 = vadd.f32 %v1399, %v1727
      %v1761 = vld [vmem:[%s423 + $0x8] sm:$0xf]
      %v1762 = vld [vmem:[%s423 + $0xc] sm:$0xf]
      %v1763 = vld [vmem:[%s423 + $0x10] sm:$0xf]
      %v1764 = vld [vmem:[%s423 + $0x14] sm:$0xf]
      %v1765 = vld [vmem:[%s423 + $0x18] sm:$0xf]
      %v1766 = vld [vmem:[%s423 + $0x1c] sm:$0xf]
      %v1767 = vld [vmem:[%s423 + $0x20] sm:$0xf]
      %v1768 = vld [vmem:[%s423 + $0x24] sm:$0xf]
      %v1769 = vld [vmem:[%s423 + $0x28] sm:$0xf]
      %v1770 = vld [vmem:[%s423 + $0x2c] sm:$0xf]
      %v1771 = vld [vmem:[%s423 + $0x30] sm:$0xf]
      %v1772 = vld [vmem:[%s423 + $0x34] sm:$0xf]
      %v1773 = vld [vmem:[%s423 + $0x38] sm:$0xf]
      %v1774 = vld [vmem:[%s423 + $0x3c] sm:$0xf]
      %v1775 = vld [vmem:[%s423 + $0x40] sm:$0xf]
      %v1776 = vld [vmem:[%s423 + $0x44] sm:$0xf]
      %v1777 = vld [vmem:[%s423 + $0x48] sm:$0xf]
      %v1778 = vld [vmem:[%s423 + $0x4c] sm:$0xf]
      %v1779 = vld [vmem:[%s423 + $0x50] sm:$0xf]
      %v1780 = vld [vmem:[%s423 + $0x54] sm:$0xf]
      %v1781 = vld [vmem:[%s423 + $0x58] sm:$0xf]
      %v1782 = vld [vmem:[%s423 + $0x5c] sm:$0xf]
      %v1783 = vld [vmem:[%s423 + $0x60] sm:$0xf]
      %v1784 = vld [vmem:[%s423 + $0x64] sm:$0xf]
      %v1785 = vld [vmem:[%s423 + $0x68] sm:$0xf]
      %v1786 = vld [vmem:[%s423 + $0x6c] sm:$0xf]
      %v1787 = vld [vmem:[%s423 + $0x70] sm:$0xf]
      %v1788 = vld [vmem:[%s423 + $0x74] sm:$0xf]
      %v1789 = vld [vmem:[%s423 + $0x78] sm:$0xf]
      %v1790 = vld [vmem:[%s423 + $0x7c] sm:$0x1]
      %s1791 = scalar_lea.vmem %s2, 128
      %v1792 = vld [vmem:[%s1791] sm:$0xf]
      %v1793 = vld [vmem:[%s1791 + $0x4] sm:$0xf]
      %v1794 = vld [vmem:[%s1791 + $0x8] sm:$0xf]
      %v1795 = vld [vmem:[%s1791 + $0xc] sm:$0xf]
      %v1796 = vld [vmem:[%s1791 + $0x10] sm:$0xf]
      %v1797 = vld [vmem:[%s1791 + $0x14] sm:$0xf]
      %v1798 = vld [vmem:[%s1791 + $0x18] sm:$0xf]
      %v1799 = vld [vmem:[%s1791 + $0x1c] sm:$0xf]
      %v1830 = vunpack.c.l.b16 %v1761
      %v1831 = vunpack.c.l.b16 %v1762
      %v1832 = vunpack.c.l.b16 %v1763
      %v1833 = vunpack.c.l.b16 %v1764
      %v1834 = vunpack.c.l.b16 %v1765
      %v1835 = vunpack.c.l.b16 %v1766
      %v1836 = vunpack.c.l.b16 %v1767
      %v1837 = vunpack.c.l.b16 %v1768
      %v1838 = vunpack.c.l.b16 %v1769
      %v1839 = vunpack.c.l.b16 %v1770
      %v1840 = vunpack.c.l.b16 %v1771
      %v1841 = vunpack.c.l.b16 %v1772
      %v1842 = vunpack.c.l.b16 %v1773
      %v1843 = vunpack.c.l.b16 %v1774
      %v1844 = vunpack.c.l.b16 %v1775
      %v1845 = vunpack.c.l.b16 %v1776
      %v1846 = vunpack.c.l.b16 %v1777
      %v1847 = vunpack.c.l.b16 %v1778
      %v1848 = vunpack.c.l.b16 %v1779
      %v1849 = vunpack.c.l.b16 %v1780
      %v1850 = vunpack.c.l.b16 %v1781
      %v1851 = vunpack.c.l.b16 %v1782
      %v1852 = vunpack.c.l.b16 %v1783
      %v1853 = vunpack.c.l.b16 %v1784
      %v1854 = vunpack.c.l.b16 %v1785
      %v1855 = vunpack.c.l.b16 %v1786
      %v1856 = vunpack.c.l.b16 %v1787
      %v1857 = vunpack.c.l.b16 %v1788
      %v1858 = vunpack.c.l.b16 %v1789
      %v1859 = vunpack.c.l.b16 %v1790
      %v1860 = vpack.c.b16 %v1831, %v1830
      %v1861 = vpack.c.b16 %v1833, %v1832
      %v1862 = vpack.c.b16 %v1835, %v1834
      %v1863 = vpack.c.b16 %v1837, %v1836
      %v1864 = vpack.c.b16 %v1839, %v1838
      %v1865 = vpack.c.b16 %v1841, %v1840
      %v1866 = vpack.c.b16 %v1843, %v1842
      %v1867 = vpack.c.b16 %v1845, %v1844
      %v1868 = vpack.c.b16 %v1847, %v1846
      %v1869 = vpack.c.b16 %v1849, %v1848
      %v1870 = vpack.c.b16 %v1851, %v1850
      %v1871 = vpack.c.b16 %v1853, %v1852
      %v1872 = vpack.c.b16 %v1855, %v1854
      %v1873 = vpack.c.b16 %v1857, %v1856
      %v1874 = vpack.c.b16 %v1859, %v1858
      %v1876 = vshrl.u32 %v1860, 16
      %v1878 = vshll.u32 %v1860, 16
      %v1880 = vrot.slane %v1878, 1
      %v1881 = vor.u32 %v1876, %v1880
      %v1883 = vshll.u32 %v1861, 16
      %v1885 = vrot.slane %v1883, 1
      %v1886 = vsel %vm557, %v1881, %v1885
      %v1887 = vshrl.u32 %v1861, 16
      %v1889 = vor.u32 %v1887, %v1885
      %v1891 = vshll.u32 %v1862, 16
      %v1893 = vrot.slane %v1891, 1
      %v1894 = vsel %vm557, %v1889, %v1893
      %v1895 = vshrl.u32 %v1862, 16
      %v1897 = vor.u32 %v1895, %v1893
      %v1899 = vshll.u32 %v1863, 16
      %v1901 = vrot.slane %v1899, 1
      %v1902 = vsel %vm557, %v1897, %v1901
      %v1903 = vshrl.u32 %v1863, 16
      %v1905 = vor.u32 %v1903, %v1901
      %v1907 = vshll.u32 %v1864, 16
      %v1909 = vrot.slane %v1907, 1
      %v1910 = vsel %vm557, %v1905, %v1909
      %v1911 = vshrl.u32 %v1864, 16
      %v1913 = vor.u32 %v1911, %v1909
      %v1915 = vshll.u32 %v1865, 16
      %v1917 = vrot.slane %v1915, 1
      %v1918 = vsel %vm557, %v1913, %v1917
      %v1919 = vshrl.u32 %v1865, 16
      %v1921 = vor.u32 %v1919, %v1917
      %v1923 = vshll.u32 %v1866, 16
      %v1925 = vrot.slane %v1923, 1
      %v1926 = vsel %vm557, %v1921, %v1925
      %v1927 = vshrl.u32 %v1866, 16
      %v1929 = vor.u32 %v1927, %v1925
      %v1931 = vshll.u32 %v1867, 16
      %v1933 = vrot.slane %v1931, 1
      %v1934 = vsel %vm557, %v1929, %v1933
      %v1935 = vshrl.u32 %v1867, 16
      %v1937 = vor.u32 %v1935, %v1933
      %v1939 = vshll.u32 %v1868, 16
      %v1941 = vrot.slane %v1939, 1
      %v1942 = vsel %vm557, %v1937, %v1941
      %v1943 = vshrl.u32 %v1868, 16
      %v1945 = vor.u32 %v1943, %v1941
      %v1947 = vshll.u32 %v1869, 16
      %v1949 = vrot.slane %v1947, 1
      %v1950 = vsel %vm557, %v1945, %v1949
      %v1951 = vshrl.u32 %v1869, 16
      %v1953 = vor.u32 %v1951, %v1949
      %v1955 = vshll.u32 %v1870, 16
      %v1957 = vrot.slane %v1955, 1
      %v1958 = vsel %vm557, %v1953, %v1957
      %v1959 = vshrl.u32 %v1870, 16
      %v1961 = vor.u32 %v1959, %v1957
      %v1963 = vshll.u32 %v1871, 16
      %v1965 = vrot.slane %v1963, 1
      %v1966 = vsel %vm557, %v1961, %v1965
      %v1967 = vshrl.u32 %v1871, 16
      %v1969 = vor.u32 %v1967, %v1965
      %v1971 = vshll.u32 %v1872, 16
      %v1973 = vrot.slane %v1971, 1
      %v1974 = vsel %vm557, %v1969, %v1973
      %v1975 = vshrl.u32 %v1872, 16
      %v1977 = vor.u32 %v1975, %v1973
      %v1979 = vshll.u32 %v1873, 16
      %v1981 = vrot.slane %v1979, 1
      %v1982 = vsel %vm557, %v1977, %v1981
      %v1983 = vshrl.u32 %v1873, 16
      %v1985 = vor.u32 %v1983, %v1981
      %v1987 = vshll.u32 %v1874, 16
      %v1989 = vrot.slane %v1987, 1
      %v1990 = vsel %vm557, %v1985, %v1989
      %v1991 = vshrl.u32 %v1874, 16
      %v1993 = vor.u32 %v1991, %v1989
      %v2002 = vunpack.c.l.b16 %v1792
      %v2003 = vunpack.c.l.b16 %v1793
      %v2004 = vunpack.c.l.b16 %v1794
      %v2005 = vunpack.c.l.b16 %v1795
      %v2006 = vunpack.c.l.b16 %v1796
      %v2007 = vunpack.c.l.b16 %v1797
      %v2008 = vunpack.c.l.b16 %v1798
      %v2009 = vunpack.c.l.b16 %v1799
      %v2010 = vpack.c.b16 %v2003, %v2002
      %v2011 = vpack.c.b16 %v2005, %v2004
      %v2012 = vpack.c.b16 %v2007, %v2006
      %v2013 = vpack.c.b16 %v2009, %v2008
      %v2019 = vsel %vm701, %v1886, 0
      %v2022 = vsel %vm701, %v1894, 0
      %v2025 = vsel %vm701, %v1902, 0
      %v2028 = vsel %vm701, %v1910, 0
      %v2031 = vsel %vm701, %v1918, 0
      %v2034 = vsel %vm701, %v1926, 0
      %v2037 = vsel %vm701, %v1934, 0
      %v2040 = vsel %vm701, %v1942, 0
      %v2043 = vsel %vm701, %v1950, 0
      %v2046 = vsel %vm701, %v1958, 0
      %v2049 = vsel %vm701, %v1966, 0
      %v2052 = vsel %vm701, %v1974, 0
      %v2055 = vsel %vm701, %v1982, 0
      %v2058 = vsel %vm701, %v1990, 0
      %v2061 = vsel %vm701, %v1993, 0
      %2063 = vmatprep.subr.bf16.mxu0 0
      %2064 = vmatpush1.bf16.msra.mxu0 0
      %2065 = vmatprep.subr.bf16.mxu0 0
      %2066 = vmatpush1.bf16.msra.mxu0 0
      %2067 = vmatprep.subr.bf16.mxu0 0
      %2068 = vmatpush1.bf16.msra.mxu0 0
      %2069 = vmatprep.subr.bf16.mxu0 0
      %2070 = vmatpush1.bf16.msra.mxu0 0
      %2071 = vmatprep.subr.bf16.mxu0 0
      %2072 = vmatpush1.bf16.msra.mxu0 %v2013
      %2073 = vmatprep.subr.bf16.mxu0 0
      %2074 = vmatpush1.bf16.msra.mxu0 %v2012
      %2075 = vmatprep.subr.bf16.mxu0 0
      %2076 = vmatpush1.bf16.msra.mxu0 %v2011
      %2077 = vmatprep.subr.bf16.mxu0 0
      %2078 = vmatpush1.bf16.msra.mxu0 %v2010
      %2079 = vmatprep.subr.bf16.mxu0 0
      %2080 = vmatpush2.bf16.msra.mxu0 0
      %2081 = vmatprep.subr.bf16.mxu0 0
      %2082 = vmatpush2.bf16.msra.mxu0 0
      %2083 = vmatprep.subr.bf16.mxu0 0
      %2084 = vmatpush2.bf16.msra.mxu0 0
      %2085 = vmatprep.subr.bf16.mxu0 0
      %2086 = vmatpush2.bf16.msra.mxu0 0
      %2087 = vmatprep.subr.bf16.mxu0 0
      %2088 = vmatpush2.bf16.msra.mxu0 0
      %2089 = vmatprep.subr.bf16.mxu0 0
      %2090 = vmatpush2.bf16.msra.mxu0 0
      %2091 = vmatprep.subr.bf16.mxu0 0
      %2092 = vmatpush2.bf16.msra.mxu0 0
      %2093 = vmatprep.subr.bf16.mxu0 0
      %2094 = vmatpush2.bf16.msra.mxu0 0
      %2095 = vmatprep.mubr.bf16.mxu0 0
      %2096 = vmatmul.mubr.bf16.gmra.mxu0 %v2019
      %v2097 = vpop.f32.mrf.mxu0
      %v2098 = vadd.f32 0.0, %v2097
      %v2099 = vpop.f32.mrf.mxu0
      %v2100 = vpop.f32.mrf.mxu0
      %v2101 = vadd.f32 0.0, %v2100
      %v2102 = vpop.f32.mrf.mxu0
      %2103 = vmatprep.mubr.bf16.mxu0 0
      %2104 = vmatmul.mubr.bf16.gmra.mxu0 %v2022
      %v2105 = vpop.f32.mrf.mxu0
      %v2106 = vadd.f32 0.0, %v2105
      %v2107 = vpop.f32.mrf.mxu0
      %v2108 = vpop.f32.mrf.mxu0
      %v2109 = vadd.f32 0.0, %v2108
      %v2110 = vpop.f32.mrf.mxu0
      %2111 = vmatprep.mubr.bf16.mxu0 0
      %2112 = vmatmul.mubr.bf16.gmra.mxu0 %v2025
      %v2113 = vpop.f32.mrf.mxu0
      %v2114 = vadd.f32 0.0, %v2113
      %v2115 = vpop.f32.mrf.mxu0
      %v2116 = vpop.f32.mrf.mxu0
      %v2117 = vadd.f32 0.0, %v2116
      %v2118 = vpop.f32.mrf.mxu0
      %2119 = vmatprep.mubr.bf16.mxu0 0
      %2120 = vmatmul.mubr.bf16.gmra.mxu0 %v2028
      %v2121 = vpop.f32.mrf.mxu0
      %v2122 = vadd.f32 0.0, %v2121
      %v2123 = vpop.f32.mrf.mxu0
      %v2124 = vpop.f32.mrf.mxu0
      %v2125 = vadd.f32 0.0, %v2124
      %v2126 = vpop.f32.mrf.mxu0
      %2127 = vmatprep.mubr.bf16.mxu0 0
      %2128 = vmatmul.mubr.bf16.gmra.mxu0 %v2031
      %v2129 = vpop.f32.mrf.mxu0
      %v2130 = vadd.f32 0.0, %v2129
      %v2131 = vpop.f32.mrf.mxu0
      %v2132 = vpop.f32.mrf.mxu0
      %v2133 = vadd.f32 0.0, %v2132
      %v2134 = vpop.f32.mrf.mxu0
      %2135 = vmatprep.mubr.bf16.mxu0 0
      %2136 = vmatmul.mubr.bf16.gmra.mxu0 %v2034
      %v2137 = vpop.f32.mrf.mxu0
      %v2138 = vadd.f32 0.0, %v2137
      %v2139 = vpop.f32.mrf.mxu0
      %v2140 = vpop.f32.mrf.mxu0
      %v2141 = vadd.f32 0.0, %v2140
      %v2142 = vpop.f32.mrf.mxu0
      %2143 = vmatprep.mubr.bf16.mxu0 0
      %2144 = vmatmul.mubr.bf16.gmra.mxu0 %v2037
      %v2145 = vpop.f32.mrf.mxu0
      %v2146 = vadd.f32 0.0, %v2145
      %v2147 = vpop.f32.mrf.mxu0
      %v2148 = vpop.f32.mrf.mxu0
      %v2149 = vadd.f32 0.0, %v2148
      %v2150 = vpop.f32.mrf.mxu0
      %2151 = vmatprep.mubr.bf16.mxu0 0
      %2152 = vmatmul.mubr.bf16.gmra.mxu0 %v2040
      %v2153 = vpop.f32.mrf.mxu0
      %v2154 = vadd.f32 0.0, %v2153
      %v2155 = vpop.f32.mrf.mxu0
      %v2156 = vpop.f32.mrf.mxu0
      %v2157 = vadd.f32 0.0, %v2156
      %v2158 = vpop.f32.mrf.mxu0
      %2159 = vmatprep.mubr.bf16.mxu0 0
      %2160 = vmatmul.mubr.bf16.gmra.mxu0 %v2043
      %v2161 = vpop.f32.mrf.mxu0
      %v2162 = vadd.f32 0.0, %v2161
      %v2163 = vpop.f32.mrf.mxu0
      %v2164 = vpop.f32.mrf.mxu0
      %v2165 = vadd.f32 0.0, %v2164
      %v2166 = vpop.f32.mrf.mxu0
      %2167 = vmatprep.mubr.bf16.mxu0 0
      %2168 = vmatmul.mubr.bf16.gmra.mxu0 %v2046
      %v2169 = vpop.f32.mrf.mxu0
      %v2170 = vadd.f32 0.0, %v2169
      %v2171 = vpop.f32.mrf.mxu0
      %v2172 = vpop.f32.mrf.mxu0
      %v2173 = vadd.f32 0.0, %v2172
      %v2174 = vpop.f32.mrf.mxu0
      %2175 = vmatprep.mubr.bf16.mxu0 0
      %2176 = vmatmul.mubr.bf16.gmra.mxu0 %v2049
      %v2177 = vpop.f32.mrf.mxu0
      %v2178 = vadd.f32 0.0, %v2177
      %v2179 = vpop.f32.mrf.mxu0
      %v2180 = vpop.f32.mrf.mxu0
      %v2181 = vadd.f32 0.0, %v2180
      %v2182 = vpop.f32.mrf.mxu0
      %2183 = vmatprep.mubr.bf16.mxu0 0
      %2184 = vmatmul.mubr.bf16.gmra.mxu0 %v2052
      %v2185 = vpop.f32.mrf.mxu0
      %v2186 = vadd.f32 0.0, %v2185
      %v2187 = vpop.f32.mrf.mxu0
      %v2188 = vpop.f32.mrf.mxu0
      %v2189 = vadd.f32 0.0, %v2188
      %v2190 = vpop.f32.mrf.mxu0
      %2191 = vmatprep.mubr.bf16.mxu0 0
      %2192 = vmatmul.mubr.bf16.gmra.mxu0 %v2055
      %v2193 = vpop.f32.mrf.mxu0
      %v2194 = vadd.f32 0.0, %v2193
      %v2195 = vpop.f32.mrf.mxu0
      %v2196 = vpop.f32.mrf.mxu0
      %v2197 = vadd.f32 0.0, %v2196
      %v2198 = vpop.f32.mrf.mxu0
      %2199 = vmatprep.mubr.bf16.mxu0 0
      %2200 = vmatmul.mubr.bf16.gmra.mxu0 %v2058
      %v2201 = vpop.f32.mrf.mxu0
      %v2202 = vadd.f32 0.0, %v2201
      %v2203 = vpop.f32.mrf.mxu0
      %v2204 = vpop.f32.mrf.mxu0
      %v2205 = vadd.f32 0.0, %v2204
      %v2206 = vpop.f32.mrf.mxu0
      %2207 = vmatprep.mubr.bf16.mxu0 0
      %2208 = vmatmul.mubr.bf16.gmra.mxu0 %v2061
      %v2209 = vpop.f32.mrf.mxu0
      %v2210 = vadd.f32 0.0, %v2209
      %v2211 = vpop.f32.mrf.mxu0
      %v2212 = vpop.f32.mrf.mxu0
      %v2213 = vpop.f32.mrf.mxu0
      %2214 = vdwg.mxu0
      %v2215 = vadd.f32 %v1732, %v2098
      %v2216 = vadd.f32 %v1733, %v2101
      %v2217 = vadd.f32 %v1734, %v2106
      %v2218 = vadd.f32 %v1735, %v2109
      %v2219 = vadd.f32 %v1736, %v2114
      %v2220 = vadd.f32 %v1737, %v2117
      %v2221 = vadd.f32 %v1738, %v2122
      %v2222 = vadd.f32 %v1739, %v2125
      %v2223 = vadd.f32 %v1740, %v2130
      %v2224 = vadd.f32 %v1741, %v2133
      %v2225 = vadd.f32 %v1742, %v2138
      %v2226 = vadd.f32 %v1743, %v2141
      %v2227 = vadd.f32 %v1744, %v2146
      %v2228 = vadd.f32 %v1745, %v2149
      %v2229 = vadd.f32 %v1746, %v2154
      %v2230 = vadd.f32 %v1747, %v2157
      %v2231 = vadd.f32 %v1748, %v2162
      %v2232 = vadd.f32 %v1749, %v2165
      %v2233 = vadd.f32 %v1750, %v2170
      %v2234 = vadd.f32 %v1751, %v2173
      %v2235 = vadd.f32 %v1752, %v2178
      %v2236 = vadd.f32 %v1753, %v2181
      %v2237 = vadd.f32 %v1754, %v2186
      %v2238 = vadd.f32 %v1755, %v2189
      %v2239 = vadd.f32 %v1756, %v2194
      %v2240 = vadd.f32 %v1757, %v2197
      %v2241 = vadd.f32 %v1758, %v2202
      %v2242 = vadd.f32 %v1759, %v2205
      %v2243 = vadd.f32 %v1760, %v2210
      %v2244 = vld [vmem:[%s423 + $0x8] sm:$0xe]
      %s2245 = scalar_lea.vmem %s2, 160
      %v2246 = vld [vmem:[%s2245] sm:$0xf]
      %v2247 = vld [vmem:[%s2245 + $0x4] sm:$0xf]
      %v2248 = vld [vmem:[%s2245 + $0x8] sm:$0xf]
      %v2249 = vld [vmem:[%s2245 + $0xc] sm:$0xf]
      %v2250 = vld [vmem:[%s2245 + $0x10] sm:$0xf]
      %v2251 = vld [vmem:[%s2245 + $0x14] sm:$0xf]
      %v2252 = vld [vmem:[%s2245 + $0x18] sm:$0xf]
      %v2253 = vld [vmem:[%s2245 + $0x1c] sm:$0xf]
      %v2255 = vunpack.c.l.b16 %v2244
      %v2256 = vpack.c.b16 %v1831, %v2255
      %v2257 = vrot.slane %v2256, 1
      %v2258 = vrot.slane %v1861, 1
      %v2259 = vsel %vm1120, %v2257, %v2258
      %v2260 = vrot.slane %v1862, 1
      %v2261 = vsel %vm1120, %v2258, %v2260
      %v2262 = vrot.slane %v1863, 1
      %v2263 = vsel %vm1120, %v2260, %v2262
      %v2264 = vrot.slane %v1864, 1
      %v2265 = vsel %vm1120, %v2262, %v2264
      %v2266 = vrot.slane %v1865, 1
      %v2267 = vsel %vm1120, %v2264, %v2266
      %v2268 = vrot.slane %v1866, 1
      %v2269 = vsel %vm1120, %v2266, %v2268
      %v2270 = vrot.slane %v1867, 1
      %v2271 = vsel %vm1120, %v2268, %v2270
      %v2272 = vrot.slane %v1868, 1
      %v2273 = vsel %vm1120, %v2270, %v2272
      %v2274 = vrot.slane %v1869, 1
      %v2275 = vsel %vm1120, %v2272, %v2274
      %v2276 = vrot.slane %v1870, 1
      %v2277 = vsel %vm1120, %v2274, %v2276
      %v2278 = vrot.slane %v1871, 1
      %v2279 = vsel %vm1120, %v2276, %v2278
      %v2280 = vrot.slane %v1872, 1
      %v2281 = vsel %vm1120, %v2278, %v2280
      %v2282 = vrot.slane %v1873, 1
      %v2283 = vsel %vm1120, %v2280, %v2282
      %v2284 = vrot.slane %v1874, 1
      %v2285 = vsel %vm1120, %v2282, %v2284
      %v2294 = vunpack.c.l.b16 %v2246
      %v2295 = vunpack.c.l.b16 %v2247
      %v2296 = vunpack.c.l.b16 %v2248
      %v2297 = vunpack.c.l.b16 %v2249
      %v2298 = vunpack.c.l.b16 %v2250
      %v2299 = vunpack.c.l.b16 %v2251
      %v2300 = vunpack.c.l.b16 %v2252
      %v2301 = vunpack.c.l.b16 %v2253
      %v2302 = vpack.c.b16 %v2295, %v2294
      %v2303 = vpack.c.b16 %v2297, %v2296
      %v2304 = vpack.c.b16 %v2299, %v2298
      %v2305 = vpack.c.b16 %v2301, %v2300
      %v2311 = vsel %vm701, %v2259, 0
      %v2314 = vsel %vm701, %v2261, 0
      %v2317 = vsel %vm701, %v2263, 0
      %v2320 = vsel %vm701, %v2265, 0
      %v2323 = vsel %vm701, %v2267, 0
      %v2326 = vsel %vm701, %v2269, 0
      %v2329 = vsel %vm701, %v2271, 0
      %v2332 = vsel %vm701, %v2273, 0
      %v2335 = vsel %vm701, %v2275, 0
      %v2338 = vsel %vm701, %v2277, 0
      %v2341 = vsel %vm701, %v2279, 0
      %v2344 = vsel %vm701, %v2281, 0
      %v2347 = vsel %vm701, %v2283, 0
      %v2350 = vsel %vm701, %v2285, 0
      %v2353 = vsel %vm701, %v2284, 0
      %2355 = vmatprep.subr.bf16.mxu0 0
      %2356 = vmatpush1.bf16.msra.mxu0 0
      %2357 = vmatprep.subr.bf16.mxu0 0
      %2358 = vmatpush1.bf16.msra.mxu0 0
      %2359 = vmatprep.subr.bf16.mxu0 0
      %2360 = vmatpush1.bf16.msra.mxu0 0
      %2361 = vmatprep.subr.bf16.mxu0 0
      %2362 = vmatpush1.bf16.msra.mxu0 0
      %2363 = vmatprep.subr.bf16.mxu0 0
      %2364 = vmatpush1.bf16.msra.mxu0 %v2305
      %2365 = vmatprep.subr.bf16.mxu0 0
      %2366 = vmatpush1.bf16.msra.mxu0 %v2304
      %2367 = vmatprep.subr.bf16.mxu0 0
      %2368 = vmatpush1.bf16.msra.mxu0 %v2303
      %2369 = vmatprep.subr.bf16.mxu0 0
      %2370 = vmatpush1.bf16.msra.mxu0 %v2302
      %2371 = vmatprep.subr.bf16.mxu0 0
      %2372 = vmatpush2.bf16.msra.mxu0 0
      %2373 = vmatprep.subr.bf16.mxu0 0
      %2374 = vmatpush2.bf16.msra.mxu0 0
      %2375 = vmatprep.subr.bf16.mxu0 0
      %2376 = vmatpush2.bf16.msra.mxu0 0
      %2377 = vmatprep.subr.bf16.mxu0 0
      %2378 = vmatpush2.bf16.msra.mxu0 0
      %2379 = vmatprep.subr.bf16.mxu0 0
      %2380 = vmatpush2.bf16.msra.mxu0 0
      %2381 = vmatprep.subr.bf16.mxu0 0
      %2382 = vmatpush2.bf16.msra.mxu0 0
      %2383 = vmatprep.subr.bf16.mxu0 0
      %2384 = vmatpush2.bf16.msra.mxu0 0
      %2385 = vmatprep.subr.bf16.mxu0 0
      %2386 = vmatpush2.bf16.msra.mxu0 0
      %2387 = vmatprep.mubr.bf16.mxu0 0
      %2388 = vmatmul.mubr.bf16.gmra.mxu0 %v2311
      %v2389 = vpop.f32.mrf.mxu0
      %v2390 = vadd.f32 0.0, %v2389
      %v2391 = vpop.f32.mrf.mxu0
      %v2392 = vpop.f32.mrf.mxu0
      %v2393 = vadd.f32 0.0, %v2392
      %v2394 = vpop.f32.mrf.mxu0
      %2395 = vmatprep.mubr.bf16.mxu0 0
      %2396 = vmatmul.mubr.bf16.gmra.mxu0 %v2314
      %v2397 = vpop.f32.mrf.mxu0
      %v2398 = vadd.f32 0.0, %v2397
      %v2399 = vpop.f32.mrf.mxu0
      %v2400 = vpop.f32.mrf.mxu0
      %v2401 = vadd.f32 0.0, %v2400
      %v2402 = vpop.f32.mrf.mxu0
      %2403 = vmatprep.mubr.bf16.mxu0 0
      %2404 = vmatmul.mubr.bf16.gmra.mxu0 %v2317
      %v2405 = vpop.f32.mrf.mxu0
      %v2406 = vadd.f32 0.0, %v2405
      %v2407 = vpop.f32.mrf.mxu0
      %v2408 = vpop.f32.mrf.mxu0
      %v2409 = vadd.f32 0.0, %v2408
      %v2410 = vpop.f32.mrf.mxu0
      %2411 = vmatprep.mubr.bf16.mxu0 0
      %2412 = vmatmul.mubr.bf16.gmra.mxu0 %v2320
      %v2413 = vpop.f32.mrf.mxu0
      %v2414 = vadd.f32 0.0, %v2413
      %v2415 = vpop.f32.mrf.mxu0
      %v2416 = vpop.f32.mrf.mxu0
      %v2417 = vadd.f32 0.0, %v2416
      %v2418 = vpop.f32.mrf.mxu0
      %2419 = vmatprep.mubr.bf16.mxu0 0
      %2420 = vmatmul.mubr.bf16.gmra.mxu0 %v2323
      %v2421 = vpop.f32.mrf.mxu0
      %v2422 = vadd.f32 0.0, %v2421
      %v2423 = vpop.f32.mrf.mxu0
      %v2424 = vpop.f32.mrf.mxu0
      %v2425 = vadd.f32 0.0, %v2424
      %v2426 = vpop.f32.mrf.mxu0
      %2427 = vmatprep.mubr.bf16.mxu0 0
      %2428 = vmatmul.mubr.bf16.gmra.mxu0 %v2326
      %v2429 = vpop.f32.mrf.mxu0
      %v2430 = vadd.f32 0.0, %v2429
      %v2431 = vpop.f32.mrf.mxu0
      %v2432 = vpop.f32.mrf.mxu0
      %v2433 = vadd.f32 0.0, %v2432
      %v2434 = vpop.f32.mrf.mxu0
      %2435 = vmatprep.mubr.bf16.mxu0 0
      %2436 = vmatmul.mubr.bf16.gmra.mxu0 %v2329
      %v2437 = vpop.f32.mrf.mxu0
      %v2438 = vadd.f32 0.0, %v2437
      %v2439 = vpop.f32.mrf.mxu0
      %v2440 = vpop.f32.mrf.mxu0
      %v2441 = vadd.f32 0.0, %v2440
      %v2442 = vpop.f32.mrf.mxu0
      %2443 = vmatprep.mubr.bf16.mxu0 0
      %2444 = vmatmul.mubr.bf16.gmra.mxu0 %v2332
      %v2445 = vpop.f32.mrf.mxu0
      %v2446 = vadd.f32 0.0, %v2445
      %v2447 = vpop.f32.mrf.mxu0
      %v2448 = vpop.f32.mrf.mxu0
      %v2449 = vadd.f32 0.0, %v2448
      %v2450 = vpop.f32.mrf.mxu0
      %2451 = vmatprep.mubr.bf16.mxu0 0
      %2452 = vmatmul.mubr.bf16.gmra.mxu0 %v2335
      %v2453 = vpop.f32.mrf.mxu0
      %v2454 = vadd.f32 0.0, %v2453
      %v2455 = vpop.f32.mrf.mxu0
      %v2456 = vpop.f32.mrf.mxu0
      %v2457 = vadd.f32 0.0, %v2456
      %v2458 = vpop.f32.mrf.mxu0
      %2459 = vmatprep.mubr.bf16.mxu0 0
      %2460 = vmatmul.mubr.bf16.gmra.mxu0 %v2338
      %v2461 = vpop.f32.mrf.mxu0
      %v2462 = vadd.f32 0.0, %v2461
      %v2463 = vpop.f32.mrf.mxu0
      %v2464 = vpop.f32.mrf.mxu0
      %v2465 = vadd.f32 0.0, %v2464
      %v2466 = vpop.f32.mrf.mxu0
      %2467 = vmatprep.mubr.bf16.mxu0 0
      %2468 = vmatmul.mubr.bf16.gmra.mxu0 %v2341
      %v2469 = vpop.f32.mrf.mxu0
      %v2470 = vadd.f32 0.0, %v2469
      %v2471 = vpop.f32.mrf.mxu0
      %v2472 = vpop.f32.mrf.mxu0
      %v2473 = vadd.f32 0.0, %v2472
      %v2474 = vpop.f32.mrf.mxu0
      %2475 = vmatprep.mubr.bf16.mxu0 0
      %2476 = vmatmul.mubr.bf16.gmra.mxu0 %v2344
      %v2477 = vpop.f32.mrf.mxu0
      %v2478 = vadd.f32 0.0, %v2477
      %v2479 = vpop.f32.mrf.mxu0
      %v2480 = vpop.f32.mrf.mxu0
      %v2481 = vadd.f32 0.0, %v2480
      %v2482 = vpop.f32.mrf.mxu0
      %2483 = vmatprep.mubr.bf16.mxu0 0
      %2484 = vmatmul.mubr.bf16.gmra.mxu0 %v2347
      %v2485 = vpop.f32.mrf.mxu0
      %v2486 = vadd.f32 0.0, %v2485
      %v2487 = vpop.f32.mrf.mxu0
      %v2488 = vpop.f32.mrf.mxu0
      %v2489 = vadd.f32 0.0, %v2488
      %v2490 = vpop.f32.mrf.mxu0
      %2491 = vmatprep.mubr.bf16.mxu0 0
      %2492 = vmatmul.mubr.bf16.gmra.mxu0 %v2350
      %v2493 = vpop.f32.mrf.mxu0
      %v2494 = vadd.f32 0.0, %v2493
      %v2495 = vpop.f32.mrf.mxu0
      %v2496 = vpop.f32.mrf.mxu0
      %v2497 = vadd.f32 0.0, %v2496
      %v2498 = vpop.f32.mrf.mxu0
      %2499 = vmatprep.mubr.bf16.mxu0 0
      %2500 = vmatmul.mubr.bf16.gmra.mxu0 %v2353
      %v2501 = vpop.f32.mrf.mxu0
      %v2502 = vadd.f32 0.0, %v2501
      %v2503 = vpop.f32.mrf.mxu0
      %v2504 = vpop.f32.mrf.mxu0
      %v2505 = vpop.f32.mrf.mxu0
      %2506 = vdwg.mxu0
      %v2507 = vadd.f32 %v2215, %v2390
      %v2508 = vadd.f32 %v2216, %v2393
      %v2509 = vadd.f32 %v2217, %v2398
      %v2510 = vadd.f32 %v2218, %v2401
      %v2511 = vadd.f32 %v2219, %v2406
      %v2512 = vadd.f32 %v2220, %v2409
      %v2513 = vadd.f32 %v2221, %v2414
      %v2514 = vadd.f32 %v2222, %v2417
      %v2515 = vadd.f32 %v2223, %v2422
      %v2516 = vadd.f32 %v2224, %v2425
      %v2517 = vadd.f32 %v2225, %v2430
      %v2518 = vadd.f32 %v2226, %v2433
      %v2519 = vadd.f32 %v2227, %v2438
      %v2520 = vadd.f32 %v2228, %v2441
      %v2521 = vadd.f32 %v2229, %v2446
      %v2522 = vadd.f32 %v2230, %v2449
      %v2523 = vadd.f32 %v2231, %v2454
      %v2524 = vadd.f32 %v2232, %v2457
      %v2525 = vadd.f32 %v2233, %v2462
      %v2526 = vadd.f32 %v2234, %v2465
      %v2527 = vadd.f32 %v2235, %v2470
      %v2528 = vadd.f32 %v2236, %v2473
      %v2529 = vadd.f32 %v2237, %v2478
      %v2530 = vadd.f32 %v2238, %v2481
      %v2531 = vadd.f32 %v2239, %v2486
      %v2532 = vadd.f32 %v2240, %v2489
      %v2533 = vadd.f32 %v2241, %v2494
      %v2534 = vadd.f32 %v2242, %v2497
      %v2535 = vadd.f32 %v2243, %v2502
      %v2536 = vld [vmem:[%s423 + $0x10] sm:$0xf]
      %v2537 = vld [vmem:[%s423 + $0x14] sm:$0xf]
      %v2538 = vld [vmem:[%s423 + $0x18] sm:$0xf]
      %v2539 = vld [vmem:[%s423 + $0x1c] sm:$0xf]
      %v2540 = vld [vmem:[%s423 + $0x20] sm:$0xf]
      %v2541 = vld [vmem:[%s423 + $0x24] sm:$0xf]
      %v2542 = vld [vmem:[%s423 + $0x28] sm:$0xf]
      %v2543 = vld [vmem:[%s423 + $0x2c] sm:$0xf]
      %v2544 = vld [vmem:[%s423 + $0x30] sm:$0xf]
      %v2545 = vld [vmem:[%s423 + $0x34] sm:$0xf]
      %v2546 = vld [vmem:[%s423 + $0x38] sm:$0xf]
      %v2547 = vld [vmem:[%s423 + $0x3c] sm:$0xf]
      %v2548 = vld [vmem:[%s423 + $0x40] sm:$0xf]
      %v2549 = vld [vmem:[%s423 + $0x44] sm:$0xf]
      %v2550 = vld [vmem:[%s423 + $0x48] sm:$0xf]
      %v2551 = vld [vmem:[%s423 + $0x4c] sm:$0xf]
      %v2552 = vld [vmem:[%s423 + $0x50] sm:$0xf]
      %v2553 = vld [vmem:[%s423 + $0x54] sm:$0xf]
      %v2554 = vld [vmem:[%s423 + $0x58] sm:$0xf]
      %v2555 = vld [vmem:[%s423 + $0x5c] sm:$0xf]
      %v2556 = vld [vmem:[%s423 + $0x60] sm:$0xf]
      %v2557 = vld [vmem:[%s423 + $0x64] sm:$0xf]
      %v2558 = vld [vmem:[%s423 + $0x68] sm:$0xf]
      %v2559 = vld [vmem:[%s423 + $0x6c] sm:$0xf]
      %v2560 = vld [vmem:[%s423 + $0x70] sm:$0xf]
      %v2561 = vld [vmem:[%s423 + $0x74] sm:$0xf]
      %v2562 = vld [vmem:[%s423 + $0x78] sm:$0xf]
      %v2563 = vld [vmem:[%s423 + $0x7c] sm:$0xf]
      %v2564 = vld [vmem:[%s423 + $0x80] sm:$0xf]
      %s2565 = scalar_lea.vmem %s2, 192
      %v2566 = vld [vmem:[%s2565] sm:$0xf]
      %v2567 = vld [vmem:[%s2565 + $0x4] sm:$0xf]
      %v2568 = vld [vmem:[%s2565 + $0x8] sm:$0xf]
      %v2569 = vld [vmem:[%s2565 + $0xc] sm:$0xf]
      %v2570 = vld [vmem:[%s2565 + $0x10] sm:$0xf]
      %v2571 = vld [vmem:[%s2565 + $0x14] sm:$0xf]
      %v2572 = vld [vmem:[%s2565 + $0x18] sm:$0xf]
      %v2573 = vld [vmem:[%s2565 + $0x1c] sm:$0xf]
      %v2603 = vunpack.c.l.b16 %v2536
      %v2604 = vunpack.c.l.b16 %v2537
      %v2605 = vunpack.c.l.b16 %v2538
      %v2606 = vunpack.c.l.b16 %v2539
      %v2607 = vunpack.c.l.b16 %v2540
      %v2608 = vunpack.c.l.b16 %v2541
      %v2609 = vunpack.c.l.b16 %v2542
      %v2610 = vunpack.c.l.b16 %v2543
      %v2611 = vunpack.c.l.b16 %v2544
      %v2612 = vunpack.c.l.b16 %v2545
      %v2613 = vunpack.c.l.b16 %v2546
      %v2614 = vunpack.c.l.b16 %v2547
      %v2615 = vunpack.c.l.b16 %v2548
      %v2616 = vunpack.c.l.b16 %v2549
      %v2617 = vunpack.c.l.b16 %v2550
      %v2618 = vunpack.c.l.b16 %v2551
      %v2619 = vunpack.c.l.b16 %v2552
      %v2620 = vunpack.c.l.b16 %v2553
      %v2621 = vunpack.c.l.b16 %v2554
      %v2622 = vunpack.c.l.b16 %v2555
      %v2623 = vunpack.c.l.b16 %v2556
      %v2624 = vunpack.c.l.b16 %v2557
      %v2625 = vunpack.c.l.b16 %v2558
      %v2626 = vunpack.c.l.b16 %v2559
      %v2627 = vunpack.c.l.b16 %v2560
      %v2628 = vunpack.c.l.b16 %v2561
      %v2629 = vunpack.c.l.b16 %v2562
      %v2630 = vunpack.c.l.b16 %v2563
      %v2631 = vunpack.c.l.b16 %v2564
      %v2632 = vpack.c.b16 %v2604, %v2603
      %v2633 = vpack.c.b16 %v2606, %v2605
      %v2634 = vpack.c.b16 %v2608, %v2607
      %v2635 = vpack.c.b16 %v2610, %v2609
      %v2636 = vpack.c.b16 %v2612, %v2611
      %v2637 = vpack.c.b16 %v2614, %v2613
      %v2638 = vpack.c.b16 %v2616, %v2615
      %v2639 = vpack.c.b16 %v2618, %v2617
      %v2640 = vpack.c.b16 %v2620, %v2619
      %v2641 = vpack.c.b16 %v2622, %v2621
      %v2642 = vpack.c.b16 %v2624, %v2623
      %v2643 = vpack.c.b16 %v2626, %v2625
      %v2644 = vpack.c.b16 %v2628, %v2627
      %v2645 = vpack.c.b16 %v2630, %v2629
      %v2646 = vpack.c.b16 %v2631, %v2631
      %v2655 = vunpack.c.l.b16 %v2566
      %v2656 = vunpack.c.l.b16 %v2567
      %v2657 = vunpack.c.l.b16 %v2568
      %v2658 = vunpack.c.l.b16 %v2569
      %v2659 = vunpack.c.l.b16 %v2570
      %v2660 = vunpack.c.l.b16 %v2571
      %v2661 = vunpack.c.l.b16 %v2572
      %v2662 = vunpack.c.l.b16 %v2573
      %v2663 = vpack.c.b16 %v2656, %v2655
      %v2664 = vpack.c.b16 %v2658, %v2657
      %v2665 = vpack.c.b16 %v2660, %v2659
      %v2666 = vpack.c.b16 %v2662, %v2661
      %v2672 = vsel %vm701, %v2632, 0
      %v2675 = vsel %vm701, %v2633, 0
      %v2678 = vsel %vm701, %v2634, 0
      %v2681 = vsel %vm701, %v2635, 0
      %v2684 = vsel %vm701, %v2636, 0
      %v2687 = vsel %vm701, %v2637, 0
      %v2690 = vsel %vm701, %v2638, 0
      %v2693 = vsel %vm701, %v2639, 0
      %v2696 = vsel %vm701, %v2640, 0
      %v2699 = vsel %vm701, %v2641, 0
      %v2702 = vsel %vm701, %v2642, 0
      %v2705 = vsel %vm701, %v2643, 0
      %v2708 = vsel %vm701, %v2644, 0
      %v2711 = vsel %vm701, %v2645, 0
      %v2714 = vsel %vm701, %v2646, 0
      %2716 = vmatprep.subr.bf16.mxu0 0
      %2717 = vmatpush1.bf16.msra.mxu0 0
      %2718 = vmatprep.subr.bf16.mxu0 0
      %2719 = vmatpush1.bf16.msra.mxu0 0
      %2720 = vmatprep.subr.bf16.mxu0 0
      %2721 = vmatpush1.bf16.msra.mxu0 0
      %2722 = vmatprep.subr.bf16.mxu0 0
      %2723 = vmatpush1.bf16.msra.mxu0 0
      %2724 = vmatprep.subr.bf16.mxu0 0
      %2725 = vmatpush1.bf16.msra.mxu0 %v2666
      %2726 = vmatprep.subr.bf16.mxu0 0
      %2727 = vmatpush1.bf16.msra.mxu0 %v2665
      %2728 = vmatprep.subr.bf16.mxu0 0
      %2729 = vmatpush1.bf16.msra.mxu0 %v2664
      %2730 = vmatprep.subr.bf16.mxu0 0
      %2731 = vmatpush1.bf16.msra.mxu0 %v2663
      %2732 = vmatprep.subr.bf16.mxu0 0
      %2733 = vmatpush2.bf16.msra.mxu0 0
      %2734 = vmatprep.subr.bf16.mxu0 0
      %2735 = vmatpush2.bf16.msra.mxu0 0
      %2736 = vmatprep.subr.bf16.mxu0 0
      %2737 = vmatpush2.bf16.msra.mxu0 0
      %2738 = vmatprep.subr.bf16.mxu0 0
      %2739 = vmatpush2.bf16.msra.mxu0 0
      %2740 = vmatprep.subr.bf16.mxu0 0
      %2741 = vmatpush2.bf16.msra.mxu0 0
      %2742 = vmatprep.subr.bf16.mxu0 0
      %2743 = vmatpush2.bf16.msra.mxu0 0
      %2744 = vmatprep.subr.bf16.mxu0 0
      %2745 = vmatpush2.bf16.msra.mxu0 0
      %2746 = vmatprep.subr.bf16.mxu0 0
      %2747 = vmatpush2.bf16.msra.mxu0 0
      %2748 = vmatprep.mubr.bf16.mxu0 0
      %2749 = vmatmul.mubr.bf16.gmra.mxu0 %v2672
      %v2750 = vpop.f32.mrf.mxu0
      %v2751 = vadd.f32 0.0, %v2750
      %v2752 = vpop.f32.mrf.mxu0
      %v2753 = vpop.f32.mrf.mxu0
      %v2754 = vadd.f32 0.0, %v2753
      %v2755 = vpop.f32.mrf.mxu0
      %2756 = vmatprep.mubr.bf16.mxu0 0
      %2757 = vmatmul.mubr.bf16.gmra.mxu0 %v2675
      %v2758 = vpop.f32.mrf.mxu0
      %v2759 = vadd.f32 0.0, %v2758
      %v2760 = vpop.f32.mrf.mxu0
      %v2761 = vpop.f32.mrf.mxu0
      %v2762 = vadd.f32 0.0, %v2761
      %v2763 = vpop.f32.mrf.mxu0
      %2764 = vmatprep.mubr.bf16.mxu0 0
      %2765 = vmatmul.mubr.bf16.gmra.mxu0 %v2678
      %v2766 = vpop.f32.mrf.mxu0
      %v2767 = vadd.f32 0.0, %v2766
      %v2768 = vpop.f32.mrf.mxu0
      %v2769 = vpop.f32.mrf.mxu0
      %v2770 = vadd.f32 0.0, %v2769
      %v2771 = vpop.f32.mrf.mxu0
      %2772 = vmatprep.mubr.bf16.mxu0 0
      %2773 = vmatmul.mubr.bf16.gmra.mxu0 %v2681
      %v2774 = vpop.f32.mrf.mxu0
      %v2775 = vadd.f32 0.0, %v2774
      %v2776 = vpop.f32.mrf.mxu0
      %v2777 = vpop.f32.mrf.mxu0
      %v2778 = vadd.f32 0.0, %v2777
      %v2779 = vpop.f32.mrf.mxu0
      %2780 = vmatprep.mubr.bf16.mxu0 0
      %2781 = vmatmul.mubr.bf16.gmra.mxu0 %v2684
      %v2782 = vpop.f32.mrf.mxu0
      %v2783 = vadd.f32 0.0, %v2782
      %v2784 = vpop.f32.mrf.mxu0
      %v2785 = vpop.f32.mrf.mxu0
      %v2786 = vadd.f32 0.0, %v2785
      %v2787 = vpop.f32.mrf.mxu0
      %2788 = vmatprep.mubr.bf16.mxu0 0
      %2789 = vmatmul.mubr.bf16.gmra.mxu0 %v2687
      %v2790 = vpop.f32.mrf.mxu0
      %v2791 = vadd.f32 0.0, %v2790
      %v2792 = vpop.f32.mrf.mxu0
      %v2793 = vpop.f32.mrf.mxu0
      %v2794 = vadd.f32 0.0, %v2793
      %v2795 = vpop.f32.mrf.mxu0
      %2796 = vmatprep.mubr.bf16.mxu0 0
      %2797 = vmatmul.mubr.bf16.gmra.mxu0 %v2690
      %v2798 = vpop.f32.mrf.mxu0
      %v2799 = vadd.f32 0.0, %v2798
      %v2800 = vpop.f32.mrf.mxu0
      %v2801 = vpop.f32.mrf.mxu0
      %v2802 = vadd.f32 0.0, %v2801
      %v2803 = vpop.f32.mrf.mxu0
      %2804 = vmatprep.mubr.bf16.mxu0 0
      %2805 = vmatmul.mubr.bf16.gmra.mxu0 %v2693
      %v2806 = vpop.f32.mrf.mxu0
      %v2807 = vadd.f32 0.0, %v2806
      %v2808 = vpop.f32.mrf.mxu0
      %v2809 = vpop.f32.mrf.mxu0
      %v2810 = vadd.f32 0.0, %v2809
      %v2811 = vpop.f32.mrf.mxu0
      %2812 = vmatprep.mubr.bf16.mxu0 0
      %2813 = vmatmul.mubr.bf16.gmra.mxu0 %v2696
      %v2814 = vpop.f32.mrf.mxu0
      %v2815 = vadd.f32 0.0, %v2814
      %v2816 = vpop.f32.mrf.mxu0
      %v2817 = vpop.f32.mrf.mxu0
      %v2818 = vadd.f32 0.0, %v2817
      %v2819 = vpop.f32.mrf.mxu0
      %2820 = vmatprep.mubr.bf16.mxu0 0
      %2821 = vmatmul.mubr.bf16.gmra.mxu0 %v2699
      %v2822 = vpop.f32.mrf.mxu0
      %v2823 = vadd.f32 0.0, %v2822
      %v2824 = vpop.f32.mrf.mxu0
      %v2825 = vpop.f32.mrf.mxu0
      %v2826 = vadd.f32 0.0, %v2825
      %v2827 = vpop.f32.mrf.mxu0
      %2828 = vmatprep.mubr.bf16.mxu0 0
      %2829 = vmatmul.mubr.bf16.gmra.mxu0 %v2702
      %v2830 = vpop.f32.mrf.mxu0
      %v2831 = vadd.f32 0.0, %v2830
      %v2832 = vpop.f32.mrf.mxu0
      %v2833 = vpop.f32.mrf.mxu0
      %v2834 = vadd.f32 0.0, %v2833
      %v2835 = vpop.f32.mrf.mxu0
      %2836 = vmatprep.mubr.bf16.mxu0 0
      %2837 = vmatmul.mubr.bf16.gmra.mxu0 %v2705
      %v2838 = vpop.f32.mrf.mxu0
      %v2839 = vadd.f32 0.0, %v2838
      %v2840 = vpop.f32.mrf.mxu0
      %v2841 = vpop.f32.mrf.mxu0
      %v2842 = vadd.f32 0.0, %v2841
      %v2843 = vpop.f32.mrf.mxu0
      %2844 = vmatprep.mubr.bf16.mxu0 0
      %2845 = vmatmul.mubr.bf16.gmra.mxu0 %v2708
      %v2846 = vpop.f32.mrf.mxu0
      %v2847 = vadd.f32 0.0, %v2846
      %v2848 = vpop.f32.mrf.mxu0
      %v2849 = vpop.f32.mrf.mxu0
      %v2850 = vadd.f32 0.0, %v2849
      %v2851 = vpop.f32.mrf.mxu0
      %2852 = vmatprep.mubr.bf16.mxu0 0
      %2853 = vmatmul.mubr.bf16.gmra.mxu0 %v2711
      %v2854 = vpop.f32.mrf.mxu0
      %v2855 = vadd.f32 0.0, %v2854
      %v2856 = vpop.f32.mrf.mxu0
      %v2857 = vpop.f32.mrf.mxu0
      %v2858 = vadd.f32 0.0, %v2857
      %v2859 = vpop.f32.mrf.mxu0
      %2860 = vmatprep.mubr.bf16.mxu0 0
      %2861 = vmatmul.mubr.bf16.gmra.mxu0 %v2714
      %v2862 = vpop.f32.mrf.mxu0
      %v2863 = vadd.f32 0.0, %v2862
      %v2864 = vpop.f32.mrf.mxu0
      %v2865 = vpop.f32.mrf.mxu0
      %v2866 = vpop.f32.mrf.mxu0
      %2867 = vdwg.mxu0
      %v2868 = vadd.f32 %v2507, %v2751
      %v2869 = vadd.f32 %v2508, %v2754
      %v2870 = vadd.f32 %v2509, %v2759
      %v2871 = vadd.f32 %v2510, %v2762
      %v2872 = vadd.f32 %v2511, %v2767
      %v2873 = vadd.f32 %v2512, %v2770
      %v2874 = vadd.f32 %v2513, %v2775
      %v2875 = vadd.f32 %v2514, %v2778
      %v2876 = vadd.f32 %v2515, %v2783
      %v2877 = vadd.f32 %v2516, %v2786
      %v2878 = vadd.f32 %v2517, %v2791
      %v2879 = vadd.f32 %v2518, %v2794
      %v2880 = vadd.f32 %v2519, %v2799
      %v2881 = vadd.f32 %v2520, %v2802
      %v2882 = vadd.f32 %v2521, %v2807
      %v2883 = vadd.f32 %v2522, %v2810
      %v2884 = vadd.f32 %v2523, %v2815
      %v2885 = vadd.f32 %v2524, %v2818
      %v2886 = vadd.f32 %v2525, %v2823
      %v2887 = vadd.f32 %v2526, %v2826
      %v2888 = vadd.f32 %v2527, %v2831
      %v2889 = vadd.f32 %v2528, %v2834
      %v2890 = vadd.f32 %v2529, %v2839
      %v2891 = vadd.f32 %v2530, %v2842
      %v2892 = vadd.f32 %v2531, %v2847
      %v2893 = vadd.f32 %v2532, %v2850
      %v2894 = vadd.f32 %v2533, %v2855
      %v2895 = vadd.f32 %v2534, %v2858
      %v2896 = vadd.f32 %v2535, %v2863
      %v2897 = vld [vmem:[%s423 + $0x10] sm:$0xf]
      %v2898 = vld [vmem:[%s423 + $0x14] sm:$0xf]
      %v2899 = vld [vmem:[%s423 + $0x18] sm:$0xf]
      %v2900 = vld [vmem:[%s423 + $0x1c] sm:$0xf]
      %v2901 = vld [vmem:[%s423 + $0x20] sm:$0xf]
      %v2902 = vld [vmem:[%s423 + $0x24] sm:$0xf]
      %v2903 = vld [vmem:[%s423 + $0x28] sm:$0xf]
      %v2904 = vld [vmem:[%s423 + $0x2c] sm:$0xf]
      %v2905 = vld [vmem:[%s423 + $0x30] sm:$0xf]
      %v2906 = vld [vmem:[%s423 + $0x34] sm:$0xf]
      %v2907 = vld [vmem:[%s423 + $0x38] sm:$0xf]
      %v2908 = vld [vmem:[%s423 + $0x3c] sm:$0xf]
      %v2909 = vld [vmem:[%s423 + $0x40] sm:$0xf]
      %v2910 = vld [vmem:[%s423 + $0x44] sm:$0xf]
      %v2911 = vld [vmem:[%s423 + $0x48] sm:$0xf]
      %v2912 = vld [vmem:[%s423 + $0x4c] sm:$0xf]
      %v2913 = vld [vmem:[%s423 + $0x50] sm:$0xf]
      %v2914 = vld [vmem:[%s423 + $0x54] sm:$0xf]
      %v2915 = vld [vmem:[%s423 + $0x58] sm:$0xf]
      %v2916 = vld [vmem:[%s423 + $0x5c] sm:$0xf]
      %v2917 = vld [vmem:[%s423 + $0x60] sm:$0xf]
      %v2918 = vld [vmem:[%s423 + $0x64] sm:$0xf]
      %v2919 = vld [vmem:[%s423 + $0x68] sm:$0xf]
      %v2920 = vld [vmem:[%s423 + $0x6c] sm:$0xf]
      %v2921 = vld [vmem:[%s423 + $0x70] sm:$0xf]
      %v2922 = vld [vmem:[%s423 + $0x74] sm:$0xf]
      %v2923 = vld [vmem:[%s423 + $0x78] sm:$0xf]
      %v2924 = vld [vmem:[%s423 + $0x7c] sm:$0xf]
      %v2925 = vld [vmem:[%s423 + $0x80] sm:$0xf]
      %v2926 = vld [vmem:[%s423 + $0x84] sm:$0x1]
      %s2927 = scalar_lea.vmem %s2, 224
      %v2928 = vld [vmem:[%s2927] sm:$0xf]
      %v2929 = vld [vmem:[%s2927 + $0x4] sm:$0xf]
      %v2930 = vld [vmem:[%s2927 + $0x8] sm:$0xf]
      %v2931 = vld [vmem:[%s2927 + $0xc] sm:$0xf]
      %v2932 = vld [vmem:[%s2927 + $0x10] sm:$0xf]
      %v2933 = vld [vmem:[%s2927 + $0x14] sm:$0xf]
      %v2934 = vld [vmem:[%s2927 + $0x18] sm:$0xf]
      %v2935 = vld [vmem:[%s2927 + $0x1c] sm:$0xf]
      %v2966 = vunpack.c.l.b16 %v2897
      %v2967 = vunpack.c.l.b16 %v2898
      %v2968 = vunpack.c.l.b16 %v2899
      %v2969 = vunpack.c.l.b16 %v2900
      %v2970 = vunpack.c.l.b16 %v2901
      %v2971 = vunpack.c.l.b16 %v2902
      %v2972 = vunpack.c.l.b16 %v2903
      %v2973 = vunpack.c.l.b16 %v2904
      %v2974 = vunpack.c.l.b16 %v2905
      %v2975 = vunpack.c.l.b16 %v2906
      %v2976 = vunpack.c.l.b16 %v2907
      %v2977 = vunpack.c.l.b16 %v2908
      %v2978 = vunpack.c.l.b16 %v2909
      %v2979 = vunpack.c.l.b16 %v2910
      %v2980 = vunpack.c.l.b16 %v2911
      %v2981 = vunpack.c.l.b16 %v2912
      %v2982 = vunpack.c.l.b16 %v2913
      %v2983 = vunpack.c.l.b16 %v2914
      %v2984 = vunpack.c.l.b16 %v2915
      %v2985 = vunpack.c.l.b16 %v2916
      %v2986 = vunpack.c.l.b16 %v2917
      %v2987 = vunpack.c.l.b16 %v2918
      %v2988 = vunpack.c.l.b16 %v2919
      %v2989 = vunpack.c.l.b16 %v2920
      %v2990 = vunpack.c.l.b16 %v2921
      %v2991 = vunpack.c.l.b16 %v2922
      %v2992 = vunpack.c.l.b16 %v2923
      %v2993 = vunpack.c.l.b16 %v2924
      %v2994 = vunpack.c.l.b16 %v2925
      %v2995 = vunpack.c.l.b16 %v2926
      %v2996 = vpack.c.b16 %v2967, %v2966
      %v2997 = vpack.c.b16 %v2969, %v2968
      %v2998 = vpack.c.b16 %v2971, %v2970
      %v2999 = vpack.c.b16 %v2973, %v2972
      %v3000 = vpack.c.b16 %v2975, %v2974
      %v3001 = vpack.c.b16 %v2977, %v2976
      %v3002 = vpack.c.b16 %v2979, %v2978
      %v3003 = vpack.c.b16 %v2981, %v2980
      %v3004 = vpack.c.b16 %v2983, %v2982
      %v3005 = vpack.c.b16 %v2985, %v2984
      %v3006 = vpack.c.b16 %v2987, %v2986
      %v3007 = vpack.c.b16 %v2989, %v2988
      %v3008 = vpack.c.b16 %v2991, %v2990
      %v3009 = vpack.c.b16 %v2993, %v2992
      %v3010 = vpack.c.b16 %v2995, %v2994
      %v3012 = vshrl.u32 %v2996, 16
      %v3014 = vshll.u32 %v2996, 16
      %v3016 = vrot.slane %v3014, 1
      %v3017 = vor.u32 %v3012, %v3016
      %v3019 = vshll.u32 %v2997, 16
      %v3021 = vrot.slane %v3019, 1
      %v3022 = vsel %vm557, %v3017, %v3021
      %v3023 = vshrl.u32 %v2997, 16
      %v3025 = vor.u32 %v3023, %v3021
      %v3027 = vshll.u32 %v2998, 16
      %v3029 = vrot.slane %v3027, 1
      %v3030 = vsel %vm557, %v3025, %v3029
      %v3031 = vshrl.u32 %v2998, 16
      %v3033 = vor.u32 %v3031, %v3029
      %v3035 = vshll.u32 %v2999, 16
      %v3037 = vrot.slane %v3035, 1
      %v3038 = vsel %vm557, %v3033, %v3037
      %v3039 = vshrl.u32 %v2999, 16
      %v3041 = vor.u32 %v3039, %v3037
      %v3043 = vshll.u32 %v3000, 16
      %v3045 = vrot.slane %v3043, 1
      %v3046 = vsel %vm557, %v3041, %v3045
      %v3047 = vshrl.u32 %v3000, 16
      %v3049 = vor.u32 %v3047, %v3045
      %v3051 = vshll.u32 %v3001, 16
      %v3053 = vrot.slane %v3051, 1
      %v3054 = vsel %vm557, %v3049, %v3053
      %v3055 = vshrl.u32 %v3001, 16
      %v3057 = vor.u32 %v3055, %v3053
      %v3059 = vshll.u32 %v3002, 16
      %v3061 = vrot.slane %v3059, 1
      %v3062 = vsel %vm557, %v3057, %v3061
      %v3063 = vshrl.u32 %v3002, 16
      %v3065 = vor.u32 %v3063, %v3061
      %v3067 = vshll.u32 %v3003, 16
      %v3069 = vrot.slane %v3067, 1
      %v3070 = vsel %vm557, %v3065, %v3069
      %v3071 = vshrl.u32 %v3003, 16
      %v3073 = vor.u32 %v3071, %v3069
      %v3075 = vshll.u32 %v3004, 16
      %v3077 = vrot.slane %v3075, 1
      %v3078 = vsel %vm557, %v3073, %v3077
      %v3079 = vshrl.u32 %v3004, 16
      %v3081 = vor.u32 %v3079, %v3077
      %v3083 = vshll.u32 %v3005, 16
      %v3085 = vrot.slane %v3083, 1
      %v3086 = vsel %vm557, %v3081, %v3085
      %v3087 = vshrl.u32 %v3005, 16
      %v3089 = vor.u32 %v3087, %v3085
      %v3091 = vshll.u32 %v3006, 16
      %v3093 = vrot.slane %v3091, 1
      %v3094 = vsel %vm557, %v3089, %v3093
      %v3095 = vshrl.u32 %v3006, 16
      %v3097 = vor.u32 %v3095, %v3093
      %v3099 = vshll.u32 %v3007, 16
      %v3101 = vrot.slane %v3099, 1
      %v3102 = vsel %vm557, %v3097, %v3101
      %v3103 = vshrl.u32 %v3007, 16
      %v3105 = vor.u32 %v3103, %v3101
      %v3107 = vshll.u32 %v3008, 16
      %v3109 = vrot.slane %v3107, 1
      %v3110 = vsel %vm557, %v3105, %v3109
      %v3111 = vshrl.u32 %v3008, 16
      %v3113 = vor.u32 %v3111, %v3109
      %v3115 = vshll.u32 %v3009, 16
      %v3117 = vrot.slane %v3115, 1
      %v3118 = vsel %vm557, %v3113, %v3117
      %v3119 = vshrl.u32 %v3009, 16
      %v3121 = vor.u32 %v3119, %v3117
      %v3123 = vshll.u32 %v3010, 16
      %v3125 = vrot.slane %v3123, 1
      %v3126 = vsel %vm557, %v3121, %v3125
      %v3127 = vshrl.u32 %v3010, 16
      %v3129 = vor.u32 %v3127, %v3125
      %v3138 = vunpack.c.l.b16 %v2928
      %v3139 = vunpack.c.l.b16 %v2929
      %v3140 = vunpack.c.l.b16 %v2930
      %v3141 = vunpack.c.l.b16 %v2931
      %v3142 = vunpack.c.l.b16 %v2932
      %v3143 = vunpack.c.l.b16 %v2933
      %v3144 = vunpack.c.l.b16 %v2934
      %v3145 = vunpack.c.l.b16 %v2935
      %v3146 = vpack.c.b16 %v3139, %v3138
      %v3147 = vpack.c.b16 %v3141, %v3140
      %v3148 = vpack.c.b16 %v3143, %v3142
      %v3149 = vpack.c.b16 %v3145, %v3144
      %v3155 = vsel %vm701, %v3022, 0
      %v3158 = vsel %vm701, %v3030, 0
      %v3161 = vsel %vm701, %v3038, 0
      %v3164 = vsel %vm701, %v3046, 0
      %v3167 = vsel %vm701, %v3054, 0
      %v3170 = vsel %vm701, %v3062, 0
      %v3173 = vsel %vm701, %v3070, 0
      %v3176 = vsel %vm701, %v3078, 0
      %v3179 = vsel %vm701, %v3086, 0
      %v3182 = vsel %vm701, %v3094, 0
      %v3185 = vsel %vm701, %v3102, 0
      %v3188 = vsel %vm701, %v3110, 0
      %v3191 = vsel %vm701, %v3118, 0
      %v3194 = vsel %vm701, %v3126, 0
      %v3197 = vsel %vm701, %v3129, 0
      %3199 = vmatprep.subr.bf16.mxu0 0
      %3200 = vmatpush1.bf16.msra.mxu0 0
      %3201 = vmatprep.subr.bf16.mxu0 0
      %3202 = vmatpush1.bf16.msra.mxu0 0
      %3203 = vmatprep.subr.bf16.mxu0 0
      %3204 = vmatpush1.bf16.msra.mxu0 0
      %3205 = vmatprep.subr.bf16.mxu0 0
      %3206 = vmatpush1.bf16.msra.mxu0 0
      %3207 = vmatprep.subr.bf16.mxu0 0
      %3208 = vmatpush1.bf16.msra.mxu0 %v3149
      %3209 = vmatprep.subr.bf16.mxu0 0
      %3210 = vmatpush1.bf16.msra.mxu0 %v3148
      %3211 = vmatprep.subr.bf16.mxu0 0
      %3212 = vmatpush1.bf16.msra.mxu0 %v3147
      %3213 = vmatprep.subr.bf16.mxu0 0
      %3214 = vmatpush1.bf16.msra.mxu0 %v3146
      %3215 = vmatprep.subr.bf16.mxu0 0
      %3216 = vmatpush2.bf16.msra.mxu0 0
      %3217 = vmatprep.subr.bf16.mxu0 0
      %3218 = vmatpush2.bf16.msra.mxu0 0
      %3219 = vmatprep.subr.bf16.mxu0 0
      %3220 = vmatpush2.bf16.msra.mxu0 0
      %3221 = vmatprep.subr.bf16.mxu0 0
      %3222 = vmatpush2.bf16.msra.mxu0 0
      %3223 = vmatprep.subr.bf16.mxu0 0
      %3224 = vmatpush2.bf16.msra.mxu0 0
      %3225 = vmatprep.subr.bf16.mxu0 0
      %3226 = vmatpush2.bf16.msra.mxu0 0
      %3227 = vmatprep.subr.bf16.mxu0 0
      %3228 = vmatpush2.bf16.msra.mxu0 0
      %3229 = vmatprep.subr.bf16.mxu0 0
      %3230 = vmatpush2.bf16.msra.mxu0 0
      %3231 = vmatprep.mubr.bf16.mxu0 0
      %3232 = vmatmul.mubr.bf16.gmra.mxu0 %v3155
      %v3233 = vpop.f32.mrf.mxu0
      %v3234 = vadd.f32 0.0, %v3233
      %v3235 = vpop.f32.mrf.mxu0
      %v3236 = vpop.f32.mrf.mxu0
      %v3237 = vadd.f32 0.0, %v3236
      %v3238 = vpop.f32.mrf.mxu0
      %3239 = vmatprep.mubr.bf16.mxu0 0
      %3240 = vmatmul.mubr.bf16.gmra.mxu0 %v3158
      %v3241 = vpop.f32.mrf.mxu0
      %v3242 = vadd.f32 0.0, %v3241
      %v3243 = vpop.f32.mrf.mxu0
      %v3244 = vpop.f32.mrf.mxu0
      %v3245 = vadd.f32 0.0, %v3244
      %v3246 = vpop.f32.mrf.mxu0
      %3247 = vmatprep.mubr.bf16.mxu0 0
      %3248 = vmatmul.mubr.bf16.gmra.mxu0 %v3161
      %v3249 = vpop.f32.mrf.mxu0
      %v3250 = vadd.f32 0.0, %v3249
      %v3251 = vpop.f32.mrf.mxu0
      %v3252 = vpop.f32.mrf.mxu0
      %v3253 = vadd.f32 0.0, %v3252
      %v3254 = vpop.f32.mrf.mxu0
      %3255 = vmatprep.mubr.bf16.mxu0 0
      %3256 = vmatmul.mubr.bf16.gmra.mxu0 %v3164
      %v3257 = vpop.f32.mrf.mxu0
      %v3258 = vadd.f32 0.0, %v3257
      %v3259 = vpop.f32.mrf.mxu0
      %v3260 = vpop.f32.mrf.mxu0
      %v3261 = vadd.f32 0.0, %v3260
      %v3262 = vpop.f32.mrf.mxu0
      %3263 = vmatprep.mubr.bf16.mxu0 0
      %3264 = vmatmul.mubr.bf16.gmra.mxu0 %v3167
      %v3265 = vpop.f32.mrf.mxu0
      %v3266 = vadd.f32 0.0, %v3265
      %v3267 = vpop.f32.mrf.mxu0
      %v3268 = vpop.f32.mrf.mxu0
      %v3269 = vadd.f32 0.0, %v3268
      %v3270 = vpop.f32.mrf.mxu0
      %3271 = vmatprep.mubr.bf16.mxu0 0
      %3272 = vmatmul.mubr.bf16.gmra.mxu0 %v3170
      %v3273 = vpop.f32.mrf.mxu0
      %v3274 = vadd.f32 0.0, %v3273
      %v3275 = vpop.f32.mrf.mxu0
      %v3276 = vpop.f32.mrf.mxu0
      %v3277 = vadd.f32 0.0, %v3276
      %v3278 = vpop.f32.mrf.mxu0
      %3279 = vmatprep.mubr.bf16.mxu0 0
      %3280 = vmatmul.mubr.bf16.gmra.mxu0 %v3173
      %v3281 = vpop.f32.mrf.mxu0
      %v3282 = vadd.f32 0.0, %v3281
      %v3283 = vpop.f32.mrf.mxu0
      %v3284 = vpop.f32.mrf.mxu0
      %v3285 = vadd.f32 0.0, %v3284
      %v3286 = vpop.f32.mrf.mxu0
      %3287 = vmatprep.mubr.bf16.mxu0 0
      %3288 = vmatmul.mubr.bf16.gmra.mxu0 %v3176
      %v3289 = vpop.f32.mrf.mxu0
      %v3290 = vadd.f32 0.0, %v3289
      %v3291 = vpop.f32.mrf.mxu0
      %v3292 = vpop.f32.mrf.mxu0
      %v3293 = vadd.f32 0.0, %v3292
      %v3294 = vpop.f32.mrf.mxu0
      %3295 = vmatprep.mubr.bf16.mxu0 0
      %3296 = vmatmul.mubr.bf16.gmra.mxu0 %v3179
      %v3297 = vpop.f32.mrf.mxu0
      %v3298 = vadd.f32 0.0, %v3297
      %v3299 = vpop.f32.mrf.mxu0
      %v3300 = vpop.f32.mrf.mxu0
      %v3301 = vadd.f32 0.0, %v3300
      %v3302 = vpop.f32.mrf.mxu0
      %3303 = vmatprep.mubr.bf16.mxu0 0
      %3304 = vmatmul.mubr.bf16.gmra.mxu0 %v3182
      %v3305 = vpop.f32.mrf.mxu0
      %v3306 = vadd.f32 0.0, %v3305
      %v3307 = vpop.f32.mrf.mxu0
      %v3308 = vpop.f32.mrf.mxu0
      %v3309 = vadd.f32 0.0, %v3308
      %v3310 = vpop.f32.mrf.mxu0
      %3311 = vmatprep.mubr.bf16.mxu0 0
      %3312 = vmatmul.mubr.bf16.gmra.mxu0 %v3185
      %v3313 = vpop.f32.mrf.mxu0
      %v3314 = vadd.f32 0.0, %v3313
      %v3315 = vpop.f32.mrf.mxu0
      %v3316 = vpop.f32.mrf.mxu0
      %v3317 = vadd.f32 0.0, %v3316
      %v3318 = vpop.f32.mrf.mxu0
      %3319 = vmatprep.mubr.bf16.mxu0 0
      %3320 = vmatmul.mubr.bf16.gmra.mxu0 %v3188
      %v3321 = vpop.f32.mrf.mxu0
      %v3322 = vadd.f32 0.0, %v3321
      %v3323 = vpop.f32.mrf.mxu0
      %v3324 = vpop.f32.mrf.mxu0
      %v3325 = vadd.f32 0.0, %v3324
      %v3326 = vpop.f32.mrf.mxu0
      %3327 = vmatprep.mubr.bf16.mxu0 0
      %3328 = vmatmul.mubr.bf16.gmra.mxu0 %v3191
      %v3329 = vpop.f32.mrf.mxu0
      %v3330 = vadd.f32 0.0, %v3329
      %v3331 = vpop.f32.mrf.mxu0
      %v3332 = vpop.f32.mrf.mxu0
      %v3333 = vadd.f32 0.0, %v3332
      %v3334 = vpop.f32.mrf.mxu0
      %3335 = vmatprep.mubr.bf16.mxu0 0
      %3336 = vmatmul.mubr.bf16.gmra.mxu0 %v3194
      %v3337 = vpop.f32.mrf.mxu0
      %v3338 = vadd.f32 0.0, %v3337
      %v3339 = vpop.f32.mrf.mxu0
      %v3340 = vpop.f32.mrf.mxu0
      %v3341 = vadd.f32 0.0, %v3340
      %v3342 = vpop.f32.mrf.mxu0
      %3343 = vmatprep.mubr.bf16.mxu0 0
      %3344 = vmatmul.mubr.bf16.gmra.mxu0 %v3197
      %v3345 = vpop.f32.mrf.mxu0
      %v3346 = vadd.f32 0.0, %v3345
      %v3347 = vpop.f32.mrf.mxu0
      %v3348 = vpop.f32.mrf.mxu0
      %v3349 = vpop.f32.mrf.mxu0
      %3350 = vdwg.mxu0
      %v3351 = vadd.f32 %v2868, %v3234
      %v3352 = vadd.f32 %v2869, %v3237
      %v3353 = vadd.f32 %v2870, %v3242
      %v3354 = vadd.f32 %v2871, %v3245
      %v3355 = vadd.f32 %v2872, %v3250
      %v3356 = vadd.f32 %v2873, %v3253
      %v3357 = vadd.f32 %v2874, %v3258
      %v3358 = vadd.f32 %v2875, %v3261
      %v3359 = vadd.f32 %v2876, %v3266
      %v3360 = vadd.f32 %v2877, %v3269
      %v3361 = vadd.f32 %v2878, %v3274
      %v3362 = vadd.f32 %v2879, %v3277
      %v3363 = vadd.f32 %v2880, %v3282
      %v3364 = vadd.f32 %v2881, %v3285
      %v3365 = vadd.f32 %v2882, %v3290
      %v3366 = vadd.f32 %v2883, %v3293
      %v3367 = vadd.f32 %v2884, %v3298
      %v3368 = vadd.f32 %v2885, %v3301
      %v3369 = vadd.f32 %v2886, %v3306
      %v3370 = vadd.f32 %v2887, %v3309
      %v3371 = vadd.f32 %v2888, %v3314
      %v3372 = vadd.f32 %v2889, %v3317
      %v3373 = vadd.f32 %v2890, %v3322
      %v3374 = vadd.f32 %v2891, %v3325
      %v3375 = vadd.f32 %v2892, %v3330
      %v3376 = vadd.f32 %v2893, %v3333
      %v3377 = vadd.f32 %v2894, %v3338
      %v3378 = vadd.f32 %v2895, %v3341
      %v3379 = vadd.f32 %v2896, %v3346
      %v3380 = vld [vmem:[%s423 + $0x10] sm:$0xe]
      %s3381 = scalar_lea.vmem %s2, 256
      %v3382 = vld [vmem:[%s3381] sm:$0xf]
      %v3383 = vld [vmem:[%s3381 + $0x4] sm:$0xf]
      %v3384 = vld [vmem:[%s3381 + $0x8] sm:$0xf]
      %v3385 = vld [vmem:[%s3381 + $0xc] sm:$0xf]
      %v3386 = vld [vmem:[%s3381 + $0x10] sm:$0xf]
      %v3387 = vld [vmem:[%s3381 + $0x14] sm:$0xf]
      %v3388 = vld [vmem:[%s3381 + $0x18] sm:$0xf]
      %v3389 = vld [vmem:[%s3381 + $0x1c] sm:$0xf]
      %v3391 = vunpack.c.l.b16 %v3380
      %v3392 = vpack.c.b16 %v2967, %v3391
      %v3393 = vrot.slane %v3392, 1
      %v3394 = vrot.slane %v2997, 1
      %v3395 = vsel %vm1120, %v3393, %v3394
      %v3396 = vrot.slane %v2998, 1
      %v3397 = vsel %vm1120, %v3394, %v3396
      %v3398 = vrot.slane %v2999, 1
      %v3399 = vsel %vm1120, %v3396, %v3398
      %v3400 = vrot.slane %v3000, 1
      %v3401 = vsel %vm1120, %v3398, %v3400
      %v3402 = vrot.slane %v3001, 1
      %v3403 = vsel %vm1120, %v3400, %v3402
      %v3404 = vrot.slane %v3002, 1
      %v3405 = vsel %vm1120, %v3402, %v3404
      %v3406 = vrot.slane %v3003, 1
      %v3407 = vsel %vm1120, %v3404, %v3406
      %v3408 = vrot.slane %v3004, 1
      %v3409 = vsel %vm1120, %v3406, %v3408
      %v3410 = vrot.slane %v3005, 1
      %v3411 = vsel %vm1120, %v3408, %v3410
      %v3412 = vrot.slane %v3006, 1
      %v3413 = vsel %vm1120, %v3410, %v3412
      %v3414 = vrot.slane %v3007, 1
      %v3415 = vsel %vm1120, %v3412, %v3414
      %v3416 = vrot.slane %v3008, 1
      %v3417 = vsel %vm1120, %v3414, %v3416
      %v3418 = vrot.slane %v3009, 1
      %v3419 = vsel %vm1120, %v3416, %v3418
      %v3420 = vrot.slane %v3010, 1
      %v3421 = vsel %vm1120, %v3418, %v3420
      %v3430 = vunpack.c.l.b16 %v3382
      %v3431 = vunpack.c.l.b16 %v3383
      %v3432 = vunpack.c.l.b16 %v3384
      %v3433 = vunpack.c.l.b16 %v3385
      %v3434 = vunpack.c.l.b16 %v3386
      %v3435 = vunpack.c.l.b16 %v3387
      %v3436 = vunpack.c.l.b16 %v3388
      %v3437 = vunpack.c.l.b16 %v3389
      %v3438 = vpack.c.b16 %v3431, %v3430
      %v3439 = vpack.c.b16 %v3433, %v3432
      %v3440 = vpack.c.b16 %v3435, %v3434
      %v3441 = vpack.c.b16 %v3437, %v3436
      %v3447 = vsel %vm701, %v3395, 0
      %v3450 = vsel %vm701, %v3397, 0
      %v3453 = vsel %vm701, %v3399, 0
      %v3456 = vsel %vm701, %v3401, 0
      %v3459 = vsel %vm701, %v3403, 0
      %v3462 = vsel %vm701, %v3405, 0
      %v3465 = vsel %vm701, %v3407, 0
      %v3468 = vsel %vm701, %v3409, 0
      %v3471 = vsel %vm701, %v3411, 0
      %v3474 = vsel %vm701, %v3413, 0
      %v3477 = vsel %vm701, %v3415, 0
      %v3480 = vsel %vm701, %v3417, 0
      %v3483 = vsel %vm701, %v3419, 0
      %v3486 = vsel %vm701, %v3421, 0
      %v3489 = vsel %vm701, %v3420, 0
      %3491 = vmatprep.subr.bf16.mxu0 0
      %3492 = vmatpush1.bf16.msra.mxu0 0
      %3493 = vmatprep.subr.bf16.mxu0 0
      %3494 = vmatpush1.bf16.msra.mxu0 0
      %3495 = vmatprep.subr.bf16.mxu0 0
      %3496 = vmatpush1.bf16.msra.mxu0 0
      %3497 = vmatprep.subr.bf16.mxu0 0
      %3498 = vmatpush1.bf16.msra.mxu0 0
      %3499 = vmatprep.subr.bf16.mxu0 0
      %3500 = vmatpush1.bf16.msra.mxu0 %v3441
      %3501 = vmatprep.subr.bf16.mxu0 0
      %3502 = vmatpush1.bf16.msra.mxu0 %v3440
      %3503 = vmatprep.subr.bf16.mxu0 0
      %3504 = vmatpush1.bf16.msra.mxu0 %v3439
      %3505 = vmatprep.subr.bf16.mxu0 0
      %3506 = vmatpush1.bf16.msra.mxu0 %v3438
      %3507 = vmatprep.subr.bf16.mxu0 0
      %3508 = vmatpush2.bf16.msra.mxu0 0
      %3509 = vmatprep.subr.bf16.mxu0 0
      %3510 = vmatpush2.bf16.msra.mxu0 0
      %3511 = vmatprep.subr.bf16.mxu0 0
      %3512 = vmatpush2.bf16.msra.mxu0 0
      %3513 = vmatprep.subr.bf16.mxu0 0
      %3514 = vmatpush2.bf16.msra.mxu0 0
      %3515 = vmatprep.subr.bf16.mxu0 0
      %3516 = vmatpush2.bf16.msra.mxu0 0
      %3517 = vmatprep.subr.bf16.mxu0 0
      %3518 = vmatpush2.bf16.msra.mxu0 0
      %3519 = vmatprep.subr.bf16.mxu0 0
      %3520 = vmatpush2.bf16.msra.mxu0 0
      %3521 = vmatprep.subr.bf16.mxu0 0
      %3522 = vmatpush2.bf16.msra.mxu0 0
      %3523 = vmatprep.mubr.bf16.mxu0 0
      %3524 = vmatmul.mubr.bf16.gmra.mxu0 %v3447
      %v3525 = vpop.f32.mrf.mxu0
      %v3526 = vadd.f32 0.0, %v3525
      %v3527 = vpop.f32.mrf.mxu0
      %v3528 = vpop.f32.mrf.mxu0
      %v3529 = vadd.f32 0.0, %v3528
      %v3530 = vpop.f32.mrf.mxu0
      %3531 = vmatprep.mubr.bf16.mxu0 0
      %3532 = vmatmul.mubr.bf16.gmra.mxu0 %v3450
      %v3533 = vpop.f32.mrf.mxu0
      %v3534 = vadd.f32 0.0, %v3533
      %v3535 = vpop.f32.mrf.mxu0
      %v3536 = vpop.f32.mrf.mxu0
      %v3537 = vadd.f32 0.0, %v3536
      %v3538 = vpop.f32.mrf.mxu0
      %3539 = vmatprep.mubr.bf16.mxu0 0
      %3540 = vmatmul.mubr.bf16.gmra.mxu0 %v3453
      %v3541 = vpop.f32.mrf.mxu0
      %v3542 = vadd.f32 0.0, %v3541
      %v3543 = vpop.f32.mrf.mxu0
      %v3544 = vpop.f32.mrf.mxu0
      %v3545 = vadd.f32 0.0, %v3544
      %v3546 = vpop.f32.mrf.mxu0
      %3547 = vmatprep.mubr.bf16.mxu0 0
      %3548 = vmatmul.mubr.bf16.gmra.mxu0 %v3456
      %v3549 = vpop.f32.mrf.mxu0
      %v3550 = vadd.f32 0.0, %v3549
      %v3551 = vpop.f32.mrf.mxu0
      %v3552 = vpop.f32.mrf.mxu0
      %v3553 = vadd.f32 0.0, %v3552
      %v3554 = vpop.f32.mrf.mxu0
      %3555 = vmatprep.mubr.bf16.mxu0 0
      %3556 = vmatmul.mubr.bf16.gmra.mxu0 %v3459
      %v3557 = vpop.f32.mrf.mxu0
      %v3558 = vadd.f32 0.0, %v3557
      %v3559 = vpop.f32.mrf.mxu0
      %v3560 = vpop.f32.mrf.mxu0
      %v3561 = vadd.f32 0.0, %v3560
      %v3562 = vpop.f32.mrf.mxu0
      %3563 = vmatprep.mubr.bf16.mxu0 0
      %3564 = vmatmul.mubr.bf16.gmra.mxu0 %v3462
      %v3565 = vpop.f32.mrf.mxu0
      %v3566 = vadd.f32 0.0, %v3565
      %v3567 = vpop.f32.mrf.mxu0
      %v3568 = vpop.f32.mrf.mxu0
      %v3569 = vadd.f32 0.0, %v3568
      %v3570 = vpop.f32.mrf.mxu0
      %3571 = vmatprep.mubr.bf16.mxu0 0
      %3572 = vmatmul.mubr.bf16.gmra.mxu0 %v3465
      %v3573 = vpop.f32.mrf.mxu0
      %v3574 = vadd.f32 0.0, %v3573
      %v3575 = vpop.f32.mrf.mxu0
      %v3576 = vpop.f32.mrf.mxu0
      %v3577 = vadd.f32 0.0, %v3576
      %v3578 = vpop.f32.mrf.mxu0
      %3579 = vmatprep.mubr.bf16.mxu0 0
      %3580 = vmatmul.mubr.bf16.gmra.mxu0 %v3468
      %v3581 = vpop.f32.mrf.mxu0
      %v3582 = vadd.f32 0.0, %v3581
      %v3583 = vpop.f32.mrf.mxu0
      %v3584 = vpop.f32.mrf.mxu0
      %v3585 = vadd.f32 0.0, %v3584
      %v3586 = vpop.f32.mrf.mxu0
      %3587 = vmatprep.mubr.bf16.mxu0 0
      %3588 = vmatmul.mubr.bf16.gmra.mxu0 %v3471
      %v3589 = vpop.f32.mrf.mxu0
      %v3590 = vadd.f32 0.0, %v3589
      %v3591 = vpop.f32.mrf.mxu0
      %v3592 = vpop.f32.mrf.mxu0
      %v3593 = vadd.f32 0.0, %v3592
      %v3594 = vpop.f32.mrf.mxu0
      %3595 = vmatprep.mubr.bf16.mxu0 0
      %3596 = vmatmul.mubr.bf16.gmra.mxu0 %v3474
      %v3597 = vpop.f32.mrf.mxu0
      %v3598 = vadd.f32 0.0, %v3597
      %v3599 = vpop.f32.mrf.mxu0
      %v3600 = vpop.f32.mrf.mxu0
      %v3601 = vadd.f32 0.0, %v3600
      %v3602 = vpop.f32.mrf.mxu0
      %3603 = vmatprep.mubr.bf16.mxu0 0
      %3604 = vmatmul.mubr.bf16.gmra.mxu0 %v3477
      %v3605 = vpop.f32.mrf.mxu0
      %v3606 = vadd.f32 0.0, %v3605
      %v3607 = vpop.f32.mrf.mxu0
      %v3608 = vpop.f32.mrf.mxu0
      %v3609 = vadd.f32 0.0, %v3608
      %v3610 = vpop.f32.mrf.mxu0
      %3611 = vmatprep.mubr.bf16.mxu0 0
      %3612 = vmatmul.mubr.bf16.gmra.mxu0 %v3480
      %v3613 = vpop.f32.mrf.mxu0
      %v3614 = vadd.f32 0.0, %v3613
      %v3615 = vpop.f32.mrf.mxu0
      %v3616 = vpop.f32.mrf.mxu0
      %v3617 = vadd.f32 0.0, %v3616
      %v3618 = vpop.f32.mrf.mxu0
      %3619 = vmatprep.mubr.bf16.mxu0 0
      %3620 = vmatmul.mubr.bf16.gmra.mxu0 %v3483
      %v3621 = vpop.f32.mrf.mxu0
      %v3622 = vadd.f32 0.0, %v3621
      %v3623 = vpop.f32.mrf.mxu0
      %v3624 = vpop.f32.mrf.mxu0
      %v3625 = vadd.f32 0.0, %v3624
      %v3626 = vpop.f32.mrf.mxu0
      %3627 = vmatprep.mubr.bf16.mxu0 0
      %3628 = vmatmul.mubr.bf16.gmra.mxu0 %v3486
      %v3629 = vpop.f32.mrf.mxu0
      %v3630 = vadd.f32 0.0, %v3629
      %v3631 = vpop.f32.mrf.mxu0
      %v3632 = vpop.f32.mrf.mxu0
      %v3633 = vadd.f32 0.0, %v3632
      %v3634 = vpop.f32.mrf.mxu0
      %3635 = vmatprep.mubr.bf16.mxu0 0
      %3636 = vmatmul.mubr.bf16.gmra.mxu0 %v3489
      %v3637 = vpop.f32.mrf.mxu0
      %v3638 = vadd.f32 0.0, %v3637
      %v3639 = vpop.f32.mrf.mxu0
      %v3640 = vpop.f32.mrf.mxu0
      %v3641 = vpop.f32.mrf.mxu0
      %3642 = vdwg.mxu0
      %v3643 = vadd.f32 %v3351, %v3526
      %v3644 = vadd.f32 %v3352, %v3529
      %v3645 = vadd.f32 %v3353, %v3534
      %v3646 = vadd.f32 %v3354, %v3537
      %v3647 = vadd.f32 %v3355, %v3542
      %v3648 = vadd.f32 %v3356, %v3545
      %v3649 = vadd.f32 %v3357, %v3550
      %v3650 = vadd.f32 %v3358, %v3553
      %v3651 = vadd.f32 %v3359, %v3558
      %v3652 = vadd.f32 %v3360, %v3561
      %v3653 = vadd.f32 %v3361, %v3566
      %v3654 = vadd.f32 %v3362, %v3569
      %v3655 = vadd.f32 %v3363, %v3574
      %v3656 = vadd.f32 %v3364, %v3577
      %v3657 = vadd.f32 %v3365, %v3582
      %v3658 = vadd.f32 %v3366, %v3585
      %v3659 = vadd.f32 %v3367, %v3590
      %v3660 = vadd.f32 %v3368, %v3593
      %v3661 = vadd.f32 %v3369, %v3598
      %v3662 = vadd.f32 %v3370, %v3601
      %v3663 = vadd.f32 %v3371, %v3606
      %v3664 = vadd.f32 %v3372, %v3609
      %v3665 = vadd.f32 %v3373, %v3614
      %v3666 = vadd.f32 %v3374, %v3617
      %v3667 = vadd.f32 %v3375, %v3622
      %v3668 = vadd.f32 %v3376, %v3625
      %v3669 = vadd.f32 %v3377, %v3630
      %v3670 = vadd.f32 %v3378, %v3633
      %v3671 = vadd.f32 %v3379, %v3638
      %v3672 = vld [vmem:[%s3] sm:$0x1]
      %v3674 = vlaneseq
      %v3675 = vshrl.u32 %v3674, 7
      %v3676 = vsub.s32 0, %v3675
      %v3677 = vrot.slane %v3672, %v3676
      %v3679 = vmul.f32 %v3643, %v3677
      %v3680 = vmul.f32 %v3644, %v3677
      %v3681 = vmul.f32 %v3645, %v3677
      %v3682 = vmul.f32 %v3646, %v3677
      %v3683 = vmul.f32 %v3647, %v3677
      %v3684 = vmul.f32 %v3648, %v3677
      %v3685 = vmul.f32 %v3649, %v3677
      %v3686 = vmul.f32 %v3650, %v3677
      %v3687 = vmul.f32 %v3651, %v3677
      %v3688 = vmul.f32 %v3652, %v3677
      %v3689 = vmul.f32 %v3653, %v3677
      %v3690 = vmul.f32 %v3654, %v3677
      %v3691 = vmul.f32 %v3655, %v3677
      %v3692 = vmul.f32 %v3656, %v3677
      %v3693 = vmul.f32 %v3657, %v3677
      %v3694 = vmul.f32 %v3658, %v3677
      %v3695 = vmul.f32 %v3659, %v3677
      %v3696 = vmul.f32 %v3660, %v3677
      %v3697 = vmul.f32 %v3661, %v3677
      %v3698 = vmul.f32 %v3662, %v3677
      %v3699 = vmul.f32 %v3663, %v3677
      %v3700 = vmul.f32 %v3664, %v3677
      %v3701 = vmul.f32 %v3665, %v3677
      %v3702 = vmul.f32 %v3666, %v3677
      %v3703 = vmul.f32 %v3667, %v3677
      %v3704 = vmul.f32 %v3668, %v3677
      %v3705 = vmul.f32 %v3669, %v3677
      %v3706 = vmul.f32 %v3670, %v3677
      %v3707 = vmul.f32 %v3671, %v3677
      %v3708 = vld [vmem:[%s4] sm:$0x1]
      %v3710 = vlaneseq
      %v3711 = vshrl.u32 %v3710, 7
      %v3712 = vsub.s32 0, %v3711
      %v3713 = vrot.slane %v3708, %v3712
      %v3715 = vadd.f32 %v3679, %v3713
      %v3716 = vadd.f32 %v3680, %v3713
      %v3717 = vadd.f32 %v3681, %v3713
      %v3718 = vadd.f32 %v3682, %v3713
      %v3719 = vadd.f32 %v3683, %v3713
      %v3720 = vadd.f32 %v3684, %v3713
      %v3721 = vadd.f32 %v3685, %v3713
      %v3722 = vadd.f32 %v3686, %v3713
      %v3723 = vadd.f32 %v3687, %v3713
      %v3724 = vadd.f32 %v3688, %v3713
      %v3725 = vadd.f32 %v3689, %v3713
      %v3726 = vadd.f32 %v3690, %v3713
      %v3727 = vadd.f32 %v3691, %v3713
      %v3728 = vadd.f32 %v3692, %v3713
      %v3729 = vadd.f32 %v3693, %v3713
      %v3730 = vadd.f32 %v3694, %v3713
      %v3731 = vadd.f32 %v3695, %v3713
      %v3732 = vadd.f32 %v3696, %v3713
      %v3733 = vadd.f32 %v3697, %v3713
      %v3734 = vadd.f32 %v3698, %v3713
      %v3735 = vadd.f32 %v3699, %v3713
      %v3736 = vadd.f32 %v3700, %v3713
      %v3737 = vadd.f32 %v3701, %v3713
      %v3738 = vadd.f32 %v3702, %v3713
      %v3739 = vadd.f32 %v3703, %v3713
      %v3740 = vadd.f32 %v3704, %v3713
      %v3741 = vadd.f32 %v3705, %v3713
      %v3742 = vadd.f32 %v3706, %v3713
      %v3743 = vadd.f32 %v3707, %v3713
      %v3744 = vmul.f32 %v3715, 0.5
      %v3745 = vmul.f32 %v3716, 0.5
      %v3746 = vmul.f32 %v3717, 0.5
      %v3747 = vmul.f32 %v3718, 0.5
      %v3748 = vmul.f32 %v3719, 0.5
      %v3749 = vmul.f32 %v3720, 0.5
      %v3750 = vmul.f32 %v3721, 0.5
      %v3751 = vmul.f32 %v3722, 0.5
      %v3752 = vmul.f32 %v3723, 0.5
      %v3753 = vmul.f32 %v3724, 0.5
      %v3754 = vmul.f32 %v3725, 0.5
      %v3755 = vmul.f32 %v3726, 0.5
      %v3756 = vmul.f32 %v3727, 0.5
      %v3757 = vmul.f32 %v3728, 0.5
      %v3758 = vmul.f32 %v3729, 0.5
      %v3759 = vmul.f32 %v3730, 0.5
      %v3760 = vmul.f32 %v3731, 0.5
      %v3761 = vmul.f32 %v3732, 0.5
      %v3762 = vmul.f32 %v3733, 0.5
      %v3763 = vmul.f32 %v3734, 0.5
      %v3764 = vmul.f32 %v3735, 0.5
      %v3765 = vmul.f32 %v3736, 0.5
      %v3766 = vmul.f32 %v3737, 0.5
      %v3767 = vmul.f32 %v3738, 0.5
      %v3768 = vmul.f32 %v3739, 0.5
      %v3769 = vmul.f32 %v3740, 0.5
      %v3770 = vmul.f32 %v3741, 0.5
      %v3771 = vmul.f32 %v3742, 0.5
      %v3772 = vmul.f32 %v3743, 0.5
      %v3773 = vmul.f32 %v3715, 0.70710677
      %v3774 = vmul.f32 %v3716, 0.70710677
      %v3775 = vmul.f32 %v3717, 0.70710677
      %v3776 = vmul.f32 %v3718, 0.70710677
      %v3777 = vmul.f32 %v3719, 0.70710677
      %v3778 = vmul.f32 %v3720, 0.70710677
      %v3779 = vmul.f32 %v3721, 0.70710677
      %v3780 = vmul.f32 %v3722, 0.70710677
      %v3781 = vmul.f32 %v3723, 0.70710677
      %v3782 = vmul.f32 %v3724, 0.70710677
      %v3783 = vmul.f32 %v3725, 0.70710677
      %v3784 = vmul.f32 %v3726, 0.70710677
      %v3785 = vmul.f32 %v3727, 0.70710677
      %v3786 = vmul.f32 %v3728, 0.70710677
      %v3787 = vmul.f32 %v3729, 0.70710677
      %v3788 = vmul.f32 %v3730, 0.70710677
      %v3789 = vmul.f32 %v3731, 0.70710677
      %v3790 = vmul.f32 %v3732, 0.70710677
      %v3791 = vmul.f32 %v3733, 0.70710677
      %v3792 = vmul.f32 %v3734, 0.70710677
      %v3793 = vmul.f32 %v3735, 0.70710677
      %v3794 = vmul.f32 %v3736, 0.70710677
      %v3795 = vmul.f32 %v3737, 0.70710677
      %v3796 = vmul.f32 %v3738, 0.70710677
      %v3797 = vmul.f32 %v3739, 0.70710677
      %v3798 = vmul.f32 %v3740, 0.70710677
      %v3799 = vmul.f32 %v3741, 0.70710677
      %v3800 = vmul.f32 %v3742, 0.70710677
      %v3801 = vmul.f32 %v3743, 0.70710677
      %v3802 = vand.u32 2147483647, %v3773
      %v3803 = vand.u32 2147483647, %v3774
      %v3804 = vand.u32 2147483647, %v3775
      %v3805 = vand.u32 2147483647, %v3776
      %v3806 = vand.u32 2147483647, %v3777
      %v3807 = vand.u32 2147483647, %v3778
      %v3808 = vand.u32 2147483647, %v3779
      %v3809 = vand.u32 2147483647, %v3780
      %v3810 = vand.u32 2147483647, %v3781
      %v3811 = vand.u32 2147483647, %v3782
      %v3812 = vand.u32 2147483647, %v3783
      %v3813 = vand.u32 2147483647, %v3784
      %v3814 = vand.u32 2147483647, %v3785
      %v3815 = vand.u32 2147483647, %v3786
      %v3816 = vand.u32 2147483647, %v3787
      %v3817 = vand.u32 2147483647, %v3788
      %v3818 = vand.u32 2147483647, %v3789
      %v3819 = vand.u32 2147483647, %v3790
      %v3820 = vand.u32 2147483647, %v3791
      %v3821 = vand.u32 2147483647, %v3792
      %v3822 = vand.u32 2147483647, %v3793
      %v3823 = vand.u32 2147483647, %v3794
      %v3824 = vand.u32 2147483647, %v3795
      %v3825 = vand.u32 2147483647, %v3796
      %v3826 = vand.u32 2147483647, %v3797
      %v3827 = vand.u32 2147483647, %v3798
      %v3828 = vand.u32 2147483647, %v3799
      %v3829 = vand.u32 2147483647, %v3800
      %v3830 = vand.u32 2147483647, %v3801
      %v3831 = vmul.f32 %v3802, 0.3275911
      %v3832 = vmul.f32 %v3803, 0.3275911
      %v3833 = vmul.f32 %v3804, 0.3275911
      %v3834 = vmul.f32 %v3805, 0.3275911
      %v3835 = vmul.f32 %v3806, 0.3275911
      %v3836 = vmul.f32 %v3807, 0.3275911
      %v3837 = vmul.f32 %v3808, 0.3275911
      %v3838 = vmul.f32 %v3809, 0.3275911
      %v3839 = vmul.f32 %v3810, 0.3275911
      %v3840 = vmul.f32 %v3811, 0.3275911
      %v3841 = vmul.f32 %v3812, 0.3275911
      %v3842 = vmul.f32 %v3813, 0.3275911
      %v3843 = vmul.f32 %v3814, 0.3275911
      %v3844 = vmul.f32 %v3815, 0.3275911
      %v3845 = vmul.f32 %v3816, 0.3275911
      %v3846 = vmul.f32 %v3817, 0.3275911
      %v3847 = vmul.f32 %v3818, 0.3275911
      %v3848 = vmul.f32 %v3819, 0.3275911
      %v3849 = vmul.f32 %v3820, 0.3275911
      %v3850 = vmul.f32 %v3821, 0.3275911
      %v3851 = vmul.f32 %v3822, 0.3275911
      %v3852 = vmul.f32 %v3823, 0.3275911
      %v3853 = vmul.f32 %v3824, 0.3275911
      %v3854 = vmul.f32 %v3825, 0.3275911
      %v3855 = vmul.f32 %v3826, 0.3275911
      %v3856 = vmul.f32 %v3827, 0.3275911
      %v3857 = vmul.f32 %v3828, 0.3275911
      %v3858 = vmul.f32 %v3829, 0.3275911
      %v3859 = vmul.f32 %v3830, 0.3275911
      %v3860 = vadd.f32 %v3831, 1.0
      %v3861 = vadd.f32 %v3832, 1.0
      %v3862 = vadd.f32 %v3833, 1.0
      %v3863 = vadd.f32 %v3834, 1.0
      %v3864 = vadd.f32 %v3835, 1.0
      %v3865 = vadd.f32 %v3836, 1.0
      %v3866 = vadd.f32 %v3837, 1.0
      %v3867 = vadd.f32 %v3838, 1.0
      %v3868 = vadd.f32 %v3839, 1.0
      %v3869 = vadd.f32 %v3840, 1.0
      %v3870 = vadd.f32 %v3841, 1.0
      %v3871 = vadd.f32 %v3842, 1.0
      %v3872 = vadd.f32 %v3843, 1.0
      %v3873 = vadd.f32 %v3844, 1.0
      %v3874 = vadd.f32 %v3845, 1.0
      %v3875 = vadd.f32 %v3846, 1.0
      %v3876 = vadd.f32 %v3847, 1.0
      %v3877 = vadd.f32 %v3848, 1.0
      %v3878 = vadd.f32 %v3849, 1.0
      %v3879 = vadd.f32 %v3850, 1.0
      %v3880 = vadd.f32 %v3851, 1.0
      %v3881 = vadd.f32 %v3852, 1.0
      %v3882 = vadd.f32 %v3853, 1.0
      %v3883 = vadd.f32 %v3854, 1.0
      %v3884 = vadd.f32 %v3855, 1.0
      %v3885 = vadd.f32 %v3856, 1.0
      %v3886 = vadd.f32 %v3857, 1.0
      %v3887 = vadd.f32 %v3858, 1.0
      %v3888 = vadd.f32 %v3859, 1.0
      %v3889 = vrcp.pop %v3860
      %v3890 = vmul.f32 1.0, %v3889
      %v3891 = vrcp.pop %v3861
      %v3892 = vmul.f32 1.0, %v3891
      %v3893 = vrcp.pop %v3862
      %v3894 = vmul.f32 1.0, %v3893
      %v3895 = vrcp.pop %v3863
      %v3896 = vmul.f32 1.0, %v3895
      %v3897 = vrcp.pop %v3864
      %v3898 = vmul.f32 1.0, %v3897
      %v3899 = vrcp.pop %v3865
      %v3900 = vmul.f32 1.0, %v3899
      %v3901 = vrcp.pop %v3866
      %v3902 = vmul.f32 1.0, %v3901
      %v3903 = vrcp.pop %v3867
      %v3904 = vmul.f32 1.0, %v3903
      %v3905 = vrcp.pop %v3868
      %v3906 = vmul.f32 1.0, %v3905
      %v3907 = vrcp.pop %v3869
      %v3908 = vmul.f32 1.0, %v3907
      %v3909 = vrcp.pop %v3870
      %v3910 = vmul.f32 1.0, %v3909
      %v3911 = vrcp.pop %v3871
      %v3912 = vmul.f32 1.0, %v3911
      %v3913 = vrcp.pop %v3872
      %v3914 = vmul.f32 1.0, %v3913
      %v3915 = vrcp.pop %v3873
      %v3916 = vmul.f32 1.0, %v3915
      %v3917 = vrcp.pop %v3874
      %v3918 = vmul.f32 1.0, %v3917
      %v3919 = vrcp.pop %v3875
      %v3920 = vmul.f32 1.0, %v3919
      %v3921 = vrcp.pop %v3876
      %v3922 = vmul.f32 1.0, %v3921
      %v3923 = vrcp.pop %v3877
      %v3924 = vmul.f32 1.0, %v3923
      %v3925 = vrcp.pop %v3878
      %v3926 = vmul.f32 1.0, %v3925
      %v3927 = vrcp.pop %v3879
      %v3928 = vmul.f32 1.0, %v3927
      %v3929 = vrcp.pop %v3880
      %v3930 = vmul.f32 1.0, %v3929
      %v3931 = vrcp.pop %v3881
      %v3932 = vmul.f32 1.0, %v3931
      %v3933 = vrcp.pop %v3882
      %v3934 = vmul.f32 1.0, %v3933
      %v3935 = vrcp.pop %v3883
      %v3936 = vmul.f32 1.0, %v3935
      %v3937 = vrcp.pop %v3884
      %v3938 = vmul.f32 1.0, %v3937
      %v3939 = vrcp.pop %v3885
      %v3940 = vmul.f32 1.0, %v3939
      %v3941 = vrcp.pop %v3886
      %v3942 = vmul.f32 1.0, %v3941
      %v3943 = vrcp.pop %v3887
      %v3944 = vmul.f32 1.0, %v3943
      %v3945 = vrcp.pop %v3888
      %v3946 = vmul.f32 1.0, %v3945
      %v3947 = vmul.f32 %v3890, 1.0614054
      %v3948 = vmul.f32 %v3892, 1.0614054
      %v3949 = vmul.f32 %v3894, 1.0614054
      %v3950 = vmul.f32 %v3896, 1.0614054
      %v3951 = vmul.f32 %v3898, 1.0614054
      %v3952 = vmul.f32 %v3900, 1.0614054
      %v3953 = vmul.f32 %v3902, 1.0614054
      %v3954 = vmul.f32 %v3904, 1.0614054
      %v3955 = vmul.f32 %v3906, 1.0614054
      %v3956 = vmul.f32 %v3908, 1.0614054
      %v3957 = vmul.f32 %v3910, 1.0614054
      %v3958 = vmul.f32 %v3912, 1.0614054
      %v3959 = vmul.f32 %v3914, 1.0614054
      %v3960 = vmul.f32 %v3916, 1.0614054
      %v3961 = vmul.f32 %v3918, 1.0614054
      %v3962 = vmul.f32 %v3920, 1.0614054
      %v3963 = vmul.f32 %v3922, 1.0614054
      %v3964 = vmul.f32 %v3924, 1.0614054
      %v3965 = vmul.f32 %v3926, 1.0614054
      %v3966 = vmul.f32 %v3928, 1.0614054
      %v3967 = vmul.f32 %v3930, 1.0614054
      %v3968 = vmul.f32 %v3932, 1.0614054
      %v3969 = vmul.f32 %v3934, 1.0614054
      %v3970 = vmul.f32 %v3936, 1.0614054
      %v3971 = vmul.f32 %v3938, 1.0614054
      %v3972 = vmul.f32 %v3940, 1.0614054
      %v3973 = vmul.f32 %v3942, 1.0614054
      %v3974 = vmul.f32 %v3944, 1.0614054
      %v3975 = vmul.f32 %v3946, 1.0614054
      %v3976 = vadd.f32 %v3947, -1.4531521
      %v3977 = vadd.f32 %v3948, -1.4531521
      %v3978 = vadd.f32 %v3949, -1.4531521
      %v3979 = vadd.f32 %v3950, -1.4531521
      %v3980 = vadd.f32 %v3951, -1.4531521
      %v3981 = vadd.f32 %v3952, -1.4531521
      %v3982 = vadd.f32 %v3953, -1.4531521
      %v3983 = vadd.f32 %v3954, -1.4531521
      %v3984 = vadd.f32 %v3955, -1.4531521
      %v3985 = vadd.f32 %v3956, -1.4531521
      %v3986 = vadd.f32 %v3957, -1.4531521
      %v3987 = vadd.f32 %v3958, -1.4531521
      %v3988 = vadd.f32 %v3959, -1.4531521
      %v3989 = vadd.f32 %v3960, -1.4531521
      %v3990 = vadd.f32 %v3961, -1.4531521
      %v3991 = vadd.f32 %v3962, -1.4531521
      %v3992 = vadd.f32 %v3963, -1.4531521
      %v3993 = vadd.f32 %v3964, -1.4531521
      %v3994 = vadd.f32 %v3965, -1.4531521
      %v3995 = vadd.f32 %v3966, -1.4531521
      %v3996 = vadd.f32 %v3967, -1.4531521
      %v3997 = vadd.f32 %v3968, -1.4531521
      %v3998 = vadd.f32 %v3969, -1.4531521
      %v3999 = vadd.f32 %v3970, -1.4531521
      %v4000 = vadd.f32 %v3971, -1.4531521
      %v4001 = vadd.f32 %v3972, -1.4531521
      %v4002 = vadd.f32 %v3973, -1.4531521
      %v4003 = vadd.f32 %v3974, -1.4531521
      %v4004 = vadd.f32 %v3975, -1.4531521
      %v4005 = vmul.f32 %v3976, %v3890
      %v4006 = vmul.f32 %v3977, %v3892
      %v4007 = vmul.f32 %v3978, %v3894
      %v4008 = vmul.f32 %v3979, %v3896
      %v4009 = vmul.f32 %v3980, %v3898
      %v4010 = vmul.f32 %v3981, %v3900
      %v4011 = vmul.f32 %v3982, %v3902
      %v4012 = vmul.f32 %v3983, %v3904
      %v4013 = vmul.f32 %v3984, %v3906
      %v4014 = vmul.f32 %v3985, %v3908
      %v4015 = vmul.f32 %v3986, %v3910
      %v4016 = vmul.f32 %v3987, %v3912
      %v4017 = vmul.f32 %v3988, %v3914
      %v4018 = vmul.f32 %v3989, %v3916
      %v4019 = vmul.f32 %v3990, %v3918
      %v4020 = vmul.f32 %v3991, %v3920
      %v4021 = vmul.f32 %v3992, %v3922
      %v4022 = vmul.f32 %v3993, %v3924
      %v4023 = vmul.f32 %v3994, %v3926
      %v4024 = vmul.f32 %v3995, %v3928
      %v4025 = vmul.f32 %v3996, %v3930
      %v4026 = vmul.f32 %v3997, %v3932
      %v4027 = vmul.f32 %v3998, %v3934
      %v4028 = vmul.f32 %v3999, %v3936
      %v4029 = vmul.f32 %v4000, %v3938
      %v4030 = vmul.f32 %v4001, %v3940
      %v4031 = vmul.f32 %v4002, %v3942
      %v4032 = vmul.f32 %v4003, %v3944
      %v4033 = vmul.f32 %v4004, %v3946
      %v4034 = vadd.f32 %v4005, 1.4214138
      %v4035 = vadd.f32 %v4006, 1.4214138
      %v4036 = vadd.f32 %v4007, 1.4214138
      %v4037 = vadd.f32 %v4008, 1.4214138
      %v4038 = vadd.f32 %v4009, 1.4214138
      %v4039 = vadd.f32 %v4010, 1.4214138
      %v4040 = vadd.f32 %v4011, 1.4214138
      %v4041 = vadd.f32 %v4012, 1.4214138
      %v4042 = vadd.f32 %v4013, 1.4214138
      %v4043 = vadd.f32 %v4014, 1.4214138
      %v4044 = vadd.f32 %v4015, 1.4214138
      %v4045 = vadd.f32 %v4016, 1.4214138
      %v4046 = vadd.f32 %v4017, 1.4214138
      %v4047 = vadd.f32 %v4018, 1.4214138
      %v4048 = vadd.f32 %v4019, 1.4214138
      %v4049 = vadd.f32 %v4020, 1.4214138
      %v4050 = vadd.f32 %v4021, 1.4214138
      %v4051 = vadd.f32 %v4022, 1.4214138
      %v4052 = vadd.f32 %v4023, 1.4214138
      %v4053 = vadd.f32 %v4024, 1.4214138
      %v4054 = vadd.f32 %v4025, 1.4214138
      %v4055 = vadd.f32 %v4026, 1.4214138
      %v4056 = vadd.f32 %v4027, 1.4214138
      %v4057 = vadd.f32 %v4028, 1.4214138
      %v4058 = vadd.f32 %v4029, 1.4214138
      %v4059 = vadd.f32 %v4030, 1.4214138
      %v4060 = vadd.f32 %v4031, 1.4214138
      %v4061 = vadd.f32 %v4032, 1.4214138
      %v4062 = vadd.f32 %v4033, 1.4214138
      %v4063 = vmul.f32 %v4034, %v3890
      %v4064 = vmul.f32 %v4035, %v3892
      %v4065 = vmul.f32 %v4036, %v3894
      %v4066 = vmul.f32 %v4037, %v3896
      %v4067 = vmul.f32 %v4038, %v3898
      %v4068 = vmul.f32 %v4039, %v3900
      %v4069 = vmul.f32 %v4040, %v3902
      %v4070 = vmul.f32 %v4041, %v3904
      %v4071 = vmul.f32 %v4042, %v3906
      %v4072 = vmul.f32 %v4043, %v3908
      %v4073 = vmul.f32 %v4044, %v3910
      %v4074 = vmul.f32 %v4045, %v3912
      %v4075 = vmul.f32 %v4046, %v3914
      %v4076 = vmul.f32 %v4047, %v3916
      %v4077 = vmul.f32 %v4048, %v3918
      %v4078 = vmul.f32 %v4049, %v3920
      %v4079 = vmul.f32 %v4050, %v3922
      %v4080 = vmul.f32 %v4051, %v3924
      %v4081 = vmul.f32 %v4052, %v3926
      %v4082 = vmul.f32 %v4053, %v3928
      %v4083 = vmul.f32 %v4054, %v3930
      %v4084 = vmul.f32 %v4055, %v3932
      %v4085 = vmul.f32 %v4056, %v3934
      %v4086 = vmul.f32 %v4057, %v3936
      %v4087 = vmul.f32 %v4058, %v3938
      %v4088 = vmul.f32 %v4059, %v3940
      %v4089 = vmul.f32 %v4060, %v3942
      %v4090 = vmul.f32 %v4061, %v3944
      %v4091 = vmul.f32 %v4062, %v3946
      %v4092 = vadd.f32 %v4063, -0.28449672
      %v4093 = vadd.f32 %v4064, -0.28449672
      %v4094 = vadd.f32 %v4065, -0.28449672
      %v4095 = vadd.f32 %v4066, -0.28449672
      %v4096 = vadd.f32 %v4067, -0.28449672
      %v4097 = vadd.f32 %v4068, -0.28449672
      %v4098 = vadd.f32 %v4069, -0.28449672
      %v4099 = vadd.f32 %v4070, -0.28449672
      %v4100 = vadd.f32 %v4071, -0.28449672
      %v4101 = vadd.f32 %v4072, -0.28449672
      %v4102 = vadd.f32 %v4073, -0.28449672
      %v4103 = vadd.f32 %v4074, -0.28449672
      %v4104 = vadd.f32 %v4075, -0.28449672
      %v4105 = vadd.f32 %v4076, -0.28449672
      %v4106 = vadd.f32 %v4077, -0.28449672
      %v4107 = vadd.f32 %v4078, -0.28449672
      %v4108 = vadd.f32 %v4079, -0.28449672
      %v4109 = vadd.f32 %v4080, -0.28449672
      %v4110 = vadd.f32 %v4081, -0.28449672
      %v4111 = vadd.f32 %v4082, -0.28449672
      %v4112 = vadd.f32 %v4083, -0.28449672
      %v4113 = vadd.f32 %v4084, -0.28449672
      %v4114 = vadd.f32 %v4085, -0.28449672
      %v4115 = vadd.f32 %v4086, -0.28449672
      %v4116 = vadd.f32 %v4087, -0.28449672
      %v4117 = vadd.f32 %v4088, -0.28449672
      %v4118 = vadd.f32 %v4089, -0.28449672
      %v4119 = vadd.f32 %v4090, -0.28449672
      %v4120 = vadd.f32 %v4091, -0.28449672
      %v4121 = vmul.f32 %v4092, %v3890
      %v4122 = vmul.f32 %v4093, %v3892
      %v4123 = vmul.f32 %v4094, %v3894
      %v4124 = vmul.f32 %v4095, %v3896
      %v4125 = vmul.f32 %v4096, %v3898
      %v4126 = vmul.f32 %v4097, %v3900
      %v4127 = vmul.f32 %v4098, %v3902
      %v4128 = vmul.f32 %v4099, %v3904
      %v4129 = vmul.f32 %v4100, %v3906
      %v4130 = vmul.f32 %v4101, %v3908
      %v4131 = vmul.f32 %v4102, %v3910
      %v4132 = vmul.f32 %v4103, %v3912
      %v4133 = vmul.f32 %v4104, %v3914
      %v4134 = vmul.f32 %v4105, %v3916
      %v4135 = vmul.f32 %v4106, %v3918
      %v4136 = vmul.f32 %v4107, %v3920
      %v4137 = vmul.f32 %v4108, %v3922
      %v4138 = vmul.f32 %v4109, %v3924
      %v4139 = vmul.f32 %v4110, %v3926
      %v4140 = vmul.f32 %v4111, %v3928
      %v4141 = vmul.f32 %v4112, %v3930
      %v4142 = vmul.f32 %v4113, %v3932
      %v4143 = vmul.f32 %v4114, %v3934
      %v4144 = vmul.f32 %v4115, %v3936
      %v4145 = vmul.f32 %v4116, %v3938
      %v4146 = vmul.f32 %v4117, %v3940
      %v4147 = vmul.f32 %v4118, %v3942
      %v4148 = vmul.f32 %v4119, %v3944
      %v4149 = vmul.f32 %v4120, %v3946
      %v4150 = vadd.f32 %v4121, 0.2548296
      %v4151 = vadd.f32 %v4122, 0.2548296
      %v4152 = vadd.f32 %v4123, 0.2548296
      %v4153 = vadd.f32 %v4124, 0.2548296
      %v4154 = vadd.f32 %v4125, 0.2548296
      %v4155 = vadd.f32 %v4126, 0.2548296
      %v4156 = vadd.f32 %v4127, 0.2548296
      %v4157 = vadd.f32 %v4128, 0.2548296
      %v4158 = vadd.f32 %v4129, 0.2548296
      %v4159 = vadd.f32 %v4130, 0.2548296
      %v4160 = vadd.f32 %v4131, 0.2548296
      %v4161 = vadd.f32 %v4132, 0.2548296
      %v4162 = vadd.f32 %v4133, 0.2548296
      %v4163 = vadd.f32 %v4134, 0.2548296
      %v4164 = vadd.f32 %v4135, 0.2548296
      %v4165 = vadd.f32 %v4136, 0.2548296
      %v4166 = vadd.f32 %v4137, 0.2548296
      %v4167 = vadd.f32 %v4138, 0.2548296
      %v4168 = vadd.f32 %v4139, 0.2548296
      %v4169 = vadd.f32 %v4140, 0.2548296
      %v4170 = vadd.f32 %v4141, 0.2548296
      %v4171 = vadd.f32 %v4142, 0.2548296
      %v4172 = vadd.f32 %v4143, 0.2548296
      %v4173 = vadd.f32 %v4144, 0.2548296
      %v4174 = vadd.f32 %v4145, 0.2548296
      %v4175 = vadd.f32 %v4146, 0.2548296
      %v4176 = vadd.f32 %v4147, 0.2548296
      %v4177 = vadd.f32 %v4148, 0.2548296
      %v4178 = vadd.f32 %v4149, 0.2548296
      %v4179 = vmul.f32 %v4150, %v3890
      %v4180 = vmul.f32 %v4151, %v3892
      %v4181 = vmul.f32 %v4152, %v3894
      %v4182 = vmul.f32 %v4153, %v3896
      %v4183 = vmul.f32 %v4154, %v3898
      %v4184 = vmul.f32 %v4155, %v3900
      %v4185 = vmul.f32 %v4156, %v3902
      %v4186 = vmul.f32 %v4157, %v3904
      %v4187 = vmul.f32 %v4158, %v3906
      %v4188 = vmul.f32 %v4159, %v3908
      %v4189 = vmul.f32 %v4160, %v3910
      %v4190 = vmul.f32 %v4161, %v3912
      %v4191 = vmul.f32 %v4162, %v3914
      %v4192 = vmul.f32 %v4163, %v3916
      %v4193 = vmul.f32 %v4164, %v3918
      %v4194 = vmul.f32 %v4165, %v3920
      %v4195 = vmul.f32 %v4166, %v3922
      %v4196 = vmul.f32 %v4167, %v3924
      %v4197 = vmul.f32 %v4168, %v3926
      %v4198 = vmul.f32 %v4169, %v3928
      %v4199 = vmul.f32 %v4170, %v3930
      %v4200 = vmul.f32 %v4171, %v3932
      %v4201 = vmul.f32 %v4172, %v3934
      %v4202 = vmul.f32 %v4173, %v3936
      %v4203 = vmul.f32 %v4174, %v3938
      %v4204 = vmul.f32 %v4175, %v3940
      %v4205 = vmul.f32 %v4176, %v3942
      %v4206 = vmul.f32 %v4177, %v3944
      %v4207 = vmul.f32 %v4178, %v3946
      %v4208 = vsub.f32 0.0, %v3802
      %v4209 = vsub.f32 0.0, %v3803
      %v4210 = vsub.f32 0.0, %v3804
      %v4211 = vsub.f32 0.0, %v3805
      %v4212 = vsub.f32 0.0, %v3806
      %v4213 = vsub.f32 0.0, %v3807
      %v4214 = vsub.f32 0.0, %v3808
      %v4215 = vsub.f32 0.0, %v3809
      %v4216 = vsub.f32 0.0, %v3810
      %v4217 = vsub.f32 0.0, %v3811
      %v4218 = vsub.f32 0.0, %v3812
      %v4219 = vsub.f32 0.0, %v3813
      %v4220 = vsub.f32 0.0, %v3814
      %v4221 = vsub.f32 0.0, %v3815
      %v4222 = vsub.f32 0.0, %v3816
      %v4223 = vsub.f32 0.0, %v3817
      %v4224 = vsub.f32 0.0, %v3818
      %v4225 = vsub.f32 0.0, %v3819
      %v4226 = vsub.f32 0.0, %v3820
      %v4227 = vsub.f32 0.0, %v3821
      %v4228 = vsub.f32 0.0, %v3822
      %v4229 = vsub.f32 0.0, %v3823
      %v4230 = vsub.f32 0.0, %v3824
      %v4231 = vsub.f32 0.0, %v3825
      %v4232 = vsub.f32 0.0, %v3826
      %v4233 = vsub.f32 0.0, %v3827
      %v4234 = vsub.f32 0.0, %v3828
      %v4235 = vsub.f32 0.0, %v3829
      %v4236 = vsub.f32 0.0, %v3830
      %v4237 = vmul.f32 %v4208, %v3802
      %v4238 = vmul.f32 %v4209, %v3803
      %v4239 = vmul.f32 %v4210, %v3804
      %v4240 = vmul.f32 %v4211, %v3805
      %v4241 = vmul.f32 %v4212, %v3806
      %v4242 = vmul.f32 %v4213, %v3807
      %v4243 = vmul.f32 %v4214, %v3808
      %v4244 = vmul.f32 %v4215, %v3809
      %v4245 = vmul.f32 %v4216, %v3810
      %v4246 = vmul.f32 %v4217, %v3811
      %v4247 = vmul.f32 %v4218, %v3812
      %v4248 = vmul.f32 %v4219, %v3813
      %v4249 = vmul.f32 %v4220, %v3814
      %v4250 = vmul.f32 %v4221, %v3815
      %v4251 = vmul.f32 %v4222, %v3816
      %v4252 = vmul.f32 %v4223, %v3817
      %v4253 = vmul.f32 %v4224, %v3818
      %v4254 = vmul.f32 %v4225, %v3819
      %v4255 = vmul.f32 %v4226, %v3820
      %v4256 = vmul.f32 %v4227, %v3821
      %v4257 = vmul.f32 %v4228, %v3822
      %v4258 = vmul.f32 %v4229, %v3823
      %v4259 = vmul.f32 %v4230, %v3824
      %v4260 = vmul.f32 %v4231, %v3825
      %v4261 = vmul.f32 %v4232, %v3826
      %v4262 = vmul.f32 %v4233, %v3827
      %v4263 = vmul.f32 %v4234, %v3828
      %v4264 = vmul.f32 %v4235, %v3829
      %v4265 = vmul.f32 %v4236, %v3830
      %v4266 = vmul.f32 %v4237, 1.442695
      %v4267 = vpow.pop %v4266
      %v4268 = vmul.f32 %v4238, 1.442695
      %v4269 = vpow.pop %v4268
      %v4270 = vmul.f32 %v4239, 1.442695
      %v4271 = vpow.pop %v4270
      %v4272 = vmul.f32 %v4240, 1.442695
      %v4273 = vpow.pop %v4272
      %v4274 = vmul.f32 %v4241, 1.442695
      %v4275 = vpow.pop %v4274
      %v4276 = vmul.f32 %v4242, 1.442695
      %v4277 = vpow.pop %v4276
      %v4278 = vmul.f32 %v4243, 1.442695
      %v4279 = vpow.pop %v4278
      %v4280 = vmul.f32 %v4244, 1.442695
      %v4281 = vpow.pop %v4280
      %v4282 = vmul.f32 %v4245, 1.442695
      %v4283 = vpow.pop %v4282
      %v4284 = vmul.f32 %v4246, 1.442695
      %v4285 = vpow.pop %v4284
      %v4286 = vmul.f32 %v4247, 1.442695
      %v4287 = vpow.pop %v4286
      %v4288 = vmul.f32 %v4248, 1.442695
      %v4289 = vpow.pop %v4288
      %v4290 = vmul.f32 %v4249, 1.442695
      %v4291 = vpow.pop %v4290
      %v4292 = vmul.f32 %v4250, 1.442695
      %v4293 = vpow.pop %v4292
      %v4294 = vmul.f32 %v4251, 1.442695
      %v4295 = vpow.pop %v4294
      %v4296 = vmul.f32 %v4252, 1.442695
      %v4297 = vpow.pop %v4296
      %v4298 = vmul.f32 %v4253, 1.442695
      %v4299 = vpow.pop %v4298
      %v4300 = vmul.f32 %v4254, 1.442695
      %v4301 = vpow.pop %v4300
      %v4302 = vmul.f32 %v4255, 1.442695
      %v4303 = vpow.pop %v4302
      %v4304 = vmul.f32 %v4256, 1.442695
      %v4305 = vpow.pop %v4304
      %v4306 = vmul.f32 %v4257, 1.442695
      %v4307 = vpow.pop %v4306
      %v4308 = vmul.f32 %v4258, 1.442695
      %v4309 = vpow.pop %v4308
      %v4310 = vmul.f32 %v4259, 1.442695
      %v4311 = vpow.pop %v4310
      %v4312 = vmul.f32 %v4260, 1.442695
      %v4313 = vpow.pop %v4312
      %v4314 = vmul.f32 %v4261, 1.442695
      %v4315 = vpow.pop %v4314
      %v4316 = vmul.f32 %v4262, 1.442695
      %v4317 = vpow.pop %v4316
      %v4318 = vmul.f32 %v4263, 1.442695
      %v4319 = vpow.pop %v4318
      %v4320 = vmul.f32 %v4264, 1.442695
      %v4321 = vpow.pop %v4320
      %v4322 = vmul.f32 %v4265, 1.442695
      %v4323 = vpow.pop %v4322
      %v4324 = vmul.f32 %v4179, %v4267
      %v4325 = vmul.f32 %v4180, %v4269
      %v4326 = vmul.f32 %v4181, %v4271
      %v4327 = vmul.f32 %v4182, %v4273
      %v4328 = vmul.f32 %v4183, %v4275
      %v4329 = vmul.f32 %v4184, %v4277
      %v4330 = vmul.f32 %v4185, %v4279
      %v4331 = vmul.f32 %v4186, %v4281
      %v4332 = vmul.f32 %v4187, %v4283
      %v4333 = vmul.f32 %v4188, %v4285
      %v4334 = vmul.f32 %v4189, %v4287
      %v4335 = vmul.f32 %v4190, %v4289
      %v4336 = vmul.f32 %v4191, %v4291
      %v4337 = vmul.f32 %v4192, %v4293
      %v4338 = vmul.f32 %v4193, %v4295
      %v4339 = vmul.f32 %v4194, %v4297
      %v4340 = vmul.f32 %v4195, %v4299
      %v4341 = vmul.f32 %v4196, %v4301
      %v4342 = vmul.f32 %v4197, %v4303
      %v4343 = vmul.f32 %v4198, %v4305
      %v4344 = vmul.f32 %v4199, %v4307
      %v4345 = vmul.f32 %v4200, %v4309
      %v4346 = vmul.f32 %v4201, %v4311
      %v4347 = vmul.f32 %v4202, %v4313
      %v4348 = vmul.f32 %v4203, %v4315
      %v4349 = vmul.f32 %v4204, %v4317
      %v4350 = vmul.f32 %v4205, %v4319
      %v4351 = vmul.f32 %v4206, %v4321
      %v4352 = vmul.f32 %v4207, %v4323
      %v4353 = vsub.f32 1.0, %v4324
      %v4354 = vsub.f32 1.0, %v4325
      %v4355 = vsub.f32 1.0, %v4326
      %v4356 = vsub.f32 1.0, %v4327
      %v4357 = vsub.f32 1.0, %v4328
      %v4358 = vsub.f32 1.0, %v4329
      %v4359 = vsub.f32 1.0, %v4330
      %v4360 = vsub.f32 1.0, %v4331
      %v4361 = vsub.f32 1.0, %v4332
      %v4362 = vsub.f32 1.0, %v4333
      %v4363 = vsub.f32 1.0, %v4334
      %v4364 = vsub.f32 1.0, %v4335
      %v4365 = vsub.f32 1.0, %v4336
      %v4366 = vsub.f32 1.0, %v4337
      %v4367 = vsub.f32 1.0, %v4338
      %v4368 = vsub.f32 1.0, %v4339
      %v4369 = vsub.f32 1.0, %v4340
      %v4370 = vsub.f32 1.0, %v4341
      %v4371 = vsub.f32 1.0, %v4342
      %v4372 = vsub.f32 1.0, %v4343
      %v4373 = vsub.f32 1.0, %v4344
      %v4374 = vsub.f32 1.0, %v4345
      %v4375 = vsub.f32 1.0, %v4346
      %v4376 = vsub.f32 1.0, %v4347
      %v4377 = vsub.f32 1.0, %v4348
      %v4378 = vsub.f32 1.0, %v4349
      %v4379 = vsub.f32 1.0, %v4350
      %v4380 = vsub.f32 1.0, %v4351
      %v4381 = vsub.f32 1.0, %v4352
      %vm4382 = vcmp.ge.f32.partialorder %v3773, 0.0
      %vm4383 = vcmp.ge.f32.partialorder %v3774, 0.0
      %vm4384 = vcmp.ge.f32.partialorder %v3775, 0.0
      %vm4385 = vcmp.ge.f32.partialorder %v3776, 0.0
      %vm4386 = vcmp.ge.f32.partialorder %v3777, 0.0
      %vm4387 = vcmp.ge.f32.partialorder %v3778, 0.0
      %vm4388 = vcmp.ge.f32.partialorder %v3779, 0.0
      %vm4389 = vcmp.ge.f32.partialorder %v3780, 0.0
      %vm4390 = vcmp.ge.f32.partialorder %v3781, 0.0
      %vm4391 = vcmp.ge.f32.partialorder %v3782, 0.0
      %vm4392 = vcmp.ge.f32.partialorder %v3783, 0.0
      %vm4393 = vcmp.ge.f32.partialorder %v3784, 0.0
      %vm4394 = vcmp.ge.f32.partialorder %v3785, 0.0
      %vm4395 = vcmp.ge.f32.partialorder %v3786, 0.0
      %vm4396 = vcmp.ge.f32.partialorder %v3787, 0.0
      %vm4397 = vcmp.ge.f32.partialorder %v3788, 0.0
      %vm4398 = vcmp.ge.f32.partialorder %v3789, 0.0
      %vm4399 = vcmp.ge.f32.partialorder %v3790, 0.0
      %vm4400 = vcmp.ge.f32.partialorder %v3791, 0.0
      %vm4401 = vcmp.ge.f32.partialorder %v3792, 0.0
      %vm4402 = vcmp.ge.f32.partialorder %v3793, 0.0
      %vm4403 = vcmp.ge.f32.partialorder %v3794, 0.0
      %vm4404 = vcmp.ge.f32.partialorder %v3795, 0.0
      %vm4405 = vcmp.ge.f32.partialorder %v3796, 0.0
      %vm4406 = vcmp.ge.f32.partialorder %v3797, 0.0
      %vm4407 = vcmp.ge.f32.partialorder %v3798, 0.0
      %vm4408 = vcmp.ge.f32.partialorder %v3799, 0.0
      %vm4409 = vcmp.ge.f32.partialorder %v3800, 0.0
      %vm4410 = vcmp.ge.f32.partialorder %v3801, 0.0
      %v4411 = vsub.f32 0.0, %v4353
      %v4412 = vsub.f32 0.0, %v4354
      %v4413 = vsub.f32 0.0, %v4355
      %v4414 = vsub.f32 0.0, %v4356
      %v4415 = vsub.f32 0.0, %v4357
      %v4416 = vsub.f32 0.0, %v4358
      %v4417 = vsub.f32 0.0, %v4359
      %v4418 = vsub.f32 0.0, %v4360
      %v4419 = vsub.f32 0.0, %v4361
      %v4420 = vsub.f32 0.0, %v4362
      %v4421 = vsub.f32 0.0, %v4363
      %v4422 = vsub.f32 0.0, %v4364
      %v4423 = vsub.f32 0.0, %v4365
      %v4424 = vsub.f32 0.0, %v4366
      %v4425 = vsub.f32 0.0, %v4367
      %v4426 = vsub.f32 0.0, %v4368
      %v4427 = vsub.f32 0.0, %v4369
      %v4428 = vsub.f32 0.0, %v4370
      %v4429 = vsub.f32 0.0, %v4371
      %v4430 = vsub.f32 0.0, %v4372
      %v4431 = vsub.f32 0.0, %v4373
      %v4432 = vsub.f32 0.0, %v4374
      %v4433 = vsub.f32 0.0, %v4375
      %v4434 = vsub.f32 0.0, %v4376
      %v4435 = vsub.f32 0.0, %v4377
      %v4436 = vsub.f32 0.0, %v4378
      %v4437 = vsub.f32 0.0, %v4379
      %v4438 = vsub.f32 0.0, %v4380
      %v4439 = vsub.f32 0.0, %v4381
      %v4440 = vsel %vm4382, %v4353, %v4411
      %v4441 = vsel %vm4383, %v4354, %v4412
      %v4442 = vsel %vm4384, %v4355, %v4413
      %v4443 = vsel %vm4385, %v4356, %v4414
      %v4444 = vsel %vm4386, %v4357, %v4415
      %v4445 = vsel %vm4387, %v4358, %v4416
      %v4446 = vsel %vm4388, %v4359, %v4417
      %v4447 = vsel %vm4389, %v4360, %v4418
      %v4448 = vsel %vm4390, %v4361, %v4419
      %v4449 = vsel %vm4391, %v4362, %v4420
      %v4450 = vsel %vm4392, %v4363, %v4421
      %v4451 = vsel %vm4393, %v4364, %v4422
      %v4452 = vsel %vm4394, %v4365, %v4423
      %v4453 = vsel %vm4395, %v4366, %v4424
      %v4454 = vsel %vm4396, %v4367, %v4425
      %v4455 = vsel %vm4397, %v4368, %v4426
      %v4456 = vsel %vm4398, %v4369, %v4427
      %v4457 = vsel %vm4399, %v4370, %v4428
      %v4458 = vsel %vm4400, %v4371, %v4429
      %v4459 = vsel %vm4401, %v4372, %v4430
      %v4460 = vsel %vm4402, %v4373, %v4431
      %v4461 = vsel %vm4403, %v4374, %v4432
      %v4462 = vsel %vm4404, %v4375, %v4433
      %v4463 = vsel %vm4405, %v4376, %v4434
      %v4464 = vsel %vm4406, %v4377, %v4435
      %v4465 = vsel %vm4407, %v4378, %v4436
      %v4466 = vsel %vm4408, %v4379, %v4437
      %v4467 = vsel %vm4409, %v4380, %v4438
      %v4468 = vsel %vm4410, %v4381, %v4439
      %v4469 = vadd.f32 %v4440, 1.0
      %v4470 = vadd.f32 %v4441, 1.0
      %v4471 = vadd.f32 %v4442, 1.0
      %v4472 = vadd.f32 %v4443, 1.0
      %v4473 = vadd.f32 %v4444, 1.0
      %v4474 = vadd.f32 %v4445, 1.0
      %v4475 = vadd.f32 %v4446, 1.0
      %v4476 = vadd.f32 %v4447, 1.0
      %v4477 = vadd.f32 %v4448, 1.0
      %v4478 = vadd.f32 %v4449, 1.0
      %v4479 = vadd.f32 %v4450, 1.0
      %v4480 = vadd.f32 %v4451, 1.0
      %v4481 = vadd.f32 %v4452, 1.0
      %v4482 = vadd.f32 %v4453, 1.0
      %v4483 = vadd.f32 %v4454, 1.0
      %v4484 = vadd.f32 %v4455, 1.0
      %v4485 = vadd.f32 %v4456, 1.0
      %v4486 = vadd.f32 %v4457, 1.0
      %v4487 = vadd.f32 %v4458, 1.0
      %v4488 = vadd.f32 %v4459, 1.0
      %v4489 = vadd.f32 %v4460, 1.0
      %v4490 = vadd.f32 %v4461, 1.0
      %v4491 = vadd.f32 %v4462, 1.0
      %v4492 = vadd.f32 %v4463, 1.0
      %v4493 = vadd.f32 %v4464, 1.0
      %v4494 = vadd.f32 %v4465, 1.0
      %v4495 = vadd.f32 %v4466, 1.0
      %v4496 = vadd.f32 %v4467, 1.0
      %v4497 = vadd.f32 %v4468, 1.0
      %v4498 = vmul.f32 %v3744, %v4469
      %v4499 = vmul.f32 %v3745, %v4470
      %v4500 = vmul.f32 %v3746, %v4471
      %v4501 = vmul.f32 %v3747, %v4472
      %v4502 = vmul.f32 %v3748, %v4473
      %v4503 = vmul.f32 %v3749, %v4474
      %v4504 = vmul.f32 %v3750, %v4475
      %v4505 = vmul.f32 %v3751, %v4476
      %v4506 = vmul.f32 %v3752, %v4477
      %v4507 = vmul.f32 %v3753, %v4478
      %v4508 = vmul.f32 %v3754, %v4479
      %v4509 = vmul.f32 %v3755, %v4480
      %v4510 = vmul.f32 %v3756, %v4481
      %v4511 = vmul.f32 %v3757, %v4482
      %v4512 = vmul.f32 %v3758, %v4483
      %v4513 = vmul.f32 %v3759, %v4484
      %v4514 = vmul.f32 %v3760, %v4485
      %v4515 = vmul.f32 %v3761, %v4486
      %v4516 = vmul.f32 %v3762, %v4487
      %v4517 = vmul.f32 %v3763, %v4488
      %v4518 = vmul.f32 %v3764, %v4489
      %v4519 = vmul.f32 %v3765, %v4490
      %v4520 = vmul.f32 %v3766, %v4491
      %v4521 = vmul.f32 %v3767, %v4492
      %v4522 = vmul.f32 %v3768, %v4493
      %v4523 = vmul.f32 %v3769, %v4494
      %v4524 = vmul.f32 %v3770, %v4495
      %v4525 = vmul.f32 %v3771, %v4496
      %v4526 = vmul.f32 %v3772, %v4497
      %v4527 = vpack.c.bf16 %v4499, %v4498
      %v4528 = vpack.c.bf16 %v4501, %v4500
      %v4529 = vpack.c.bf16 %v4503, %v4502
      %v4530 = vpack.c.bf16 %v4505, %v4504
      %v4531 = vpack.c.bf16 %v4507, %v4506
      %v4532 = vpack.c.bf16 %v4509, %v4508
      %v4533 = vpack.c.bf16 %v4511, %v4510
      %v4534 = vpack.c.bf16 %v4513, %v4512
      %v4535 = vpack.c.bf16 %v4515, %v4514
      %v4536 = vpack.c.bf16 %v4517, %v4516
      %v4537 = vpack.c.bf16 %v4519, %v4518
      %v4538 = vpack.c.bf16 %v4521, %v4520
      %v4539 = vpack.c.bf16 %v4523, %v4522
      %v4540 = vpack.c.bf16 %v4525, %v4524
      %v4541 = vpack.c.bf16 %v4526, %v4526
      %v4557 = vunpack.c.l.b16 %v4527
      %v4558 = vunpack.c.h.b16 %v4527
      %v4559 = vunpack.c.l.b16 %v4528
      %v4560 = vunpack.c.h.b16 %v4528
      %v4561 = vunpack.c.l.b16 %v4529
      %v4562 = vunpack.c.h.b16 %v4529
      %v4563 = vunpack.c.l.b16 %v4530
      %v4564 = vunpack.c.h.b16 %v4530
      %v4565 = vunpack.c.l.b16 %v4531
      %v4566 = vunpack.c.h.b16 %v4531
      %v4567 = vunpack.c.l.b16 %v4532
      %v4568 = vunpack.c.h.b16 %v4532
      %v4569 = vunpack.c.l.b16 %v4533
      %v4570 = vunpack.c.h.b16 %v4533
      %v4571 = vunpack.c.l.b16 %v4534
      %v4572 = vunpack.c.h.b16 %v4534
      %v4573 = vunpack.c.l.b16 %v4535
      %v4574 = vunpack.c.h.b16 %v4535
      %v4575 = vunpack.c.l.b16 %v4536
      %v4576 = vunpack.c.h.b16 %v4536
      %v4577 = vunpack.c.l.b16 %v4537
      %v4578 = vunpack.c.h.b16 %v4537
      %v4579 = vunpack.c.l.b16 %v4538
      %v4580 = vunpack.c.h.b16 %v4538
      %v4581 = vunpack.c.l.b16 %v4539
      %v4582 = vunpack.c.h.b16 %v4539
      %v4583 = vunpack.c.l.b16 %v4540
      %v4584 = vunpack.c.h.b16 %v4540
      %v4585 = vunpack.c.l.b16 %v4541
      %v4586 = vpack.c.b16 %v4557, %v4557
      %v4587 = vpack.c.b16 %v4558, %v4558
      %v4588 = vpack.c.b16 %v4559, %v4559
      %v4589 = vpack.c.b16 %v4560, %v4560
      %v4590 = vpack.c.b16 %v4561, %v4561
      %v4591 = vpack.c.b16 %v4562, %v4562
      %v4592 = vpack.c.b16 %v4563, %v4563
      %v4593 = vpack.c.b16 %v4564, %v4564
      %v4594 = vpack.c.b16 %v4565, %v4565
      %v4595 = vpack.c.b16 %v4566, %v4566
      %v4596 = vpack.c.b16 %v4567, %v4567
      %v4597 = vpack.c.b16 %v4568, %v4568
      %v4598 = vpack.c.b16 %v4569, %v4569
      %v4599 = vpack.c.b16 %v4570, %v4570
      %v4600 = vpack.c.b16 %v4571, %v4571
      %v4601 = vpack.c.b16 %v4572, %v4572
      %v4602 = vpack.c.b16 %v4573, %v4573
      %v4603 = vpack.c.b16 %v4574, %v4574
      %v4604 = vpack.c.b16 %v4575, %v4575
      %v4605 = vpack.c.b16 %v4576, %v4576
      %v4606 = vpack.c.b16 %v4577, %v4577
      %v4607 = vpack.c.b16 %v4578, %v4578
      %v4608 = vpack.c.b16 %v4579, %v4579
      %v4609 = vpack.c.b16 %v4580, %v4580
      %v4610 = vpack.c.b16 %v4581, %v4581
      %v4611 = vpack.c.b16 %v4582, %v4582
      %v4612 = vpack.c.b16 %v4583, %v4583
      %v4613 = vpack.c.b16 %v4584, %v4584
      %v4614 = vpack.c.b16 %v4585, %v4585
      %vm4644 = vcmask 519168
      %4645 = vst.msk [vmem:[#allocation2] sm:$0xf] %vm4644, %v4586
      %4646 = vst.msk [vmem:[#allocation2 + $0x4] sm:$0xf] %vm4644, %v4587
      %4647 = vst.msk [vmem:[#allocation2 + $0x8] sm:$0xf] %vm4644, %v4588
      %4648 = vst.msk [vmem:[#allocation2 + $0xc] sm:$0xf] %vm4644, %v4589
      %4649 = vst.msk [vmem:[#allocation2 + $0x10] sm:$0xf] %vm4644, %v4590
      %4650 = vst.msk [vmem:[#allocation2 + $0x14] sm:$0xf] %vm4644, %v4591
      %4651 = vst.msk [vmem:[#allocation2 + $0x18] sm:$0xf] %vm4644, %v4592
      %4652 = vst.msk [vmem:[#allocation2 + $0x1c] sm:$0xf] %vm4644, %v4593
      %4653 = vst.msk [vmem:[#allocation2 + $0x20] sm:$0xf] %vm4644, %v4594
      %4654 = vst.msk [vmem:[#allocation2 + $0x24] sm:$0xf] %vm4644, %v4595
      %4655 = vst.msk [vmem:[#allocation2 + $0x28] sm:$0xf] %vm4644, %v4596
      %4656 = vst.msk [vmem:[#allocation2 + $0x2c] sm:$0xf] %vm4644, %v4597
      %4657 = vst.msk [vmem:[#allocation2 + $0x30] sm:$0xf] %vm4644, %v4598
      %4658 = vst.msk [vmem:[#allocation2 + $0x34] sm:$0xf] %vm4644, %v4599
      %4659 = vst.msk [vmem:[#allocation2 + $0x38] sm:$0xf] %vm4644, %v4600
      %4660 = vst.msk [vmem:[#allocation2 + $0x3c] sm:$0xf] %vm4644, %v4601
      %4661 = vst.msk [vmem:[#allocation2 + $0x40] sm:$0xf] %vm4644, %v4602
      %4662 = vst.msk [vmem:[#allocation2 + $0x44] sm:$0xf] %vm4644, %v4603
      %4663 = vst.msk [vmem:[#allocation2 + $0x48] sm:$0xf] %vm4644, %v4604
      %4664 = vst.msk [vmem:[#allocation2 + $0x4c] sm:$0xf] %vm4644, %v4605
      %4665 = vst.msk [vmem:[#allocation2 + $0x50] sm:$0xf] %vm4644, %v4606
      %4666 = vst.msk [vmem:[#allocation2 + $0x54] sm:$0xf] %vm4644, %v4607
      %4667 = vst.msk [vmem:[#allocation2 + $0x58] sm:$0xf] %vm4644, %v4608
      %4668 = vst.msk [vmem:[#allocation2 + $0x5c] sm:$0xf] %vm4644, %v4609
      %4669 = vst.msk [vmem:[#allocation2 + $0x60] sm:$0xf] %vm4644, %v4610
      %4670 = vst.msk [vmem:[#allocation2 + $0x64] sm:$0xf] %vm4644, %v4611
      %4671 = vst.msk [vmem:[#allocation2 + $0x68] sm:$0xf] %vm4644, %v4612
      %4672 = vst.msk [vmem:[#allocation2 + $0x6c] sm:$0xf] %vm4644, %v4613
      %4673 = vst.msk [vmem:[#allocation2 + $0x70] sm:$0xf] %vm4644, %v4614
      %v4674 = vld [vmem:[#allocation2] sm:$0xf]
      %v4675 = vld [vmem:[#allocation2 + $0x4] sm:$0xf]
      %v4676 = vld [vmem:[#allocation2 + $0x8] sm:$0xf]
      %v4677 = vld [vmem:[#allocation2 + $0xc] sm:$0xf]
      %v4678 = vld [vmem:[#allocation2 + $0x10] sm:$0xf]
      %v4679 = vld [vmem:[#allocation2 + $0x14] sm:$0xf]
      %v4680 = vld [vmem:[#allocation2 + $0x18] sm:$0xf]
      %v4681 = vld [vmem:[#allocation2 + $0x1c] sm:$0xf]
      %v4682 = vld [vmem:[#allocation2 + $0x20] sm:$0xf]
      %v4683 = vld [vmem:[#allocation2 + $0x24] sm:$0xf]
      %v4684 = vld [vmem:[#allocation2 + $0x28] sm:$0xf]
      %v4685 = vld [vmem:[#allocation2 + $0x2c] sm:$0xf]
      %v4686 = vld [vmem:[#allocation2 + $0x30] sm:$0xf]
      %v4687 = vld [vmem:[#allocation2 + $0x34] sm:$0xf]
      %v4688 = vld [vmem:[#allocation2 + $0x38] sm:$0xf]
      %v4689 = vld [vmem:[#allocation2 + $0x3c] sm:$0xf]
      %v4690 = vld [vmem:[#allocation2 + $0x40] sm:$0xf]
      %v4691 = vld [vmem:[#allocation2 + $0x44] sm:$0xf]
      %v4692 = vld [vmem:[#allocation2 + $0x48] sm:$0xf]
      %v4693 = vld [vmem:[#allocation2 + $0x4c] sm:$0xf]
      %v4694 = vld [vmem:[#allocation2 + $0x50] sm:$0xf]
      %v4695 = vld [vmem:[#allocation2 + $0x54] sm:$0xf]
      %v4696 = vld [vmem:[#allocation2 + $0x58] sm:$0xf]
      %v4697 = vld [vmem:[#allocation2 + $0x5c] sm:$0xf]
      %v4698 = vld [vmem:[%s5] sm:$0xf]
      %v4699 = vld [vmem:[%s5 + $0x4] sm:$0xf]
      %v4700 = vld [vmem:[%s5 + $0x8] sm:$0xf]
      %v4701 = vld [vmem:[%s5 + $0xc] sm:$0xf]
      %v4702 = vld [vmem:[%s5 + $0x10] sm:$0xf]
      %v4703 = vld [vmem:[%s5 + $0x14] sm:$0xf]
      %v4704 = vld [vmem:[%s5 + $0x18] sm:$0xf]
      %v4705 = vld [vmem:[%s5 + $0x1c] sm:$0xf]
      %v4706 = vld [vmem:[#allocation2 + $0x60] sm:$0x1]
      %s4707 = scalar_lea.vmem %s5, 32
      %v4708 = vld [vmem:[%s4707] sm:$0xf]
      %v4709 = vld [vmem:[%s4707 + $0x4] sm:$0xf]
      %v4710 = vld [vmem:[%s4707 + $0x8] sm:$0xf]
      %v4711 = vld [vmem:[%s4707 + $0xc] sm:$0xf]
      %v4712 = vld [vmem:[%s4707 + $0x10] sm:$0xf]
      %v4713 = vld [vmem:[%s4707 + $0x14] sm:$0xf]
      %v4714 = vld [vmem:[%s4707 + $0x18] sm:$0xf]
      %v4715 = vld [vmem:[%s4707 + $0x1c] sm:$0xf]
      %v4741 = vunpack.c.l.b16 %v4674
      %v4742 = vunpack.c.l.b16 %v4675
      %v4743 = vunpack.c.l.b16 %v4676
      %v4744 = vunpack.c.l.b16 %v4677
      %v4745 = vunpack.c.l.b16 %v4678
      %v4746 = vunpack.c.l.b16 %v4679
      %v4747 = vunpack.c.l.b16 %v4680
      %v4748 = vunpack.c.l.b16 %v4681
      %v4749 = vunpack.c.l.b16 %v4682
      %v4750 = vunpack.c.l.b16 %v4683
      %v4751 = vunpack.c.l.b16 %v4684
      %v4752 = vunpack.c.l.b16 %v4685
      %v4753 = vunpack.c.l.b16 %v4686
      %v4754 = vunpack.c.l.b16 %v4687
      %v4755 = vunpack.c.l.b16 %v4688
      %v4756 = vunpack.c.l.b16 %v4689
      %v4757 = vunpack.c.l.b16 %v4690
      %v4758 = vunpack.c.l.b16 %v4691
      %v4759 = vunpack.c.l.b16 %v4692
      %v4760 = vunpack.c.l.b16 %v4693
      %v4761 = vunpack.c.l.b16 %v4694
      %v4762 = vunpack.c.l.b16 %v4695
      %v4763 = vunpack.c.l.b16 %v4696
      %v4764 = vunpack.c.l.b16 %v4697
      %v4765 = vunpack.c.l.b16 %v4706
      %v4766 = vpack.c.b16 %v4742, %v4741
      %v4767 = vpack.c.b16 %v4744, %v4743
      %v4768 = vpack.c.b16 %v4746, %v4745
      %v4769 = vpack.c.b16 %v4748, %v4747
      %v4770 = vpack.c.b16 %v4750, %v4749
      %v4771 = vpack.c.b16 %v4752, %v4751
      %v4772 = vpack.c.b16 %v4754, %v4753
      %v4773 = vpack.c.b16 %v4756, %v4755
      %v4774 = vpack.c.b16 %v4758, %v4757
      %v4775 = vpack.c.b16 %v4760, %v4759
      %v4776 = vpack.c.b16 %v4762, %v4761
      %v4777 = vpack.c.b16 %v4764, %v4763
      %v4778 = vpack.c.b16 %v4765, %v4765
      %v4780 = vshrl.u32 %v4766, 16
      %v4782 = vshll.u32 %v4766, 16
      %v4784 = vrot.slane %v4782, 1
      %v4785 = vor.u32 %v4780, %v4784
      %v4787 = vshll.u32 %v4767, 16
      %v4789 = vrot.slane %v4787, 1
      %v4790 = vsel %vm557, %v4785, %v4789
      %v4791 = vshrl.u32 %v4767, 16
      %v4793 = vor.u32 %v4791, %v4789
      %v4795 = vshll.u32 %v4768, 16
      %v4797 = vrot.slane %v4795, 1
      %v4798 = vsel %vm557, %v4793, %v4797
      %v4799 = vshrl.u32 %v4768, 16
      %v4801 = vor.u32 %v4799, %v4797
      %v4803 = vshll.u32 %v4769, 16
      %v4805 = vrot.slane %v4803, 1
      %v4806 = vsel %vm557, %v4801, %v4805
      %v4807 = vshrl.u32 %v4769, 16
      %v4809 = vor.u32 %v4807, %v4805
      %v4811 = vshll.u32 %v4770, 16
      %v4813 = vrot.slane %v4811, 1
      %v4814 = vsel %vm557, %v4809, %v4813
      %v4815 = vshrl.u32 %v4770, 16
      %v4817 = vor.u32 %v4815, %v4813
      %v4819 = vshll.u32 %v4771, 16
      %v4821 = vrot.slane %v4819, 1
      %v4822 = vsel %vm557, %v4817, %v4821
      %v4823 = vshrl.u32 %v4771, 16
      %v4825 = vor.u32 %v4823, %v4821
      %v4827 = vshll.u32 %v4772, 16
      %v4829 = vrot.slane %v4827, 1
      %v4830 = vsel %vm557, %v4825, %v4829
      %v4831 = vshrl.u32 %v4772, 16
      %v4833 = vor.u32 %v4831, %v4829
      %v4835 = vshll.u32 %v4773, 16
      %v4837 = vrot.slane %v4835, 1
      %v4838 = vsel %vm557, %v4833, %v4837
      %v4839 = vshrl.u32 %v4773, 16
      %v4841 = vor.u32 %v4839, %v4837
      %v4843 = vshll.u32 %v4774, 16
      %v4845 = vrot.slane %v4843, 1
      %v4846 = vsel %vm557, %v4841, %v4845
      %v4847 = vshrl.u32 %v4774, 16
      %v4849 = vor.u32 %v4847, %v4845
      %v4851 = vshll.u32 %v4775, 16
      %v4853 = vrot.slane %v4851, 1
      %v4854 = vsel %vm557, %v4849, %v4853
      %v4855 = vshrl.u32 %v4775, 16
      %v4857 = vor.u32 %v4855, %v4853
      %v4859 = vshll.u32 %v4776, 16
      %v4861 = vrot.slane %v4859, 1
      %v4862 = vsel %vm557, %v4857, %v4861
      %v4863 = vshrl.u32 %v4776, 16
      %v4865 = vor.u32 %v4863, %v4861
      %v4867 = vshll.u32 %v4777, 16
      %v4869 = vrot.slane %v4867, 1
      %v4870 = vsel %vm557, %v4865, %v4869
      %v4871 = vshrl.u32 %v4777, 16
      %v4873 = vor.u32 %v4871, %v4869
      %v4875 = vshll.u32 %v4778, 16
      %v4877 = vrot.slane %v4875, 1
      %v4878 = vsel %vm557, %v4873, %v4877
      %v4887 = vunpack.c.l.b16 %v4708
      %v4888 = vunpack.c.l.b16 %v4709
      %v4889 = vunpack.c.l.b16 %v4710
      %v4890 = vunpack.c.l.b16 %v4711
      %v4891 = vunpack.c.l.b16 %v4712
      %v4892 = vunpack.c.l.b16 %v4713
      %v4893 = vunpack.c.l.b16 %v4714
      %v4894 = vunpack.c.l.b16 %v4715
      %v4895 = vpack.c.b16 %v4888, %v4887
      %v4896 = vpack.c.b16 %v4890, %v4889
      %v4897 = vpack.c.b16 %v4892, %v4891
      %v4898 = vpack.c.b16 %v4894, %v4893
      %v4904 = vsel %vm701, %v4790, 0
      %v4907 = vsel %vm701, %v4798, 0
      %v4910 = vsel %vm701, %v4806, 0
      %v4913 = vsel %vm701, %v4814, 0
      %v4916 = vsel %vm701, %v4822, 0
      %v4919 = vsel %vm701, %v4830, 0
      %v4922 = vsel %vm701, %v4838, 0
      %v4925 = vsel %vm701, %v4846, 0
      %v4928 = vsel %vm701, %v4854, 0
      %v4931 = vsel %vm701, %v4862, 0
      %v4934 = vsel %vm701, %v4870, 0
      %v4937 = vsel %vm701, %v4878, 0
      %4939 = vmatprep.subr.bf16.mxu0 0
      %4940 = vmatpush1.bf16.msra.mxu0 0
      %4941 = vmatprep.subr.bf16.mxu0 0
      %4942 = vmatpush1.bf16.msra.mxu0 0
      %4943 = vmatprep.subr.bf16.mxu0 0
      %4944 = vmatpush1.bf16.msra.mxu0 0
      %4945 = vmatprep.subr.bf16.mxu0 0
      %4946 = vmatpush1.bf16.msra.mxu0 0
      %4947 = vmatprep.subr.bf16.mxu0 0
      %4948 = vmatpush1.bf16.msra.mxu0 %v4898
      %4949 = vmatprep.subr.bf16.mxu0 0
      %4950 = vmatpush1.bf16.msra.mxu0 %v4897
      %4951 = vmatprep.subr.bf16.mxu0 0
      %4952 = vmatpush1.bf16.msra.mxu0 %v4896
      %4953 = vmatprep.subr.bf16.mxu0 0
      %4954 = vmatpush1.bf16.msra.mxu0 %v4895
      %4955 = vmatprep.subr.bf16.mxu0 0
      %4956 = vmatpush2.bf16.msra.mxu0 0
      %4957 = vmatprep.subr.bf16.mxu0 0
      %4958 = vmatpush2.bf16.msra.mxu0 0
      %4959 = vmatprep.subr.bf16.mxu0 0
      %4960 = vmatpush2.bf16.msra.mxu0 0
      %4961 = vmatprep.subr.bf16.mxu0 0
      %4962 = vmatpush2.bf16.msra.mxu0 0
      %4963 = vmatprep.subr.bf16.mxu0 0
      %4964 = vmatpush2.bf16.msra.mxu0 0
      %4965 = vmatprep.subr.bf16.mxu0 0
      %4966 = vmatpush2.bf16.msra.mxu0 0
      %4967 = vmatprep.subr.bf16.mxu0 0
      %4968 = vmatpush2.bf16.msra.mxu0 0
      %4969 = vmatprep.subr.bf16.mxu0 0
      %4970 = vmatpush2.bf16.msra.mxu0 0
      %4971 = vmatprep.mubr.bf16.mxu0 0
      %4972 = vmatmul.mubr.bf16.gmra.mxu0 %v4904
      %v4973 = vpop.f32.mrf.mxu0
      %v4974 = vadd.f32 0.0, %v4973
      %v4975 = vpop.f32.mrf.mxu0
      %v4976 = vpop.f32.mrf.mxu0
      %v4977 = vadd.f32 0.0, %v4976
      %v4978 = vpop.f32.mrf.mxu0
      %4979 = vmatprep.mubr.bf16.mxu0 0
      %4980 = vmatmul.mubr.bf16.gmra.mxu0 %v4907
      %v4981 = vpop.f32.mrf.mxu0
      %v4982 = vadd.f32 0.0, %v4981
      %v4983 = vpop.f32.mrf.mxu0
      %v4984 = vpop.f32.mrf.mxu0
      %v4985 = vadd.f32 0.0, %v4984
      %v4986 = vpop.f32.mrf.mxu0
      %4987 = vmatprep.mubr.bf16.mxu0 0
      %4988 = vmatmul.mubr.bf16.gmra.mxu0 %v4910
      %v4989 = vpop.f32.mrf.mxu0
      %v4990 = vadd.f32 0.0, %v4989
      %v4991 = vpop.f32.mrf.mxu0
      %v4992 = vpop.f32.mrf.mxu0
      %v4993 = vadd.f32 0.0, %v4992
      %v4994 = vpop.f32.mrf.mxu0
      %4995 = vmatprep.mubr.bf16.mxu0 0
      %4996 = vmatmul.mubr.bf16.gmra.mxu0 %v4913
      %v4997 = vpop.f32.mrf.mxu0
      %v4998 = vadd.f32 0.0, %v4997
      %v4999 = vpop.f32.mrf.mxu0
      %v5000 = vpop.f32.mrf.mxu0
      %v5001 = vadd.f32 0.0, %v5000
      %v5002 = vpop.f32.mrf.mxu0
      %5003 = vmatprep.mubr.bf16.mxu0 0
      %5004 = vmatmul.mubr.bf16.gmra.mxu0 %v4916
      %v5005 = vpop.f32.mrf.mxu0
      %v5006 = vadd.f32 0.0, %v5005
      %v5007 = vpop.f32.mrf.mxu0
      %v5008 = vpop.f32.mrf.mxu0
      %v5009 = vadd.f32 0.0, %v5008
      %v5010 = vpop.f32.mrf.mxu0
      %5011 = vmatprep.mubr.bf16.mxu0 0
      %5012 = vmatmul.mubr.bf16.gmra.mxu0 %v4919
      %v5013 = vpop.f32.mrf.mxu0
      %v5014 = vadd.f32 0.0, %v5013
      %v5015 = vpop.f32.mrf.mxu0
      %v5016 = vpop.f32.mrf.mxu0
      %v5017 = vadd.f32 0.0, %v5016
      %v5018 = vpop.f32.mrf.mxu0
      %5019 = vmatprep.mubr.bf16.mxu0 0
      %5020 = vmatmul.mubr.bf16.gmra.mxu0 %v4922
      %v5021 = vpop.f32.mrf.mxu0
      %v5022 = vadd.f32 0.0, %v5021
      %v5023 = vpop.f32.mrf.mxu0
      %v5024 = vpop.f32.mrf.mxu0
      %v5025 = vadd.f32 0.0, %v5024
      %v5026 = vpop.f32.mrf.mxu0
      %5027 = vmatprep.mubr.bf16.mxu0 0
      %5028 = vmatmul.mubr.bf16.gmra.mxu0 %v4925
      %v5029 = vpop.f32.mrf.mxu0
      %v5030 = vadd.f32 0.0, %v5029
      %v5031 = vpop.f32.mrf.mxu0
      %v5032 = vpop.f32.mrf.mxu0
      %v5033 = vadd.f32 0.0, %v5032
      %v5034 = vpop.f32.mrf.mxu0
      %5035 = vmatprep.mubr.bf16.mxu0 0
      %5036 = vmatmul.mubr.bf16.gmra.mxu0 %v4928
      %v5037 = vpop.f32.mrf.mxu0
      %v5038 = vadd.f32 0.0, %v5037
      %v5039 = vpop.f32.mrf.mxu0
      %v5040 = vpop.f32.mrf.mxu0
      %v5041 = vadd.f32 0.0, %v5040
      %v5042 = vpop.f32.mrf.mxu0
      %5043 = vmatprep.mubr.bf16.mxu0 0
      %5044 = vmatmul.mubr.bf16.gmra.mxu0 %v4931
      %v5045 = vpop.f32.mrf.mxu0
      %v5046 = vadd.f32 0.0, %v5045
      %v5047 = vpop.f32.mrf.mxu0
      %v5048 = vpop.f32.mrf.mxu0
      %v5049 = vadd.f32 0.0, %v5048
      %v5050 = vpop.f32.mrf.mxu0
      %5051 = vmatprep.mubr.bf16.mxu0 0
      %5052 = vmatmul.mubr.bf16.gmra.mxu0 %v4934
      %v5053 = vpop.f32.mrf.mxu0
      %v5054 = vadd.f32 0.0, %v5053
      %v5055 = vpop.f32.mrf.mxu0
      %v5056 = vpop.f32.mrf.mxu0
      %v5057 = vadd.f32 0.0, %v5056
      %v5058 = vpop.f32.mrf.mxu0
      %5059 = vmatprep.mubr.bf16.mxu0 0
      %5060 = vmatmul.mubr.bf16.gmra.mxu0 %v4937
      %v5061 = vpop.f32.mrf.mxu0
      %v5062 = vadd.f32 0.0, %v5061
      %v5063 = vpop.f32.mrf.mxu0
      %v5064 = vpop.f32.mrf.mxu0
      %v5065 = vadd.f32 0.0, %v5064
      %v5066 = vpop.f32.mrf.mxu0
      %5067 = vdwg.mxu0
      %v5076 = vunpack.c.l.b16 %v4698
      %v5077 = vunpack.c.l.b16 %v4699
      %v5078 = vunpack.c.l.b16 %v4700
      %v5079 = vunpack.c.l.b16 %v4701
      %v5080 = vunpack.c.l.b16 %v4702
      %v5081 = vunpack.c.l.b16 %v4703
      %v5082 = vunpack.c.l.b16 %v4704
      %v5083 = vunpack.c.l.b16 %v4705
      %v5084 = vpack.c.b16 %v5077, %v5076
      %v5085 = vpack.c.b16 %v5079, %v5078
      %v5086 = vpack.c.b16 %v5081, %v5080
      %v5087 = vpack.c.b16 %v5083, %v5082
      %v5092 = vsel %vm701, %v4766, 0
      %v5094 = vsel %vm701, %v4767, 0
      %v5096 = vsel %vm701, %v4768, 0
      %v5098 = vsel %vm701, %v4769, 0
      %v5100 = vsel %vm701, %v4770, 0
      %v5102 = vsel %vm701, %v4771, 0
      %v5104 = vsel %vm701, %v4772, 0
      %v5106 = vsel %vm701, %v4773, 0
      %v5108 = vsel %vm701, %v4774, 0
      %v5110 = vsel %vm701, %v4775, 0
      %v5112 = vsel %vm701, %v4776, 0
      %v5114 = vsel %vm701, %v4777, 0
      %5116 = vmatprep.subr.bf16.mxu0 0
      %5117 = vmatpush1.bf16.msra.mxu0 0
      %5118 = vmatprep.subr.bf16.mxu0 0
      %5119 = vmatpush1.bf16.msra.mxu0 0
      %5120 = vmatprep.subr.bf16.mxu0 0
      %5121 = vmatpush1.bf16.msra.mxu0 0
      %5122 = vmatprep.subr.bf16.mxu0 0
      %5123 = vmatpush1.bf16.msra.mxu0 0
      %5124 = vmatprep.subr.bf16.mxu0 0
      %5125 = vmatpush1.bf16.msra.mxu0 %v5087
      %5126 = vmatprep.subr.bf16.mxu0 0
      %5127 = vmatpush1.bf16.msra.mxu0 %v5086
      %5128 = vmatprep.subr.bf16.mxu0 0
      %5129 = vmatpush1.bf16.msra.mxu0 %v5085
      %5130 = vmatprep.subr.bf16.mxu0 0
      %5131 = vmatpush1.bf16.msra.mxu0 %v5084
      %5132 = vmatprep.subr.bf16.mxu0 0
      %5133 = vmatpush2.bf16.msra.mxu0 0
      %5134 = vmatprep.subr.bf16.mxu0 0
      %5135 = vmatpush2.bf16.msra.mxu0 0
      %5136 = vmatprep.subr.bf16.mxu0 0
      %5137 = vmatpush2.bf16.msra.mxu0 0
      %5138 = vmatprep.subr.bf16.mxu0 0
      %5139 = vmatpush2.bf16.msra.mxu0 0
      %5140 = vmatprep.subr.bf16.mxu0 0
      %5141 = vmatpush2.bf16.msra.mxu0 0
      %5142 = vmatprep.subr.bf16.mxu0 0
      %5143 = vmatpush2.bf16.msra.mxu0 0
      %5144 = vmatprep.subr.bf16.mxu0 0
      %5145 = vmatpush2.bf16.msra.mxu0 0
      %5146 = vmatprep.subr.bf16.mxu0 0
      %5147 = vmatpush2.bf16.msra.mxu0 0
      %5148 = vmatprep.mubr.bf16.mxu0 0
      %5149 = vmatmul.mubr.bf16.gmra.mxu0 %v5092
      %v5150 = vpop.f32.mrf.mxu0
      %v5151 = vadd.f32 %v4974, %v5150
      %v5152 = vpop.f32.mrf.mxu0
      %v5153 = vpop.f32.mrf.mxu0
      %v5154 = vadd.f32 %v4977, %v5153
      %v5155 = vpop.f32.mrf.mxu0
      %5156 = vmatprep.mubr.bf16.mxu0 0
      %5157 = vmatmul.mubr.bf16.gmra.mxu0 %v5094
      %v5158 = vpop.f32.mrf.mxu0
      %v5159 = vadd.f32 %v4982, %v5158
      %v5160 = vpop.f32.mrf.mxu0
      %v5161 = vpop.f32.mrf.mxu0
      %v5162 = vadd.f32 %v4985, %v5161
      %v5163 = vpop.f32.mrf.mxu0
      %5164 = vmatprep.mubr.bf16.mxu0 0
      %5165 = vmatmul.mubr.bf16.gmra.mxu0 %v5096
      %v5166 = vpop.f32.mrf.mxu0
      %v5167 = vadd.f32 %v4990, %v5166
      %v5168 = vpop.f32.mrf.mxu0
      %v5169 = vpop.f32.mrf.mxu0
      %v5170 = vadd.f32 %v4993, %v5169
      %v5171 = vpop.f32.mrf.mxu0
      %5172 = vmatprep.mubr.bf16.mxu0 0
      %5173 = vmatmul.mubr.bf16.gmra.mxu0 %v5098
      %v5174 = vpop.f32.mrf.mxu0
      %v5175 = vadd.f32 %v4998, %v5174
      %v5176 = vpop.f32.mrf.mxu0
      %v5177 = vpop.f32.mrf.mxu0
      %v5178 = vadd.f32 %v5001, %v5177
      %v5179 = vpop.f32.mrf.mxu0
      %5180 = vmatprep.mubr.bf16.mxu0 0
      %5181 = vmatmul.mubr.bf16.gmra.mxu0 %v5100
      %v5182 = vpop.f32.mrf.mxu0
      %v5183 = vadd.f32 %v5006, %v5182
      %v5184 = vpop.f32.mrf.mxu0
      %v5185 = vpop.f32.mrf.mxu0
      %v5186 = vadd.f32 %v5009, %v5185
      %v5187 = vpop.f32.mrf.mxu0
      %5188 = vmatprep.mubr.bf16.mxu0 0
      %5189 = vmatmul.mubr.bf16.gmra.mxu0 %v5102
      %v5190 = vpop.f32.mrf.mxu0
      %v5191 = vadd.f32 %v5014, %v5190
      %v5192 = vpop.f32.mrf.mxu0
      %v5193 = vpop.f32.mrf.mxu0
      %v5194 = vadd.f32 %v5017, %v5193
      %v5195 = vpop.f32.mrf.mxu0
      %5196 = vmatprep.mubr.bf16.mxu0 0
      %5197 = vmatmul.mubr.bf16.gmra.mxu0 %v5104
      %v5198 = vpop.f32.mrf.mxu0
      %v5199 = vadd.f32 %v5022, %v5198
      %v5200 = vpop.f32.mrf.mxu0
      %v5201 = vpop.f32.mrf.mxu0
      %v5202 = vadd.f32 %v5025, %v5201
      %v5203 = vpop.f32.mrf.mxu0
      %5204 = vmatprep.mubr.bf16.mxu0 0
      %5205 = vmatmul.mubr.bf16.gmra.mxu0 %v5106
      %v5206 = vpop.f32.mrf.mxu0
      %v5207 = vadd.f32 %v5030, %v5206
      %v5208 = vpop.f32.mrf.mxu0
      %v5209 = vpop.f32.mrf.mxu0
      %v5210 = vadd.f32 %v5033, %v5209
      %v5211 = vpop.f32.mrf.mxu0
      %5212 = vmatprep.mubr.bf16.mxu0 0
      %5213 = vmatmul.mubr.bf16.gmra.mxu0 %v5108
      %v5214 = vpop.f32.mrf.mxu0
      %v5215 = vadd.f32 %v5038, %v5214
      %v5216 = vpop.f32.mrf.mxu0
      %v5217 = vpop.f32.mrf.mxu0
      %v5218 = vadd.f32 %v5041, %v5217
      %v5219 = vpop.f32.mrf.mxu0
      %5220 = vmatprep.mubr.bf16.mxu0 0
      %5221 = vmatmul.mubr.bf16.gmra.mxu0 %v5110
      %v5222 = vpop.f32.mrf.mxu0
      %v5223 = vadd.f32 %v5046, %v5222
      %v5224 = vpop.f32.mrf.mxu0
      %v5225 = vpop.f32.mrf.mxu0
      %v5226 = vadd.f32 %v5049, %v5225
      %v5227 = vpop.f32.mrf.mxu0
      %5228 = vmatprep.mubr.bf16.mxu0 0
      %5229 = vmatmul.mubr.bf16.gmra.mxu0 %v5112
      %v5230 = vpop.f32.mrf.mxu0
      %v5231 = vadd.f32 %v5054, %v5230
      %v5232 = vpop.f32.mrf.mxu0
      %v5233 = vpop.f32.mrf.mxu0
      %v5234 = vadd.f32 %v5057, %v5233
      %v5235 = vpop.f32.mrf.mxu0
      %5236 = vmatprep.mubr.bf16.mxu0 0
      %5237 = vmatmul.mubr.bf16.gmra.mxu0 %v5114
      %v5238 = vpop.f32.mrf.mxu0
      %v5239 = vadd.f32 %v5062, %v5238
      %v5240 = vpop.f32.mrf.mxu0
      %v5241 = vpop.f32.mrf.mxu0
      %v5242 = vadd.f32 %v5065, %v5241
      %v5243 = vpop.f32.mrf.mxu0
      %5244 = vdwg.mxu0
      %v5245 = vld [vmem:[#allocation2] sm:$0xe]
      %s5246 = scalar_lea.vmem %s5, 64
      %v5247 = vld [vmem:[%s5246] sm:$0xf]
      %v5248 = vld [vmem:[%s5246 + $0x4] sm:$0xf]
      %v5249 = vld [vmem:[%s5246 + $0x8] sm:$0xf]
      %v5250 = vld [vmem:[%s5246 + $0xc] sm:$0xf]
      %v5251 = vld [vmem:[%s5246 + $0x10] sm:$0xf]
      %v5252 = vld [vmem:[%s5246 + $0x14] sm:$0xf]
      %v5253 = vld [vmem:[%s5246 + $0x18] sm:$0xf]
      %v5254 = vld [vmem:[%s5246 + $0x1c] sm:$0xf]
      %v5256 = vunpack.c.l.b16 %v5245
      %v5257 = vpack.c.b16 %v4742, %v5256
      %v5258 = vrot.slane %v5257, 1
      %v5259 = vrot.slane %v4767, 1
      %v5260 = vsel %vm1120, %v5258, %v5259
      %v5261 = vrot.slane %v4768, 1
      %v5262 = vsel %vm1120, %v5259, %v5261
      %v5263 = vrot.slane %v4769, 1
      %v5264 = vsel %vm1120, %v5261, %v5263
      %v5265 = vrot.slane %v4770, 1
      %v5266 = vsel %vm1120, %v5263, %v5265
      %v5267 = vrot.slane %v4771, 1
      %v5268 = vsel %vm1120, %v5265, %v5267
      %v5269 = vrot.slane %v4772, 1
      %v5270 = vsel %vm1120, %v5267, %v5269
      %v5271 = vrot.slane %v4773, 1
      %v5272 = vsel %vm1120, %v5269, %v5271
      %v5273 = vrot.slane %v4774, 1
      %v5274 = vsel %vm1120, %v5271, %v5273
      %v5275 = vrot.slane %v4775, 1
      %v5276 = vsel %vm1120, %v5273, %v5275
      %v5277 = vrot.slane %v4776, 1
      %v5278 = vsel %vm1120, %v5275, %v5277
      %v5279 = vrot.slane %v4777, 1
      %v5280 = vsel %vm1120, %v5277, %v5279
      %v5281 = vrot.slane %v4778, 1
      %v5282 = vsel %vm1120, %v5279, %v5281
      %v5291 = vunpack.c.l.b16 %v5247
      %v5292 = vunpack.c.l.b16 %v5248
      %v5293 = vunpack.c.l.b16 %v5249
      %v5294 = vunpack.c.l.b16 %v5250
      %v5295 = vunpack.c.l.b16 %v5251
      %v5296 = vunpack.c.l.b16 %v5252
      %v5297 = vunpack.c.l.b16 %v5253
      %v5298 = vunpack.c.l.b16 %v5254
      %v5299 = vpack.c.b16 %v5292, %v5291
      %v5300 = vpack.c.b16 %v5294, %v5293
      %v5301 = vpack.c.b16 %v5296, %v5295
      %v5302 = vpack.c.b16 %v5298, %v5297
      %v5308 = vsel %vm701, %v5260, 0
      %v5311 = vsel %vm701, %v5262, 0
      %v5314 = vsel %vm701, %v5264, 0
      %v5317 = vsel %vm701, %v5266, 0
      %v5320 = vsel %vm701, %v5268, 0
      %v5323 = vsel %vm701, %v5270, 0
      %v5326 = vsel %vm701, %v5272, 0
      %v5329 = vsel %vm701, %v5274, 0
      %v5332 = vsel %vm701, %v5276, 0
      %v5335 = vsel %vm701, %v5278, 0
      %v5338 = vsel %vm701, %v5280, 0
      %v5341 = vsel %vm701, %v5282, 0
      %5343 = vmatprep.subr.bf16.mxu0 0
      %5344 = vmatpush1.bf16.msra.mxu0 0
      %5345 = vmatprep.subr.bf16.mxu0 0
      %5346 = vmatpush1.bf16.msra.mxu0 0
      %5347 = vmatprep.subr.bf16.mxu0 0
      %5348 = vmatpush1.bf16.msra.mxu0 0
      %5349 = vmatprep.subr.bf16.mxu0 0
      %5350 = vmatpush1.bf16.msra.mxu0 0
      %5351 = vmatprep.subr.bf16.mxu0 0
      %5352 = vmatpush1.bf16.msra.mxu0 %v5302
      %5353 = vmatprep.subr.bf16.mxu0 0
      %5354 = vmatpush1.bf16.msra.mxu0 %v5301
      %5355 = vmatprep.subr.bf16.mxu0 0
      %5356 = vmatpush1.bf16.msra.mxu0 %v5300
      %5357 = vmatprep.subr.bf16.mxu0 0
      %5358 = vmatpush1.bf16.msra.mxu0 %v5299
      %5359 = vmatprep.subr.bf16.mxu0 0
      %5360 = vmatpush2.bf16.msra.mxu0 0
      %5361 = vmatprep.subr.bf16.mxu0 0
      %5362 = vmatpush2.bf16.msra.mxu0 0
      %5363 = vmatprep.subr.bf16.mxu0 0
      %5364 = vmatpush2.bf16.msra.mxu0 0
      %5365 = vmatprep.subr.bf16.mxu0 0
      %5366 = vmatpush2.bf16.msra.mxu0 0
      %5367 = vmatprep.subr.bf16.mxu0 0
      %5368 = vmatpush2.bf16.msra.mxu0 0
      %5369 = vmatprep.subr.bf16.mxu0 0
      %5370 = vmatpush2.bf16.msra.mxu0 0
      %5371 = vmatprep.subr.bf16.mxu0 0
      %5372 = vmatpush2.bf16.msra.mxu0 0
      %5373 = vmatprep.subr.bf16.mxu0 0
      %5374 = vmatpush2.bf16.msra.mxu0 0
      %5375 = vmatprep.mubr.bf16.mxu0 0
      %5376 = vmatmul.mubr.bf16.gmra.mxu0 %v5308
      %v5377 = vpop.f32.mrf.mxu0
      %v5378 = vadd.f32 0.0, %v5377
      %v5379 = vpop.f32.mrf.mxu0
      %v5380 = vpop.f32.mrf.mxu0
      %v5381 = vadd.f32 0.0, %v5380
      %v5382 = vpop.f32.mrf.mxu0
      %5383 = vmatprep.mubr.bf16.mxu0 0
      %5384 = vmatmul.mubr.bf16.gmra.mxu0 %v5311
      %v5385 = vpop.f32.mrf.mxu0
      %v5386 = vadd.f32 0.0, %v5385
      %v5387 = vpop.f32.mrf.mxu0
      %v5388 = vpop.f32.mrf.mxu0
      %v5389 = vadd.f32 0.0, %v5388
      %v5390 = vpop.f32.mrf.mxu0
      %5391 = vmatprep.mubr.bf16.mxu0 0
      %5392 = vmatmul.mubr.bf16.gmra.mxu0 %v5314
      %v5393 = vpop.f32.mrf.mxu0
      %v5394 = vadd.f32 0.0, %v5393
      %v5395 = vpop.f32.mrf.mxu0
      %v5396 = vpop.f32.mrf.mxu0
      %v5397 = vadd.f32 0.0, %v5396
      %v5398 = vpop.f32.mrf.mxu0
      %5399 = vmatprep.mubr.bf16.mxu0 0
      %5400 = vmatmul.mubr.bf16.gmra.mxu0 %v5317
      %v5401 = vpop.f32.mrf.mxu0
      %v5402 = vadd.f32 0.0, %v5401
      %v5403 = vpop.f32.mrf.mxu0
      %v5404 = vpop.f32.mrf.mxu0
      %v5405 = vadd.f32 0.0, %v5404
      %v5406 = vpop.f32.mrf.mxu0
      %5407 = vmatprep.mubr.bf16.mxu0 0
      %5408 = vmatmul.mubr.bf16.gmra.mxu0 %v5320
      %v5409 = vpop.f32.mrf.mxu0
      %v5410 = vadd.f32 0.0, %v5409
      %v5411 = vpop.f32.mrf.mxu0
      %v5412 = vpop.f32.mrf.mxu0
      %v5413 = vadd.f32 0.0, %v5412
      %v5414 = vpop.f32.mrf.mxu0
      %5415 = vmatprep.mubr.bf16.mxu0 0
      %5416 = vmatmul.mubr.bf16.gmra.mxu0 %v5323
      %v5417 = vpop.f32.mrf.mxu0
      %v5418 = vadd.f32 0.0, %v5417
      %v5419 = vpop.f32.mrf.mxu0
      %v5420 = vpop.f32.mrf.mxu0
      %v5421 = vadd.f32 0.0, %v5420
      %v5422 = vpop.f32.mrf.mxu0
      %5423 = vmatprep.mubr.bf16.mxu0 0
      %5424 = vmatmul.mubr.bf16.gmra.mxu0 %v5326
      %v5425 = vpop.f32.mrf.mxu0
      %v5426 = vadd.f32 0.0, %v5425
      %v5427 = vpop.f32.mrf.mxu0
      %v5428 = vpop.f32.mrf.mxu0
      %v5429 = vadd.f32 0.0, %v5428
      %v5430 = vpop.f32.mrf.mxu0
      %5431 = vmatprep.mubr.bf16.mxu0 0
      %5432 = vmatmul.mubr.bf16.gmra.mxu0 %v5329
      %v5433 = vpop.f32.mrf.mxu0
      %v5434 = vadd.f32 0.0, %v5433
      %v5435 = vpop.f32.mrf.mxu0
      %v5436 = vpop.f32.mrf.mxu0
      %v5437 = vadd.f32 0.0, %v5436
      %v5438 = vpop.f32.mrf.mxu0
      %5439 = vmatprep.mubr.bf16.mxu0 0
      %5440 = vmatmul.mubr.bf16.gmra.mxu0 %v5332
      %v5441 = vpop.f32.mrf.mxu0
      %v5442 = vadd.f32 0.0, %v5441
      %v5443 = vpop.f32.mrf.mxu0
      %v5444 = vpop.f32.mrf.mxu0
      %v5445 = vadd.f32 0.0, %v5444
      %v5446 = vpop.f32.mrf.mxu0
      %5447 = vmatprep.mubr.bf16.mxu0 0
      %5448 = vmatmul.mubr.bf16.gmra.mxu0 %v5335
      %v5449 = vpop.f32.mrf.mxu0
      %v5450 = vadd.f32 0.0, %v5449
      %v5451 = vpop.f32.mrf.mxu0
      %v5452 = vpop.f32.mrf.mxu0
      %v5453 = vadd.f32 0.0, %v5452
      %v5454 = vpop.f32.mrf.mxu0
      %5455 = vmatprep.mubr.bf16.mxu0 0
      %5456 = vmatmul.mubr.bf16.gmra.mxu0 %v5338
      %v5457 = vpop.f32.mrf.mxu0
      %v5458 = vadd.f32 0.0, %v5457
      %v5459 = vpop.f32.mrf.mxu0
      %v5460 = vpop.f32.mrf.mxu0
      %v5461 = vadd.f32 0.0, %v5460
      %v5462 = vpop.f32.mrf.mxu0
      %5463 = vmatprep.mubr.bf16.mxu0 0
      %5464 = vmatmul.mubr.bf16.gmra.mxu0 %v5341
      %v5465 = vpop.f32.mrf.mxu0
      %v5466 = vadd.f32 0.0, %v5465
      %v5467 = vpop.f32.mrf.mxu0
      %v5468 = vpop.f32.mrf.mxu0
      %v5469 = vadd.f32 0.0, %v5468
      %v5470 = vpop.f32.mrf.mxu0
      %5471 = vdwg.mxu0
      %v5472 = vadd.f32 %v5151, %v5378
      %v5473 = vadd.f32 %v5154, %v5381
      %v5474 = vadd.f32 %v5159, %v5386
      %v5475 = vadd.f32 %v5162, %v5389
      %v5476 = vadd.f32 %v5167, %v5394
      %v5477 = vadd.f32 %v5170, %v5397
      %v5478 = vadd.f32 %v5175, %v5402
      %v5479 = vadd.f32 %v5178, %v5405
      %v5480 = vadd.f32 %v5183, %v5410
      %v5481 = vadd.f32 %v5186, %v5413
      %v5482 = vadd.f32 %v5191, %v5418
      %v5483 = vadd.f32 %v5194, %v5421
      %v5484 = vadd.f32 %v5199, %v5426
      %v5485 = vadd.f32 %v5202, %v5429
      %v5486 = vadd.f32 %v5207, %v5434
      %v5487 = vadd.f32 %v5210, %v5437
      %v5488 = vadd.f32 %v5215, %v5442
      %v5489 = vadd.f32 %v5218, %v5445
      %v5490 = vadd.f32 %v5223, %v5450
      %v5491 = vadd.f32 %v5226, %v5453
      %v5492 = vadd.f32 %v5231, %v5458
      %v5493 = vadd.f32 %v5234, %v5461
      %v5494 = vadd.f32 %v5239, %v5466
      %v5495 = vadd.f32 %v5242, %v5469
      %v5496 = vld [vmem:[#allocation2 + $0x8] sm:$0xf]
      %v5497 = vld [vmem:[#allocation2 + $0xc] sm:$0xf]
      %v5498 = vld [vmem:[#allocation2 + $0x10] sm:$0xf]
      %v5499 = vld [vmem:[#allocation2 + $0x14] sm:$0xf]
      %v5500 = vld [vmem:[#allocation2 + $0x18] sm:$0xf]
      %v5501 = vld [vmem:[#allocation2 + $0x1c] sm:$0xf]
      %v5502 = vld [vmem:[#allocation2 + $0x20] sm:$0xf]
      %v5503 = vld [vmem:[#allocation2 + $0x24] sm:$0xf]
      %v5504 = vld [vmem:[#allocation2 + $0x28] sm:$0xf]
      %v5505 = vld [vmem:[#allocation2 + $0x2c] sm:$0xf]
      %v5506 = vld [vmem:[#allocation2 + $0x30] sm:$0xf]
      %v5507 = vld [vmem:[#allocation2 + $0x34] sm:$0xf]
      %v5508 = vld [vmem:[#allocation2 + $0x38] sm:$0xf]
      %v5509 = vld [vmem:[#allocation2 + $0x3c] sm:$0xf]
      %v5510 = vld [vmem:[#allocation2 + $0x40] sm:$0xf]
      %v5511 = vld [vmem:[#allocation2 + $0x44] sm:$0xf]
      %v5512 = vld [vmem:[#allocation2 + $0x48] sm:$0xf]
      %v5513 = vld [vmem:[#allocation2 + $0x4c] sm:$0xf]
      %v5514 = vld [vmem:[#allocation2 + $0x50] sm:$0xf]
      %v5515 = vld [vmem:[#allocation2 + $0x54] sm:$0xf]
      %v5516 = vld [vmem:[#allocation2 + $0x58] sm:$0xf]
      %v5517 = vld [vmem:[#allocation2 + $0x5c] sm:$0xf]
      %v5518 = vld [vmem:[#allocation2 + $0x60] sm:$0xf]
      %v5519 = vld [vmem:[#allocation2 + $0x64] sm:$0xf]
      %s5520 = scalar_lea.vmem %s5, 96
      %v5521 = vld [vmem:[%s5520] sm:$0xf]
      %v5522 = vld [vmem:[%s5520 + $0x4] sm:$0xf]
      %v5523 = vld [vmem:[%s5520 + $0x8] sm:$0xf]
      %v5524 = vld [vmem:[%s5520 + $0xc] sm:$0xf]
      %v5525 = vld [vmem:[%s5520 + $0x10] sm:$0xf]
      %v5526 = vld [vmem:[%s5520 + $0x14] sm:$0xf]
      %v5527 = vld [vmem:[%s5520 + $0x18] sm:$0xf]
      %v5528 = vld [vmem:[%s5520 + $0x1c] sm:$0xf]
      %v5553 = vunpack.c.l.b16 %v5496
      %v5554 = vunpack.c.l.b16 %v5497
      %v5555 = vunpack.c.l.b16 %v5498
      %v5556 = vunpack.c.l.b16 %v5499
      %v5557 = vunpack.c.l.b16 %v5500
      %v5558 = vunpack.c.l.b16 %v5501
      %v5559 = vunpack.c.l.b16 %v5502
      %v5560 = vunpack.c.l.b16 %v5503
      %v5561 = vunpack.c.l.b16 %v5504
      %v5562 = vunpack.c.l.b16 %v5505
      %v5563 = vunpack.c.l.b16 %v5506
      %v5564 = vunpack.c.l.b16 %v5507
      %v5565 = vunpack.c.l.b16 %v5508
      %v5566 = vunpack.c.l.b16 %v5509
      %v5567 = vunpack.c.l.b16 %v5510
      %v5568 = vunpack.c.l.b16 %v5511
      %v5569 = vunpack.c.l.b16 %v5512
      %v5570 = vunpack.c.l.b16 %v5513
      %v5571 = vunpack.c.l.b16 %v5514
      %v5572 = vunpack.c.l.b16 %v5515
      %v5573 = vunpack.c.l.b16 %v5516
      %v5574 = vunpack.c.l.b16 %v5517
      %v5575 = vunpack.c.l.b16 %v5518
      %v5576 = vunpack.c.l.b16 %v5519
      %v5577 = vpack.c.b16 %v5554, %v5553
      %v5578 = vpack.c.b16 %v5556, %v5555
      %v5579 = vpack.c.b16 %v5558, %v5557
      %v5580 = vpack.c.b16 %v5560, %v5559
      %v5581 = vpack.c.b16 %v5562, %v5561
      %v5582 = vpack.c.b16 %v5564, %v5563
      %v5583 = vpack.c.b16 %v5566, %v5565
      %v5584 = vpack.c.b16 %v5568, %v5567
      %v5585 = vpack.c.b16 %v5570, %v5569
      %v5586 = vpack.c.b16 %v5572, %v5571
      %v5587 = vpack.c.b16 %v5574, %v5573
      %v5588 = vpack.c.b16 %v5576, %v5575
      %v5597 = vunpack.c.l.b16 %v5521
      %v5598 = vunpack.c.l.b16 %v5522
      %v5599 = vunpack.c.l.b16 %v5523
      %v5600 = vunpack.c.l.b16 %v5524
      %v5601 = vunpack.c.l.b16 %v5525
      %v5602 = vunpack.c.l.b16 %v5526
      %v5603 = vunpack.c.l.b16 %v5527
      %v5604 = vunpack.c.l.b16 %v5528
      %v5605 = vpack.c.b16 %v5598, %v5597
      %v5606 = vpack.c.b16 %v5600, %v5599
      %v5607 = vpack.c.b16 %v5602, %v5601
      %v5608 = vpack.c.b16 %v5604, %v5603
      %v5614 = vsel %vm701, %v5577, 0
      %v5617 = vsel %vm701, %v5578, 0
      %v5620 = vsel %vm701, %v5579, 0
      %v5623 = vsel %vm701, %v5580, 0
      %v5626 = vsel %vm701, %v5581, 0
      %v5629 = vsel %vm701, %v5582, 0
      %v5632 = vsel %vm701, %v5583, 0
      %v5635 = vsel %vm701, %v5584, 0
      %v5638 = vsel %vm701, %v5585, 0
      %v5641 = vsel %vm701, %v5586, 0
      %v5644 = vsel %vm701, %v5587, 0
      %v5647 = vsel %vm701, %v5588, 0
      %5649 = vmatprep.subr.bf16.mxu0 0
      %5650 = vmatpush1.bf16.msra.mxu0 0
      %5651 = vmatprep.subr.bf16.mxu0 0
      %5652 = vmatpush1.bf16.msra.mxu0 0
      %5653 = vmatprep.subr.bf16.mxu0 0
      %5654 = vmatpush1.bf16.msra.mxu0 0
      %5655 = vmatprep.subr.bf16.mxu0 0
      %5656 = vmatpush1.bf16.msra.mxu0 0
      %5657 = vmatprep.subr.bf16.mxu0 0
      %5658 = vmatpush1.bf16.msra.mxu0 %v5608
      %5659 = vmatprep.subr.bf16.mxu0 0
      %5660 = vmatpush1.bf16.msra.mxu0 %v5607
      %5661 = vmatprep.subr.bf16.mxu0 0
      %5662 = vmatpush1.bf16.msra.mxu0 %v5606
      %5663 = vmatprep.subr.bf16.mxu0 0
      %5664 = vmatpush1.bf16.msra.mxu0 %v5605
      %5665 = vmatprep.subr.bf16.mxu0 0
      %5666 = vmatpush2.bf16.msra.mxu0 0
      %5667 = vmatprep.subr.bf16.mxu0 0
      %5668 = vmatpush2.bf16.msra.mxu0 0
      %5669 = vmatprep.subr.bf16.mxu0 0
      %5670 = vmatpush2.bf16.msra.mxu0 0
      %5671 = vmatprep.subr.bf16.mxu0 0
      %5672 = vmatpush2.bf16.msra.mxu0 0
      %5673 = vmatprep.subr.bf16.mxu0 0
      %5674 = vmatpush2.bf16.msra.mxu0 0
      %5675 = vmatprep.subr.bf16.mxu0 0
      %5676 = vmatpush2.bf16.msra.mxu0 0
      %5677 = vmatprep.subr.bf16.mxu0 0
      %5678 = vmatpush2.bf16.msra.mxu0 0
      %5679 = vmatprep.subr.bf16.mxu0 0
      %5680 = vmatpush2.bf16.msra.mxu0 0
      %5681 = vmatprep.mubr.bf16.mxu0 0
      %5682 = vmatmul.mubr.bf16.gmra.mxu0 %v5614
      %v5683 = vpop.f32.mrf.mxu0
      %v5684 = vadd.f32 0.0, %v5683
      %v5685 = vpop.f32.mrf.mxu0
      %v5686 = vpop.f32.mrf.mxu0
      %v5687 = vadd.f32 0.0, %v5686
      %v5688 = vpop.f32.mrf.mxu0
      %5689 = vmatprep.mubr.bf16.mxu0 0
      %5690 = vmatmul.mubr.bf16.gmra.mxu0 %v5617
      %v5691 = vpop.f32.mrf.mxu0
      %v5692 = vadd.f32 0.0, %v5691
      %v5693 = vpop.f32.mrf.mxu0
      %v5694 = vpop.f32.mrf.mxu0
      %v5695 = vadd.f32 0.0, %v5694
      %v5696 = vpop.f32.mrf.mxu0
      %5697 = vmatprep.mubr.bf16.mxu0 0
      %5698 = vmatmul.mubr.bf16.gmra.mxu0 %v5620
      %v5699 = vpop.f32.mrf.mxu0
      %v5700 = vadd.f32 0.0, %v5699
      %v5701 = vpop.f32.mrf.mxu0
      %v5702 = vpop.f32.mrf.mxu0
      %v5703 = vadd.f32 0.0, %v5702
      %v5704 = vpop.f32.mrf.mxu0
      %5705 = vmatprep.mubr.bf16.mxu0 0
      %5706 = vmatmul.mubr.bf16.gmra.mxu0 %v5623
      %v5707 = vpop.f32.mrf.mxu0
      %v5708 = vadd.f32 0.0, %v5707
      %v5709 = vpop.f32.mrf.mxu0
      %v5710 = vpop.f32.mrf.mxu0
      %v5711 = vadd.f32 0.0, %v5710
      %v5712 = vpop.f32.mrf.mxu0
      %5713 = vmatprep.mubr.bf16.mxu0 0
      %5714 = vmatmul.mubr.bf16.gmra.mxu0 %v5626
      %v5715 = vpop.f32.mrf.mxu0
      %v5716 = vadd.f32 0.0, %v5715
      %v5717 = vpop.f32.mrf.mxu0
      %v5718 = vpop.f32.mrf.mxu0
      %v5719 = vadd.f32 0.0, %v5718
      %v5720 = vpop.f32.mrf.mxu0
      %5721 = vmatprep.mubr.bf16.mxu0 0
      %5722 = vmatmul.mubr.bf16.gmra.mxu0 %v5629
      %v5723 = vpop.f32.mrf.mxu0
      %v5724 = vadd.f32 0.0, %v5723
      %v5725 = vpop.f32.mrf.mxu0
      %v5726 = vpop.f32.mrf.mxu0
      %v5727 = vadd.f32 0.0, %v5726
      %v5728 = vpop.f32.mrf.mxu0
      %5729 = vmatprep.mubr.bf16.mxu0 0
      %5730 = vmatmul.mubr.bf16.gmra.mxu0 %v5632
      %v5731 = vpop.f32.mrf.mxu0
      %v5732 = vadd.f32 0.0, %v5731
      %v5733 = vpop.f32.mrf.mxu0
      %v5734 = vpop.f32.mrf.mxu0
      %v5735 = vadd.f32 0.0, %v5734
      %v5736 = vpop.f32.mrf.mxu0
      %5737 = vmatprep.mubr.bf16.mxu0 0
      %5738 = vmatmul.mubr.bf16.gmra.mxu0 %v5635
      %v5739 = vpop.f32.mrf.mxu0
      %v5740 = vadd.f32 0.0, %v5739
      %v5741 = vpop.f32.mrf.mxu0
      %v5742 = vpop.f32.mrf.mxu0
      %v5743 = vadd.f32 0.0, %v5742
      %v5744 = vpop.f32.mrf.mxu0
      %5745 = vmatprep.mubr.bf16.mxu0 0
      %5746 = vmatmul.mubr.bf16.gmra.mxu0 %v5638
      %v5747 = vpop.f32.mrf.mxu0
      %v5748 = vadd.f32 0.0, %v5747
      %v5749 = vpop.f32.mrf.mxu0
      %v5750 = vpop.f32.mrf.mxu0
      %v5751 = vadd.f32 0.0, %v5750
      %v5752 = vpop.f32.mrf.mxu0
      %5753 = vmatprep.mubr.bf16.mxu0 0
      %5754 = vmatmul.mubr.bf16.gmra.mxu0 %v5641
      %v5755 = vpop.f32.mrf.mxu0
      %v5756 = vadd.f32 0.0, %v5755
      %v5757 = vpop.f32.mrf.mxu0
      %v5758 = vpop.f32.mrf.mxu0
      %v5759 = vadd.f32 0.0, %v5758
      %v5760 = vpop.f32.mrf.mxu0
      %5761 = vmatprep.mubr.bf16.mxu0 0
      %5762 = vmatmul.mubr.bf16.gmra.mxu0 %v5644
      %v5763 = vpop.f32.mrf.mxu0
      %v5764 = vadd.f32 0.0, %v5763
      %v5765 = vpop.f32.mrf.mxu0
      %v5766 = vpop.f32.mrf.mxu0
      %v5767 = vadd.f32 0.0, %v5766
      %v5768 = vpop.f32.mrf.mxu0
      %5769 = vmatprep.mubr.bf16.mxu0 0
      %5770 = vmatmul.mubr.bf16.gmra.mxu0 %v5647
      %v5771 = vpop.f32.mrf.mxu0
      %v5772 = vadd.f32 0.0, %v5771
      %v5773 = vpop.f32.mrf.mxu0
      %v5774 = vpop.f32.mrf.mxu0
      %v5775 = vadd.f32 0.0, %v5774
      %v5776 = vpop.f32.mrf.mxu0
      %5777 = vdwg.mxu0
      %v5778 = vadd.f32 %v5472, %v5684
      %v5779 = vadd.f32 %v5473, %v5687
      %v5780 = vadd.f32 %v5474, %v5692
      %v5781 = vadd.f32 %v5475, %v5695
      %v5782 = vadd.f32 %v5476, %v5700
      %v5783 = vadd.f32 %v5477, %v5703
      %v5784 = vadd.f32 %v5478, %v5708
      %v5785 = vadd.f32 %v5479, %v5711
      %v5786 = vadd.f32 %v5480, %v5716
      %v5787 = vadd.f32 %v5481, %v5719
      %v5788 = vadd.f32 %v5482, %v5724
      %v5789 = vadd.f32 %v5483, %v5727
      %v5790 = vadd.f32 %v5484, %v5732
      %v5791 = vadd.f32 %v5485, %v5735
      %v5792 = vadd.f32 %v5486, %v5740
      %v5793 = vadd.f32 %v5487, %v5743
      %v5794 = vadd.f32 %v5488, %v5748
      %v5795 = vadd.f32 %v5489, %v5751
      %v5796 = vadd.f32 %v5490, %v5756
      %v5797 = vadd.f32 %v5491, %v5759
      %v5798 = vadd.f32 %v5492, %v5764
      %v5799 = vadd.f32 %v5493, %v5767
      %v5800 = vadd.f32 %v5494, %v5772
      %v5801 = vadd.f32 %v5495, %v5775
      %v5802 = vld [vmem:[#allocation2 + $0x8] sm:$0xf]
      %v5803 = vld [vmem:[#allocation2 + $0xc] sm:$0xf]
      %v5804 = vld [vmem:[#allocation2 + $0x10] sm:$0xf]
      %v5805 = vld [vmem:[#allocation2 + $0x14] sm:$0xf]
      %v5806 = vld [vmem:[#allocation2 + $0x18] sm:$0xf]
      %v5807 = vld [vmem:[#allocation2 + $0x1c] sm:$0xf]
      %v5808 = vld [vmem:[#allocation2 + $0x20] sm:$0xf]
      %v5809 = vld [vmem:[#allocation2 + $0x24] sm:$0xf]
      %v5810 = vld [vmem:[#allocation2 + $0x28] sm:$0xf]
      %v5811 = vld [vmem:[#allocation2 + $0x2c] sm:$0xf]
      %v5812 = vld [vmem:[#allocation2 + $0x30] sm:$0xf]
      %v5813 = vld [vmem:[#allocation2 + $0x34] sm:$0xf]
      %v5814 = vld [vmem:[#allocation2 + $0x38] sm:$0xf]
      %v5815 = vld [vmem:[#allocation2 + $0x3c] sm:$0xf]
      %v5816 = vld [vmem:[#allocation2 + $0x40] sm:$0xf]
      %v5817 = vld [vmem:[#allocation2 + $0x44] sm:$0xf]
      %v5818 = vld [vmem:[#allocation2 + $0x48] sm:$0xf]
      %v5819 = vld [vmem:[#allocation2 + $0x4c] sm:$0xf]
      %v5820 = vld [vmem:[#allocation2 + $0x50] sm:$0xf]
      %v5821 = vld [vmem:[#allocation2 + $0x54] sm:$0xf]
      %v5822 = vld [vmem:[#allocation2 + $0x58] sm:$0xf]
      %v5823 = vld [vmem:[#allocation2 + $0x5c] sm:$0xf]
      %v5824 = vld [vmem:[#allocation2 + $0x60] sm:$0xf]
      %v5825 = vld [vmem:[#allocation2 + $0x64] sm:$0xf]
      %v5826 = vld [vmem:[#allocation2 + $0x68] sm:$0x1]
      %s5827 = scalar_lea.vmem %s5, 128
      %v5828 = vld [vmem:[%s5827] sm:$0xf]
      %v5829 = vld [vmem:[%s5827 + $0x4] sm:$0xf]
      %v5830 = vld [vmem:[%s5827 + $0x8] sm:$0xf]
      %v5831 = vld [vmem:[%s5827 + $0xc] sm:$0xf]
      %v5832 = vld [vmem:[%s5827 + $0x10] sm:$0xf]
      %v5833 = vld [vmem:[%s5827 + $0x14] sm:$0xf]
      %v5834 = vld [vmem:[%s5827 + $0x18] sm:$0xf]
      %v5835 = vld [vmem:[%s5827 + $0x1c] sm:$0xf]
      %v5861 = vunpack.c.l.b16 %v5802
      %v5862 = vunpack.c.l.b16 %v5803
      %v5863 = vunpack.c.l.b16 %v5804
      %v5864 = vunpack.c.l.b16 %v5805
      %v5865 = vunpack.c.l.b16 %v5806
      %v5866 = vunpack.c.l.b16 %v5807
      %v5867 = vunpack.c.l.b16 %v5808
      %v5868 = vunpack.c.l.b16 %v5809
      %v5869 = vunpack.c.l.b16 %v5810
      %v5870 = vunpack.c.l.b16 %v5811
      %v5871 = vunpack.c.l.b16 %v5812
      %v5872 = vunpack.c.l.b16 %v5813
      %v5873 = vunpack.c.l.b16 %v5814
      %v5874 = vunpack.c.l.b16 %v5815
      %v5875 = vunpack.c.l.b16 %v5816
      %v5876 = vunpack.c.l.b16 %v5817
      %v5877 = vunpack.c.l.b16 %v5818
      %v5878 = vunpack.c.l.b16 %v5819
      %v5879 = vunpack.c.l.b16 %v5820
      %v5880 = vunpack.c.l.b16 %v5821
      %v5881 = vunpack.c.l.b16 %v5822
      %v5882 = vunpack.c.l.b16 %v5823
      %v5883 = vunpack.c.l.b16 %v5824
      %v5884 = vunpack.c.l.b16 %v5825
      %v5885 = vunpack.c.l.b16 %v5826
      %v5886 = vpack.c.b16 %v5862, %v5861
      %v5887 = vpack.c.b16 %v5864, %v5863
      %v5888 = vpack.c.b16 %v5866, %v5865
      %v5889 = vpack.c.b16 %v5868, %v5867
      %v5890 = vpack.c.b16 %v5870, %v5869
      %v5891 = vpack.c.b16 %v5872, %v5871
      %v5892 = vpack.c.b16 %v5874, %v5873
      %v5893 = vpack.c.b16 %v5876, %v5875
      %v5894 = vpack.c.b16 %v5878, %v5877
      %v5895 = vpack.c.b16 %v5880, %v5879
      %v5896 = vpack.c.b16 %v5882, %v5881
      %v5897 = vpack.c.b16 %v5884, %v5883
      %v5898 = vpack.c.b16 %v5885, %v5885
      %v5900 = vshrl.u32 %v5886, 16
      %v5902 = vshll.u32 %v5886, 16
      %v5904 = vrot.slane %v5902, 1
      %v5905 = vor.u32 %v5900, %v5904
      %v5907 = vshll.u32 %v5887, 16
      %v5909 = vrot.slane %v5907, 1
      %v5910 = vsel %vm557, %v5905, %v5909
      %v5911 = vshrl.u32 %v5887, 16
      %v5913 = vor.u32 %v5911, %v5909
      %v5915 = vshll.u32 %v5888, 16
      %v5917 = vrot.slane %v5915, 1
      %v5918 = vsel %vm557, %v5913, %v5917
      %v5919 = vshrl.u32 %v5888, 16
      %v5921 = vor.u32 %v5919, %v5917
      %v5923 = vshll.u32 %v5889, 16
      %v5925 = vrot.slane %v5923, 1
      %v5926 = vsel %vm557, %v5921, %v5925
      %v5927 = vshrl.u32 %v5889, 16
      %v5929 = vor.u32 %v5927, %v5925
      %v5931 = vshll.u32 %v5890, 16
      %v5933 = vrot.slane %v5931, 1
      %v5934 = vsel %vm557, %v5929, %v5933
      %v5935 = vshrl.u32 %v5890, 16
      %v5937 = vor.u32 %v5935, %v5933
      %v5939 = vshll.u32 %v5891, 16
      %v5941 = vrot.slane %v5939, 1
      %v5942 = vsel %vm557, %v5937, %v5941
      %v5943 = vshrl.u32 %v5891, 16
      %v5945 = vor.u32 %v5943, %v5941
      %v5947 = vshll.u32 %v5892, 16
      %v5949 = vrot.slane %v5947, 1
      %v5950 = vsel %vm557, %v5945, %v5949
      %v5951 = vshrl.u32 %v5892, 16
      %v5953 = vor.u32 %v5951, %v5949
      %v5955 = vshll.u32 %v5893, 16
      %v5957 = vrot.slane %v5955, 1
      %v5958 = vsel %vm557, %v5953, %v5957
      %v5959 = vshrl.u32 %v5893, 16
      %v5961 = vor.u32 %v5959, %v5957
      %v5963 = vshll.u32 %v5894, 16
      %v5965 = vrot.slane %v5963, 1
      %v5966 = vsel %vm557, %v5961, %v5965
      %v5967 = vshrl.u32 %v5894, 16
      %v5969 = vor.u32 %v5967, %v5965
      %v5971 = vshll.u32 %v5895, 16
      %v5973 = vrot.slane %v5971, 1
      %v5974 = vsel %vm557, %v5969, %v5973
      %v5975 = vshrl.u32 %v5895, 16
      %v5977 = vor.u32 %v5975, %v5973
      %v5979 = vshll.u32 %v5896, 16
      %v5981 = vrot.slane %v5979, 1
      %v5982 = vsel %vm557, %v5977, %v5981
      %v5983 = vshrl.u32 %v5896, 16
      %v5985 = vor.u32 %v5983, %v5981
      %v5987 = vshll.u32 %v5897, 16
      %v5989 = vrot.slane %v5987, 1
      %v5990 = vsel %vm557, %v5985, %v5989
      %v5991 = vshrl.u32 %v5897, 16
      %v5993 = vor.u32 %v5991, %v5989
      %v5995 = vshll.u32 %v5898, 16
      %v5997 = vrot.slane %v5995, 1
      %v5998 = vsel %vm557, %v5993, %v5997
      %v6007 = vunpack.c.l.b16 %v5828
      %v6008 = vunpack.c.l.b16 %v5829
      %v6009 = vunpack.c.l.b16 %v5830
      %v6010 = vunpack.c.l.b16 %v5831
      %v6011 = vunpack.c.l.b16 %v5832
      %v6012 = vunpack.c.l.b16 %v5833
      %v6013 = vunpack.c.l.b16 %v5834
      %v6014 = vunpack.c.l.b16 %v5835
      %v6015 = vpack.c.b16 %v6008, %v6007
      %v6016 = vpack.c.b16 %v6010, %v6009
      %v6017 = vpack.c.b16 %v6012, %v6011
      %v6018 = vpack.c.b16 %v6014, %v6013
      %v6024 = vsel %vm701, %v5910, 0
      %v6027 = vsel %vm701, %v5918, 0
      %v6030 = vsel %vm701, %v5926, 0
      %v6033 = vsel %vm701, %v5934, 0
      %v6036 = vsel %vm701, %v5942, 0
      %v6039 = vsel %vm701, %v5950, 0
      %v6042 = vsel %vm701, %v5958, 0
      %v6045 = vsel %vm701, %v5966, 0
      %v6048 = vsel %vm701, %v5974, 0
      %v6051 = vsel %vm701, %v5982, 0
      %v6054 = vsel %vm701, %v5990, 0
      %v6057 = vsel %vm701, %v5998, 0
      %6059 = vmatprep.subr.bf16.mxu0 0
      %6060 = vmatpush1.bf16.msra.mxu0 0
      %6061 = vmatprep.subr.bf16.mxu0 0
      %6062 = vmatpush1.bf16.msra.mxu0 0
      %6063 = vmatprep.subr.bf16.mxu0 0
      %6064 = vmatpush1.bf16.msra.mxu0 0
      %6065 = vmatprep.subr.bf16.mxu0 0
      %6066 = vmatpush1.bf16.msra.mxu0 0
      %6067 = vmatprep.subr.bf16.mxu0 0
      %6068 = vmatpush1.bf16.msra.mxu0 %v6018
      %6069 = vmatprep.subr.bf16.mxu0 0
      %6070 = vmatpush1.bf16.msra.mxu0 %v6017
      %6071 = vmatprep.subr.bf16.mxu0 0
      %6072 = vmatpush1.bf16.msra.mxu0 %v6016
      %6073 = vmatprep.subr.bf16.mxu0 0
      %6074 = vmatpush1.bf16.msra.mxu0 %v6015
      %6075 = vmatprep.subr.bf16.mxu0 0
      %6076 = vmatpush2.bf16.msra.mxu0 0
      %6077 = vmatprep.subr.bf16.mxu0 0
      %6078 = vmatpush2.bf16.msra.mxu0 0
      %6079 = vmatprep.subr.bf16.mxu0 0
      %6080 = vmatpush2.bf16.msra.mxu0 0
      %6081 = vmatprep.subr.bf16.mxu0 0
      %6082 = vmatpush2.bf16.msra.mxu0 0
      %6083 = vmatprep.subr.bf16.mxu0 0
      %6084 = vmatpush2.bf16.msra.mxu0 0
      %6085 = vmatprep.subr.bf16.mxu0 0
      %6086 = vmatpush2.bf16.msra.mxu0 0
      %6087 = vmatprep.subr.bf16.mxu0 0
      %6088 = vmatpush2.bf16.msra.mxu0 0
      %6089 = vmatprep.subr.bf16.mxu0 0
      %6090 = vmatpush2.bf16.msra.mxu0 0
      %6091 = vmatprep.mubr.bf16.mxu0 0
      %6092 = vmatmul.mubr.bf16.gmra.mxu0 %v6024
      %v6093 = vpop.f32.mrf.mxu0
      %v6094 = vadd.f32 0.0, %v6093
      %v6095 = vpop.f32.mrf.mxu0
      %v6096 = vpop.f32.mrf.mxu0
      %v6097 = vadd.f32 0.0, %v6096
      %v6098 = vpop.f32.mrf.mxu0
      %6099 = vmatprep.mubr.bf16.mxu0 0
      %6100 = vmatmul.mubr.bf16.gmra.mxu0 %v6027
      %v6101 = vpop.f32.mrf.mxu0
      %v6102 = vadd.f32 0.0, %v6101
      %v6103 = vpop.f32.mrf.mxu0
      %v6104 = vpop.f32.mrf.mxu0
      %v6105 = vadd.f32 0.0, %v6104
      %v6106 = vpop.f32.mrf.mxu0
      %6107 = vmatprep.mubr.bf16.mxu0 0
      %6108 = vmatmul.mubr.bf16.gmra.mxu0 %v6030
      %v6109 = vpop.f32.mrf.mxu0
      %v6110 = vadd.f32 0.0, %v6109
      %v6111 = vpop.f32.mrf.mxu0
      %v6112 = vpop.f32.mrf.mxu0
      %v6113 = vadd.f32 0.0, %v6112
      %v6114 = vpop.f32.mrf.mxu0
      %6115 = vmatprep.mubr.bf16.mxu0 0
      %6116 = vmatmul.mubr.bf16.gmra.mxu0 %v6033
      %v6117 = vpop.f32.mrf.mxu0
      %v6118 = vadd.f32 0.0, %v6117
      %v6119 = vpop.f32.mrf.mxu0
      %v6120 = vpop.f32.mrf.mxu0
      %v6121 = vadd.f32 0.0, %v6120
      %v6122 = vpop.f32.mrf.mxu0
      %6123 = vmatprep.mubr.bf16.mxu0 0
      %6124 = vmatmul.mubr.bf16.gmra.mxu0 %v6036
      %v6125 = vpop.f32.mrf.mxu0
      %v6126 = vadd.f32 0.0, %v6125
      %v6127 = vpop.f32.mrf.mxu0
      %v6128 = vpop.f32.mrf.mxu0
      %v6129 = vadd.f32 0.0, %v6128
      %v6130 = vpop.f32.mrf.mxu0
      %6131 = vmatprep.mubr.bf16.mxu0 0
      %6132 = vmatmul.mubr.bf16.gmra.mxu0 %v6039
      %v6133 = vpop.f32.mrf.mxu0
      %v6134 = vadd.f32 0.0, %v6133
      %v6135 = vpop.f32.mrf.mxu0
      %v6136 = vpop.f32.mrf.mxu0
      %v6137 = vadd.f32 0.0, %v6136
      %v6138 = vpop.f32.mrf.mxu0
      %6139 = vmatprep.mubr.bf16.mxu0 0
      %6140 = vmatmul.mubr.bf16.gmra.mxu0 %v6042
      %v6141 = vpop.f32.mrf.mxu0
      %v6142 = vadd.f32 0.0, %v6141
      %v6143 = vpop.f32.mrf.mxu0
      %v6144 = vpop.f32.mrf.mxu0
      %v6145 = vadd.f32 0.0, %v6144
      %v6146 = vpop.f32.mrf.mxu0
      %6147 = vmatprep.mubr.bf16.mxu0 0
      %6148 = vmatmul.mubr.bf16.gmra.mxu0 %v6045
      %v6149 = vpop.f32.mrf.mxu0
      %v6150 = vadd.f32 0.0, %v6149
      %v6151 = vpop.f32.mrf.mxu0
      %v6152 = vpop.f32.mrf.mxu0
      %v6153 = vadd.f32 0.0, %v6152
      %v6154 = vpop.f32.mrf.mxu0
      %6155 = vmatprep.mubr.bf16.mxu0 0
      %6156 = vmatmul.mubr.bf16.gmra.mxu0 %v6048
      %v6157 = vpop.f32.mrf.mxu0
      %v6158 = vadd.f32 0.0, %v6157
      %v6159 = vpop.f32.mrf.mxu0
      %v6160 = vpop.f32.mrf.mxu0
      %v6161 = vadd.f32 0.0, %v6160
      %v6162 = vpop.f32.mrf.mxu0
      %6163 = vmatprep.mubr.bf16.mxu0 0
      %6164 = vmatmul.mubr.bf16.gmra.mxu0 %v6051
      %v6165 = vpop.f32.mrf.mxu0
      %v6166 = vadd.f32 0.0, %v6165
      %v6167 = vpop.f32.mrf.mxu0
      %v6168 = vpop.f32.mrf.mxu0
      %v6169 = vadd.f32 0.0, %v6168
      %v6170 = vpop.f32.mrf.mxu0
      %6171 = vmatprep.mubr.bf16.mxu0 0
      %6172 = vmatmul.mubr.bf16.gmra.mxu0 %v6054
      %v6173 = vpop.f32.mrf.mxu0
      %v6174 = vadd.f32 0.0, %v6173
      %v6175 = vpop.f32.mrf.mxu0
      %v6176 = vpop.f32.mrf.mxu0
      %v6177 = vadd.f32 0.0, %v6176
      %v6178 = vpop.f32.mrf.mxu0
      %6179 = vmatprep.mubr.bf16.mxu0 0
      %6180 = vmatmul.mubr.bf16.gmra.mxu0 %v6057
      %v6181 = vpop.f32.mrf.mxu0
      %v6182 = vadd.f32 0.0, %v6181
      %v6183 = vpop.f32.mrf.mxu0
      %v6184 = vpop.f32.mrf.mxu0
      %v6185 = vadd.f32 0.0, %v6184
      %v6186 = vpop.f32.mrf.mxu0
      %6187 = vdwg.mxu0
      %v6188 = vadd.f32 %v5778, %v6094
      %v6189 = vadd.f32 %v5779, %v6097
      %v6190 = vadd.f32 %v5780, %v6102
      %v6191 = vadd.f32 %v5781, %v6105
      %v6192 = vadd.f32 %v5782, %v6110
      %v6193 = vadd.f32 %v5783, %v6113
      %v6194 = vadd.f32 %v5784, %v6118
      %v6195 = vadd.f32 %v5785, %v6121
      %v6196 = vadd.f32 %v5786, %v6126
      %v6197 = vadd.f32 %v5787, %v6129
      %v6198 = vadd.f32 %v5788, %v6134
      %v6199 = vadd.f32 %v5789, %v6137
      %v6200 = vadd.f32 %v5790, %v6142
      %v6201 = vadd.f32 %v5791, %v6145
      %v6202 = vadd.f32 %v5792, %v6150
      %v6203 = vadd.f32 %v5793, %v6153
      %v6204 = vadd.f32 %v5794, %v6158
      %v6205 = vadd.f32 %v5795, %v6161
      %v6206 = vadd.f32 %v5796, %v6166
      %v6207 = vadd.f32 %v5797, %v6169
      %v6208 = vadd.f32 %v5798, %v6174
      %v6209 = vadd.f32 %v5799, %v6177
      %v6210 = vadd.f32 %v5800, %v6182
      %v6211 = vadd.f32 %v5801, %v6185
      %v6212 = vld [vmem:[#allocation2 + $0x8] sm:$0xe]
      %s6213 = scalar_lea.vmem %s5, 160
      %v6214 = vld [vmem:[%s6213] sm:$0xf]
      %v6215 = vld [vmem:[%s6213 + $0x4] sm:$0xf]
      %v6216 = vld [vmem:[%s6213 + $0x8] sm:$0xf]
      %v6217 = vld [vmem:[%s6213 + $0xc] sm:$0xf]
      %v6218 = vld [vmem:[%s6213 + $0x10] sm:$0xf]
      %v6219 = vld [vmem:[%s6213 + $0x14] sm:$0xf]
      %v6220 = vld [vmem:[%s6213 + $0x18] sm:$0xf]
      %v6221 = vld [vmem:[%s6213 + $0x1c] sm:$0xf]
      %v6223 = vunpack.c.l.b16 %v6212
      %v6224 = vpack.c.b16 %v5862, %v6223
      %v6225 = vrot.slane %v6224, 1
      %v6226 = vrot.slane %v5887, 1
      %v6227 = vsel %vm1120, %v6225, %v6226
      %v6228 = vrot.slane %v5888, 1
      %v6229 = vsel %vm1120, %v6226, %v6228
      %v6230 = vrot.slane %v5889, 1
      %v6231 = vsel %vm1120, %v6228, %v6230
      %v6232 = vrot.slane %v5890, 1
      %v6233 = vsel %vm1120, %v6230, %v6232
      %v6234 = vrot.slane %v5891, 1
      %v6235 = vsel %vm1120, %v6232, %v6234
      %v6236 = vrot.slane %v5892, 1
      %v6237 = vsel %vm1120, %v6234, %v6236
      %v6238 = vrot.slane %v5893, 1
      %v6239 = vsel %vm1120, %v6236, %v6238
      %v6240 = vrot.slane %v5894, 1
      %v6241 = vsel %vm1120, %v6238, %v6240
      %v6242 = vrot.slane %v5895, 1
      %v6243 = vsel %vm1120, %v6240, %v6242
      %v6244 = vrot.slane %v5896, 1
      %v6245 = vsel %vm1120, %v6242, %v6244
      %v6246 = vrot.slane %v5897, 1
      %v6247 = vsel %vm1120, %v6244, %v6246
      %v6248 = vrot.slane %v5898, 1
      %v6249 = vsel %vm1120, %v6246, %v6248
      %v6258 = vunpack.c.l.b16 %v6214
      %v6259 = vunpack.c.l.b16 %v6215
      %v6260 = vunpack.c.l.b16 %v6216
      %v6261 = vunpack.c.l.b16 %v6217
      %v6262 = vunpack.c.l.b16 %v6218
      %v6263 = vunpack.c.l.b16 %v6219
      %v6264 = vunpack.c.l.b16 %v6220
      %v6265 = vunpack.c.l.b16 %v6221
      %v6266 = vpack.c.b16 %v6259, %v6258
      %v6267 = vpack.c.b16 %v6261, %v6260
      %v6268 = vpack.c.b16 %v6263, %v6262
      %v6269 = vpack.c.b16 %v6265, %v6264
      %v6275 = vsel %vm701, %v6227, 0
      %v6278 = vsel %vm701, %v6229, 0
      %v6281 = vsel %vm701, %v6231, 0
      %v6284 = vsel %vm701, %v6233, 0
      %v6287 = vsel %vm701, %v6235, 0
      %v6290 = vsel %vm701, %v6237, 0
      %v6293 = vsel %vm701, %v6239, 0
      %v6296 = vsel %vm701, %v6241, 0
      %v6299 = vsel %vm701, %v6243, 0
      %v6302 = vsel %vm701, %v6245, 0
      %v6305 = vsel %vm701, %v6247, 0
      %v6308 = vsel %vm701, %v6249, 0
      %6310 = vmatprep.subr.bf16.mxu0 0
      %6311 = vmatpush1.bf16.msra.mxu0 0
      %6312 = vmatprep.subr.bf16.mxu0 0
      %6313 = vmatpush1.bf16.msra.mxu0 0
      %6314 = vmatprep.subr.bf16.mxu0 0
      %6315 = vmatpush1.bf16.msra.mxu0 0
      %6316 = vmatprep.subr.bf16.mxu0 0
      %6317 = vmatpush1.bf16.msra.mxu0 0
      %6318 = vmatprep.subr.bf16.mxu0 0
      %6319 = vmatpush1.bf16.msra.mxu0 %v6269
      %6320 = vmatprep.subr.bf16.mxu0 0
      %6321 = vmatpush1.bf16.msra.mxu0 %v6268
      %6322 = vmatprep.subr.bf16.mxu0 0
      %6323 = vmatpush1.bf16.msra.mxu0 %v6267
      %6324 = vmatprep.subr.bf16.mxu0 0
      %6325 = vmatpush1.bf16.msra.mxu0 %v6266
      %6326 = vmatprep.subr.bf16.mxu0 0
      %6327 = vmatpush2.bf16.msra.mxu0 0
      %6328 = vmatprep.subr.bf16.mxu0 0
      %6329 = vmatpush2.bf16.msra.mxu0 0
      %6330 = vmatprep.subr.bf16.mxu0 0
      %6331 = vmatpush2.bf16.msra.mxu0 0
      %6332 = vmatprep.subr.bf16.mxu0 0
      %6333 = vmatpush2.bf16.msra.mxu0 0
      %6334 = vmatprep.subr.bf16.mxu0 0
      %6335 = vmatpush2.bf16.msra.mxu0 0
      %6336 = vmatprep.subr.bf16.mxu0 0
      %6337 = vmatpush2.bf16.msra.mxu0 0
      %6338 = vmatprep.subr.bf16.mxu0 0
      %6339 = vmatpush2.bf16.msra.mxu0 0
      %6340 = vmatprep.subr.bf16.mxu0 0
      %6341 = vmatpush2.bf16.msra.mxu0 0
      %6342 = vmatprep.mubr.bf16.mxu0 0
      %6343 = vmatmul.mubr.bf16.gmra.mxu0 %v6275
      %v6344 = vpop.f32.mrf.mxu0
      %v6345 = vadd.f32 0.0, %v6344
      %v6346 = vpop.f32.mrf.mxu0
      %v6347 = vpop.f32.mrf.mxu0
      %v6348 = vadd.f32 0.0, %v6347
      %v6349 = vpop.f32.mrf.mxu0
      %6350 = vmatprep.mubr.bf16.mxu0 0
      %6351 = vmatmul.mubr.bf16.gmra.mxu0 %v6278
      %v6352 = vpop.f32.mrf.mxu0
      %v6353 = vadd.f32 0.0, %v6352
      %v6354 = vpop.f32.mrf.mxu0
      %v6355 = vpop.f32.mrf.mxu0
      %v6356 = vadd.f32 0.0, %v6355
      %v6357 = vpop.f32.mrf.mxu0
      %6358 = vmatprep.mubr.bf16.mxu0 0
      %6359 = vmatmul.mubr.bf16.gmra.mxu0 %v6281
      %v6360 = vpop.f32.mrf.mxu0
      %v6361 = vadd.f32 0.0, %v6360
      %v6362 = vpop.f32.mrf.mxu0
      %v6363 = vpop.f32.mrf.mxu0
      %v6364 = vadd.f32 0.0, %v6363
      %v6365 = vpop.f32.mrf.mxu0
      %6366 = vmatprep.mubr.bf16.mxu0 0
      %6367 = vmatmul.mubr.bf16.gmra.mxu0 %v6284
      %v6368 = vpop.f32.mrf.mxu0
      %v6369 = vadd.f32 0.0, %v6368
      %v6370 = vpop.f32.mrf.mxu0
      %v6371 = vpop.f32.mrf.mxu0
      %v6372 = vadd.f32 0.0, %v6371
      %v6373 = vpop.f32.mrf.mxu0
      %6374 = vmatprep.mubr.bf16.mxu0 0
      %6375 = vmatmul.mubr.bf16.gmra.mxu0 %v6287
      %v6376 = vpop.f32.mrf.mxu0
      %v6377 = vadd.f32 0.0, %v6376
      %v6378 = vpop.f32.mrf.mxu0
      %v6379 = vpop.f32.mrf.mxu0
      %v6380 = vadd.f32 0.0, %v6379
      %v6381 = vpop.f32.mrf.mxu0
      %6382 = vmatprep.mubr.bf16.mxu0 0
      %6383 = vmatmul.mubr.bf16.gmra.mxu0 %v6290
      %v6384 = vpop.f32.mrf.mxu0
      %v6385 = vadd.f32 0.0, %v6384
      %v6386 = vpop.f32.mrf.mxu0
      %v6387 = vpop.f32.mrf.mxu0
      %v6388 = vadd.f32 0.0, %v6387
      %v6389 = vpop.f32.mrf.mxu0
      %6390 = vmatprep.mubr.bf16.mxu0 0
      %6391 = vmatmul.mubr.bf16.gmra.mxu0 %v6293
      %v6392 = vpop.f32.mrf.mxu0
      %v6393 = vadd.f32 0.0, %v6392
      %v6394 = vpop.f32.mrf.mxu0
      %v6395 = vpop.f32.mrf.mxu0
      %v6396 = vadd.f32 0.0, %v6395
      %v6397 = vpop.f32.mrf.mxu0
      %6398 = vmatprep.mubr.bf16.mxu0 0
      %6399 = vmatmul.mubr.bf16.gmra.mxu0 %v6296
      %v6400 = vpop.f32.mrf.mxu0
      %v6401 = vadd.f32 0.0, %v6400
      %v6402 = vpop.f32.mrf.mxu0
      %v6403 = vpop.f32.mrf.mxu0
      %v6404 = vadd.f32 0.0, %v6403
      %v6405 = vpop.f32.mrf.mxu0
      %6406 = vmatprep.mubr.bf16.mxu0 0
      %6407 = vmatmul.mubr.bf16.gmra.mxu0 %v6299
      %v6408 = vpop.f32.mrf.mxu0
      %v6409 = vadd.f32 0.0, %v6408
      %v6410 = vpop.f32.mrf.mxu0
      %v6411 = vpop.f32.mrf.mxu0
      %v6412 = vadd.f32 0.0, %v6411
      %v6413 = vpop.f32.mrf.mxu0
      %6414 = vmatprep.mubr.bf16.mxu0 0
      %6415 = vmatmul.mubr.bf16.gmra.mxu0 %v6302
      %v6416 = vpop.f32.mrf.mxu0
      %v6417 = vadd.f32 0.0, %v6416
      %v6418 = vpop.f32.mrf.mxu0
      %v6419 = vpop.f32.mrf.mxu0
      %v6420 = vadd.f32 0.0, %v6419
      %v6421 = vpop.f32.mrf.mxu0
      %6422 = vmatprep.mubr.bf16.mxu0 0
      %6423 = vmatmul.mubr.bf16.gmra.mxu0 %v6305
      %v6424 = vpop.f32.mrf.mxu0
      %v6425 = vadd.f32 0.0, %v6424
      %v6426 = vpop.f32.mrf.mxu0
      %v6427 = vpop.f32.mrf.mxu0
      %v6428 = vadd.f32 0.0, %v6427
      %v6429 = vpop.f32.mrf.mxu0
      %6430 = vmatprep.mubr.bf16.mxu0 0
      %6431 = vmatmul.mubr.bf16.gmra.mxu0 %v6308
      %v6432 = vpop.f32.mrf.mxu0
      %v6433 = vadd.f32 0.0, %v6432
      %v6434 = vpop.f32.mrf.mxu0
      %v6435 = vpop.f32.mrf.mxu0
      %v6436 = vadd.f32 0.0, %v6435
      %v6437 = vpop.f32.mrf.mxu0
      %6438 = vdwg.mxu0
      %v6439 = vadd.f32 %v6188, %v6345
      %v6440 = vadd.f32 %v6189, %v6348
      %v6441 = vadd.f32 %v6190, %v6353
      %v6442 = vadd.f32 %v6191, %v6356
      %v6443 = vadd.f32 %v6192, %v6361
      %v6444 = vadd.f32 %v6193, %v6364
      %v6445 = vadd.f32 %v6194, %v6369
      %v6446 = vadd.f32 %v6195, %v6372
      %v6447 = vadd.f32 %v6196, %v6377
      %v6448 = vadd.f32 %v6197, %v6380
      %v6449 = vadd.f32 %v6198, %v6385
      %v6450 = vadd.f32 %v6199, %v6388
      %v6451 = vadd.f32 %v6200, %v6393
      %v6452 = vadd.f32 %v6201, %v6396
      %v6453 = vadd.f32 %v6202, %v6401
      %v6454 = vadd.f32 %v6203, %v6404
      %v6455 = vadd.f32 %v6204, %v6409
      %v6456 = vadd.f32 %v6205, %v6412
      %v6457 = vadd.f32 %v6206, %v6417
      %v6458 = vadd.f32 %v6207, %v6420
      %v6459 = vadd.f32 %v6208, %v6425
      %v6460 = vadd.f32 %v6209, %v6428
      %v6461 = vadd.f32 %v6210, %v6433
      %v6462 = vadd.f32 %v6211, %v6436
      %v6463 = vld [vmem:[#allocation2 + $0x10] sm:$0xf]
      %v6464 = vld [vmem:[#allocation2 + $0x14] sm:$0xf]
      %v6465 = vld [vmem:[#allocation2 + $0x18] sm:$0xf]
      %v6466 = vld [vmem:[#allocation2 + $0x1c] sm:$0xf]
      %v6467 = vld [vmem:[#allocation2 + $0x20] sm:$0xf]
      %v6468 = vld [vmem:[#allocation2 + $0x24] sm:$0xf]
      %v6469 = vld [vmem:[#allocation2 + $0x28] sm:$0xf]
      %v6470 = vld [vmem:[#allocation2 + $0x2c] sm:$0xf]
      %v6471 = vld [vmem:[#allocation2 + $0x30] sm:$0xf]
      %v6472 = vld [vmem:[#allocation2 + $0x34] sm:$0xf]
      %v6473 = vld [vmem:[#allocation2 + $0x38] sm:$0xf]
      %v6474 = vld [vmem:[#allocation2 + $0x3c] sm:$0xf]
      %v6475 = vld [vmem:[#allocation2 + $0x40] sm:$0xf]
      %v6476 = vld [vmem:[#allocation2 + $0x44] sm:$0xf]
      %v6477 = vld [vmem:[#allocation2 + $0x48] sm:$0xf]
      %v6478 = vld [vmem:[#allocation2 + $0x4c] sm:$0xf]
      %v6479 = vld [vmem:[#allocation2 + $0x50] sm:$0xf]
      %v6480 = vld [vmem:[#allocation2 + $0x54] sm:$0xf]
      %v6481 = vld [vmem:[#allocation2 + $0x58] sm:$0xf]
      %v6482 = vld [vmem:[#allocation2 + $0x5c] sm:$0xf]
      %v6483 = vld [vmem:[#allocation2 + $0x60] sm:$0xf]
      %v6484 = vld [vmem:[#allocation2 + $0x64] sm:$0xf]
      %v6485 = vld [vmem:[#allocation2 + $0x68] sm:$0xf]
      %v6486 = vld [vmem:[#allocation2 + $0x6c] sm:$0xf]
      %s6487 = scalar_lea.vmem %s5, 192
      %v6488 = vld [vmem:[%s6487] sm:$0xf]
      %v6489 = vld [vmem:[%s6487 + $0x4] sm:$0xf]
      %v6490 = vld [vmem:[%s6487 + $0x8] sm:$0xf]
      %v6491 = vld [vmem:[%s6487 + $0xc] sm:$0xf]
      %v6492 = vld [vmem:[%s6487 + $0x10] sm:$0xf]
      %v6493 = vld [vmem:[%s6487 + $0x14] sm:$0xf]
      %v6494 = vld [vmem:[%s6487 + $0x18] sm:$0xf]
      %v6495 = vld [vmem:[%s6487 + $0x1c] sm:$0xf]
      %v6520 = vunpack.c.l.b16 %v6463
      %v6521 = vunpack.c.l.b16 %v6464
      %v6522 = vunpack.c.l.b16 %v6465
      %v6523 = vunpack.c.l.b16 %v6466
      %v6524 = vunpack.c.l.b16 %v6467
      %v6525 = vunpack.c.l.b16 %v6468
      %v6526 = vunpack.c.l.b16 %v6469
      %v6527 = vunpack.c.l.b16 %v6470
      %v6528 = vunpack.c.l.b16 %v6471
      %v6529 = vunpack.c.l.b16 %v6472
      %v6530 = vunpack.c.l.b16 %v6473
      %v6531 = vunpack.c.l.b16 %v6474
      %v6532 = vunpack.c.l.b16 %v6475
      %v6533 = vunpack.c.l.b16 %v6476
      %v6534 = vunpack.c.l.b16 %v6477
      %v6535 = vunpack.c.l.b16 %v6478
      %v6536 = vunpack.c.l.b16 %v6479
      %v6537 = vunpack.c.l.b16 %v6480
      %v6538 = vunpack.c.l.b16 %v6481
      %v6539 = vunpack.c.l.b16 %v6482
      %v6540 = vunpack.c.l.b16 %v6483
      %v6541 = vunpack.c.l.b16 %v6484
      %v6542 = vunpack.c.l.b16 %v6485
      %v6543 = vunpack.c.l.b16 %v6486
      %v6544 = vpack.c.b16 %v6521, %v6520
      %v6545 = vpack.c.b16 %v6523, %v6522
      %v6546 = vpack.c.b16 %v6525, %v6524
      %v6547 = vpack.c.b16 %v6527, %v6526
      %v6548 = vpack.c.b16 %v6529, %v6528
      %v6549 = vpack.c.b16 %v6531, %v6530
      %v6550 = vpack.c.b16 %v6533, %v6532
      %v6551 = vpack.c.b16 %v6535, %v6534
      %v6552 = vpack.c.b16 %v6537, %v6536
      %v6553 = vpack.c.b16 %v6539, %v6538
      %v6554 = vpack.c.b16 %v6541, %v6540
      %v6555 = vpack.c.b16 %v6543, %v6542
      %v6564 = vunpack.c.l.b16 %v6488
      %v6565 = vunpack.c.l.b16 %v6489
      %v6566 = vunpack.c.l.b16 %v6490
      %v6567 = vunpack.c.l.b16 %v6491
      %v6568 = vunpack.c.l.b16 %v6492
      %v6569 = vunpack.c.l.b16 %v6493
      %v6570 = vunpack.c.l.b16 %v6494
      %v6571 = vunpack.c.l.b16 %v6495
      %v6572 = vpack.c.b16 %v6565, %v6564
      %v6573 = vpack.c.b16 %v6567, %v6566
      %v6574 = vpack.c.b16 %v6569, %v6568
      %v6575 = vpack.c.b16 %v6571, %v6570
      %v6581 = vsel %vm701, %v6544, 0
      %v6584 = vsel %vm701, %v6545, 0
      %v6587 = vsel %vm701, %v6546, 0
      %v6590 = vsel %vm701, %v6547, 0
      %v6593 = vsel %vm701, %v6548, 0
      %v6596 = vsel %vm701, %v6549, 0
      %v6599 = vsel %vm701, %v6550, 0
      %v6602 = vsel %vm701, %v6551, 0
      %v6605 = vsel %vm701, %v6552, 0
      %v6608 = vsel %vm701, %v6553, 0
      %v6611 = vsel %vm701, %v6554, 0
      %v6614 = vsel %vm701, %v6555, 0
      %6616 = vmatprep.subr.bf16.mxu0 0
      %6617 = vmatpush1.bf16.msra.mxu0 0
      %6618 = vmatprep.subr.bf16.mxu0 0
      %6619 = vmatpush1.bf16.msra.mxu0 0
      %6620 = vmatprep.subr.bf16.mxu0 0
      %6621 = vmatpush1.bf16.msra.mxu0 0
      %6622 = vmatprep.subr.bf16.mxu0 0
      %6623 = vmatpush1.bf16.msra.mxu0 0
      %6624 = vmatprep.subr.bf16.mxu0 0
      %6625 = vmatpush1.bf16.msra.mxu0 %v6575
      %6626 = vmatprep.subr.bf16.mxu0 0
      %6627 = vmatpush1.bf16.msra.mxu0 %v6574
      %6628 = vmatprep.subr.bf16.mxu0 0
      %6629 = vmatpush1.bf16.msra.mxu0 %v6573
      %6630 = vmatprep.subr.bf16.mxu0 0
      %6631 = vmatpush1.bf16.msra.mxu0 %v6572
      %6632 = vmatprep.subr.bf16.mxu0 0
      %6633 = vmatpush2.bf16.msra.mxu0 0
      %6634 = vmatprep.subr.bf16.mxu0 0
      %6635 = vmatpush2.bf16.msra.mxu0 0
      %6636 = vmatprep.subr.bf16.mxu0 0
      %6637 = vmatpush2.bf16.msra.mxu0 0
      %6638 = vmatprep.subr.bf16.mxu0 0
      %6639 = vmatpush2.bf16.msra.mxu0 0
      %6640 = vmatprep.subr.bf16.mxu0 0
      %6641 = vmatpush2.bf16.msra.mxu0 0
      %6642 = vmatprep.subr.bf16.mxu0 0
      %6643 = vmatpush2.bf16.msra.mxu0 0
      %6644 = vmatprep.subr.bf16.mxu0 0
      %6645 = vmatpush2.bf16.msra.mxu0 0
      %6646 = vmatprep.subr.bf16.mxu0 0
      %6647 = vmatpush2.bf16.msra.mxu0 0
      %6648 = vmatprep.mubr.bf16.mxu0 0
      %6649 = vmatmul.mubr.bf16.gmra.mxu0 %v6581
      %v6650 = vpop.f32.mrf.mxu0
      %v6651 = vadd.f32 0.0, %v6650
      %v6652 = vpop.f32.mrf.mxu0
      %v6653 = vpop.f32.mrf.mxu0
      %v6654 = vadd.f32 0.0, %v6653
      %v6655 = vpop.f32.mrf.mxu0
      %6656 = vmatprep.mubr.bf16.mxu0 0
      %6657 = vmatmul.mubr.bf16.gmra.mxu0 %v6584
      %v6658 = vpop.f32.mrf.mxu0
      %v6659 = vadd.f32 0.0, %v6658
      %v6660 = vpop.f32.mrf.mxu0
      %v6661 = vpop.f32.mrf.mxu0
      %v6662 = vadd.f32 0.0, %v6661
      %v6663 = vpop.f32.mrf.mxu0
      %6664 = vmatprep.mubr.bf16.mxu0 0
      %6665 = vmatmul.mubr.bf16.gmra.mxu0 %v6587
      %v6666 = vpop.f32.mrf.mxu0
      %v6667 = vadd.f32 0.0, %v6666
      %v6668 = vpop.f32.mrf.mxu0
      %v6669 = vpop.f32.mrf.mxu0
      %v6670 = vadd.f32 0.0, %v6669
      %v6671 = vpop.f32.mrf.mxu0
      %6672 = vmatprep.mubr.bf16.mxu0 0
      %6673 = vmatmul.mubr.bf16.gmra.mxu0 %v6590
      %v6674 = vpop.f32.mrf.mxu0
      %v6675 = vadd.f32 0.0, %v6674
      %v6676 = vpop.f32.mrf.mxu0
      %v6677 = vpop.f32.mrf.mxu0
      %v6678 = vadd.f32 0.0, %v6677
      %v6679 = vpop.f32.mrf.mxu0
      %6680 = vmatprep.mubr.bf16.mxu0 0
      %6681 = vmatmul.mubr.bf16.gmra.mxu0 %v6593
      %v6682 = vpop.f32.mrf.mxu0
      %v6683 = vadd.f32 0.0, %v6682
      %v6684 = vpop.f32.mrf.mxu0
      %v6685 = vpop.f32.mrf.mxu0
      %v6686 = vadd.f32 0.0, %v6685
      %v6687 = vpop.f32.mrf.mxu0
      %6688 = vmatprep.mubr.bf16.mxu0 0
      %6689 = vmatmul.mubr.bf16.gmra.mxu0 %v6596
      %v6690 = vpop.f32.mrf.mxu0
      %v6691 = vadd.f32 0.0, %v6690
      %v6692 = vpop.f32.mrf.mxu0
      %v6693 = vpop.f32.mrf.mxu0
      %v6694 = vadd.f32 0.0, %v6693
      %v6695 = vpop.f32.mrf.mxu0
      %6696 = vmatprep.mubr.bf16.mxu0 0
      %6697 = vmatmul.mubr.bf16.gmra.mxu0 %v6599
      %v6698 = vpop.f32.mrf.mxu0
      %v6699 = vadd.f32 0.0, %v6698
      %v6700 = vpop.f32.mrf.mxu0
      %v6701 = vpop.f32.mrf.mxu0
      %v6702 = vadd.f32 0.0, %v6701
      %v6703 = vpop.f32.mrf.mxu0
      %6704 = vmatprep.mubr.bf16.mxu0 0
      %6705 = vmatmul.mubr.bf16.gmra.mxu0 %v6602
      %v6706 = vpop.f32.mrf.mxu0
      %v6707 = vadd.f32 0.0, %v6706
      %v6708 = vpop.f32.mrf.mxu0
      %v6709 = vpop.f32.mrf.mxu0
      %v6710 = vadd.f32 0.0, %v6709
      %v6711 = vpop.f32.mrf.mxu0
      %6712 = vmatprep.mubr.bf16.mxu0 0
      %6713 = vmatmul.mubr.bf16.gmra.mxu0 %v6605
      %v6714 = vpop.f32.mrf.mxu0
      %v6715 = vadd.f32 0.0, %v6714
      %v6716 = vpop.f32.mrf.mxu0
      %v6717 = vpop.f32.mrf.mxu0
      %v6718 = vadd.f32 0.0, %v6717
      %v6719 = vpop.f32.mrf.mxu0
      %6720 = vmatprep.mubr.bf16.mxu0 0
      %6721 = vmatmul.mubr.bf16.gmra.mxu0 %v6608
      %v6722 = vpop.f32.mrf.mxu0
      %v6723 = vadd.f32 0.0, %v6722
      %v6724 = vpop.f32.mrf.mxu0
      %v6725 = vpop.f32.mrf.mxu0
      %v6726 = vadd.f32 0.0, %v6725
      %v6727 = vpop.f32.mrf.mxu0
      %6728 = vmatprep.mubr.bf16.mxu0 0
      %6729 = vmatmul.mubr.bf16.gmra.mxu0 %v6611
      %v6730 = vpop.f32.mrf.mxu0
      %v6731 = vadd.f32 0.0, %v6730
      %v6732 = vpop.f32.mrf.mxu0
      %v6733 = vpop.f32.mrf.mxu0
      %v6734 = vadd.f32 0.0, %v6733
      %v6735 = vpop.f32.mrf.mxu0
      %6736 = vmatprep.mubr.bf16.mxu0 0
      %6737 = vmatmul.mubr.bf16.gmra.mxu0 %v6614
      %v6738 = vpop.f32.mrf.mxu0
      %v6739 = vadd.f32 0.0, %v6738
      %v6740 = vpop.f32.mrf.mxu0
      %v6741 = vpop.f32.mrf.mxu0
      %v6742 = vadd.f32 0.0, %v6741
      %v6743 = vpop.f32.mrf.mxu0
      %6744 = vdwg.mxu0
      %v6745 = vadd.f32 %v6439, %v6651
      %v6746 = vadd.f32 %v6440, %v6654
      %v6747 = vadd.f32 %v6441, %v6659
      %v6748 = vadd.f32 %v6442, %v6662
      %v6749 = vadd.f32 %v6443, %v6667
      %v6750 = vadd.f32 %v6444, %v6670
      %v6751 = vadd.f32 %v6445, %v6675
      %v6752 = vadd.f32 %v6446, %v6678
      %v6753 = vadd.f32 %v6447, %v6683
      %v6754 = vadd.f32 %v6448, %v6686
      %v6755 = vadd.f32 %v6449, %v6691
      %v6756 = vadd.f32 %v6450, %v6694
      %v6757 = vadd.f32 %v6451, %v6699
      %v6758 = vadd.f32 %v6452, %v6702
      %v6759 = vadd.f32 %v6453, %v6707
      %v6760 = vadd.f32 %v6454, %v6710
      %v6761 = vadd.f32 %v6455, %v6715
      %v6762 = vadd.f32 %v6456, %v6718
      %v6763 = vadd.f32 %v6457, %v6723
      %v6764 = vadd.f32 %v6458, %v6726
      %v6765 = vadd.f32 %v6459, %v6731
      %v6766 = vadd.f32 %v6460, %v6734
      %v6767 = vadd.f32 %v6461, %v6739
      %v6768 = vadd.f32 %v6462, %v6742
      %v6769 = vld [vmem:[#allocation2 + $0x10] sm:$0xf]
      %v6770 = vld [vmem:[#allocation2 + $0x14] sm:$0xf]
      %v6771 = vld [vmem:[#allocation2 + $0x18] sm:$0xf]
      %v6772 = vld [vmem:[#allocation2 + $0x1c] sm:$0xf]
      %v6773 = vld [vmem:[#allocation2 + $0x20] sm:$0xf]
      %v6774 = vld [vmem:[#allocation2 + $0x24] sm:$0xf]
      %v6775 = vld [vmem:[#allocation2 + $0x28] sm:$0xf]
      %v6776 = vld [vmem:[#allocation2 + $0x2c] sm:$0xf]
      %v6777 = vld [vmem:[#allocation2 + $0x30] sm:$0xf]
      %v6778 = vld [vmem:[#allocation2 + $0x34] sm:$0xf]
      %v6779 = vld [vmem:[#allocation2 + $0x38] sm:$0xf]
      %v6780 = vld [vmem:[#allocation2 + $0x3c] sm:$0xf]
      %v6781 = vld [vmem:[#allocation2 + $0x40] sm:$0xf]
      %v6782 = vld [vmem:[#allocation2 + $0x44] sm:$0xf]
      %v6783 = vld [vmem:[#allocation2 + $0x48] sm:$0xf]
      %v6784 = vld [vmem:[#allocation2 + $0x4c] sm:$0xf]
      %v6785 = vld [vmem:[#allocation2 + $0x50] sm:$0xf]
      %v6786 = vld [vmem:[#allocation2 + $0x54] sm:$0xf]
      %v6787 = vld [vmem:[#allocation2 + $0x58] sm:$0xf]
      %v6788 = vld [vmem:[#allocation2 + $0x5c] sm:$0xf]
      %v6789 = vld [vmem:[#allocation2 + $0x60] sm:$0xf]
      %v6790 = vld [vmem:[#allocation2 + $0x64] sm:$0xf]
      %v6791 = vld [vmem:[#allocation2 + $0x68] sm:$0xf]
      %v6792 = vld [vmem:[#allocation2 + $0x6c] sm:$0xf]
      %v6793 = vld [vmem:[#allocation2 + $0x70] sm:$0x1]
      %s6794 = scalar_lea.vmem %s5, 224
      %v6795 = vld [vmem:[%s6794] sm:$0xf]
      %v6796 = vld [vmem:[%s6794 + $0x4] sm:$0xf]
      %v6797 = vld [vmem:[%s6794 + $0x8] sm:$0xf]
      %v6798 = vld [vmem:[%s6794 + $0xc] sm:$0xf]
      %v6799 = vld [vmem:[%s6794 + $0x10] sm:$0xf]
      %v6800 = vld [vmem:[%s6794 + $0x14] sm:$0xf]
      %v6801 = vld [vmem:[%s6794 + $0x18] sm:$0xf]
      %v6802 = vld [vmem:[%s6794 + $0x1c] sm:$0xf]
      %v6828 = vunpack.c.l.b16 %v6769
      %v6829 = vunpack.c.l.b16 %v6770
      %v6830 = vunpack.c.l.b16 %v6771
      %v6831 = vunpack.c.l.b16 %v6772
      %v6832 = vunpack.c.l.b16 %v6773
      %v6833 = vunpack.c.l.b16 %v6774
      %v6834 = vunpack.c.l.b16 %v6775
      %v6835 = vunpack.c.l.b16 %v6776
      %v6836 = vunpack.c.l.b16 %v6777
      %v6837 = vunpack.c.l.b16 %v6778
      %v6838 = vunpack.c.l.b16 %v6779
      %v6839 = vunpack.c.l.b16 %v6780
      %v6840 = vunpack.c.l.b16 %v6781
      %v6841 = vunpack.c.l.b16 %v6782
      %v6842 = vunpack.c.l.b16 %v6783
      %v6843 = vunpack.c.l.b16 %v6784
      %v6844 = vunpack.c.l.b16 %v6785
      %v6845 = vunpack.c.l.b16 %v6786
      %v6846 = vunpack.c.l.b16 %v6787
      %v6847 = vunpack.c.l.b16 %v6788
      %v6848 = vunpack.c.l.b16 %v6789
      %v6849 = vunpack.c.l.b16 %v6790
      %v6850 = vunpack.c.l.b16 %v6791
      %v6851 = vunpack.c.l.b16 %v6792
      %v6852 = vunpack.c.l.b16 %v6793
      %v6853 = vpack.c.b16 %v6829, %v6828
      %v6854 = vpack.c.b16 %v6831, %v6830
      %v6855 = vpack.c.b16 %v6833, %v6832
      %v6856 = vpack.c.b16 %v6835, %v6834
      %v6857 = vpack.c.b16 %v6837, %v6836
      %v6858 = vpack.c.b16 %v6839, %v6838
      %v6859 = vpack.c.b16 %v6841, %v6840
      %v6860 = vpack.c.b16 %v6843, %v6842
      %v6861 = vpack.c.b16 %v6845, %v6844
      %v6862 = vpack.c.b16 %v6847, %v6846
      %v6863 = vpack.c.b16 %v6849, %v6848
      %v6864 = vpack.c.b16 %v6851, %v6850
      %v6865 = vpack.c.b16 %v6852, %v6852
      %v6867 = vshrl.u32 %v6853, 16
      %v6869 = vshll.u32 %v6853, 16
      %v6871 = vrot.slane %v6869, 1
      %v6872 = vor.u32 %v6867, %v6871
      %v6874 = vshll.u32 %v6854, 16
      %v6876 = vrot.slane %v6874, 1
      %v6877 = vsel %vm557, %v6872, %v6876
      %v6878 = vshrl.u32 %v6854, 16
      %v6880 = vor.u32 %v6878, %v6876
      %v6882 = vshll.u32 %v6855, 16
      %v6884 = vrot.slane %v6882, 1
      %v6885 = vsel %vm557, %v6880, %v6884
      %v6886 = vshrl.u32 %v6855, 16
      %v6888 = vor.u32 %v6886, %v6884
      %v6890 = vshll.u32 %v6856, 16
      %v6892 = vrot.slane %v6890, 1
      %v6893 = vsel %vm557, %v6888, %v6892
      %v6894 = vshrl.u32 %v6856, 16
      %v6896 = vor.u32 %v6894, %v6892
      %v6898 = vshll.u32 %v6857, 16
      %v6900 = vrot.slane %v6898, 1
      %v6901 = vsel %vm557, %v6896, %v6900
      %v6902 = vshrl.u32 %v6857, 16
      %v6904 = vor.u32 %v6902, %v6900
      %v6906 = vshll.u32 %v6858, 16
      %v6908 = vrot.slane %v6906, 1
      %v6909 = vsel %vm557, %v6904, %v6908
      %v6910 = vshrl.u32 %v6858, 16
      %v6912 = vor.u32 %v6910, %v6908
      %v6914 = vshll.u32 %v6859, 16
      %v6916 = vrot.slane %v6914, 1
      %v6917 = vsel %vm557, %v6912, %v6916
      %v6918 = vshrl.u32 %v6859, 16
      %v6920 = vor.u32 %v6918, %v6916
      %v6922 = vshll.u32 %v6860, 16
      %v6924 = vrot.slane %v6922, 1
      %v6925 = vsel %vm557, %v6920, %v6924
      %v6926 = vshrl.u32 %v6860, 16
      %v6928 = vor.u32 %v6926, %v6924
      %v6930 = vshll.u32 %v6861, 16
      %v6932 = vrot.slane %v6930, 1
      %v6933 = vsel %vm557, %v6928, %v6932
      %v6934 = vshrl.u32 %v6861, 16
      %v6936 = vor.u32 %v6934, %v6932
      %v6938 = vshll.u32 %v6862, 16
      %v6940 = vrot.slane %v6938, 1
      %v6941 = vsel %vm557, %v6936, %v6940
      %v6942 = vshrl.u32 %v6862, 16
      %v6944 = vor.u32 %v6942, %v6940
      %v6946 = vshll.u32 %v6863, 16
      %v6948 = vrot.slane %v6946, 1
      %v6949 = vsel %vm557, %v6944, %v6948
      %v6950 = vshrl.u32 %v6863, 16
      %v6952 = vor.u32 %v6950, %v6948
      %v6954 = vshll.u32 %v6864, 16
      %v6956 = vrot.slane %v6954, 1
      %v6957 = vsel %vm557, %v6952, %v6956
      %v6958 = vshrl.u32 %v6864, 16
      %v6960 = vor.u32 %v6958, %v6956
      %v6962 = vshll.u32 %v6865, 16
      %v6964 = vrot.slane %v6962, 1
      %v6965 = vsel %vm557, %v6960, %v6964
      %v6974 = vunpack.c.l.b16 %v6795
      %v6975 = vunpack.c.l.b16 %v6796
      %v6976 = vunpack.c.l.b16 %v6797
      %v6977 = vunpack.c.l.b16 %v6798
      %v6978 = vunpack.c.l.b16 %v6799
      %v6979 = vunpack.c.l.b16 %v6800
      %v6980 = vunpack.c.l.b16 %v6801
      %v6981 = vunpack.c.l.b16 %v6802
      %v6982 = vpack.c.b16 %v6975, %v6974
      %v6983 = vpack.c.b16 %v6977, %v6976
      %v6984 = vpack.c.b16 %v6979, %v6978
      %v6985 = vpack.c.b16 %v6981, %v6980
      %v6991 = vsel %vm701, %v6877, 0
      %v6994 = vsel %vm701, %v6885, 0
      %v6997 = vsel %vm701, %v6893, 0
      %v7000 = vsel %vm701, %v6901, 0
      %v7003 = vsel %vm701, %v6909, 0
      %v7006 = vsel %vm701, %v6917, 0
      %v7009 = vsel %vm701, %v6925, 0
      %v7012 = vsel %vm701, %v6933, 0
      %v7015 = vsel %vm701, %v6941, 0
      %v7018 = vsel %vm701, %v6949, 0
      %v7021 = vsel %vm701, %v6957, 0
      %v7024 = vsel %vm701, %v6965, 0
      %7026 = vmatprep.subr.bf16.mxu0 0
      %7027 = vmatpush1.bf16.msra.mxu0 0
      %7028 = vmatprep.subr.bf16.mxu0 0
      %7029 = vmatpush1.bf16.msra.mxu0 0
      %7030 = vmatprep.subr.bf16.mxu0 0
      %7031 = vmatpush1.bf16.msra.mxu0 0
      %7032 = vmatprep.subr.bf16.mxu0 0
      %7033 = vmatpush1.bf16.msra.mxu0 0
      %7034 = vmatprep.subr.bf16.mxu0 0
      %7035 = vmatpush1.bf16.msra.mxu0 %v6985
      %7036 = vmatprep.subr.bf16.mxu0 0
      %7037 = vmatpush1.bf16.msra.mxu0 %v6984
      %7038 = vmatprep.subr.bf16.mxu0 0
      %7039 = vmatpush1.bf16.msra.mxu0 %v6983
      %7040 = vmatprep.subr.bf16.mxu0 0
      %7041 = vmatpush1.bf16.msra.mxu0 %v6982
      %7042 = vmatprep.subr.bf16.mxu0 0
      %7043 = vmatpush2.bf16.msra.mxu0 0
      %7044 = vmatprep.subr.bf16.mxu0 0
      %7045 = vmatpush2.bf16.msra.mxu0 0
      %7046 = vmatprep.subr.bf16.mxu0 0
      %7047 = vmatpush2.bf16.msra.mxu0 0
      %7048 = vmatprep.subr.bf16.mxu0 0
      %7049 = vmatpush2.bf16.msra.mxu0 0
      %7050 = vmatprep.subr.bf16.mxu0 0
      %7051 = vmatpush2.bf16.msra.mxu0 0
      %7052 = vmatprep.subr.bf16.mxu0 0
      %7053 = vmatpush2.bf16.msra.mxu0 0
      %7054 = vmatprep.subr.bf16.mxu0 0
      %7055 = vmatpush2.bf16.msra.mxu0 0
      %7056 = vmatprep.subr.bf16.mxu0 0
      %7057 = vmatpush2.bf16.msra.mxu0 0
      %7058 = vmatprep.mubr.bf16.mxu0 0
      %7059 = vmatmul.mubr.bf16.gmra.mxu0 %v6991
      %v7060 = vpop.f32.mrf.mxu0
      %v7061 = vadd.f32 0.0, %v7060
      %v7062 = vpop.f32.mrf.mxu0
      %v7063 = vpop.f32.mrf.mxu0
      %v7064 = vadd.f32 0.0, %v7063
      %v7065 = vpop.f32.mrf.mxu0
      %7066 = vmatprep.mubr.bf16.mxu0 0
      %7067 = vmatmul.mubr.bf16.gmra.mxu0 %v6994
      %v7068 = vpop.f32.mrf.mxu0
      %v7069 = vadd.f32 0.0, %v7068
      %v7070 = vpop.f32.mrf.mxu0
      %v7071 = vpop.f32.mrf.mxu0
      %v7072 = vadd.f32 0.0, %v7071
      %v7073 = vpop.f32.mrf.mxu0
      %7074 = vmatprep.mubr.bf16.mxu0 0
      %7075 = vmatmul.mubr.bf16.gmra.mxu0 %v6997
      %v7076 = vpop.f32.mrf.mxu0
      %v7077 = vadd.f32 0.0, %v7076
      %v7078 = vpop.f32.mrf.mxu0
      %v7079 = vpop.f32.mrf.mxu0
      %v7080 = vadd.f32 0.0, %v7079
      %v7081 = vpop.f32.mrf.mxu0
      %7082 = vmatprep.mubr.bf16.mxu0 0
      %7083 = vmatmul.mubr.bf16.gmra.mxu0 %v7000
      %v7084 = vpop.f32.mrf.mxu0
      %v7085 = vadd.f32 0.0, %v7084
      %v7086 = vpop.f32.mrf.mxu0
      %v7087 = vpop.f32.mrf.mxu0
      %v7088 = vadd.f32 0.0, %v7087
      %v7089 = vpop.f32.mrf.mxu0
      %7090 = vmatprep.mubr.bf16.mxu0 0
      %7091 = vmatmul.mubr.bf16.gmra.mxu0 %v7003
      %v7092 = vpop.f32.mrf.mxu0
      %v7093 = vadd.f32 0.0, %v7092
      %v7094 = vpop.f32.mrf.mxu0
      %v7095 = vpop.f32.mrf.mxu0
      %v7096 = vadd.f32 0.0, %v7095
      %v7097 = vpop.f32.mrf.mxu0
      %7098 = vmatprep.mubr.bf16.mxu0 0
      %7099 = vmatmul.mubr.bf16.gmra.mxu0 %v7006
      %v7100 = vpop.f32.mrf.mxu0
      %v7101 = vadd.f32 0.0, %v7100
      %v7102 = vpop.f32.mrf.mxu0
      %v7103 = vpop.f32.mrf.mxu0
      %v7104 = vadd.f32 0.0, %v7103
      %v7105 = vpop.f32.mrf.mxu0
      %7106 = vmatprep.mubr.bf16.mxu0 0
      %7107 = vmatmul.mubr.bf16.gmra.mxu0 %v7009
      %v7108 = vpop.f32.mrf.mxu0
      %v7109 = vadd.f32 0.0, %v7108
      %v7110 = vpop.f32.mrf.mxu0
      %v7111 = vpop.f32.mrf.mxu0
      %v7112 = vadd.f32 0.0, %v7111
      %v7113 = vpop.f32.mrf.mxu0
      %7114 = vmatprep.mubr.bf16.mxu0 0
      %7115 = vmatmul.mubr.bf16.gmra.mxu0 %v7012
      %v7116 = vpop.f32.mrf.mxu0
      %v7117 = vadd.f32 0.0, %v7116
      %v7118 = vpop.f32.mrf.mxu0
      %v7119 = vpop.f32.mrf.mxu0
      %v7120 = vadd.f32 0.0, %v7119
      %v7121 = vpop.f32.mrf.mxu0
      %7122 = vmatprep.mubr.bf16.mxu0 0
      %7123 = vmatmul.mubr.bf16.gmra.mxu0 %v7015
      %v7124 = vpop.f32.mrf.mxu0
      %v7125 = vadd.f32 0.0, %v7124
      %v7126 = vpop.f32.mrf.mxu0
      %v7127 = vpop.f32.mrf.mxu0
      %v7128 = vadd.f32 0.0, %v7127
      %v7129 = vpop.f32.mrf.mxu0
      %7130 = vmatprep.mubr.bf16.mxu0 0
      %7131 = vmatmul.mubr.bf16.gmra.mxu0 %v7018
      %v7132 = vpop.f32.mrf.mxu0
      %v7133 = vadd.f32 0.0, %v7132
      %v7134 = vpop.f32.mrf.mxu0
      %v7135 = vpop.f32.mrf.mxu0
      %v7136 = vadd.f32 0.0, %v7135
      %v7137 = vpop.f32.mrf.mxu0
      %7138 = vmatprep.mubr.bf16.mxu0 0
      %7139 = vmatmul.mubr.bf16.gmra.mxu0 %v7021
      %v7140 = vpop.f32.mrf.mxu0
      %v7141 = vadd.f32 0.0, %v7140
      %v7142 = vpop.f32.mrf.mxu0
      %v7143 = vpop.f32.mrf.mxu0
      %v7144 = vadd.f32 0.0, %v7143
      %v7145 = vpop.f32.mrf.mxu0
      %7146 = vmatprep.mubr.bf16.mxu0 0
      %7147 = vmatmul.mubr.bf16.gmra.mxu0 %v7024
      %v7148 = vpop.f32.mrf.mxu0
      %v7149 = vadd.f32 0.0, %v7148
      %v7150 = vpop.f32.mrf.mxu0
      %v7151 = vpop.f32.mrf.mxu0
      %v7152 = vadd.f32 0.0, %v7151
      %v7153 = vpop.f32.mrf.mxu0
      %7154 = vdwg.mxu0
      %v7155 = vadd.f32 %v6745, %v7061
      %v7156 = vadd.f32 %v6746, %v7064
      %v7157 = vadd.f32 %v6747, %v7069
      %v7158 = vadd.f32 %v6748, %v7072
      %v7159 = vadd.f32 %v6749, %v7077
      %v7160 = vadd.f32 %v6750, %v7080
      %v7161 = vadd.f32 %v6751, %v7085
      %v7162 = vadd.f32 %v6752, %v7088
      %v7163 = vadd.f32 %v6753, %v7093
      %v7164 = vadd.f32 %v6754, %v7096
      %v7165 = vadd.f32 %v6755, %v7101
      %v7166 = vadd.f32 %v6756, %v7104
      %v7167 = vadd.f32 %v6757, %v7109
      %v7168 = vadd.f32 %v6758, %v7112
      %v7169 = vadd.f32 %v6759, %v7117
      %v7170 = vadd.f32 %v6760, %v7120
      %v7171 = vadd.f32 %v6761, %v7125
      %v7172 = vadd.f32 %v6762, %v7128
      %v7173 = vadd.f32 %v6763, %v7133
      %v7174 = vadd.f32 %v6764, %v7136
      %v7175 = vadd.f32 %v6765, %v7141
      %v7176 = vadd.f32 %v6766, %v7144
      %v7177 = vadd.f32 %v6767, %v7149
      %v7178 = vadd.f32 %v6768, %v7152
      %v7179 = vld [vmem:[#allocation2 + $0x10] sm:$0xe]
      %s7180 = scalar_lea.vmem %s5, 256
      %v7181 = vld [vmem:[%s7180] sm:$0xf]
      %v7182 = vld [vmem:[%s7180 + $0x4] sm:$0xf]
      %v7183 = vld [vmem:[%s7180 + $0x8] sm:$0xf]
      %v7184 = vld [vmem:[%s7180 + $0xc] sm:$0xf]
      %v7185 = vld [vmem:[%s7180 + $0x10] sm:$0xf]
      %v7186 = vld [vmem:[%s7180 + $0x14] sm:$0xf]
      %v7187 = vld [vmem:[%s7180 + $0x18] sm:$0xf]
      %v7188 = vld [vmem:[%s7180 + $0x1c] sm:$0xf]
      %v7190 = vunpack.c.l.b16 %v7179
      %v7191 = vpack.c.b16 %v6829, %v7190
      %v7192 = vrot.slane %v7191, 1
      %v7193 = vrot.slane %v6854, 1
      %v7194 = vsel %vm1120, %v7192, %v7193
      %v7195 = vrot.slane %v6855, 1
      %v7196 = vsel %vm1120, %v7193, %v7195
      %v7197 = vrot.slane %v6856, 1
      %v7198 = vsel %vm1120, %v7195, %v7197
      %v7199 = vrot.slane %v6857, 1
      %v7200 = vsel %vm1120, %v7197, %v7199
      %v7201 = vrot.slane %v6858, 1
      %v7202 = vsel %vm1120, %v7199, %v7201
      %v7203 = vrot.slane %v6859, 1
      %v7204 = vsel %vm1120, %v7201, %v7203
      %v7205 = vrot.slane %v6860, 1
      %v7206 = vsel %vm1120, %v7203, %v7205
      %v7207 = vrot.slane %v6861, 1
      %v7208 = vsel %vm1120, %v7205, %v7207
      %v7209 = vrot.slane %v6862, 1
      %v7210 = vsel %vm1120, %v7207, %v7209
      %v7211 = vrot.slane %v6863, 1
      %v7212 = vsel %vm1120, %v7209, %v7211
      %v7213 = vrot.slane %v6864, 1
      %v7214 = vsel %vm1120, %v7211, %v7213
      %v7215 = vrot.slane %v6865, 1
      %v7216 = vsel %vm1120, %v7213, %v7215
      %v7225 = vunpack.c.l.b16 %v7181
      %v7226 = vunpack.c.l.b16 %v7182
      %v7227 = vunpack.c.l.b16 %v7183
      %v7228 = vunpack.c.l.b16 %v7184
      %v7229 = vunpack.c.l.b16 %v7185
      %v7230 = vunpack.c.l.b16 %v7186
      %v7231 = vunpack.c.l.b16 %v7187
      %v7232 = vunpack.c.l.b16 %v7188
      %v7233 = vpack.c.b16 %v7226, %v7225
      %v7234 = vpack.c.b16 %v7228, %v7227
      %v7235 = vpack.c.b16 %v7230, %v7229
      %v7236 = vpack.c.b16 %v7232, %v7231
      %v7242 = vsel %vm701, %v7194, 0
      %v7245 = vsel %vm701, %v7196, 0
      %v7248 = vsel %vm701, %v7198, 0
      %v7251 = vsel %vm701, %v7200, 0
      %v7254 = vsel %vm701, %v7202, 0
      %v7257 = vsel %vm701, %v7204, 0
      %v7260 = vsel %vm701, %v7206, 0
      %v7263 = vsel %vm701, %v7208, 0
      %v7266 = vsel %vm701, %v7210, 0
      %v7269 = vsel %vm701, %v7212, 0
      %v7272 = vsel %vm701, %v7214, 0
      %v7275 = vsel %vm701, %v7216, 0
      %7277 = vmatprep.subr.bf16.mxu0 0
      %7278 = vmatpush1.bf16.msra.mxu0 0
      %7279 = vmatprep.subr.bf16.mxu0 0
      %7280 = vmatpush1.bf16.msra.mxu0 0
      %7281 = vmatprep.subr.bf16.mxu0 0
      %7282 = vmatpush1.bf16.msra.mxu0 0
      %7283 = vmatprep.subr.bf16.mxu0 0
      %7284 = vmatpush1.bf16.msra.mxu0 0
      %7285 = vmatprep.subr.bf16.mxu0 0
      %7286 = vmatpush1.bf16.msra.mxu0 %v7236
      %7287 = vmatprep.subr.bf16.mxu0 0
      %7288 = vmatpush1.bf16.msra.mxu0 %v7235
      %7289 = vmatprep.subr.bf16.mxu0 0
      %7290 = vmatpush1.bf16.msra.mxu0 %v7234
      %7291 = vmatprep.subr.bf16.mxu0 0
      %7292 = vmatpush1.bf16.msra.mxu0 %v7233
      %7293 = vmatprep.subr.bf16.mxu0 0
      %7294 = vmatpush2.bf16.msra.mxu0 0
      %7295 = vmatprep.subr.bf16.mxu0 0
      %7296 = vmatpush2.bf16.msra.mxu0 0
      %7297 = vmatprep.subr.bf16.mxu0 0
      %7298 = vmatpush2.bf16.msra.mxu0 0
      %7299 = vmatprep.subr.bf16.mxu0 0
      %7300 = vmatpush2.bf16.msra.mxu0 0
      %7301 = vmatprep.subr.bf16.mxu0 0
      %7302 = vmatpush2.bf16.msra.mxu0 0
      %7303 = vmatprep.subr.bf16.mxu0 0
      %7304 = vmatpush2.bf16.msra.mxu0 0
      %7305 = vmatprep.subr.bf16.mxu0 0
      %7306 = vmatpush2.bf16.msra.mxu0 0
      %7307 = vmatprep.subr.bf16.mxu0 0
      %7308 = vmatpush2.bf16.msra.mxu0 0
      %7309 = vmatprep.mubr.bf16.mxu0 0
      %7310 = vmatmul.mubr.bf16.gmra.mxu0 %v7242
      %v7311 = vpop.f32.mrf.mxu0
      %v7312 = vadd.f32 0.0, %v7311
      %v7313 = vpop.f32.mrf.mxu0
      %v7314 = vpop.f32.mrf.mxu0
      %v7315 = vadd.f32 0.0, %v7314
      %v7316 = vpop.f32.mrf.mxu0
      %7317 = vmatprep.mubr.bf16.mxu0 0
      %7318 = vmatmul.mubr.bf16.gmra.mxu0 %v7245
      %v7319 = vpop.f32.mrf.mxu0
      %v7320 = vadd.f32 0.0, %v7319
      %v7321 = vpop.f32.mrf.mxu0
      %v7322 = vpop.f32.mrf.mxu0
      %v7323 = vadd.f32 0.0, %v7322
      %v7324 = vpop.f32.mrf.mxu0
      %7325 = vmatprep.mubr.bf16.mxu0 0
      %7326 = vmatmul.mubr.bf16.gmra.mxu0 %v7248
      %v7327 = vpop.f32.mrf.mxu0
      %v7328 = vadd.f32 0.0, %v7327
      %v7329 = vpop.f32.mrf.mxu0
      %v7330 = vpop.f32.mrf.mxu0
      %v7331 = vadd.f32 0.0, %v7330
      %v7332 = vpop.f32.mrf.mxu0
      %7333 = vmatprep.mubr.bf16.mxu0 0
      %7334 = vmatmul.mubr.bf16.gmra.mxu0 %v7251
      %v7335 = vpop.f32.mrf.mxu0
      %v7336 = vadd.f32 0.0, %v7335
      %v7337 = vpop.f32.mrf.mxu0
      %v7338 = vpop.f32.mrf.mxu0
      %v7339 = vadd.f32 0.0, %v7338
      %v7340 = vpop.f32.mrf.mxu0
      %7341 = vmatprep.mubr.bf16.mxu0 0
      %7342 = vmatmul.mubr.bf16.gmra.mxu0 %v7254
      %v7343 = vpop.f32.mrf.mxu0
      %v7344 = vadd.f32 0.0, %v7343
      %v7345 = vpop.f32.mrf.mxu0
      %v7346 = vpop.f32.mrf.mxu0
      %v7347 = vadd.f32 0.0, %v7346
      %v7348 = vpop.f32.mrf.mxu0
      %7349 = vmatprep.mubr.bf16.mxu0 0
      %7350 = vmatmul.mubr.bf16.gmra.mxu0 %v7257
      %v7351 = vpop.f32.mrf.mxu0
      %v7352 = vadd.f32 0.0, %v7351
      %v7353 = vpop.f32.mrf.mxu0
      %v7354 = vpop.f32.mrf.mxu0
      %v7355 = vadd.f32 0.0, %v7354
      %v7356 = vpop.f32.mrf.mxu0
      %7357 = vmatprep.mubr.bf16.mxu0 0
      %7358 = vmatmul.mubr.bf16.gmra.mxu0 %v7260
      %v7359 = vpop.f32.mrf.mxu0
      %v7360 = vadd.f32 0.0, %v7359
      %v7361 = vpop.f32.mrf.mxu0
      %v7362 = vpop.f32.mrf.mxu0
      %v7363 = vadd.f32 0.0, %v7362
      %v7364 = vpop.f32.mrf.mxu0
      %7365 = vmatprep.mubr.bf16.mxu0 0
      %7366 = vmatmul.mubr.bf16.gmra.mxu0 %v7263
      %v7367 = vpop.f32.mrf.mxu0
      %v7368 = vadd.f32 0.0, %v7367
      %v7369 = vpop.f32.mrf.mxu0
      %v7370 = vpop.f32.mrf.mxu0
      %v7371 = vadd.f32 0.0, %v7370
      %v7372 = vpop.f32.mrf.mxu0
      %7373 = vmatprep.mubr.bf16.mxu0 0
      %7374 = vmatmul.mubr.bf16.gmra.mxu0 %v7266
      %v7375 = vpop.f32.mrf.mxu0
      %v7376 = vadd.f32 0.0, %v7375
      %v7377 = vpop.f32.mrf.mxu0
      %v7378 = vpop.f32.mrf.mxu0
      %v7379 = vadd.f32 0.0, %v7378
      %v7380 = vpop.f32.mrf.mxu0
      %7381 = vmatprep.mubr.bf16.mxu0 0
      %7382 = vmatmul.mubr.bf16.gmra.mxu0 %v7269
      %v7383 = vpop.f32.mrf.mxu0
      %v7384 = vadd.f32 0.0, %v7383
      %v7385 = vpop.f32.mrf.mxu0
      %v7386 = vpop.f32.mrf.mxu0
      %v7387 = vadd.f32 0.0, %v7386
      %v7388 = vpop.f32.mrf.mxu0
      %7389 = vmatprep.mubr.bf16.mxu0 0
      %7390 = vmatmul.mubr.bf16.gmra.mxu0 %v7272
      %v7391 = vpop.f32.mrf.mxu0
      %v7392 = vadd.f32 0.0, %v7391
      %v7393 = vpop.f32.mrf.mxu0
      %v7394 = vpop.f32.mrf.mxu0
      %v7395 = vadd.f32 0.0, %v7394
      %v7396 = vpop.f32.mrf.mxu0
      %7397 = vmatprep.mubr.bf16.mxu0 0
      %7398 = vmatmul.mubr.bf16.gmra.mxu0 %v7275
      %v7399 = vpop.f32.mrf.mxu0
      %v7400 = vadd.f32 0.0, %v7399
      %v7401 = vpop.f32.mrf.mxu0
      %v7402 = vpop.f32.mrf.mxu0
      %v7403 = vadd.f32 0.0, %v7402
      %v7404 = vpop.f32.mrf.mxu0
      %7405 = vdwg.mxu0
      %v7406 = vadd.f32 %v7155, %v7312
      %v7407 = vadd.f32 %v7156, %v7315
      %v7408 = vadd.f32 %v7157, %v7320
      %v7409 = vadd.f32 %v7158, %v7323
      %v7410 = vadd.f32 %v7159, %v7328
      %v7411 = vadd.f32 %v7160, %v7331
      %v7412 = vadd.f32 %v7161, %v7336
      %v7413 = vadd.f32 %v7162, %v7339
      %v7414 = vadd.f32 %v7163, %v7344
      %v7415 = vadd.f32 %v7164, %v7347
      %v7416 = vadd.f32 %v7165, %v7352
      %v7417 = vadd.f32 %v7166, %v7355
      %v7418 = vadd.f32 %v7167, %v7360
      %v7419 = vadd.f32 %v7168, %v7363
      %v7420 = vadd.f32 %v7169, %v7368
      %v7421 = vadd.f32 %v7170, %v7371
      %v7422 = vadd.f32 %v7171, %v7376
      %v7423 = vadd.f32 %v7172, %v7379
      %v7424 = vadd.f32 %v7173, %v7384
      %v7425 = vadd.f32 %v7174, %v7387
      %v7426 = vadd.f32 %v7175, %v7392
      %v7427 = vadd.f32 %v7176, %v7395
      %v7428 = vadd.f32 %v7177, %v7400
      %v7429 = vadd.f32 %v7178, %v7403
      %v7430 = vld [vmem:[%s6] sm:$0x1]
      %v7432 = vlaneseq
      %v7433 = vshrl.u32 %v7432, 7
      %v7434 = vsub.s32 0, %v7433
      %v7435 = vrot.slane %v7430, %v7434
      %v7437 = vmul.f32 %v7406, %v7435
      %v7438 = vmul.f32 %v7407, %v7435
      %v7439 = vmul.f32 %v7408, %v7435
      %v7440 = vmul.f32 %v7409, %v7435
      %v7441 = vmul.f32 %v7410, %v7435
      %v7442 = vmul.f32 %v7411, %v7435
      %v7443 = vmul.f32 %v7412, %v7435
      %v7444 = vmul.f32 %v7413, %v7435
      %v7445 = vmul.f32 %v7414, %v7435
      %v7446 = vmul.f32 %v7415, %v7435
      %v7447 = vmul.f32 %v7416, %v7435
      %v7448 = vmul.f32 %v7417, %v7435
      %v7449 = vmul.f32 %v7418, %v7435
      %v7450 = vmul.f32 %v7419, %v7435
      %v7451 = vmul.f32 %v7420, %v7435
      %v7452 = vmul.f32 %v7421, %v7435
      %v7453 = vmul.f32 %v7422, %v7435
      %v7454 = vmul.f32 %v7423, %v7435
      %v7455 = vmul.f32 %v7424, %v7435
      %v7456 = vmul.f32 %v7425, %v7435
      %v7457 = vmul.f32 %v7426, %v7435
      %v7458 = vmul.f32 %v7427, %v7435
      %v7459 = vmul.f32 %v7428, %v7435
      %v7460 = vmul.f32 %v7429, %v7435
      %v7461 = vld [vmem:[%s7] sm:$0x1]
      %v7463 = vlaneseq
      %v7464 = vshrl.u32 %v7463, 7
      %v7465 = vsub.s32 0, %v7464
      %v7466 = vrot.slane %v7461, %v7465
      %v7468 = vadd.f32 %v7437, %v7466
      %v7469 = vadd.f32 %v7438, %v7466
      %v7470 = vadd.f32 %v7439, %v7466
      %v7471 = vadd.f32 %v7440, %v7466
      %v7472 = vadd.f32 %v7441, %v7466
      %v7473 = vadd.f32 %v7442, %v7466
      %v7474 = vadd.f32 %v7443, %v7466
      %v7475 = vadd.f32 %v7444, %v7466
      %v7476 = vadd.f32 %v7445, %v7466
      %v7477 = vadd.f32 %v7446, %v7466
      %v7478 = vadd.f32 %v7447, %v7466
      %v7479 = vadd.f32 %v7448, %v7466
      %v7480 = vadd.f32 %v7449, %v7466
      %v7481 = vadd.f32 %v7450, %v7466
      %v7482 = vadd.f32 %v7451, %v7466
      %v7483 = vadd.f32 %v7452, %v7466
      %v7484 = vadd.f32 %v7453, %v7466
      %v7485 = vadd.f32 %v7454, %v7466
      %v7486 = vadd.f32 %v7455, %v7466
      %v7487 = vadd.f32 %v7456, %v7466
      %v7488 = vadd.f32 %v7457, %v7466
      %v7489 = vadd.f32 %v7458, %v7466
      %v7490 = vadd.f32 %v7459, %v7466
      %v7491 = vadd.f32 %v7460, %v7466
      %v7492 = vmul.f32 %v7468, 0.5
      %v7493 = vmul.f32 %v7469, 0.5
      %v7494 = vmul.f32 %v7470, 0.5
      %v7495 = vmul.f32 %v7471, 0.5
      %v7496 = vmul.f32 %v7472, 0.5
      %v7497 = vmul.f32 %v7473, 0.5
      %v7498 = vmul.f32 %v7474, 0.5
      %v7499 = vmul.f32 %v7475, 0.5
      %v7500 = vmul.f32 %v7476, 0.5
      %v7501 = vmul.f32 %v7477, 0.5
      %v7502 = vmul.f32 %v7478, 0.5
      %v7503 = vmul.f32 %v7479, 0.5
      %v7504 = vmul.f32 %v7480, 0.5
      %v7505 = vmul.f32 %v7481, 0.5
      %v7506 = vmul.f32 %v7482, 0.5
      %v7507 = vmul.f32 %v7483, 0.5
      %v7508 = vmul.f32 %v7484, 0.5
      %v7509 = vmul.f32 %v7485, 0.5
      %v7510 = vmul.f32 %v7486, 0.5
      %v7511 = vmul.f32 %v7487, 0.5
      %v7512 = vmul.f32 %v7488, 0.5
      %v7513 = vmul.f32 %v7489, 0.5
      %v7514 = vmul.f32 %v7490, 0.5
      %v7515 = vmul.f32 %v7491, 0.5
      %v7516 = vmul.f32 %v7468, 0.70710677
      %v7517 = vmul.f32 %v7469, 0.70710677
      %v7518 = vmul.f32 %v7470, 0.70710677
      %v7519 = vmul.f32 %v7471, 0.70710677
      %v7520 = vmul.f32 %v7472, 0.70710677
      %v7521 = vmul.f32 %v7473, 0.70710677
      %v7522 = vmul.f32 %v7474, 0.70710677
      %v7523 = vmul.f32 %v7475, 0.70710677
      %v7524 = vmul.f32 %v7476, 0.70710677
      %v7525 = vmul.f32 %v7477, 0.70710677
      %v7526 = vmul.f32 %v7478, 0.70710677
      %v7527 = vmul.f32 %v7479, 0.70710677
      %v7528 = vmul.f32 %v7480, 0.70710677
      %v7529 = vmul.f32 %v7481, 0.70710677
      %v7530 = vmul.f32 %v7482, 0.70710677
      %v7531 = vmul.f32 %v7483, 0.70710677
      %v7532 = vmul.f32 %v7484, 0.70710677
      %v7533 = vmul.f32 %v7485, 0.70710677
      %v7534 = vmul.f32 %v7486, 0.70710677
      %v7535 = vmul.f32 %v7487, 0.70710677
      %v7536 = vmul.f32 %v7488, 0.70710677
      %v7537 = vmul.f32 %v7489, 0.70710677
      %v7538 = vmul.f32 %v7490, 0.70710677
      %v7539 = vmul.f32 %v7491, 0.70710677
      %v7540 = vand.u32 2147483647, %v7516
      %v7541 = vand.u32 2147483647, %v7517
      %v7542 = vand.u32 2147483647, %v7518
      %v7543 = vand.u32 2147483647, %v7519
      %v7544 = vand.u32 2147483647, %v7520
      %v7545 = vand.u32 2147483647, %v7521
      %v7546 = vand.u32 2147483647, %v7522
      %v7547 = vand.u32 2147483647, %v7523
      %v7548 = vand.u32 2147483647, %v7524
      %v7549 = vand.u32 2147483647, %v7525
      %v7550 = vand.u32 2147483647, %v7526
      %v7551 = vand.u32 2147483647, %v7527
      %v7552 = vand.u32 2147483647, %v7528
      %v7553 = vand.u32 2147483647, %v7529
      %v7554 = vand.u32 2147483647, %v7530
      %v7555 = vand.u32 2147483647, %v7531
      %v7556 = vand.u32 2147483647, %v7532
      %v7557 = vand.u32 2147483647, %v7533
      %v7558 = vand.u32 2147483647, %v7534
      %v7559 = vand.u32 2147483647, %v7535
      %v7560 = vand.u32 2147483647, %v7536
      %v7561 = vand.u32 2147483647, %v7537
      %v7562 = vand.u32 2147483647, %v7538
      %v7563 = vand.u32 2147483647, %v7539
      %v7564 = vmul.f32 %v7540, 0.3275911
      %v7565 = vmul.f32 %v7541, 0.3275911
      %v7566 = vmul.f32 %v7542, 0.3275911
      %v7567 = vmul.f32 %v7543, 0.3275911
      %v7568 = vmul.f32 %v7544, 0.3275911
      %v7569 = vmul.f32 %v7545, 0.3275911
      %v7570 = vmul.f32 %v7546, 0.3275911
      %v7571 = vmul.f32 %v7547, 0.3275911
      %v7572 = vmul.f32 %v7548, 0.3275911
      %v7573 = vmul.f32 %v7549, 0.3275911
      %v7574 = vmul.f32 %v7550, 0.3275911
      %v7575 = vmul.f32 %v7551, 0.3275911
      %v7576 = vmul.f32 %v7552, 0.3275911
      %v7577 = vmul.f32 %v7553, 0.3275911
      %v7578 = vmul.f32 %v7554, 0.3275911
      %v7579 = vmul.f32 %v7555, 0.3275911
      %v7580 = vmul.f32 %v7556, 0.3275911
      %v7581 = vmul.f32 %v7557, 0.3275911
      %v7582 = vmul.f32 %v7558, 0.3275911
      %v7583 = vmul.f32 %v7559, 0.3275911
      %v7584 = vmul.f32 %v7560, 0.3275911
      %v7585 = vmul.f32 %v7561, 0.3275911
      %v7586 = vmul.f32 %v7562, 0.3275911
      %v7587 = vmul.f32 %v7563, 0.3275911
      %v7588 = vadd.f32 %v7564, 1.0
      %v7589 = vadd.f32 %v7565, 1.0
      %v7590 = vadd.f32 %v7566, 1.0
      %v7591 = vadd.f32 %v7567, 1.0
      %v7592 = vadd.f32 %v7568, 1.0
      %v7593 = vadd.f32 %v7569, 1.0
      %v7594 = vadd.f32 %v7570, 1.0
      %v7595 = vadd.f32 %v7571, 1.0
      %v7596 = vadd.f32 %v7572, 1.0
      %v7597 = vadd.f32 %v7573, 1.0
      %v7598 = vadd.f32 %v7574, 1.0
      %v7599 = vadd.f32 %v7575, 1.0
      %v7600 = vadd.f32 %v7576, 1.0
      %v7601 = vadd.f32 %v7577, 1.0
      %v7602 = vadd.f32 %v7578, 1.0
      %v7603 = vadd.f32 %v7579, 1.0
      %v7604 = vadd.f32 %v7580, 1.0
      %v7605 = vadd.f32 %v7581, 1.0
      %v7606 = vadd.f32 %v7582, 1.0
      %v7607 = vadd.f32 %v7583, 1.0
      %v7608 = vadd.f32 %v7584, 1.0
      %v7609 = vadd.f32 %v7585, 1.0
      %v7610 = vadd.f32 %v7586, 1.0
      %v7611 = vadd.f32 %v7587, 1.0
      %v7612 = vrcp.pop %v7588
      %v7613 = vmul.f32 1.0, %v7612
      %v7614 = vrcp.pop %v7589
      %v7615 = vmul.f32 1.0, %v7614
      %v7616 = vrcp.pop %v7590
      %v7617 = vmul.f32 1.0, %v7616
      %v7618 = vrcp.pop %v7591
      %v7619 = vmul.f32 1.0, %v7618
      %v7620 = vrcp.pop %v7592
      %v7621 = vmul.f32 1.0, %v7620
      %v7622 = vrcp.pop %v7593
      %v7623 = vmul.f32 1.0, %v7622
      %v7624 = vrcp.pop %v7594
      %v7625 = vmul.f32 1.0, %v7624
      %v7626 = vrcp.pop %v7595
      %v7627 = vmul.f32 1.0, %v7626
      %v7628 = vrcp.pop %v7596
      %v7629 = vmul.f32 1.0, %v7628
      %v7630 = vrcp.pop %v7597
      %v7631 = vmul.f32 1.0, %v7630
      %v7632 = vrcp.pop %v7598
      %v7633 = vmul.f32 1.0, %v7632
      %v7634 = vrcp.pop %v7599
      %v7635 = vmul.f32 1.0, %v7634
      %v7636 = vrcp.pop %v7600
      %v7637 = vmul.f32 1.0, %v7636
      %v7638 = vrcp.pop %v7601
      %v7639 = vmul.f32 1.0, %v7638
      %v7640 = vrcp.pop %v7602
      %v7641 = vmul.f32 1.0, %v7640
      %v7642 = vrcp.pop %v7603
      %v7643 = vmul.f32 1.0, %v7642
      %v7644 = vrcp.pop %v7604
      %v7645 = vmul.f32 1.0, %v7644
      %v7646 = vrcp.pop %v7605
      %v7647 = vmul.f32 1.0, %v7646
      %v7648 = vrcp.pop %v7606
      %v7649 = vmul.f32 1.0, %v7648
      %v7650 = vrcp.pop %v7607
      %v7651 = vmul.f32 1.0, %v7650
      %v7652 = vrcp.pop %v7608
      %v7653 = vmul.f32 1.0, %v7652
      %v7654 = vrcp.pop %v7609
      %v7655 = vmul.f32 1.0, %v7654
      %v7656 = vrcp.pop %v7610
      %v7657 = vmul.f32 1.0, %v7656
      %v7658 = vrcp.pop %v7611
      %v7659 = vmul.f32 1.0, %v7658
      %v7660 = vmul.f32 %v7613, 1.0614054
      %v7661 = vmul.f32 %v7615, 1.0614054
      %v7662 = vmul.f32 %v7617, 1.0614054
      %v7663 = vmul.f32 %v7619, 1.0614054
      %v7664 = vmul.f32 %v7621, 1.0614054
      %v7665 = vmul.f32 %v7623, 1.0614054
      %v7666 = vmul.f32 %v7625, 1.0614054
      %v7667 = vmul.f32 %v7627, 1.0614054
      %v7668 = vmul.f32 %v7629, 1.0614054
      %v7669 = vmul.f32 %v7631, 1.0614054
      %v7670 = vmul.f32 %v7633, 1.0614054
      %v7671 = vmul.f32 %v7635, 1.0614054
      %v7672 = vmul.f32 %v7637, 1.0614054
      %v7673 = vmul.f32 %v7639, 1.0614054
      %v7674 = vmul.f32 %v7641, 1.0614054
      %v7675 = vmul.f32 %v7643, 1.0614054
      %v7676 = vmul.f32 %v7645, 1.0614054
      %v7677 = vmul.f32 %v7647, 1.0614054
      %v7678 = vmul.f32 %v7649, 1.0614054
      %v7679 = vmul.f32 %v7651, 1.0614054
      %v7680 = vmul.f32 %v7653, 1.0614054
      %v7681 = vmul.f32 %v7655, 1.0614054
      %v7682 = vmul.f32 %v7657, 1.0614054
      %v7683 = vmul.f32 %v7659, 1.0614054
      %v7684 = vadd.f32 %v7660, -1.4531521
      %v7685 = vadd.f32 %v7661, -1.4531521
      %v7686 = vadd.f32 %v7662, -1.4531521
      %v7687 = vadd.f32 %v7663, -1.4531521
      %v7688 = vadd.f32 %v7664, -1.4531521
      %v7689 = vadd.f32 %v7665, -1.4531521
      %v7690 = vadd.f32 %v7666, -1.4531521
      %v7691 = vadd.f32 %v7667, -1.4531521
      %v7692 = vadd.f32 %v7668, -1.4531521
      %v7693 = vadd.f32 %v7669, -1.4531521
      %v7694 = vadd.f32 %v7670, -1.4531521
      %v7695 = vadd.f32 %v7671, -1.4531521
      %v7696 = vadd.f32 %v7672, -1.4531521
      %v7697 = vadd.f32 %v7673, -1.4531521
      %v7698 = vadd.f32 %v7674, -1.4531521
      %v7699 = vadd.f32 %v7675, -1.4531521
      %v7700 = vadd.f32 %v7676, -1.4531521
      %v7701 = vadd.f32 %v7677, -1.4531521
      %v7702 = vadd.f32 %v7678, -1.4531521
      %v7703 = vadd.f32 %v7679, -1.4531521
      %v7704 = vadd.f32 %v7680, -1.4531521
      %v7705 = vadd.f32 %v7681, -1.4531521
      %v7706 = vadd.f32 %v7682, -1.4531521
      %v7707 = vadd.f32 %v7683, -1.4531521
      %v7708 = vmul.f32 %v7684, %v7613
      %v7709 = vmul.f32 %v7685, %v7615
      %v7710 = vmul.f32 %v7686, %v7617
      %v7711 = vmul.f32 %v7687, %v7619
      %v7712 = vmul.f32 %v7688, %v7621
      %v7713 = vmul.f32 %v7689, %v7623
      %v7714 = vmul.f32 %v7690, %v7625
      %v7715 = vmul.f32 %v7691, %v7627
      %v7716 = vmul.f32 %v7692, %v7629
      %v7717 = vmul.f32 %v7693, %v7631
      %v7718 = vmul.f32 %v7694, %v7633
      %v7719 = vmul.f32 %v7695, %v7635
      %v7720 = vmul.f32 %v7696, %v7637
      %v7721 = vmul.f32 %v7697, %v7639
      %v7722 = vmul.f32 %v7698, %v7641
      %v7723 = vmul.f32 %v7699, %v7643
      %v7724 = vmul.f32 %v7700, %v7645
      %v7725 = vmul.f32 %v7701, %v7647
      %v7726 = vmul.f32 %v7702, %v7649
      %v7727 = vmul.f32 %v7703, %v7651
      %v7728 = vmul.f32 %v7704, %v7653
      %v7729 = vmul.f32 %v7705, %v7655
      %v7730 = vmul.f32 %v7706, %v7657
      %v7731 = vmul.f32 %v7707, %v7659
      %v7732 = vadd.f32 %v7708, 1.4214138
      %v7733 = vadd.f32 %v7709, 1.4214138
      %v7734 = vadd.f32 %v7710, 1.4214138
      %v7735 = vadd.f32 %v7711, 1.4214138
      %v7736 = vadd.f32 %v7712, 1.4214138
      %v7737 = vadd.f32 %v7713, 1.4214138
      %v7738 = vadd.f32 %v7714, 1.4214138
      %v7739 = vadd.f32 %v7715, 1.4214138
      %v7740 = vadd.f32 %v7716, 1.4214138
      %v7741 = vadd.f32 %v7717, 1.4214138
      %v7742 = vadd.f32 %v7718, 1.4214138
      %v7743 = vadd.f32 %v7719, 1.4214138
      %v7744 = vadd.f32 %v7720, 1.4214138
      %v7745 = vadd.f32 %v7721, 1.4214138
      %v7746 = vadd.f32 %v7722, 1.4214138
      %v7747 = vadd.f32 %v7723, 1.4214138
      %v7748 = vadd.f32 %v7724, 1.4214138
      %v7749 = vadd.f32 %v7725, 1.4214138
      %v7750 = vadd.f32 %v7726, 1.4214138
      %v7751 = vadd.f32 %v7727, 1.4214138
      %v7752 = vadd.f32 %v7728, 1.4214138
      %v7753 = vadd.f32 %v7729, 1.4214138
      %v7754 = vadd.f32 %v7730, 1.4214138
      %v7755 = vadd.f32 %v7731, 1.4214138
      %v7756 = vmul.f32 %v7732, %v7613
      %v7757 = vmul.f32 %v7733, %v7615
      %v7758 = vmul.f32 %v7734, %v7617
      %v7759 = vmul.f32 %v7735, %v7619
      %v7760 = vmul.f32 %v7736, %v7621
      %v7761 = vmul.f32 %v7737, %v7623
      %v7762 = vmul.f32 %v7738, %v7625
      %v7763 = vmul.f32 %v7739, %v7627
      %v7764 = vmul.f32 %v7740, %v7629
      %v7765 = vmul.f32 %v7741, %v7631
      %v7766 = vmul.f32 %v7742, %v7633
      %v7767 = vmul.f32 %v7743, %v7635
      %v7768 = vmul.f32 %v7744, %v7637
      %v7769 = vmul.f32 %v7745, %v7639
      %v7770 = vmul.f32 %v7746, %v7641
      %v7771 = vmul.f32 %v7747, %v7643
      %v7772 = vmul.f32 %v7748, %v7645
      %v7773 = vmul.f32 %v7749, %v7647
      %v7774 = vmul.f32 %v7750, %v7649
      %v7775 = vmul.f32 %v7751, %v7651
      %v7776 = vmul.f32 %v7752, %v7653
      %v7777 = vmul.f32 %v7753, %v7655
      %v7778 = vmul.f32 %v7754, %v7657
      %v7779 = vmul.f32 %v7755, %v7659
      %v7780 = vadd.f32 %v7756, -0.28449672
      %v7781 = vadd.f32 %v7757, -0.28449672
      %v7782 = vadd.f32 %v7758, -0.28449672
      %v7783 = vadd.f32 %v7759, -0.28449672
      %v7784 = vadd.f32 %v7760, -0.28449672
      %v7785 = vadd.f32 %v7761, -0.28449672
      %v7786 = vadd.f32 %v7762, -0.28449672
      %v7787 = vadd.f32 %v7763, -0.28449672
      %v7788 = vadd.f32 %v7764, -0.28449672
      %v7789 = vadd.f32 %v7765, -0.28449672
      %v7790 = vadd.f32 %v7766, -0.28449672
      %v7791 = vadd.f32 %v7767, -0.28449672
      %v7792 = vadd.f32 %v7768, -0.28449672
      %v7793 = vadd.f32 %v7769, -0.28449672
      %v7794 = vadd.f32 %v7770, -0.28449672
      %v7795 = vadd.f32 %v7771, -0.28449672
      %v7796 = vadd.f32 %v7772, -0.28449672
      %v7797 = vadd.f32 %v7773, -0.28449672
      %v7798 = vadd.f32 %v7774, -0.28449672
      %v7799 = vadd.f32 %v7775, -0.28449672
      %v7800 = vadd.f32 %v7776, -0.28449672
      %v7801 = vadd.f32 %v7777, -0.28449672
      %v7802 = vadd.f32 %v7778, -0.28449672
      %v7803 = vadd.f32 %v7779, -0.28449672
      %v7804 = vmul.f32 %v7780, %v7613
      %v7805 = vmul.f32 %v7781, %v7615
      %v7806 = vmul.f32 %v7782, %v7617
      %v7807 = vmul.f32 %v7783, %v7619
      %v7808 = vmul.f32 %v7784, %v7621
      %v7809 = vmul.f32 %v7785, %v7623
      %v7810 = vmul.f32 %v7786, %v7625
      %v7811 = vmul.f32 %v7787, %v7627
      %v7812 = vmul.f32 %v7788, %v7629
      %v7813 = vmul.f32 %v7789, %v7631
      %v7814 = vmul.f32 %v7790, %v7633
      %v7815 = vmul.f32 %v7791, %v7635
      %v7816 = vmul.f32 %v7792, %v7637
      %v7817 = vmul.f32 %v7793, %v7639
      %v7818 = vmul.f32 %v7794, %v7641
      %v7819 = vmul.f32 %v7795, %v7643
      %v7820 = vmul.f32 %v7796, %v7645
      %v7821 = vmul.f32 %v7797, %v7647
      %v7822 = vmul.f32 %v7798, %v7649
      %v7823 = vmul.f32 %v7799, %v7651
      %v7824 = vmul.f32 %v7800, %v7653
      %v7825 = vmul.f32 %v7801, %v7655
      %v7826 = vmul.f32 %v7802, %v7657
      %v7827 = vmul.f32 %v7803, %v7659
      %v7828 = vadd.f32 %v7804, 0.2548296
      %v7829 = vadd.f32 %v7805, 0.2548296
      %v7830 = vadd.f32 %v7806, 0.2548296
      %v7831 = vadd.f32 %v7807, 0.2548296
      %v7832 = vadd.f32 %v7808, 0.2548296
      %v7833 = vadd.f32 %v7809, 0.2548296
      %v7834 = vadd.f32 %v7810, 0.2548296
      %v7835 = vadd.f32 %v7811, 0.2548296
      %v7836 = vadd.f32 %v7812, 0.2548296
      %v7837 = vadd.f32 %v7813, 0.2548296
      %v7838 = vadd.f32 %v7814, 0.2548296
      %v7839 = vadd.f32 %v7815, 0.2548296
      %v7840 = vadd.f32 %v7816, 0.2548296
      %v7841 = vadd.f32 %v7817, 0.2548296
      %v7842 = vadd.f32 %v7818, 0.2548296
      %v7843 = vadd.f32 %v7819, 0.2548296
      %v7844 = vadd.f32 %v7820, 0.2548296
      %v7845 = vadd.f32 %v7821, 0.2548296
      %v7846 = vadd.f32 %v7822, 0.2548296
      %v7847 = vadd.f32 %v7823, 0.2548296
      %v7848 = vadd.f32 %v7824, 0.2548296
      %v7849 = vadd.f32 %v7825, 0.2548296
      %v7850 = vadd.f32 %v7826, 0.2548296
      %v7851 = vadd.f32 %v7827, 0.2548296
      %v7852 = vmul.f32 %v7828, %v7613
      %v7853 = vmul.f32 %v7829, %v7615
      %v7854 = vmul.f32 %v7830, %v7617
      %v7855 = vmul.f32 %v7831, %v7619
      %v7856 = vmul.f32 %v7832, %v7621
      %v7857 = vmul.f32 %v7833, %v7623
      %v7858 = vmul.f32 %v7834, %v7625
      %v7859 = vmul.f32 %v7835, %v7627
      %v7860 = vmul.f32 %v7836, %v7629
      %v7861 = vmul.f32 %v7837, %v7631
      %v7862 = vmul.f32 %v7838, %v7633
      %v7863 = vmul.f32 %v7839, %v7635
      %v7864 = vmul.f32 %v7840, %v7637
      %v7865 = vmul.f32 %v7841, %v7639
      %v7866 = vmul.f32 %v7842, %v7641
      %v7867 = vmul.f32 %v7843, %v7643
      %v7868 = vmul.f32 %v7844, %v7645
      %v7869 = vmul.f32 %v7845, %v7647
      %v7870 = vmul.f32 %v7846, %v7649
      %v7871 = vmul.f32 %v7847, %v7651
      %v7872 = vmul.f32 %v7848, %v7653
      %v7873 = vmul.f32 %v7849, %v7655
      %v7874 = vmul.f32 %v7850, %v7657
      %v7875 = vmul.f32 %v7851, %v7659
      %v7876 = vsub.f32 0.0, %v7540
      %v7877 = vsub.f32 0.0, %v7541
      %v7878 = vsub.f32 0.0, %v7542
      %v7879 = vsub.f32 0.0, %v7543
      %v7880 = vsub.f32 0.0, %v7544
      %v7881 = vsub.f32 0.0, %v7545
      %v7882 = vsub.f32 0.0, %v7546
      %v7883 = vsub.f32 0.0, %v7547
      %v7884 = vsub.f32 0.0, %v7548
      %v7885 = vsub.f32 0.0, %v7549
      %v7886 = vsub.f32 0.0, %v7550
      %v7887 = vsub.f32 0.0, %v7551
      %v7888 = vsub.f32 0.0, %v7552
      %v7889 = vsub.f32 0.0, %v7553
      %v7890 = vsub.f32 0.0, %v7554
      %v7891 = vsub.f32 0.0, %v7555
      %v7892 = vsub.f32 0.0, %v7556
      %v7893 = vsub.f32 0.0, %v7557
      %v7894 = vsub.f32 0.0, %v7558
      %v7895 = vsub.f32 0.0, %v7559
      %v7896 = vsub.f32 0.0, %v7560
      %v7897 = vsub.f32 0.0, %v7561
      %v7898 = vsub.f32 0.0, %v7562
      %v7899 = vsub.f32 0.0, %v7563
      %v7900 = vmul.f32 %v7876, %v7540
      %v7901 = vmul.f32 %v7877, %v7541
      %v7902 = vmul.f32 %v7878, %v7542
      %v7903 = vmul.f32 %v7879, %v7543
      %v7904 = vmul.f32 %v7880, %v7544
      %v7905 = vmul.f32 %v7881, %v7545
      %v7906 = vmul.f32 %v7882, %v7546
      %v7907 = vmul.f32 %v7883, %v7547
      %v7908 = vmul.f32 %v7884, %v7548
      %v7909 = vmul.f32 %v7885, %v7549
      %v7910 = vmul.f32 %v7886, %v7550
      %v7911 = vmul.f32 %v7887, %v7551
      %v7912 = vmul.f32 %v7888, %v7552
      %v7913 = vmul.f32 %v7889, %v7553
      %v7914 = vmul.f32 %v7890, %v7554
      %v7915 = vmul.f32 %v7891, %v7555
      %v7916 = vmul.f32 %v7892, %v7556
      %v7917 = vmul.f32 %v7893, %v7557
      %v7918 = vmul.f32 %v7894, %v7558
      %v7919 = vmul.f32 %v7895, %v7559
      %v7920 = vmul.f32 %v7896, %v7560
      %v7921 = vmul.f32 %v7897, %v7561
      %v7922 = vmul.f32 %v7898, %v7562
      %v7923 = vmul.f32 %v7899, %v7563
      %v7924 = vmul.f32 %v7900, 1.442695
      %v7925 = vpow.pop %v7924
      %v7926 = vmul.f32 %v7901, 1.442695
      %v7927 = vpow.pop %v7926
      %v7928 = vmul.f32 %v7902, 1.442695
      %v7929 = vpow.pop %v7928
      %v7930 = vmul.f32 %v7903, 1.442695
      %v7931 = vpow.pop %v7930
      %v7932 = vmul.f32 %v7904, 1.442695
      %v7933 = vpow.pop %v7932
      %v7934 = vmul.f32 %v7905, 1.442695
      %v7935 = vpow.pop %v7934
      %v7936 = vmul.f32 %v7906, 1.442695
      %v7937 = vpow.pop %v7936
      %v7938 = vmul.f32 %v7907, 1.442695
      %v7939 = vpow.pop %v7938
      %v7940 = vmul.f32 %v7908, 1.442695
      %v7941 = vpow.pop %v7940
      %v7942 = vmul.f32 %v7909, 1.442695
      %v7943 = vpow.pop %v7942
      %v7944 = vmul.f32 %v7910, 1.442695
      %v7945 = vpow.pop %v7944
      %v7946 = vmul.f32 %v7911, 1.442695
      %v7947 = vpow.pop %v7946
      %v7948 = vmul.f32 %v7912, 1.442695
      %v7949 = vpow.pop %v7948
      %v7950 = vmul.f32 %v7913, 1.442695
      %v7951 = vpow.pop %v7950
      %v7952 = vmul.f32 %v7914, 1.442695
      %v7953 = vpow.pop %v7952
      %v7954 = vmul.f32 %v7915, 1.442695
      %v7955 = vpow.pop %v7954
      %v7956 = vmul.f32 %v7916, 1.442695
      %v7957 = vpow.pop %v7956
      %v7958 = vmul.f32 %v7917, 1.442695
      %v7959 = vpow.pop %v7958
      %v7960 = vmul.f32 %v7918, 1.442695
      %v7961 = vpow.pop %v7960
      %v7962 = vmul.f32 %v7919, 1.442695
      %v7963 = vpow.pop %v7962
      %v7964 = vmul.f32 %v7920, 1.442695
      %v7965 = vpow.pop %v7964
      %v7966 = vmul.f32 %v7921, 1.442695
      %v7967 = vpow.pop %v7966
      %v7968 = vmul.f32 %v7922, 1.442695
      %v7969 = vpow.pop %v7968
      %v7970 = vmul.f32 %v7923, 1.442695
      %v7971 = vpow.pop %v7970
      %v7972 = vmul.f32 %v7852, %v7925
      %v7973 = vmul.f32 %v7853, %v7927
      %v7974 = vmul.f32 %v7854, %v7929
      %v7975 = vmul.f32 %v7855, %v7931
      %v7976 = vmul.f32 %v7856, %v7933
      %v7977 = vmul.f32 %v7857, %v7935
      %v7978 = vmul.f32 %v7858, %v7937
      %v7979 = vmul.f32 %v7859, %v7939
      %v7980 = vmul.f32 %v7860, %v7941
      %v7981 = vmul.f32 %v7861, %v7943
      %v7982 = vmul.f32 %v7862, %v7945
      %v7983 = vmul.f32 %v7863, %v7947
      %v7984 = vmul.f32 %v7864, %v7949
      %v7985 = vmul.f32 %v7865, %v7951
      %v7986 = vmul.f32 %v7866, %v7953
      %v7987 = vmul.f32 %v7867, %v7955
      %v7988 = vmul.f32 %v7868, %v7957
      %v7989 = vmul.f32 %v7869, %v7959
      %v7990 = vmul.f32 %v7870, %v7961
      %v7991 = vmul.f32 %v7871, %v7963
      %v7992 = vmul.f32 %v7872, %v7965
      %v7993 = vmul.f32 %v7873, %v7967
      %v7994 = vmul.f32 %v7874, %v7969
      %v7995 = vmul.f32 %v7875, %v7971
      %v7996 = vsub.f32 1.0, %v7972
      %v7997 = vsub.f32 1.0, %v7973
      %v7998 = vsub.f32 1.0, %v7974
      %v7999 = vsub.f32 1.0, %v7975
      %v8000 = vsub.f32 1.0, %v7976
      %v8001 = vsub.f32 1.0, %v7977
      %v8002 = vsub.f32 1.0, %v7978
      %v8003 = vsub.f32 1.0, %v7979
      %v8004 = vsub.f32 1.0, %v7980
      %v8005 = vsub.f32 1.0, %v7981
      %v8006 = vsub.f32 1.0, %v7982
      %v8007 = vsub.f32 1.0, %v7983
      %v8008 = vsub.f32 1.0, %v7984
      %v8009 = vsub.f32 1.0, %v7985
      %v8010 = vsub.f32 1.0, %v7986
      %v8011 = vsub.f32 1.0, %v7987
      %v8012 = vsub.f32 1.0, %v7988
      %v8013 = vsub.f32 1.0, %v7989
      %v8014 = vsub.f32 1.0, %v7990
      %v8015 = vsub.f32 1.0, %v7991
      %v8016 = vsub.f32 1.0, %v7992
      %v8017 = vsub.f32 1.0, %v7993
      %v8018 = vsub.f32 1.0, %v7994
      %v8019 = vsub.f32 1.0, %v7995
      %vm8020 = vcmp.ge.f32.partialorder %v7516, 0.0
      %vm8021 = vcmp.ge.f32.partialorder %v7517, 0.0
      %vm8022 = vcmp.ge.f32.partialorder %v7518, 0.0
      %vm8023 = vcmp.ge.f32.partialorder %v7519, 0.0
      %vm8024 = vcmp.ge.f32.partialorder %v7520, 0.0
      %vm8025 = vcmp.ge.f32.partialorder %v7521, 0.0
      %vm8026 = vcmp.ge.f32.partialorder %v7522, 0.0
      %vm8027 = vcmp.ge.f32.partialorder %v7523, 0.0
      %vm8028 = vcmp.ge.f32.partialorder %v7524, 0.0
      %vm8029 = vcmp.ge.f32.partialorder %v7525, 0.0
      %vm8030 = vcmp.ge.f32.partialorder %v7526, 0.0
      %vm8031 = vcmp.ge.f32.partialorder %v7527, 0.0
      %vm8032 = vcmp.ge.f32.partialorder %v7528, 0.0
      %vm8033 = vcmp.ge.f32.partialorder %v7529, 0.0
      %vm8034 = vcmp.ge.f32.partialorder %v7530, 0.0
      %vm8035 = vcmp.ge.f32.partialorder %v7531, 0.0
      %vm8036 = vcmp.ge.f32.partialorder %v7532, 0.0
      %vm8037 = vcmp.ge.f32.partialorder %v7533, 0.0
      %vm8038 = vcmp.ge.f32.partialorder %v7534, 0.0
      %vm8039 = vcmp.ge.f32.partialorder %v7535, 0.0
      %vm8040 = vcmp.ge.f32.partialorder %v7536, 0.0
      %vm8041 = vcmp.ge.f32.partialorder %v7537, 0.0
      %vm8042 = vcmp.ge.f32.partialorder %v7538, 0.0
      %vm8043 = vcmp.ge.f32.partialorder %v7539, 0.0
      %v8044 = vsub.f32 0.0, %v7996
      %v8045 = vsub.f32 0.0, %v7997
      %v8046 = vsub.f32 0.0, %v7998
      %v8047 = vsub.f32 0.0, %v7999
      %v8048 = vsub.f32 0.0, %v8000
      %v8049 = vsub.f32 0.0, %v8001
      %v8050 = vsub.f32 0.0, %v8002
      %v8051 = vsub.f32 0.0, %v8003
      %v8052 = vsub.f32 0.0, %v8004
      %v8053 = vsub.f32 0.0, %v8005
      %v8054 = vsub.f32 0.0, %v8006
      %v8055 = vsub.f32 0.0, %v8007
      %v8056 = vsub.f32 0.0, %v8008
      %v8057 = vsub.f32 0.0, %v8009
      %v8058 = vsub.f32 0.0, %v8010
      %v8059 = vsub.f32 0.0, %v8011
      %v8060 = vsub.f32 0.0, %v8012
      %v8061 = vsub.f32 0.0, %v8013
      %v8062 = vsub.f32 0.0, %v8014
      %v8063 = vsub.f32 0.0, %v8015
      %v8064 = vsub.f32 0.0, %v8016
      %v8065 = vsub.f32 0.0, %v8017
      %v8066 = vsub.f32 0.0, %v8018
      %v8067 = vsub.f32 0.0, %v8019
      %v8068 = vsel %vm8020, %v7996, %v8044
      %v8069 = vsel %vm8021, %v7997, %v8045
      %v8070 = vsel %vm8022, %v7998, %v8046
      %v8071 = vsel %vm8023, %v7999, %v8047
      %v8072 = vsel %vm8024, %v8000, %v8048
      %v8073 = vsel %vm8025, %v8001, %v8049
      %v8074 = vsel %vm8026, %v8002, %v8050
      %v8075 = vsel %vm8027, %v8003, %v8051
      %v8076 = vsel %vm8028, %v8004, %v8052
      %v8077 = vsel %vm8029, %v8005, %v8053
      %v8078 = vsel %vm8030, %v8006, %v8054
      %v8079 = vsel %vm8031, %v8007, %v8055
      %v8080 = vsel %vm8032, %v8008, %v8056
      %v8081 = vsel %vm8033, %v8009, %v8057
      %v8082 = vsel %vm8034, %v8010, %v8058
      %v8083 = vsel %vm8035, %v8011, %v8059
      %v8084 = vsel %vm8036, %v8012, %v8060
      %v8085 = vsel %vm8037, %v8013, %v8061
      %v8086 = vsel %vm8038, %v8014, %v8062
      %v8087 = vsel %vm8039, %v8015, %v8063
      %v8088 = vsel %vm8040, %v8016, %v8064
      %v8089 = vsel %vm8041, %v8017, %v8065
      %v8090 = vsel %vm8042, %v8018, %v8066
      %v8091 = vsel %vm8043, %v8019, %v8067
      %v8092 = vadd.f32 %v8068, 1.0
      %v8093 = vadd.f32 %v8069, 1.0
      %v8094 = vadd.f32 %v8070, 1.0
      %v8095 = vadd.f32 %v8071, 1.0
      %v8096 = vadd.f32 %v8072, 1.0
      %v8097 = vadd.f32 %v8073, 1.0
      %v8098 = vadd.f32 %v8074, 1.0
      %v8099 = vadd.f32 %v8075, 1.0
      %v8100 = vadd.f32 %v8076, 1.0
      %v8101 = vadd.f32 %v8077, 1.0
      %v8102 = vadd.f32 %v8078, 1.0
      %v8103 = vadd.f32 %v8079, 1.0
      %v8104 = vadd.f32 %v8080, 1.0
      %v8105 = vadd.f32 %v8081, 1.0
      %v8106 = vadd.f32 %v8082, 1.0
      %v8107 = vadd.f32 %v8083, 1.0
      %v8108 = vadd.f32 %v8084, 1.0
      %v8109 = vadd.f32 %v8085, 1.0
      %v8110 = vadd.f32 %v8086, 1.0
      %v8111 = vadd.f32 %v8087, 1.0
      %v8112 = vadd.f32 %v8088, 1.0
      %v8113 = vadd.f32 %v8089, 1.0
      %v8114 = vadd.f32 %v8090, 1.0
      %v8115 = vadd.f32 %v8091, 1.0
      %v8116 = vmul.f32 %v7492, %v8092
      %v8117 = vmul.f32 %v7493, %v8093
      %v8118 = vmul.f32 %v7494, %v8094
      %v8119 = vmul.f32 %v7495, %v8095
      %v8120 = vmul.f32 %v7496, %v8096
      %v8121 = vmul.f32 %v7497, %v8097
      %v8122 = vmul.f32 %v7498, %v8098
      %v8123 = vmul.f32 %v7499, %v8099
      %v8124 = vmul.f32 %v7500, %v8100
      %v8125 = vmul.f32 %v7501, %v8101
      %v8126 = vmul.f32 %v7502, %v8102
      %v8127 = vmul.f32 %v7503, %v8103
      %v8128 = vmul.f32 %v7504, %v8104
      %v8129 = vmul.f32 %v7505, %v8105
      %v8130 = vmul.f32 %v7506, %v8106
      %v8131 = vmul.f32 %v7507, %v8107
      %v8132 = vmul.f32 %v7508, %v8108
      %v8133 = vmul.f32 %v7509, %v8109
      %v8134 = vmul.f32 %v7510, %v8110
      %v8135 = vmul.f32 %v7511, %v8111
      %v8136 = vmul.f32 %v7512, %v8112
      %v8137 = vmul.f32 %v7513, %v8113
      %v8138 = vmul.f32 %v7514, %v8114
      %v8139 = vmul.f32 %v7515, %v8115
      %v8140 = vld [vmem:[%s10] sm:$0xff]
      %v8141 = vld [vmem:[%s10 + $0x8] sm:$0xff]
      %v8142 = vld [vmem:[%s10 + $0x10] sm:$0xff]
      %v8143 = vld [vmem:[%s10 + $0x18] sm:$0xff]
      %v8144 = vld [vmem:[%s10 + $0x20] sm:$0xff]
      %v8145 = vld [vmem:[%s10 + $0x28] sm:$0xff]
      %v8146 = vld [vmem:[%s10 + $0x30] sm:$0xff]
      %v8147 = vld [vmem:[%s10 + $0x38] sm:$0xff]
      %v8148 = vld [vmem:[%s10 + $0x40] sm:$0xff]
      %v8149 = vld [vmem:[%s10 + $0x48] sm:$0xff]
      %v8150 = vld [vmem:[%s10 + $0x50] sm:$0xff]
      %v8151 = vld [vmem:[%s10 + $0x58] sm:$0xff]
      %v8152 = vld [vmem:[%s10 + $0x60] sm:$0xff]
      %v8153 = vld [vmem:[%s10 + $0x68] sm:$0xff]
      %v8154 = vld [vmem:[%s10 + $0x70] sm:$0xff]
      %v8155 = vld [vmem:[%s10 + $0x78] sm:$0xff]
      %v8156 = vld [vmem:[%s10 + $0x80] sm:$0xff]
      %v8157 = vld [vmem:[%s10 + $0x88] sm:$0xff]
      %v8158 = vld [vmem:[%s10 + $0x90] sm:$0xff]
      %v8159 = vld [vmem:[%s10 + $0x98] sm:$0xff]
      %v8160 = vld [vmem:[%s10 + $0xa0] sm:$0xff]
      %v8161 = vld [vmem:[%s10 + $0xa8] sm:$0xff]
      %v8162 = vld [vmem:[%s10 + $0xb0] sm:$0xff]
      %v8163 = vld [vmem:[%s10 + $0xb8] sm:$0xff]
      %8165 = vset.pattern.permute.xlu0 0
      %8166 = vperm.xlu0 %8165, %v8140
      %v8167 = vpop.permute.xlu0 %8166
      %8170 = vset.pattern.permute.xlu0 0
      %8171 = vperm.xlu0 %8170, %v8141
      %v8172 = vpop.permute.xlu0 %8171
      %8175 = vset.pattern.permute.xlu0 0
      %8176 = vperm.xlu0 %8175, %v8142
      %v8177 = vpop.permute.xlu0 %8176
      %8180 = vset.pattern.permute.xlu0 0
      %8181 = vperm.xlu0 %8180, %v8143
      %v8182 = vpop.permute.xlu0 %8181
      %8185 = vset.pattern.permute.xlu0 0
      %8186 = vperm.xlu0 %8185, %v8144
      %v8187 = vpop.permute.xlu0 %8186
      %8190 = vset.pattern.permute.xlu0 0
      %8191 = vperm.xlu0 %8190, %v8145
      %v8192 = vpop.permute.xlu0 %8191
      %8195 = vset.pattern.permute.xlu0 0
      %8196 = vperm.xlu0 %8195, %v8146
      %v8197 = vpop.permute.xlu0 %8196
      %8200 = vset.pattern.permute.xlu0 0
      %8201 = vperm.xlu0 %8200, %v8147
      %v8202 = vpop.permute.xlu0 %8201
      %8205 = vset.pattern.permute.xlu0 0
      %8206 = vperm.xlu0 %8205, %v8148
      %v8207 = vpop.permute.xlu0 %8206
      %8210 = vset.pattern.permute.xlu0 0
      %8211 = vperm.xlu0 %8210, %v8149
      %v8212 = vpop.permute.xlu0 %8211
      %8215 = vset.pattern.permute.xlu0 0
      %8216 = vperm.xlu0 %8215, %v8150
      %v8217 = vpop.permute.xlu0 %8216
      %8220 = vset.pattern.permute.xlu0 0
      %8221 = vperm.xlu0 %8220, %v8151
      %v8222 = vpop.permute.xlu0 %8221
      %8225 = vset.pattern.permute.xlu0 0
      %8226 = vperm.xlu0 %8225, %v8152
      %v8227 = vpop.permute.xlu0 %8226
      %8230 = vset.pattern.permute.xlu0 0
      %8231 = vperm.xlu0 %8230, %v8153
      %v8232 = vpop.permute.xlu0 %8231
      %8235 = vset.pattern.permute.xlu0 0
      %8236 = vperm.xlu0 %8235, %v8154
      %v8237 = vpop.permute.xlu0 %8236
      %8240 = vset.pattern.permute.xlu0 0
      %8241 = vperm.xlu0 %8240, %v8155
      %v8242 = vpop.permute.xlu0 %8241
      %8245 = vset.pattern.permute.xlu0 0
      %8246 = vperm.xlu0 %8245, %v8156
      %v8247 = vpop.permute.xlu0 %8246
      %8250 = vset.pattern.permute.xlu0 0
      %8251 = vperm.xlu0 %8250, %v8157
      %v8252 = vpop.permute.xlu0 %8251
      %8255 = vset.pattern.permute.xlu0 0
      %8256 = vperm.xlu0 %8255, %v8158
      %v8257 = vpop.permute.xlu0 %8256
      %8260 = vset.pattern.permute.xlu0 0
      %8261 = vperm.xlu0 %8260, %v8159
      %v8262 = vpop.permute.xlu0 %8261
      %8265 = vset.pattern.permute.xlu0 0
      %8266 = vperm.xlu0 %8265, %v8160
      %v8267 = vpop.permute.xlu0 %8266
      %8270 = vset.pattern.permute.xlu0 0
      %8271 = vperm.xlu0 %8270, %v8161
      %v8272 = vpop.permute.xlu0 %8271
      %8275 = vset.pattern.permute.xlu0 0
      %8276 = vperm.xlu0 %8275, %v8162
      %v8277 = vpop.permute.xlu0 %8276
      %8280 = vset.pattern.permute.xlu0 0
      %8281 = vperm.xlu0 %8280, %v8163
      %v8282 = vpop.permute.xlu0 %8281
      %v8284 = vmul.f32 %v8116, %v8167
      %v8285 = vmul.f32 %v8117, %v8172
      %v8286 = vmul.f32 %v8118, %v8177
      %v8287 = vmul.f32 %v8119, %v8182
      %v8288 = vmul.f32 %v8120, %v8187
      %v8289 = vmul.f32 %v8121, %v8192
      %v8290 = vmul.f32 %v8122, %v8197
      %v8291 = vmul.f32 %v8123, %v8202
      %v8292 = vmul.f32 %v8124, %v8207
      %v8293 = vmul.f32 %v8125, %v8212
      %v8294 = vmul.f32 %v8126, %v8217
      %v8295 = vmul.f32 %v8127, %v8222
      %v8296 = vmul.f32 %v8128, %v8227
      %v8297 = vmul.f32 %v8129, %v8232
      %v8298 = vmul.f32 %v8130, %v8237
      %v8299 = vmul.f32 %v8131, %v8242
      %v8300 = vmul.f32 %v8132, %v8247
      %v8301 = vmul.f32 %v8133, %v8252
      %v8302 = vmul.f32 %v8134, %v8257
      %v8303 = vmul.f32 %v8135, %v8262
      %v8304 = vmul.f32 %v8136, %v8267
      %v8305 = vmul.f32 %v8137, %v8272
      %v8306 = vmul.f32 %v8138, %v8277
      %v8307 = vmul.f32 %v8139, %v8282
      %v8308 = vsel %vm701, %v8284, 0.0
      %v8309 = vsel %vm701, %v8285, 0.0
      %v8310 = vadd.f32 %v8308, %v8309
      %v8311 = vsel %vm701, %v8286, 0.0
      %v8312 = vadd.f32 %v8310, %v8311
      %v8313 = vsel %vm701, %v8287, 0.0
      %v8314 = vadd.f32 %v8312, %v8313
      %v8315 = vsel %vm701, %v8288, 0.0
      %v8316 = vadd.f32 %v8314, %v8315
      %v8317 = vsel %vm701, %v8289, 0.0
      %v8318 = vadd.f32 %v8316, %v8317
      %v8319 = vsel %vm701, %v8290, 0.0
      %v8320 = vadd.f32 %v8318, %v8319
      %v8321 = vsel %vm701, %v8291, 0.0
      %v8322 = vadd.f32 %v8320, %v8321
      %v8323 = vsel %vm701, %v8292, 0.0
      %v8324 = vadd.f32 %v8322, %v8323
      %v8325 = vsel %vm701, %v8293, 0.0
      %v8326 = vadd.f32 %v8324, %v8325
      %v8327 = vsel %vm701, %v8294, 0.0
      %v8328 = vadd.f32 %v8326, %v8327
      %v8329 = vsel %vm701, %v8295, 0.0
      %v8330 = vadd.f32 %v8328, %v8329
      %v8331 = vsel %vm701, %v8296, 0.0
      %v8332 = vadd.f32 %v8330, %v8331
      %v8333 = vsel %vm701, %v8297, 0.0
      %v8334 = vadd.f32 %v8332, %v8333
      %v8335 = vsel %vm701, %v8298, 0.0
      %v8336 = vadd.f32 %v8334, %v8335
      %v8337 = vsel %vm701, %v8299, 0.0
      %v8338 = vadd.f32 %v8336, %v8337
      %v8339 = vsel %vm701, %v8300, 0.0
      %v8340 = vadd.f32 %v8338, %v8339
      %v8341 = vsel %vm701, %v8301, 0.0
      %v8342 = vadd.f32 %v8340, %v8341
      %v8343 = vsel %vm701, %v8302, 0.0
      %v8344 = vadd.f32 %v8342, %v8343
      %v8345 = vsel %vm701, %v8303, 0.0
      %v8346 = vadd.f32 %v8344, %v8345
      %v8347 = vsel %vm701, %v8304, 0.0
      %v8348 = vadd.f32 %v8346, %v8347
      %v8349 = vsel %vm701, %v8305, 0.0
      %v8350 = vadd.f32 %v8348, %v8349
      %v8351 = vsel %vm701, %v8306, 0.0
      %v8352 = vadd.f32 %v8350, %v8351
      %v8353 = vsel %vm701, %v8307, 0.0
      %v8354 = vadd.f32 %v8352, %v8353
      %v8355 = vrot.slane %v8354, 4
      %v8356 = vadd.f32 %v8354, %v8355
      %v8357 = vrot.slane %v8356, 2
      %v8358 = vadd.f32 %v8356, %v8357
      %v8359 = vrot.slane %v8358, 1
      %v8360 = vadd.f32 %v8358, %v8359
      %v8361 = vmul.f32 %v8360, 0.0069444445
      %v8362 = vld [vmem:[%s8] sm:$0xff]
      %v8363 = vld [vmem:[%s8 + $0x8] sm:$0xff]
      %v8364 = vld [vmem:[%s8 + $0x10] sm:$0xff]
      %v8365 = vld [vmem:[%s8 + $0x18] sm:$0xff]
      %v8366 = vld [vmem:[%s8 + $0x20] sm:$0xff]
      %v8367 = vld [vmem:[%s8 + $0x28] sm:$0xff]
      %v8368 = vld [vmem:[%s8 + $0x30] sm:$0xff]
      %v8369 = vld [vmem:[%s8 + $0x38] sm:$0xff]
      %v8371 = vsel %vm701, %v8361, 0
      %8373 = vmatprep.subr.mxu0 0.0
      %8374 = vmatpush1.msra.mxu0 0.0
      %8375 = vmatprep.subr.mxu0 0.0
      %8376 = vmatpush1.msra.mxu0 0.0
      %8377 = vmatprep.subr.mxu0 0.0
      %8378 = vmatpush1.msra.mxu0 0.0
      %8379 = vmatprep.subr.mxu0 0.0
      %8380 = vmatpush1.msra.mxu0 0.0
      %8381 = vmatprep.subr.mxu0 0.0
      %8382 = vmatpush1.msra.mxu0 0.0
      %8383 = vmatprep.subr.mxu0 0.0
      %8384 = vmatpush1.msra.mxu0 0.0
      %8385 = vmatprep.subr.mxu0 0.0
      %8386 = vmatpush1.msra.mxu0 0.0
      %8387 = vmatprep.subr.mxu0 0.0
      %8388 = vmatpush1.msra.mxu0 0.0
      %8389 = vmatprep.subr.mxu0 0.0
      %8390 = vmatpush1.msra.mxu0 %v8369
      %8391 = vmatprep.subr.mxu0 0.0
      %8392 = vmatpush1.msra.mxu0 %v8368
      %8393 = vmatprep.subr.mxu0 0.0
      %8394 = vmatpush1.msra.mxu0 %v8367
      %8395 = vmatprep.subr.mxu0 0.0
      %8396 = vmatpush1.msra.mxu0 %v8366
      %8397 = vmatprep.subr.mxu0 0.0
      %8398 = vmatpush1.msra.mxu0 %v8365
      %8399 = vmatprep.subr.mxu0 0.0
      %8400 = vmatpush1.msra.mxu0 %v8364
      %8401 = vmatprep.subr.mxu0 0.0
      %8402 = vmatpush1.msra.mxu0 %v8363
      %8403 = vmatprep.subr.mxu0 0.0
      %8404 = vmatpush1.msra.mxu0 %v8362
      %8405 = vmatprep.subr.mxu0 0.0
      %8406 = vmatpush2.msra.mxu0 0.0
      %8407 = vmatprep.subr.mxu0 0.0
      %8408 = vmatpush2.msra.mxu0 0.0
      %8409 = vmatprep.subr.mxu0 0.0
      %8410 = vmatpush2.msra.mxu0 0.0
      %8411 = vmatprep.subr.mxu0 0.0
      %8412 = vmatpush2.msra.mxu0 0.0
      %8413 = vmatprep.subr.mxu0 0.0
      %8414 = vmatpush2.msra.mxu0 0.0
      %8415 = vmatprep.subr.mxu0 0.0
      %8416 = vmatpush2.msra.mxu0 0.0
      %8417 = vmatprep.subr.mxu0 0.0
      %8418 = vmatpush2.msra.mxu0 0.0
      %8419 = vmatprep.subr.mxu0 0.0
      %8420 = vmatpush2.msra.mxu0 0.0
      %8421 = vmatprep.subr.mxu0 0.0
      %8422 = vmatpush2.msra.mxu0 0.0
      %8423 = vmatprep.subr.mxu0 0.0
      %8424 = vmatpush2.msra.mxu0 0.0
      %8425 = vmatprep.subr.mxu0 0.0
      %8426 = vmatpush2.msra.mxu0 0.0
      %8427 = vmatprep.subr.mxu0 0.0
      %8428 = vmatpush2.msra.mxu0 0.0
      %8429 = vmatprep.subr.mxu0 0.0
      %8430 = vmatpush2.msra.mxu0 0.0
      %8431 = vmatprep.subr.mxu0 0.0
      %8432 = vmatpush2.msra.mxu0 0.0
      %8433 = vmatprep.subr.mxu0 0.0
      %8434 = vmatpush2.msra.mxu0 0.0
      %8435 = vmatprep.subr.mxu0 0.0
      %8436 = vmatpush2.msra.mxu0 0.0
      %8437 = vmatprep.mubr.f32.mxu0 0.0
      %8438 = vmatmul.mubr.f32.gmra.mxu0 %v8371
      %v8439 = vpop.f32.mrf.mxu0
      %v8440 = vadd.f32 0.0, %v8439
      %v8441 = vpop.f32.mrf.mxu0
      %8442 = vdwg.mxu0
      %v8443 = vmax.f32 %v8440, 0.0
      %v8444 = vld [vmem:[%s9] sm:$0xf]
      %vm8445 = vcmask 31744
      %v8447 = vsel %vm8445, %v8443, 0
      %vm8449 = vcmask 1043456
      %v8451 = vsel %vm8449, %v8444, 0
      %8453 = vmatprep.subr.mxu0 0.0
      %8454 = vmatpush1.msra.mxu0 0.0
      %8455 = vmatprep.subr.mxu0 0.0
      %8456 = vmatpush1.msra.mxu0 0.0
      %8457 = vmatprep.subr.mxu0 0.0
      %8458 = vmatpush1.msra.mxu0 0.0
      %8459 = vmatprep.subr.mxu0 0.0
      %8460 = vmatpush1.msra.mxu0 0.0
      %8461 = vmatprep.subr.mxu0 0.0
      %8462 = vmatpush1.msra.mxu0 0.0
      %8463 = vmatprep.subr.mxu0 0.0
      %8464 = vmatpush1.msra.mxu0 0.0
      %8465 = vmatprep.subr.mxu0 0.0
      %8466 = vmatpush1.msra.mxu0 0.0
      %8467 = vmatprep.subr.mxu0 0.0
      %8468 = vmatpush1.msra.mxu0 0.0
      %8469 = vmatprep.subr.mxu0 0.0
      %8470 = vmatpush1.msra.mxu0 0.0
      %8471 = vmatprep.subr.mxu0 0.0
      %8472 = vmatpush1.msra.mxu0 0.0
      %8473 = vmatprep.subr.mxu0 0.0
      %8474 = vmatpush1.msra.mxu0 0.0
      %8475 = vmatprep.subr.mxu0 0.0
      %8476 = vmatpush1.msra.mxu0 0.0
      %8477 = vmatprep.subr.mxu0 0.0
      %8478 = vmatpush1.msra.mxu0 0.0
      %8479 = vmatprep.subr.mxu0 0.0
      %8480 = vmatpush1.msra.mxu0 0.0
      %8481 = vmatprep.subr.mxu0 0.0
      %8482 = vmatpush1.msra.mxu0 0.0
      %8483 = vmatprep.subr.mxu0 0.0
      %8484 = vmatpush1.msra.mxu0 %v8451
      %8485 = vmatprep.subr.mxu0 0.0
      %8486 = vmatpush2.msra.mxu0 0.0
      %8487 = vmatprep.subr.mxu0 0.0
      %8488 = vmatpush2.msra.mxu0 0.0
      %8489 = vmatprep.subr.mxu0 0.0
      %8490 = vmatpush2.msra.mxu0 0.0
      %8491 = vmatprep.subr.mxu0 0.0
      %8492 = vmatpush2.msra.mxu0 0.0
      %8493 = vmatprep.subr.mxu0 0.0
      %8494 = vmatpush2.msra.mxu0 0.0
      %8495 = vmatprep.subr.mxu0 0.0
      %8496 = vmatpush2.msra.mxu0 0.0
      %8497 = vmatprep.subr.mxu0 0.0
      %8498 = vmatpush2.msra.mxu0 0.0
      %8499 = vmatprep.subr.mxu0 0.0
      %8500 = vmatpush2.msra.mxu0 0.0
      %8501 = vmatprep.subr.mxu0 0.0
      %8502 = vmatpush2.msra.mxu0 0.0
      %8503 = vmatprep.subr.mxu0 0.0
      %8504 = vmatpush2.msra.mxu0 0.0
      %8505 = vmatprep.subr.mxu0 0.0
      %8506 = vmatpush2.msra.mxu0 0.0
      %8507 = vmatprep.subr.mxu0 0.0
      %8508 = vmatpush2.msra.mxu0 0.0
      %8509 = vmatprep.subr.mxu0 0.0
      %8510 = vmatpush2.msra.mxu0 0.0
      %8511 = vmatprep.subr.mxu0 0.0
      %8512 = vmatpush2.msra.mxu0 0.0
      %8513 = vmatprep.subr.mxu0 0.0
      %8514 = vmatpush2.msra.mxu0 0.0
      %8515 = vmatprep.subr.mxu0 0.0
      %8516 = vmatpush2.msra.mxu0 0.0
      %8517 = vmatprep.mubr.f32.mxu0 0.0
      %8518 = vmatmul.mubr.f32.gmra.mxu0 %v8447
      %v8519 = vpop.f32.mrf.mxu0
      %v8520 = vadd.f32 0.0, %v8519
      %v8521 = vpop.f32.mrf.mxu0
      %8522 = vdwg.mxu0
      %v8523 = vsub.f32 0.0, %v8520
      %v8524 = vmul.f32 %v8523, 1.442695
      %v8525 = vpow.pop %v8524
      %v8526 = vadd.f32 %v8525, 1.0
      %v8527 = vrcp.pop %v8526
      %v8528 = vmul.f32 1.0, %v8527
      %v8529 = vlaneseq
      %v8530 = vshrl.u32 %v8529, 7
      %v8531 = vsub.s32 0, %v8530
      %v8532 = vrot.slane %v8528, %v8531
      %v8533 = vmul.f32 %v8116, %v8532
      %v8534 = vmul.f32 %v8117, %v8532
      %v8535 = vmul.f32 %v8118, %v8532
      %v8536 = vmul.f32 %v8119, %v8532
      %v8537 = vmul.f32 %v8120, %v8532
      %v8538 = vmul.f32 %v8121, %v8532
      %v8539 = vmul.f32 %v8122, %v8532
      %v8540 = vmul.f32 %v8123, %v8532
      %v8541 = vmul.f32 %v8124, %v8532
      %v8542 = vmul.f32 %v8125, %v8532
      %v8543 = vmul.f32 %v8126, %v8532
      %v8544 = vmul.f32 %v8127, %v8532
      %v8545 = vmul.f32 %v8128, %v8532
      %v8546 = vmul.f32 %v8129, %v8532
      %v8547 = vmul.f32 %v8130, %v8532
      %v8548 = vmul.f32 %v8131, %v8532
      %v8549 = vmul.f32 %v8132, %v8532
      %v8550 = vmul.f32 %v8133, %v8532
      %v8551 = vmul.f32 %v8134, %v8532
      %v8552 = vmul.f32 %v8135, %v8532
      %v8553 = vmul.f32 %v8136, %v8532
      %v8554 = vmul.f32 %v8137, %v8532
      %v8555 = vmul.f32 %v8138, %v8532
      %v8556 = vmul.f32 %v8139, %v8532
      %8557 = vst.msk [vmem:[#allocation3] sm:$0xff] %vm701, %v8533
      %8558 = vst.msk [vmem:[#allocation3 + $0x8] sm:$0xff] %vm701, %v8534
      %8559 = vst.msk [vmem:[#allocation3 + $0x10] sm:$0xff] %vm701, %v8535
      %8560 = vst.msk [vmem:[#allocation3 + $0x18] sm:$0xff] %vm701, %v8536
      %8561 = vst.msk [vmem:[#allocation3 + $0x20] sm:$0xff] %vm701, %v8537
      %8562 = vst.msk [vmem:[#allocation3 + $0x28] sm:$0xff] %vm701, %v8538
      %8563 = vst.msk [vmem:[#allocation3 + $0x30] sm:$0xff] %vm701, %v8539
      %8564 = vst.msk [vmem:[#allocation3 + $0x38] sm:$0xff] %vm701, %v8540
      %8565 = vst.msk [vmem:[#allocation3 + $0x40] sm:$0xff] %vm701, %v8541
      %8566 = vst.msk [vmem:[#allocation3 + $0x48] sm:$0xff] %vm701, %v8542
      %8567 = vst.msk [vmem:[#allocation3 + $0x50] sm:$0xff] %vm701, %v8543
      %8568 = vst.msk [vmem:[#allocation3 + $0x58] sm:$0xff] %vm701, %v8544
      %8569 = vst.msk [vmem:[#allocation3 + $0x60] sm:$0xff] %vm701, %v8545
      %8570 = vst.msk [vmem:[#allocation3 + $0x68] sm:$0xff] %vm701, %v8546
      %8571 = vst.msk [vmem:[#allocation3 + $0x70] sm:$0xff] %vm701, %v8547
      %8572 = vst.msk [vmem:[#allocation3 + $0x78] sm:$0xff] %vm701, %v8548
      %8573 = vst.msk [vmem:[#allocation3 + $0x80] sm:$0xff] %vm701, %v8549
      %8574 = vst.msk [vmem:[#allocation3 + $0x88] sm:$0xff] %vm701, %v8550
      %8575 = vst.msk [vmem:[#allocation3 + $0x90] sm:$0xff] %vm701, %v8551
      %8576 = vst.msk [vmem:[#allocation3 + $0x98] sm:$0xff] %vm701, %v8552
      %8577 = vst.msk [vmem:[#allocation3 + $0xa0] sm:$0xff] %vm701, %v8553
      %8578 = vst.msk [vmem:[#allocation3 + $0xa8] sm:$0xff] %vm701, %v8554
      %8579 = vst.msk [vmem:[#allocation3 + $0xb0] sm:$0xff] %vm701, %v8555
      %8580 = vst.msk [vmem:[#allocation3 + $0xb8] sm:$0xff] %vm701, %v8556
      %v8581 = vld [vmem:[%s11] sm:$0xff]
      %v8582 = vld [vmem:[%s11 + $0x8] sm:$0xff]
      %v8583 = vld [vmem:[#allocation3] sm:$0xff]
      %v8584 = vld [vmem:[#allocation3 + $0x8] sm:$0xf]
      %vm8585 = vcmask 97280
      %v8587 = vsel %vm8585, %v8581, 0
      %v8590 = vsel %vm8585, %v8582, 0
      %v8593 = vsel %vm8449, %v8584, 0
      %8595 = vmatprep.subr.mxu0 0.0
      %8596 = vmatpush1.msra.mxu0 0.0
      %8597 = vmatprep.subr.mxu0 0.0
      %8598 = vmatpush1.msra.mxu0 0.0
      %8599 = vmatprep.subr.mxu0 0.0
      %8600 = vmatpush1.msra.mxu0 0.0
      %8601 = vmatprep.subr.mxu0 0.0
      %8602 = vmatpush1.msra.mxu0 0.0
      %8603 = vmatprep.subr.mxu0 0.0
      %8604 = vmatpush1.msra.mxu0 0.0
      %8605 = vmatprep.subr.mxu0 0.0
      %8606 = vmatpush1.msra.mxu0 0.0
      %8607 = vmatprep.subr.mxu0 0.0
      %8608 = vmatpush1.msra.mxu0 0.0
      %8609 = vmatprep.subr.mxu0 0.0
      %8610 = vmatpush1.msra.mxu0 0.0
      %8611 = vmatprep.subr.mxu0 0.0
      %8612 = vmatpush1.msra.mxu0 0.0
      %8613 = vmatprep.subr.mxu0 0.0
      %8614 = vmatpush1.msra.mxu0 0.0
      %8615 = vmatprep.subr.mxu0 0.0
      %8616 = vmatpush1.msra.mxu0 0.0
      %8617 = vmatprep.subr.mxu0 0.0
      %8618 = vmatpush1.msra.mxu0 0.0
      %8619 = vmatprep.subr.mxu0 0.0
      %8620 = vmatpush1.msra.mxu0 0.0
      %8621 = vmatprep.subr.mxu0 0.0
      %8622 = vmatpush1.msra.mxu0 0.0
      %8623 = vmatprep.subr.mxu0 0.0
      %8624 = vmatpush1.msra.mxu0 %v8593
      %8625 = vmatprep.subr.mxu0 0.0
      %8626 = vmatpush1.msra.mxu0 %v8583
      %8627 = vmatprep.subr.mxu0 0.0
      %8628 = vmatpush2.msra.mxu0 0.0
      %8629 = vmatprep.subr.mxu0 0.0
      %8630 = vmatpush2.msra.mxu0 0.0
      %8631 = vmatprep.subr.mxu0 0.0
      %8632 = vmatpush2.msra.mxu0 0.0
      %8633 = vmatprep.subr.mxu0 0.0
      %8634 = vmatpush2.msra.mxu0 0.0
      %8635 = vmatprep.subr.mxu0 0.0
      %8636 = vmatpush2.msra.mxu0 0.0
      %8637 = vmatprep.subr.mxu0 0.0
      %8638 = vmatpush2.msra.mxu0 0.0
      %8639 = vmatprep.subr.mxu0 0.0
      %8640 = vmatpush2.msra.mxu0 0.0
      %8641 = vmatprep.subr.mxu0 0.0
      %8642 = vmatpush2.msra.mxu0 0.0
      %8643 = vmatprep.subr.mxu0 0.0
      %8644 = vmatpush2.msra.mxu0 0.0
      %8645 = vmatprep.subr.mxu0 0.0
      %8646 = vmatpush2.msra.mxu0 0.0
      %8647 = vmatprep.subr.mxu0 0.0
      %8648 = vmatpush2.msra.mxu0 0.0
      %8649 = vmatprep.subr.mxu0 0.0
      %8650 = vmatpush2.msra.mxu0 0.0
      %8651 = vmatprep.subr.mxu0 0.0
      %8652 = vmatpush2.msra.mxu0 0.0
      %8653 = vmatprep.subr.mxu0 0.0
      %8654 = vmatpush2.msra.mxu0 0.0
      %8655 = vmatprep.subr.mxu0 0.0
      %8656 = vmatpush2.msra.mxu0 0.0
      %8657 = vmatprep.subr.mxu0 0.0
      %8658 = vmatpush2.msra.mxu0 0.0
      %8659 = vmatprep.mubr.f32.mxu0 0.0
      %8660 = vmatmul.mubr.f32.gmra.mxu0 %v8587
      %v8661 = vpop.f32.mrf.mxu0
      %v8662 = vadd.f32 0.0, %v8661
      %v8663 = vpop.f32.mrf.mxu0
      %8664 = vmatprep.mubr.f32.mxu0 0.0
      %8665 = vmatmul.mubr.f32.gmra.mxu0 %v8590
      %v8666 = vpop.f32.mrf.mxu0
      %v8667 = vadd.f32 0.0, %v8666
      %v8668 = vpop.f32.mrf.mxu0
      %8669 = vdwg.mxu0
      %v8670 = vld [vmem:[#allocation3 + $0x10] sm:$0xff]
      %v8671 = vld [vmem:[#allocation3 + $0x18] sm:$0xf]
      %v8673 = vsel %vm8449, %v8671, 0
      %8675 = vmatprep.subr.mxu0 0.0
      %8676 = vmatpush1.msra.mxu0 0.0
      %8677 = vmatprep.subr.mxu0 0.0
      %8678 = vmatpush1.msra.mxu0 0.0
      %8679 = vmatprep.subr.mxu0 0.0
      %8680 = vmatpush1.msra.mxu0 0.0
      %8681 = vmatprep.subr.mxu0 0.0
      %8682 = vmatpush1.msra.mxu0 0.0
      %8683 = vmatprep.subr.mxu0 0.0
      %8684 = vmatpush1.msra.mxu0 0.0
      %8685 = vmatprep.subr.mxu0 0.0
      %8686 = vmatpush1.msra.mxu0 0.0
      %8687 = vmatprep.subr.mxu0 0.0
      %8688 = vmatpush1.msra.mxu0 0.0
      %8689 = vmatprep.subr.mxu0 0.0
      %8690 = vmatpush1.msra.mxu0 0.0
      %8691 = vmatprep.subr.mxu0 0.0
      %8692 = vmatpush1.msra.mxu0 0.0
      %8693 = vmatprep.subr.mxu0 0.0
      %8694 = vmatpush1.msra.mxu0 0.0
      %8695 = vmatprep.subr.mxu0 0.0
      %8696 = vmatpush1.msra.mxu0 0.0
      %8697 = vmatprep.subr.mxu0 0.0
      %8698 = vmatpush1.msra.mxu0 0.0
      %8699 = vmatprep.subr.mxu0 0.0
      %8700 = vmatpush1.msra.mxu0 0.0
      %8701 = vmatprep.subr.mxu0 0.0
      %8702 = vmatpush1.msra.mxu0 0.0
      %8703 = vmatprep.subr.mxu0 0.0
      %8704 = vmatpush1.msra.mxu0 %v8673
      %8705 = vmatprep.subr.mxu0 0.0
      %8706 = vmatpush1.msra.mxu0 %v8670
      %8707 = vmatprep.subr.mxu0 0.0
      %8708 = vmatpush2.msra.mxu0 0.0
      %8709 = vmatprep.subr.mxu0 0.0
      %8710 = vmatpush2.msra.mxu0 0.0
      %8711 = vmatprep.subr.mxu0 0.0
      %8712 = vmatpush2.msra.mxu0 0.0
      %8713 = vmatprep.subr.mxu0 0.0
      %8714 = vmatpush2.msra.mxu0 0.0
      %8715 = vmatprep.subr.mxu0 0.0
      %8716 = vmatpush2.msra.mxu0 0.0
      %8717 = vmatprep.subr.mxu0 0.0
      %8718 = vmatpush2.msra.mxu0 0.0
      %8719 = vmatprep.subr.mxu0 0.0
      %8720 = vmatpush2.msra.mxu0 0.0
      %8721 = vmatprep.subr.mxu0 0.0
      %8722 = vmatpush2.msra.mxu0 0.0
      %8723 = vmatprep.subr.mxu0 0.0
      %8724 = vmatpush2.msra.mxu0 0.0
      %8725 = vmatprep.subr.mxu0 0.0
      %8726 = vmatpush2.msra.mxu0 0.0
      %8727 = vmatprep.subr.mxu0 0.0
      %8728 = vmatpush2.msra.mxu0 0.0
      %8729 = vmatprep.subr.mxu0 0.0
      %8730 = vmatpush2.msra.mxu0 0.0
      %8731 = vmatprep.subr.mxu0 0.0
      %8732 = vmatpush2.msra.mxu0 0.0
      %8733 = vmatprep.subr.mxu0 0.0
      %8734 = vmatpush2.msra.mxu0 0.0
      %8735 = vmatprep.subr.mxu0 0.0
      %8736 = vmatpush2.msra.mxu0 0.0
      %8737 = vmatprep.subr.mxu0 0.0
      %8738 = vmatpush2.msra.mxu0 0.0
      %8739 = vmatprep.mubr.f32.mxu0 0.0
      %8740 = vmatmul.mubr.f32.gmra.mxu0 %v8587
      %v8741 = vpop.f32.mrf.mxu0
      %v8742 = vadd.f32 0.0, %v8741
      %v8743 = vpop.f32.mrf.mxu0
      %8744 = vmatprep.mubr.f32.mxu0 0.0
      %8745 = vmatmul.mubr.f32.gmra.mxu0 %v8590
      %v8746 = vpop.f32.mrf.mxu0
      %v8747 = vadd.f32 0.0, %v8746
      %v8748 = vpop.f32.mrf.mxu0
      %8749 = vdwg.mxu0
      %v8750 = vld [vmem:[#allocation3 + $0x20] sm:$0xff]
      %v8751 = vld [vmem:[#allocation3 + $0x28] sm:$0xf]
      %v8753 = vsel %vm8449, %v8751, 0
      %8755 = vmatprep.subr.mxu0 0.0
      %8756 = vmatpush1.msra.mxu0 0.0
      %8757 = vmatprep.subr.mxu0 0.0
      %8758 = vmatpush1.msra.mxu0 0.0
      %8759 = vmatprep.subr.mxu0 0.0
      %8760 = vmatpush1.msra.mxu0 0.0
      %8761 = vmatprep.subr.mxu0 0.0
      %8762 = vmatpush1.msra.mxu0 0.0
      %8763 = vmatprep.subr.mxu0 0.0
      %8764 = vmatpush1.msra.mxu0 0.0
      %8765 = vmatprep.subr.mxu0 0.0
      %8766 = vmatpush1.msra.mxu0 0.0
      %8767 = vmatprep.subr.mxu0 0.0
      %8768 = vmatpush1.msra.mxu0 0.0
      %8769 = vmatprep.subr.mxu0 0.0
      %8770 = vmatpush1.msra.mxu0 0.0
      %8771 = vmatprep.subr.mxu0 0.0
      %8772 = vmatpush1.msra.mxu0 0.0
      %8773 = vmatprep.subr.mxu0 0.0
      %8774 = vmatpush1.msra.mxu0 0.0
      %8775 = vmatprep.subr.mxu0 0.0
      %8776 = vmatpush1.msra.mxu0 0.0
      %8777 = vmatprep.subr.mxu0 0.0
      %8778 = vmatpush1.msra.mxu0 0.0
      %8779 = vmatprep.subr.mxu0 0.0
      %8780 = vmatpush1.msra.mxu0 0.0
      %8781 = vmatprep.subr.mxu0 0.0
      %8782 = vmatpush1.msra.mxu0 0.0
      %8783 = vmatprep.subr.mxu0 0.0
      %8784 = vmatpush1.msra.mxu0 %v8753
      %8785 = vmatprep.subr.mxu0 0.0
      %8786 = vmatpush1.msra.mxu0 %v8750
      %8787 = vmatprep.subr.mxu0 0.0
      %8788 = vmatpush2.msra.mxu0 0.0
      %8789 = vmatprep.subr.mxu0 0.0
      %8790 = vmatpush2.msra.mxu0 0.0
      %8791 = vmatprep.subr.mxu0 0.0
      %8792 = vmatpush2.msra.mxu0 0.0
      %8793 = vmatprep.subr.mxu0 0.0
      %8794 = vmatpush2.msra.mxu0 0.0
      %8795 = vmatprep.subr.mxu0 0.0
      %8796 = vmatpush2.msra.mxu0 0.0
      %8797 = vmatprep.subr.mxu0 0.0
      %8798 = vmatpush2.msra.mxu0 0.0
      %8799 = vmatprep.subr.mxu0 0.0
      %8800 = vmatpush2.msra.mxu0 0.0
      %8801 = vmatprep.subr.mxu0 0.0
      %8802 = vmatpush2.msra.mxu0 0.0
      %8803 = vmatprep.subr.mxu0 0.0
      %8804 = vmatpush2.msra.mxu0 0.0
      %8805 = vmatprep.subr.mxu0 0.0
      %8806 = vmatpush2.msra.mxu0 0.0
      %8807 = vmatprep.subr.mxu0 0.0
      %8808 = vmatpush2.msra.mxu0 0.0
      %8809 = vmatprep.subr.mxu0 0.0
      %8810 = vmatpush2.msra.mxu0 0.0
      %8811 = vmatprep.subr.mxu0 0.0
      %8812 = vmatpush2.msra.mxu0 0.0
      %8813 = vmatprep.subr.mxu0 0.0
      %8814 = vmatpush2.msra.mxu0 0.0
      %8815 = vmatprep.subr.mxu0 0.0
      %8816 = vmatpush2.msra.mxu0 0.0
      %8817 = vmatprep.subr.mxu0 0.0
      %8818 = vmatpush2.msra.mxu0 0.0
      %8819 = vmatprep.mubr.f32.mxu0 0.0
      %8820 = vmatmul.mubr.f32.gmra.mxu0 %v8587
      %v8821 = vpop.f32.mrf.mxu0
      %v8822 = vadd.f32 0.0, %v8821
      %v8823 = vpop.f32.mrf.mxu0
      %8824 = vmatprep.mubr.f32.mxu0 0.0
      %8825 = vmatmul.mubr.f32.gmra.mxu0 %v8590
      %v8826 = vpop.f32.mrf.mxu0
      %v8827 = vadd.f32 0.0, %v8826
      %v8828 = vpop.f32.mrf.mxu0
      %8829 = vdwg.mxu0
      %v8830 = vld [vmem:[#allocation3 + $0x30] sm:$0xff]
      %v8831 = vld [vmem:[#allocation3 + $0x38] sm:$0xf]
      %v8833 = vsel %vm8449, %v8831, 0
      %8835 = vmatprep.subr.mxu0 0.0
      %8836 = vmatpush1.msra.mxu0 0.0
      %8837 = vmatprep.subr.mxu0 0.0
      %8838 = vmatpush1.msra.mxu0 0.0
      %8839 = vmatprep.subr.mxu0 0.0
      %8840 = vmatpush1.msra.mxu0 0.0
      %8841 = vmatprep.subr.mxu0 0.0
      %8842 = vmatpush1.msra.mxu0 0.0
      %8843 = vmatprep.subr.mxu0 0.0
      %8844 = vmatpush1.msra.mxu0 0.0
      %8845 = vmatprep.subr.mxu0 0.0
      %8846 = vmatpush1.msra.mxu0 0.0
      %8847 = vmatprep.subr.mxu0 0.0
      %8848 = vmatpush1.msra.mxu0 0.0
      %8849 = vmatprep.subr.mxu0 0.0
      %8850 = vmatpush1.msra.mxu0 0.0
      %8851 = vmatprep.subr.mxu0 0.0
      %8852 = vmatpush1.msra.mxu0 0.0
      %8853 = vmatprep.subr.mxu0 0.0
      %8854 = vmatpush1.msra.mxu0 0.0
      %8855 = vmatprep.subr.mxu0 0.0
      %8856 = vmatpush1.msra.mxu0 0.0
      %8857 = vmatprep.subr.mxu0 0.0
      %8858 = vmatpush1.msra.mxu0 0.0
      %8859 = vmatprep.subr.mxu0 0.0
      %8860 = vmatpush1.msra.mxu0 0.0
      %8861 = vmatprep.subr.mxu0 0.0
      %8862 = vmatpush1.msra.mxu0 0.0
      %8863 = vmatprep.subr.mxu0 0.0
      %8864 = vmatpush1.msra.mxu0 %v8833
      %8865 = vmatprep.subr.mxu0 0.0
      %8866 = vmatpush1.msra.mxu0 %v8830
      %8867 = vmatprep.subr.mxu0 0.0
      %8868 = vmatpush2.msra.mxu0 0.0
      %8869 = vmatprep.subr.mxu0 0.0
      %8870 = vmatpush2.msra.mxu0 0.0
      %8871 = vmatprep.subr.mxu0 0.0
      %8872 = vmatpush2.msra.mxu0 0.0
      %8873 = vmatprep.subr.mxu0 0.0
      %8874 = vmatpush2.msra.mxu0 0.0
      %8875 = vmatprep.subr.mxu0 0.0
      %8876 = vmatpush2.msra.mxu0 0.0
      %8877 = vmatprep.subr.mxu0 0.0
      %8878 = vmatpush2.msra.mxu0 0.0
      %8879 = vmatprep.subr.mxu0 0.0
      %8880 = vmatpush2.msra.mxu0 0.0
      %8881 = vmatprep.subr.mxu0 0.0
      %8882 = vmatpush2.msra.mxu0 0.0
      %8883 = vmatprep.subr.mxu0 0.0
      %8884 = vmatpush2.msra.mxu0 0.0
      %8885 = vmatprep.subr.mxu0 0.0
      %8886 = vmatpush2.msra.mxu0 0.0
      %8887 = vmatprep.subr.mxu0 0.0
      %8888 = vmatpush2.msra.mxu0 0.0
      %8889 = vmatprep.subr.mxu0 0.0
      %8890 = vmatpush2.msra.mxu0 0.0
      %8891 = vmatprep.subr.mxu0 0.0
      %8892 = vmatpush2.msra.mxu0 0.0
      %8893 = vmatprep.subr.mxu0 0.0
      %8894 = vmatpush2.msra.mxu0 0.0
      %8895 = vmatprep.subr.mxu0 0.0
      %8896 = vmatpush2.msra.mxu0 0.0
      %8897 = vmatprep.subr.mxu0 0.0
      %8898 = vmatpush2.msra.mxu0 0.0
      %8899 = vmatprep.mubr.f32.mxu0 0.0
      %8900 = vmatmul.mubr.f32.gmra.mxu0 %v8587
      %v8901 = vpop.f32.mrf.mxu0
      %v8902 = vadd.f32 0.0, %v8901
      %v8903 = vpop.f32.mrf.mxu0
      %8904 = vmatprep.mubr.f32.mxu0 0.0
      %8905 = vmatmul.mubr.f32.gmra.mxu0 %v8590
      %v8906 = vpop.f32.mrf.mxu0
      %v8907 = vadd.f32 0.0, %v8906
      %v8908 = vpop.f32.mrf.mxu0
      %8909 = vdwg.mxu0
      %v8910 = vld [vmem:[#allocation3 + $0x40] sm:$0xff]
      %v8911 = vld [vmem:[#allocation3 + $0x48] sm:$0xf]
      %v8913 = vsel %vm8449, %v8911, 0
      %8915 = vmatprep.subr.mxu0 0.0
      %8916 = vmatpush1.msra.mxu0 0.0
      %8917 = vmatprep.subr.mxu0 0.0
      %8918 = vmatpush1.msra.mxu0 0.0
      %8919 = vmatprep.subr.mxu0 0.0
      %8920 = vmatpush1.msra.mxu0 0.0
      %8921 = vmatprep.subr.mxu0 0.0
      %8922 = vmatpush1.msra.mxu0 0.0
      %8923 = vmatprep.subr.mxu0 0.0
      %8924 = vmatpush1.msra.mxu0 0.0
      %8925 = vmatprep.subr.mxu0 0.0
      %8926 = vmatpush1.msra.mxu0 0.0
      %8927 = vmatprep.subr.mxu0 0.0
      %8928 = vmatpush1.msra.mxu0 0.0
      %8929 = vmatprep.subr.mxu0 0.0
      %8930 = vmatpush1.msra.mxu0 0.0
      %8931 = vmatprep.subr.mxu0 0.0
      %8932 = vmatpush1.msra.mxu0 0.0
      %8933 = vmatprep.subr.mxu0 0.0
      %8934 = vmatpush1.msra.mxu0 0.0
      %8935 = vmatprep.subr.mxu0 0.0
      %8936 = vmatpush1.msra.mxu0 0.0
      %8937 = vmatprep.subr.mxu0 0.0
      %8938 = vmatpush1.msra.mxu0 0.0
      %8939 = vmatprep.subr.mxu0 0.0
      %8940 = vmatpush1.msra.mxu0 0.0
      %8941 = vmatprep.subr.mxu0 0.0
      %8942 = vmatpush1.msra.mxu0 0.0
      %8943 = vmatprep.subr.mxu0 0.0
      %8944 = vmatpush1.msra.mxu0 %v8913
      %8945 = vmatprep.subr.mxu0 0.0
      %8946 = vmatpush1.msra.mxu0 %v8910
      %8947 = vmatprep.subr.mxu0 0.0
      %8948 = vmatpush2.msra.mxu0 0.0
      %8949 = vmatprep.subr.mxu0 0.0
      %8950 = vmatpush2.msra.mxu0 0.0
      %8951 = vmatprep.subr.mxu0 0.0
      %8952 = vmatpush2.msra.mxu0 0.0
      %8953 = vmatprep.subr.mxu0 0.0
      %8954 = vmatpush2.msra.mxu0 0.0
      %8955 = vmatprep.subr.mxu0 0.0
      %8956 = vmatpush2.msra.mxu0 0.0
      %8957 = vmatprep.subr.mxu0 0.0
      %8958 = vmatpush2.msra.mxu0 0.0
      %8959 = vmatprep.subr.mxu0 0.0
      %8960 = vmatpush2.msra.mxu0 0.0
      %8961 = vmatprep.subr.mxu0 0.0
      %8962 = vmatpush2.msra.mxu0 0.0
      %8963 = vmatprep.subr.mxu0 0.0
      %8964 = vmatpush2.msra.mxu0 0.0
      %8965 = vmatprep.subr.mxu0 0.0
      %8966 = vmatpush2.msra.mxu0 0.0
      %8967 = vmatprep.subr.mxu0 0.0
      %8968 = vmatpush2.msra.mxu0 0.0
      %8969 = vmatprep.subr.mxu0 0.0
      %8970 = vmatpush2.msra.mxu0 0.0
      %8971 = vmatprep.subr.mxu0 0.0
      %8972 = vmatpush2.msra.mxu0 0.0
      %8973 = vmatprep.subr.mxu0 0.0
      %8974 = vmatpush2.msra.mxu0 0.0
      %8975 = vmatprep.subr.mxu0 0.0
      %8976 = vmatpush2.msra.mxu0 0.0
      %8977 = vmatprep.subr.mxu0 0.0
      %8978 = vmatpush2.msra.mxu0 0.0
      %8979 = vmatprep.mubr.f32.mxu0 0.0
      %8980 = vmatmul.mubr.f32.gmra.mxu0 %v8587
      %v8981 = vpop.f32.mrf.mxu0
      %v8982 = vadd.f32 0.0, %v8981
      %v8983 = vpop.f32.mrf.mxu0
      %8984 = vmatprep.mubr.f32.mxu0 0.0
      %8985 = vmatmul.mubr.f32.gmra.mxu0 %v8590
      %v8986 = vpop.f32.mrf.mxu0
      %v8987 = vadd.f32 0.0, %v8986
      %v8988 = vpop.f32.mrf.mxu0
      %8989 = vdwg.mxu0
      %v8990 = vld [vmem:[#allocation3 + $0x50] sm:$0xff]
      %v8991 = vld [vmem:[#allocation3 + $0x58] sm:$0xf]
      %v8993 = vsel %vm8449, %v8991, 0
      %8995 = vmatprep.subr.mxu0 0.0
      %8996 = vmatpush1.msra.mxu0 0.0
      %8997 = vmatprep.subr.mxu0 0.0
      %8998 = vmatpush1.msra.mxu0 0.0
      %8999 = vmatprep.subr.mxu0 0.0
      %9000 = vmatpush1.msra.mxu0 0.0
      %9001 = vmatprep.subr.mxu0 0.0
      %9002 = vmatpush1.msra.mxu0 0.0
      %9003 = vmatprep.subr.mxu0 0.0
      %9004 = vmatpush1.msra.mxu0 0.0
      %9005 = vmatprep.subr.mxu0 0.0
      %9006 = vmatpush1.msra.mxu0 0.0
      %9007 = vmatprep.subr.mxu0 0.0
      %9008 = vmatpush1.msra.mxu0 0.0
      %9009 = vmatprep.subr.mxu0 0.0
      %9010 = vmatpush1.msra.mxu0 0.0
      %9011 = vmatprep.subr.mxu0 0.0
      %9012 = vmatpush1.msra.mxu0 0.0
      %9013 = vmatprep.subr.mxu0 0.0
      %9014 = vmatpush1.msra.mxu0 0.0
      %9015 = vmatprep.subr.mxu0 0.0
      %9016 = vmatpush1.msra.mxu0 0.0
      %9017 = vmatprep.subr.mxu0 0.0
      %9018 = vmatpush1.msra.mxu0 0.0
      %9019 = vmatprep.subr.mxu0 0.0
      %9020 = vmatpush1.msra.mxu0 0.0
      %9021 = vmatprep.subr.mxu0 0.0
      %9022 = vmatpush1.msra.mxu0 0.0
      %9023 = vmatprep.subr.mxu0 0.0
      %9024 = vmatpush1.msra.mxu0 %v8993
      %9025 = vmatprep.subr.mxu0 0.0
      %9026 = vmatpush1.msra.mxu0 %v8990
      %9027 = vmatprep.subr.mxu0 0.0
      %9028 = vmatpush2.msra.mxu0 0.0
      %9029 = vmatprep.subr.mxu0 0.0
      %9030 = vmatpush2.msra.mxu0 0.0
      %9031 = vmatprep.subr.mxu0 0.0
      %9032 = vmatpush2.msra.mxu0 0.0
      %9033 = vmatprep.subr.mxu0 0.0
      %9034 = vmatpush2.msra.mxu0 0.0
      %9035 = vmatprep.subr.mxu0 0.0
      %9036 = vmatpush2.msra.mxu0 0.0
      %9037 = vmatprep.subr.mxu0 0.0
      %9038 = vmatpush2.msra.mxu0 0.0
      %9039 = vmatprep.subr.mxu0 0.0
      %9040 = vmatpush2.msra.mxu0 0.0
      %9041 = vmatprep.subr.mxu0 0.0
      %9042 = vmatpush2.msra.mxu0 0.0
      %9043 = vmatprep.subr.mxu0 0.0
      %9044 = vmatpush2.msra.mxu0 0.0
      %9045 = vmatprep.subr.mxu0 0.0
      %9046 = vmatpush2.msra.mxu0 0.0
      %9047 = vmatprep.subr.mxu0 0.0
      %9048 = vmatpush2.msra.mxu0 0.0
      %9049 = vmatprep.subr.mxu0 0.0
      %9050 = vmatpush2.msra.mxu0 0.0
      %9051 = vmatprep.subr.mxu0 0.0
      %9052 = vmatpush2.msra.mxu0 0.0
      %9053 = vmatprep.subr.mxu0 0.0
      %9054 = vmatpush2.msra.mxu0 0.0
      %9055 = vmatprep.subr.mxu0 0.0
      %9056 = vmatpush2.msra.mxu0 0.0
      %9057 = vmatprep.subr.mxu0 0.0
      %9058 = vmatpush2.msra.mxu0 0.0
      %9059 = vmatprep.mubr.f32.mxu0 0.0
      %9060 = vmatmul.mubr.f32.gmra.mxu0 %v8587
      %v9061 = vpop.f32.mrf.mxu0
      %v9062 = vadd.f32 0.0, %v9061
      %v9063 = vpop.f32.mrf.mxu0
      %9064 = vmatprep.mubr.f32.mxu0 0.0
      %9065 = vmatmul.mubr.f32.gmra.mxu0 %v8590
      %v9066 = vpop.f32.mrf.mxu0
      %v9067 = vadd.f32 0.0, %v9066
      %v9068 = vpop.f32.mrf.mxu0
      %9069 = vdwg.mxu0
      %v9070 = vld [vmem:[#allocation3 + $0x60] sm:$0xff]
      %v9071 = vld [vmem:[#allocation3 + $0x68] sm:$0xf]
      %v9073 = vsel %vm8449, %v9071, 0
      %9075 = vmatprep.subr.mxu0 0.0
      %9076 = vmatpush1.msra.mxu0 0.0
      %9077 = vmatprep.subr.mxu0 0.0
      %9078 = vmatpush1.msra.mxu0 0.0
      %9079 = vmatprep.subr.mxu0 0.0
      %9080 = vmatpush1.msra.mxu0 0.0
      %9081 = vmatprep.subr.mxu0 0.0
      %9082 = vmatpush1.msra.mxu0 0.0
      %9083 = vmatprep.subr.mxu0 0.0
      %9084 = vmatpush1.msra.mxu0 0.0
      %9085 = vmatprep.subr.mxu0 0.0
      %9086 = vmatpush1.msra.mxu0 0.0
      %9087 = vmatprep.subr.mxu0 0.0
      %9088 = vmatpush1.msra.mxu0 0.0
      %9089 = vmatprep.subr.mxu0 0.0
      %9090 = vmatpush1.msra.mxu0 0.0
      %9091 = vmatprep.subr.mxu0 0.0
      %9092 = vmatpush1.msra.mxu0 0.0
      %9093 = vmatprep.subr.mxu0 0.0
      %9094 = vmatpush1.msra.mxu0 0.0
      %9095 = vmatprep.subr.mxu0 0.0
      %9096 = vmatpush1.msra.mxu0 0.0
      %9097 = vmatprep.subr.mxu0 0.0
      %9098 = vmatpush1.msra.mxu0 0.0
      %9099 = vmatprep.subr.mxu0 0.0
      %9100 = vmatpush1.msra.mxu0 0.0
      %9101 = vmatprep.subr.mxu0 0.0
      %9102 = vmatpush1.msra.mxu0 0.0
      %9103 = vmatprep.subr.mxu0 0.0
      %9104 = vmatpush1.msra.mxu0 %v9073
      %9105 = vmatprep.subr.mxu0 0.0
      %9106 = vmatpush1.msra.mxu0 %v9070
      %9107 = vmatprep.subr.mxu0 0.0
      %9108 = vmatpush2.msra.mxu0 0.0
      %9109 = vmatprep.subr.mxu0 0.0
      %9110 = vmatpush2.msra.mxu0 0.0
      %9111 = vmatprep.subr.mxu0 0.0
      %9112 = vmatpush2.msra.mxu0 0.0
      %9113 = vmatprep.subr.mxu0 0.0
      %9114 = vmatpush2.msra.mxu0 0.0
      %9115 = vmatprep.subr.mxu0 0.0
      %9116 = vmatpush2.msra.mxu0 0.0
      %9117 = vmatprep.subr.mxu0 0.0
      %9118 = vmatpush2.msra.mxu0 0.0
      %9119 = vmatprep.subr.mxu0 0.0
      %9120 = vmatpush2.msra.mxu0 0.0
      %9121 = vmatprep.subr.mxu0 0.0
      %9122 = vmatpush2.msra.mxu0 0.0
      %9123 = vmatprep.subr.mxu0 0.0
      %9124 = vmatpush2.msra.mxu0 0.0
      %9125 = vmatprep.subr.mxu0 0.0
      %9126 = vmatpush2.msra.mxu0 0.0
      %9127 = vmatprep.subr.mxu0 0.0
      %9128 = vmatpush2.msra.mxu0 0.0
      %9129 = vmatprep.subr.mxu0 0.0
      %9130 = vmatpush2.msra.mxu0 0.0
      %9131 = vmatprep.subr.mxu0 0.0
      %9132 = vmatpush2.msra.mxu0 0.0
      %9133 = vmatprep.subr.mxu0 0.0
      %9134 = vmatpush2.msra.mxu0 0.0
      %9135 = vmatprep.subr.mxu0 0.0
      %9136 = vmatpush2.msra.mxu0 0.0
      %9137 = vmatprep.subr.mxu0 0.0
      %9138 = vmatpush2.msra.mxu0 0.0
      %9139 = vmatprep.mubr.f32.mxu0 0.0
      %9140 = vmatmul.mubr.f32.gmra.mxu0 %v8587
      %v9141 = vpop.f32.mrf.mxu0
      %v9142 = vadd.f32 0.0, %v9141
      %v9143 = vpop.f32.mrf.mxu0
      %9144 = vmatprep.mubr.f32.mxu0 0.0
      %9145 = vmatmul.mubr.f32.gmra.mxu0 %v8590
      %v9146 = vpop.f32.mrf.mxu0
      %v9147 = vadd.f32 0.0, %v9146
      %v9148 = vpop.f32.mrf.mxu0
      %9149 = vdwg.mxu0
      %v9150 = vld [vmem:[#allocation3 + $0x70] sm:$0xff]
      %v9151 = vld [vmem:[#allocation3 + $0x78] sm:$0xf]
      %v9153 = vsel %vm8449, %v9151, 0
      %9155 = vmatprep.subr.mxu0 0.0
      %9156 = vmatpush1.msra.mxu0 0.0
      %9157 = vmatprep.subr.mxu0 0.0
      %9158 = vmatpush1.msra.mxu0 0.0
      %9159 = vmatprep.subr.mxu0 0.0
      %9160 = vmatpush1.msra.mxu0 0.0
      %9161 = vmatprep.subr.mxu0 0.0
      %9162 = vmatpush1.msra.mxu0 0.0
      %9163 = vmatprep.subr.mxu0 0.0
      %9164 = vmatpush1.msra.mxu0 0.0
      %9165 = vmatprep.subr.mxu0 0.0
      %9166 = vmatpush1.msra.mxu0 0.0
      %9167 = vmatprep.subr.mxu0 0.0
      %9168 = vmatpush1.msra.mxu0 0.0
      %9169 = vmatprep.subr.mxu0 0.0
      %9170 = vmatpush1.msra.mxu0 0.0
      %9171 = vmatprep.subr.mxu0 0.0
      %9172 = vmatpush1.msra.mxu0 0.0
      %9173 = vmatprep.subr.mxu0 0.0
      %9174 = vmatpush1.msra.mxu0 0.0
      %9175 = vmatprep.subr.mxu0 0.0
      %9176 = vmatpush1.msra.mxu0 0.0
      %9177 = vmatprep.subr.mxu0 0.0
      %9178 = vmatpush1.msra.mxu0 0.0
      %9179 = vmatprep.subr.mxu0 0.0
      %9180 = vmatpush1.msra.mxu0 0.0
      %9181 = vmatprep.subr.mxu0 0.0
      %9182 = vmatpush1.msra.mxu0 0.0
      %9183 = vmatprep.subr.mxu0 0.0
      %9184 = vmatpush1.msra.mxu0 %v9153
      %9185 = vmatprep.subr.mxu0 0.0
      %9186 = vmatpush1.msra.mxu0 %v9150
      %9187 = vmatprep.subr.mxu0 0.0
      %9188 = vmatpush2.msra.mxu0 0.0
      %9189 = vmatprep.subr.mxu0 0.0
      %9190 = vmatpush2.msra.mxu0 0.0
      %9191 = vmatprep.subr.mxu0 0.0
      %9192 = vmatpush2.msra.mxu0 0.0
      %9193 = vmatprep.subr.mxu0 0.0
      %9194 = vmatpush2.msra.mxu0 0.0
      %9195 = vmatprep.subr.mxu0 0.0
      %9196 = vmatpush2.msra.mxu0 0.0
      %9197 = vmatprep.subr.mxu0 0.0
      %9198 = vmatpush2.msra.mxu0 0.0
      %9199 = vmatprep.subr.mxu0 0.0
      %9200 = vmatpush2.msra.mxu0 0.0
      %9201 = vmatprep.subr.mxu0 0.0
      %9202 = vmatpush2.msra.mxu0 0.0
      %9203 = vmatprep.subr.mxu0 0.0
      %9204 = vmatpush2.msra.mxu0 0.0
      %9205 = vmatprep.subr.mxu0 0.0
      %9206 = vmatpush2.msra.mxu0 0.0
      %9207 = vmatprep.subr.mxu0 0.0
      %9208 = vmatpush2.msra.mxu0 0.0
      %9209 = vmatprep.subr.mxu0 0.0
      %9210 = vmatpush2.msra.mxu0 0.0
      %9211 = vmatprep.subr.mxu0 0.0
      %9212 = vmatpush2.msra.mxu0 0.0
      %9213 = vmatprep.subr.mxu0 0.0
      %9214 = vmatpush2.msra.mxu0 0.0
      %9215 = vmatprep.subr.mxu0 0.0
      %9216 = vmatpush2.msra.mxu0 0.0
      %9217 = vmatprep.subr.mxu0 0.0
      %9218 = vmatpush2.msra.mxu0 0.0
      %9219 = vmatprep.mubr.f32.mxu0 0.0
      %9220 = vmatmul.mubr.f32.gmra.mxu0 %v8587
      %v9221 = vpop.f32.mrf.mxu0
      %v9222 = vadd.f32 0.0, %v9221
      %v9223 = vpop.f32.mrf.mxu0
      %9224 = vmatprep.mubr.f32.mxu0 0.0
      %9225 = vmatmul.mubr.f32.gmra.mxu0 %v8590
      %v9226 = vpop.f32.mrf.mxu0
      %v9227 = vadd.f32 0.0, %v9226
      %v9228 = vpop.f32.mrf.mxu0
      %9229 = vdwg.mxu0
      %v9230 = vld [vmem:[#allocation3 + $0x80] sm:$0xff]
      %v9231 = vld [vmem:[#allocation3 + $0x88] sm:$0xf]
      %v9233 = vsel %vm8449, %v9231, 0
      %9235 = vmatprep.subr.mxu0 0.0
      %9236 = vmatpush1.msra.mxu0 0.0
      %9237 = vmatprep.subr.mxu0 0.0
      %9238 = vmatpush1.msra.mxu0 0.0
      %9239 = vmatprep.subr.mxu0 0.0
      %9240 = vmatpush1.msra.mxu0 0.0
      %9241 = vmatprep.subr.mxu0 0.0
      %9242 = vmatpush1.msra.mxu0 0.0
      %9243 = vmatprep.subr.mxu0 0.0
      %9244 = vmatpush1.msra.mxu0 0.0
      %9245 = vmatprep.subr.mxu0 0.0
      %9246 = vmatpush1.msra.mxu0 0.0
      %9247 = vmatprep.subr.mxu0 0.0
      %9248 = vmatpush1.msra.mxu0 0.0
      %9249 = vmatprep.subr.mxu0 0.0
      %9250 = vmatpush1.msra.mxu0 0.0
      %9251 = vmatprep.subr.mxu0 0.0
      %9252 = vmatpush1.msra.mxu0 0.0
      %9253 = vmatprep.subr.mxu0 0.0
      %9254 = vmatpush1.msra.mxu0 0.0
      %9255 = vmatprep.subr.mxu0 0.0
      %9256 = vmatpush1.msra.mxu0 0.0
      %9257 = vmatprep.subr.mxu0 0.0
      %9258 = vmatpush1.msra.mxu0 0.0
      %9259 = vmatprep.subr.mxu0 0.0
      %9260 = vmatpush1.msra.mxu0 0.0
      %9261 = vmatprep.subr.mxu0 0.0
      %9262 = vmatpush1.msra.mxu0 0.0
      %9263 = vmatprep.subr.mxu0 0.0
      %9264 = vmatpush1.msra.mxu0 %v9233
      %9265 = vmatprep.subr.mxu0 0.0
      %9266 = vmatpush1.msra.mxu0 %v9230
      %9267 = vmatprep.subr.mxu0 0.0
      %9268 = vmatpush2.msra.mxu0 0.0
      %9269 = vmatprep.subr.mxu0 0.0
      %9270 = vmatpush2.msra.mxu0 0.0
      %9271 = vmatprep.subr.mxu0 0.0
      %9272 = vmatpush2.msra.mxu0 0.0
      %9273 = vmatprep.subr.mxu0 0.0
      %9274 = vmatpush2.msra.mxu0 0.0
      %9275 = vmatprep.subr.mxu0 0.0
      %9276 = vmatpush2.msra.mxu0 0.0
      %9277 = vmatprep.subr.mxu0 0.0
      %9278 = vmatpush2.msra.mxu0 0.0
      %9279 = vmatprep.subr.mxu0 0.0
      %9280 = vmatpush2.msra.mxu0 0.0
      %9281 = vmatprep.subr.mxu0 0.0
      %9282 = vmatpush2.msra.mxu0 0.0
      %9283 = vmatprep.subr.mxu0 0.0
      %9284 = vmatpush2.msra.mxu0 0.0
      %9285 = vmatprep.subr.mxu0 0.0
      %9286 = vmatpush2.msra.mxu0 0.0
      %9287 = vmatprep.subr.mxu0 0.0
      %9288 = vmatpush2.msra.mxu0 0.0
      %9289 = vmatprep.subr.mxu0 0.0
      %9290 = vmatpush2.msra.mxu0 0.0
      %9291 = vmatprep.subr.mxu0 0.0
      %9292 = vmatpush2.msra.mxu0 0.0
      %9293 = vmatprep.subr.mxu0 0.0
      %9294 = vmatpush2.msra.mxu0 0.0
      %9295 = vmatprep.subr.mxu0 0.0
      %9296 = vmatpush2.msra.mxu0 0.0
      %9297 = vmatprep.subr.mxu0 0.0
      %9298 = vmatpush2.msra.mxu0 0.0
      %9299 = vmatprep.mubr.f32.mxu0 0.0
      %9300 = vmatmul.mubr.f32.gmra.mxu0 %v8587
      %v9301 = vpop.f32.mrf.mxu0
      %v9302 = vadd.f32 0.0, %v9301
      %v9303 = vpop.f32.mrf.mxu0
      %9304 = vmatprep.mubr.f32.mxu0 0.0
      %9305 = vmatmul.mubr.f32.gmra.mxu0 %v8590
      %v9306 = vpop.f32.mrf.mxu0
      %v9307 = vadd.f32 0.0, %v9306
      %v9308 = vpop.f32.mrf.mxu0
      %9309 = vdwg.mxu0
      %v9310 = vld [vmem:[#allocation3 + $0x90] sm:$0xff]
      %v9311 = vld [vmem:[#allocation3 + $0x98] sm:$0xf]
      %v9313 = vsel %vm8449, %v9311, 0
      %9315 = vmatprep.subr.mxu0 0.0
      %9316 = vmatpush1.msra.mxu0 0.0
      %9317 = vmatprep.subr.mxu0 0.0
      %9318 = vmatpush1.msra.mxu0 0.0
      %9319 = vmatprep.subr.mxu0 0.0
      %9320 = vmatpush1.msra.mxu0 0.0
      %9321 = vmatprep.subr.mxu0 0.0
      %9322 = vmatpush1.msra.mxu0 0.0
      %9323 = vmatprep.subr.mxu0 0.0
      %9324 = vmatpush1.msra.mxu0 0.0
      %9325 = vmatprep.subr.mxu0 0.0
      %9326 = vmatpush1.msra.mxu0 0.0
      %9327 = vmatprep.subr.mxu0 0.0
      %9328 = vmatpush1.msra.mxu0 0.0
      %9329 = vmatprep.subr.mxu0 0.0
      %9330 = vmatpush1.msra.mxu0 0.0
      %9331 = vmatprep.subr.mxu0 0.0
      %9332 = vmatpush1.msra.mxu0 0.0
      %9333 = vmatprep.subr.mxu0 0.0
      %9334 = vmatpush1.msra.mxu0 0.0
      %9335 = vmatprep.subr.mxu0 0.0
      %9336 = vmatpush1.msra.mxu0 0.0
      %9337 = vmatprep.subr.mxu0 0.0
      %9338 = vmatpush1.msra.mxu0 0.0
      %9339 = vmatprep.subr.mxu0 0.0
      %9340 = vmatpush1.msra.mxu0 0.0
      %9341 = vmatprep.subr.mxu0 0.0
      %9342 = vmatpush1.msra.mxu0 0.0
      %9343 = vmatprep.subr.mxu0 0.0
      %9344 = vmatpush1.msra.mxu0 %v9313
      %9345 = vmatprep.subr.mxu0 0.0
      %9346 = vmatpush1.msra.mxu0 %v9310
      %9347 = vmatprep.subr.mxu0 0.0
      %9348 = vmatpush2.msra.mxu0 0.0
      %9349 = vmatprep.subr.mxu0 0.0
      %9350 = vmatpush2.msra.mxu0 0.0
      %9351 = vmatprep.subr.mxu0 0.0
      %9352 = vmatpush2.msra.mxu0 0.0
      %9353 = vmatprep.subr.mxu0 0.0
      %9354 = vmatpush2.msra.mxu0 0.0
      %9355 = vmatprep.subr.mxu0 0.0
      %9356 = vmatpush2.msra.mxu0 0.0
      %9357 = vmatprep.subr.mxu0 0.0
      %9358 = vmatpush2.msra.mxu0 0.0
      %9359 = vmatprep.subr.mxu0 0.0
      %9360 = vmatpush2.msra.mxu0 0.0
      %9361 = vmatprep.subr.mxu0 0.0
      %9362 = vmatpush2.msra.mxu0 0.0
      %9363 = vmatprep.subr.mxu0 0.0
      %9364 = vmatpush2.msra.mxu0 0.0
      %9365 = vmatprep.subr.mxu0 0.0
      %9366 = vmatpush2.msra.mxu0 0.0
      %9367 = vmatprep.subr.mxu0 0.0
      %9368 = vmatpush2.msra.mxu0 0.0
      %9369 = vmatprep.subr.mxu0 0.0
      %9370 = vmatpush2.msra.mxu0 0.0
      %9371 = vmatprep.subr.mxu0 0.0
      %9372 = vmatpush2.msra.mxu0 0.0
      %9373 = vmatprep.subr.mxu0 0.0
      %9374 = vmatpush2.msra.mxu0 0.0
      %9375 = vmatprep.subr.mxu0 0.0
      %9376 = vmatpush2.msra.mxu0 0.0
      %9377 = vmatprep.subr.mxu0 0.0
      %9378 = vmatpush2.msra.mxu0 0.0
      %9379 = vmatprep.mubr.f32.mxu0 0.0
      %9380 = vmatmul.mubr.f32.gmra.mxu0 %v8587
      %v9381 = vpop.f32.mrf.mxu0
      %v9382 = vadd.f32 0.0, %v9381
      %v9383 = vpop.f32.mrf.mxu0
      %9384 = vmatprep.mubr.f32.mxu0 0.0
      %9385 = vmatmul.mubr.f32.gmra.mxu0 %v8590
      %v9386 = vpop.f32.mrf.mxu0
      %v9387 = vadd.f32 0.0, %v9386
      %v9388 = vpop.f32.mrf.mxu0
      %9389 = vdwg.mxu0
      %v9390 = vld [vmem:[#allocation3 + $0xa0] sm:$0xff]
      %v9391 = vld [vmem:[#allocation3 + $0xa8] sm:$0xf]
      %v9393 = vsel %vm8449, %v9391, 0
      %9395 = vmatprep.subr.mxu0 0.0
      %9396 = vmatpush1.msra.mxu0 0.0
      %9397 = vmatprep.subr.mxu0 0.0
      %9398 = vmatpush1.msra.mxu0 0.0
      %9399 = vmatprep.subr.mxu0 0.0
      %9400 = vmatpush1.msra.mxu0 0.0
      %9401 = vmatprep.subr.mxu0 0.0
      %9402 = vmatpush1.msra.mxu0 0.0
      %9403 = vmatprep.subr.mxu0 0.0
      %9404 = vmatpush1.msra.mxu0 0.0
      %9405 = vmatprep.subr.mxu0 0.0
      %9406 = vmatpush1.msra.mxu0 0.0
      %9407 = vmatprep.subr.mxu0 0.0
      %9408 = vmatpush1.msra.mxu0 0.0
      %9409 = vmatprep.subr.mxu0 0.0
      %9410 = vmatpush1.msra.mxu0 0.0
      %9411 = vmatprep.subr.mxu0 0.0
      %9412 = vmatpush1.msra.mxu0 0.0
      %9413 = vmatprep.subr.mxu0 0.0
      %9414 = vmatpush1.msra.mxu0 0.0
      %9415 = vmatprep.subr.mxu0 0.0
      %9416 = vmatpush1.msra.mxu0 0.0
      %9417 = vmatprep.subr.mxu0 0.0
      %9418 = vmatpush1.msra.mxu0 0.0
      %9419 = vmatprep.subr.mxu0 0.0
      %9420 = vmatpush1.msra.mxu0 0.0
      %9421 = vmatprep.subr.mxu0 0.0
      %9422 = vmatpush1.msra.mxu0 0.0
      %9423 = vmatprep.subr.mxu0 0.0
      %9424 = vmatpush1.msra.mxu0 %v9393
      %9425 = vmatprep.subr.mxu0 0.0
      %9426 = vmatpush1.msra.mxu0 %v9390
      %9427 = vmatprep.subr.mxu0 0.0
      %9428 = vmatpush2.msra.mxu0 0.0
      %9429 = vmatprep.subr.mxu0 0.0
      %9430 = vmatpush2.msra.mxu0 0.0
      %9431 = vmatprep.subr.mxu0 0.0
      %9432 = vmatpush2.msra.mxu0 0.0
      %9433 = vmatprep.subr.mxu0 0.0
      %9434 = vmatpush2.msra.mxu0 0.0
      %9435 = vmatprep.subr.mxu0 0.0
      %9436 = vmatpush2.msra.mxu0 0.0
      %9437 = vmatprep.subr.mxu0 0.0
      %9438 = vmatpush2.msra.mxu0 0.0
      %9439 = vmatprep.subr.mxu0 0.0
      %9440 = vmatpush2.msra.mxu0 0.0
      %9441 = vmatprep.subr.mxu0 0.0
      %9442 = vmatpush2.msra.mxu0 0.0
      %9443 = vmatprep.subr.mxu0 0.0
      %9444 = vmatpush2.msra.mxu0 0.0
      %9445 = vmatprep.subr.mxu0 0.0
      %9446 = vmatpush2.msra.mxu0 0.0
      %9447 = vmatprep.subr.mxu0 0.0
      %9448 = vmatpush2.msra.mxu0 0.0
      %9449 = vmatprep.subr.mxu0 0.0
      %9450 = vmatpush2.msra.mxu0 0.0
      %9451 = vmatprep.subr.mxu0 0.0
      %9452 = vmatpush2.msra.mxu0 0.0
      %9453 = vmatprep.subr.mxu0 0.0
      %9454 = vmatpush2.msra.mxu0 0.0
      %9455 = vmatprep.subr.mxu0 0.0
      %9456 = vmatpush2.msra.mxu0 0.0
      %9457 = vmatprep.subr.mxu0 0.0
      %9458 = vmatpush2.msra.mxu0 0.0
      %9459 = vmatprep.mubr.f32.mxu0 0.0
      %9460 = vmatmul.mubr.f32.gmra.mxu0 %v8587
      %v9461 = vpop.f32.mrf.mxu0
      %v9462 = vadd.f32 0.0, %v9461
      %v9463 = vpop.f32.mrf.mxu0
      %9464 = vmatprep.mubr.f32.mxu0 0.0
      %9465 = vmatmul.mubr.f32.gmra.mxu0 %v8590
      %v9466 = vpop.f32.mrf.mxu0
      %v9467 = vadd.f32 0.0, %v9466
      %v9468 = vpop.f32.mrf.mxu0
      %9469 = vdwg.mxu0
      %v9470 = vld [vmem:[#allocation3 + $0xb0] sm:$0xff]
      %v9471 = vld [vmem:[#allocation3 + $0xb8] sm:$0xf]
      %v9473 = vsel %vm8449, %v9471, 0
      %9475 = vmatprep.subr.mxu0 0.0
      %9476 = vmatpush1.msra.mxu0 0.0
      %9477 = vmatprep.subr.mxu0 0.0
      %9478 = vmatpush1.msra.mxu0 0.0
      %9479 = vmatprep.subr.mxu0 0.0
      %9480 = vmatpush1.msra.mxu0 0.0
      %9481 = vmatprep.subr.mxu0 0.0
      %9482 = vmatpush1.msra.mxu0 0.0
      %9483 = vmatprep.subr.mxu0 0.0
      %9484 = vmatpush1.msra.mxu0 0.0
      %9485 = vmatprep.subr.mxu0 0.0
      %9486 = vmatpush1.msra.mxu0 0.0
      %9487 = vmatprep.subr.mxu0 0.0
      %9488 = vmatpush1.msra.mxu0 0.0
      %9489 = vmatprep.subr.mxu0 0.0
      %9490 = vmatpush1.msra.mxu0 0.0
      %9491 = vmatprep.subr.mxu0 0.0
      %9492 = vmatpush1.msra.mxu0 0.0
      %9493 = vmatprep.subr.mxu0 0.0
      %9494 = vmatpush1.msra.mxu0 0.0
      %9495 = vmatprep.subr.mxu0 0.0
      %9496 = vmatpush1.msra.mxu0 0.0
      %9497 = vmatprep.subr.mxu0 0.0
      %9498 = vmatpush1.msra.mxu0 0.0
      %9499 = vmatprep.subr.mxu0 0.0
      %9500 = vmatpush1.msra.mxu0 0.0
      %9501 = vmatprep.subr.mxu0 0.0
      %9502 = vmatpush1.msra.mxu0 0.0
      %9503 = vmatprep.subr.mxu0 0.0
      %9504 = vmatpush1.msra.mxu0 %v9473
      %9505 = vmatprep.subr.mxu0 0.0
      %9506 = vmatpush1.msra.mxu0 %v9470
      %9507 = vmatprep.subr.mxu0 0.0
      %9508 = vmatpush2.msra.mxu0 0.0
      %9509 = vmatprep.subr.mxu0 0.0
      %9510 = vmatpush2.msra.mxu0 0.0
      %9511 = vmatprep.subr.mxu0 0.0
      %9512 = vmatpush2.msra.mxu0 0.0
      %9513 = vmatprep.subr.mxu0 0.0
      %9514 = vmatpush2.msra.mxu0 0.0
      %9515 = vmatprep.subr.mxu0 0.0
      %9516 = vmatpush2.msra.mxu0 0.0
      %9517 = vmatprep.subr.mxu0 0.0
      %9518 = vmatpush2.msra.mxu0 0.0
      %9519 = vmatprep.subr.mxu0 0.0
      %9520 = vmatpush2.msra.mxu0 0.0
      %9521 = vmatprep.subr.mxu0 0.0
      %9522 = vmatpush2.msra.mxu0 0.0
      %9523 = vmatprep.subr.mxu0 0.0
      %9524 = vmatpush2.msra.mxu0 0.0
      %9525 = vmatprep.subr.mxu0 0.0
      %9526 = vmatpush2.msra.mxu0 0.0
      %9527 = vmatprep.subr.mxu0 0.0
      %9528 = vmatpush2.msra.mxu0 0.0
      %9529 = vmatprep.subr.mxu0 0.0
      %9530 = vmatpush2.msra.mxu0 0.0
      %9531 = vmatprep.subr.mxu0 0.0
      %9532 = vmatpush2.msra.mxu0 0.0
      %9533 = vmatprep.subr.mxu0 0.0
      %9534 = vmatpush2.msra.mxu0 0.0
      %9535 = vmatprep.subr.mxu0 0.0
      %9536 = vmatpush2.msra.mxu0 0.0
      %9537 = vmatprep.subr.mxu0 0.0
      %9538 = vmatpush2.msra.mxu0 0.0
      %9539 = vmatprep.mubr.f32.mxu0 0.0
      %9540 = vmatmul.mubr.f32.gmra.mxu0 %v8587
      %v9541 = vpop.f32.mrf.mxu0
      %v9542 = vadd.f32 0.0, %v9541
      %v9543 = vpop.f32.mrf.mxu0
      %9544 = vmatprep.mubr.f32.mxu0 0.0
      %9545 = vmatmul.mubr.f32.gmra.mxu0 %v8590
      %v9546 = vpop.f32.mrf.mxu0
      %v9547 = vadd.f32 0.0, %v9546
      %v9548 = vpop.f32.mrf.mxu0
      %9549 = vdwg.mxu0
      %v9550 = vld [vmem:[%s428] sm:$0xff]
      %v9551 = vld [vmem:[%s428 + $0x8] sm:$0xff]
      %v9552 = vld [vmem:[%s428 + $0x10] sm:$0xff]
      %v9553 = vld [vmem:[%s428 + $0x18] sm:$0xff]
      %v9554 = vld [vmem:[%s428 + $0x20] sm:$0xff]
      %v9555 = vld [vmem:[%s428 + $0x28] sm:$0xff]
      %v9556 = vld [vmem:[%s428 + $0x30] sm:$0xff]
      %v9557 = vld [vmem:[%s428 + $0x38] sm:$0xff]
      %v9558 = vld [vmem:[%s428 + $0x40] sm:$0xff]
      %v9559 = vld [vmem:[%s428 + $0x48] sm:$0xff]
      %v9560 = vld [vmem:[%s428 + $0x50] sm:$0xff]
      %v9561 = vld [vmem:[%s428 + $0x58] sm:$0xff]
      %v9562 = vld [vmem:[%s428 + $0x60] sm:$0xff]
      %v9563 = vld [vmem:[%s428 + $0x68] sm:$0xff]
      %v9564 = vld [vmem:[%s428 + $0x70] sm:$0xff]
      %v9565 = vld [vmem:[%s428 + $0x78] sm:$0xff]
      %v9566 = vld [vmem:[%s428 + $0x80] sm:$0xff]
      %v9567 = vld [vmem:[%s428 + $0x88] sm:$0xff]
      %v9568 = vld [vmem:[%s428 + $0x90] sm:$0xff]
      %v9569 = vld [vmem:[%s428 + $0x98] sm:$0xff]
      %v9570 = vld [vmem:[%s428 + $0xa0] sm:$0xff]
      %v9571 = vld [vmem:[%s428 + $0xa8] sm:$0xff]
      %v9572 = vld [vmem:[%s428 + $0xb0] sm:$0xff]
      %v9573 = vld [vmem:[%s428 + $0xb8] sm:$0xff]
      %v9574 = vld [vmem:[%s428 + $0xc0] sm:$0xff]
      %v9575 = vld [vmem:[%s428 + $0xc8] sm:$0xff]
      %v9576 = vld [vmem:[%s428 + $0xd0] sm:$0xff]
      %v9577 = vld [vmem:[%s428 + $0xd8] sm:$0xff]
      %v9578 = vld [vmem:[%s428 + $0xe0] sm:$0xff]
      %v9579 = vld [vmem:[%s428 + $0xe8] sm:$0xff]
      %v9580 = vld [vmem:[%s428 + $0xf0] sm:$0xff]
      %v9581 = vld [vmem:[%s428 + $0xf8] sm:$0xff]
      %v9582 = vadd.f32 %v8662, %v9550
      %v9583 = vadd.f32 %v8667, %v9551
      %9584 = vst.msk [vmem:[%s433] sm:$0xff] %vm701, %v9582
      %9585 = vst.msk [vmem:[%s433 + $0x8] sm:$0xff] %vm701, %v9583
      %v9586 = vmul.f32 %v8662, 0.26666668
      %v9587 = vmul.f32 %v8667, 0.26666668
      %v9588 = vmul.f32 %v8742, 0.73333335
      %v9589 = vmul.f32 %v8747, 0.73333335
      %v9590 = vadd.f32 %v9586, %v9588
      %v9591 = vadd.f32 %v9587, %v9589
      %v9592 = vadd.f32 %v9590, %v9552
      %v9593 = vadd.f32 %v9591, %v9553
      %s9594 = scalar_lea.vmem %s433, 16
      %9595 = vst.msk [vmem:[%s9594] sm:$0xff] %vm701, %v9592
      %9596 = vst.msk [vmem:[%s9594 + $0x8] sm:$0xff] %vm701, %v9593
      %v9597 = vmul.f32 %v8742, 0.53333336
      %v9598 = vmul.f32 %v8747, 0.53333336
      %v9599 = vmul.f32 %v8822, 0.46666667
      %v9600 = vmul.f32 %v8827, 0.46666667
      %v9601 = vadd.f32 %v9597, %v9599
      %v9602 = vadd.f32 %v9598, %v9600
      %v9603 = vadd.f32 %v9601, %v9554
      %v9604 = vadd.f32 %v9602, %v9555
      %s9605 = scalar_lea.vmem %s433, 32
      %9606 = vst.msk [vmem:[%s9605] sm:$0xff] %vm701, %v9603
      %9607 = vst.msk [vmem:[%s9605 + $0x8] sm:$0xff] %vm701, %v9604
      %v9608 = vmul.f32 %v8822, 0.8
      %v9609 = vmul.f32 %v8827, 0.8
      %v9610 = vmul.f32 %v8902, 0.2
      %v9611 = vmul.f32 %v8907, 0.2
      %v9612 = vadd.f32 %v9608, %v9610
      %v9613 = vadd.f32 %v9609, %v9611
      %v9614 = vadd.f32 %v9612, %v9556
      %v9615 = vadd.f32 %v9613, %v9557
      %s9616 = scalar_lea.vmem %s433, 48
      %9617 = vst.msk [vmem:[%s9616] sm:$0xff] %vm701, %v9614
      %9618 = vst.msk [vmem:[%s9616 + $0x8] sm:$0xff] %vm701, %v9615
      %v9619 = vmul.f32 %v8822, 0.06666667
      %v9620 = vmul.f32 %v8827, 0.06666667
      %v9621 = vmul.f32 %v8902, 0.93333334
      %v9622 = vmul.f32 %v8907, 0.93333334
      %v9623 = vadd.f32 %v9619, %v9621
      %v9624 = vadd.f32 %v9620, %v9622
      %v9625 = vadd.f32 %v9623, %v9558
      %v9626 = vadd.f32 %v9624, %v9559
      %s9627 = scalar_lea.vmem %s433, 64
      %9628 = vst.msk [vmem:[%s9627] sm:$0xff] %vm701, %v9625
      %9629 = vst.msk [vmem:[%s9627 + $0x8] sm:$0xff] %vm701, %v9626
      %v9630 = vmul.f32 %v8902, 0.33333334
      %v9631 = vmul.f32 %v8907, 0.33333334
      %v9632 = vmul.f32 %v8982, 0.6666667
      %v9633 = vmul.f32 %v8987, 0.6666667
      %v9634 = vadd.f32 %v9630, %v9632
      %v9635 = vadd.f32 %v9631, %v9633
      %v9636 = vadd.f32 %v9634, %v9560
      %v9637 = vadd.f32 %v9635, %v9561
      %s9638 = scalar_lea.vmem %s433, 80
      %9639 = vst.msk [vmem:[%s9638] sm:$0xff] %vm701, %v9636
      %9640 = vst.msk [vmem:[%s9638 + $0x8] sm:$0xff] %vm701, %v9637
      %v9641 = vmul.f32 %v8982, 0.6
      %v9642 = vmul.f32 %v8987, 0.6
      %v9643 = vmul.f32 %v9062, 0.4
      %v9644 = vmul.f32 %v9067, 0.4
      %v9645 = vadd.f32 %v9641, %v9643
      %v9646 = vadd.f32 %v9642, %v9644
      %v9647 = vadd.f32 %v9645, %v9562
      %v9648 = vadd.f32 %v9646, %v9563
      %s9649 = scalar_lea.vmem %s433, 96
      %9650 = vst.msk [vmem:[%s9649] sm:$0xff] %vm701, %v9647
      %9651 = vst.msk [vmem:[%s9649 + $0x8] sm:$0xff] %vm701, %v9648
      %v9652 = vmul.f32 %v9062, 0.8666667
      %v9653 = vmul.f32 %v9067, 0.8666667
      %v9654 = vmul.f32 %v9142, 0.13333334
      %v9655 = vmul.f32 %v9147, 0.13333334
      %v9656 = vadd.f32 %v9652, %v9654
      %v9657 = vadd.f32 %v9653, %v9655
      %v9658 = vadd.f32 %v9656, %v9564
      %v9659 = vadd.f32 %v9657, %v9565
      %s9660 = scalar_lea.vmem %s433, 112
      %9661 = vst.msk [vmem:[%s9660] sm:$0xff] %vm701, %v9658
      %9662 = vst.msk [vmem:[%s9660 + $0x8] sm:$0xff] %vm701, %v9659
      %v9663 = vmul.f32 %v9062, 0.13333334
      %v9664 = vmul.f32 %v9067, 0.13333334
      %v9665 = vmul.f32 %v9142, 0.8666667
      %v9666 = vmul.f32 %v9147, 0.8666667
      %v9667 = vadd.f32 %v9663, %v9665
      %v9668 = vadd.f32 %v9664, %v9666
      %v9669 = vadd.f32 %v9667, %v9566
      %v9670 = vadd.f32 %v9668, %v9567
      %s9671 = scalar_lea.vmem %s433, 128
      %9672 = vst.msk [vmem:[%s9671] sm:$0xff] %vm701, %v9669
      %9673 = vst.msk [vmem:[%s9671 + $0x8] sm:$0xff] %vm701, %v9670
      %v9674 = vmul.f32 %v9142, 0.4
      %v9675 = vmul.f32 %v9147, 0.4
      %v9676 = vmul.f32 %v9222, 0.6
      %v9677 = vmul.f32 %v9227, 0.6
      %v9678 = vadd.f32 %v9674, %v9676
      %v9679 = vadd.f32 %v9675, %v9677
      %v9680 = vadd.f32 %v9678, %v9568
      %v9681 = vadd.f32 %v9679, %v9569
      %s9682 = scalar_lea.vmem %s433, 144
      %9683 = vst.msk [vmem:[%s9682] sm:$0xff] %vm701, %v9680
      %9684 = vst.msk [vmem:[%s9682 + $0x8] sm:$0xff] %vm701, %v9681
      %v9685 = vmul.f32 %v9222, 0.6666667
      %v9686 = vmul.f32 %v9227, 0.6666667
      %v9687 = vmul.f32 %v9302, 0.33333334
      %v9688 = vmul.f32 %v9307, 0.33333334
      %v9689 = vadd.f32 %v9685, %v9687
      %v9690 = vadd.f32 %v9686, %v9688
      %v9691 = vadd.f32 %v9689, %v9570
      %v9692 = vadd.f32 %v9690, %v9571
      %s9693 = scalar_lea.vmem %s433, 160
      %9694 = vst.msk [vmem:[%s9693] sm:$0xff] %vm701, %v9691
      %9695 = vst.msk [vmem:[%s9693 + $0x8] sm:$0xff] %vm701, %v9692
      %v9696 = vmul.f32 %v9302, 0.93333334
      %v9697 = vmul.f32 %v9307, 0.93333334
      %v9698 = vmul.f32 %v9382, 0.06666667
      %v9699 = vmul.f32 %v9387, 0.06666667
      %v9700 = vadd.f32 %v9696, %v9698
      %v9701 = vadd.f32 %v9697, %v9699
      %v9702 = vadd.f32 %v9700, %v9572
      %v9703 = vadd.f32 %v9701, %v9573
      %s9704 = scalar_lea.vmem %s433, 176
      %9705 = vst.msk [vmem:[%s9704] sm:$0xff] %vm701, %v9702
      %9706 = vst.msk [vmem:[%s9704 + $0x8] sm:$0xff] %vm701, %v9703
      %v9707 = vmul.f32 %v9302, 0.2
      %v9708 = vmul.f32 %v9307, 0.2
      %v9709 = vmul.f32 %v9382, 0.8
      %v9710 = vmul.f32 %v9387, 0.8
      %v9711 = vadd.f32 %v9707, %v9709
      %v9712 = vadd.f32 %v9708, %v9710
      %v9713 = vadd.f32 %v9711, %v9574
      %v9714 = vadd.f32 %v9712, %v9575
      %s9715 = scalar_lea.vmem %s433, 192
      %9716 = vst.msk [vmem:[%s9715] sm:$0xff] %vm701, %v9713
      %9717 = vst.msk [vmem:[%s9715 + $0x8] sm:$0xff] %vm701, %v9714
      %v9718 = vmul.f32 %v9382, 0.46666667
      %v9719 = vmul.f32 %v9387, 0.46666667
      %v9720 = vmul.f32 %v9462, 0.53333336
      %v9721 = vmul.f32 %v9467, 0.53333336
      %v9722 = vadd.f32 %v9718, %v9720
      %v9723 = vadd.f32 %v9719, %v9721
      %v9724 = vadd.f32 %v9722, %v9576
      %v9725 = vadd.f32 %v9723, %v9577
      %s9726 = scalar_lea.vmem %s433, 208
      %9727 = vst.msk [vmem:[%s9726] sm:$0xff] %vm701, %v9724
      %9728 = vst.msk [vmem:[%s9726 + $0x8] sm:$0xff] %vm701, %v9725
      %v9729 = vmul.f32 %v9462, 0.73333335
      %v9730 = vmul.f32 %v9467, 0.73333335
      %v9731 = vmul.f32 %v9542, 0.26666668
      %v9732 = vmul.f32 %v9547, 0.26666668
      %v9733 = vadd.f32 %v9729, %v9731
      %v9734 = vadd.f32 %v9730, %v9732
      %v9735 = vadd.f32 %v9733, %v9578
      %v9736 = vadd.f32 %v9734, %v9579
      %s9737 = scalar_lea.vmem %s433, 224
      %9738 = vst.msk [vmem:[%s9737] sm:$0xff] %vm701, %v9735
      %9739 = vst.msk [vmem:[%s9737 + $0x8] sm:$0xff] %vm701, %v9736
      %v9740 = vadd.f32 %v9542, %v9580
      %v9741 = vadd.f32 %v9547, %v9581
      %s9742 = scalar_lea.vmem %s433, 240
      %9743 = vst.msk [vmem:[%s9742] sm:$0xff] %vm701, %v9740
      %9744 = vst.msk [vmem:[%s9742 + $0x8] sm:$0xff] %vm701, %v9741
      %p9745 = scmp.lt.s32.totalorder %s23, 1
      %s9746 = scalar_select %p9745, %s23, 1
      %s9747 = smul.addr %s9746, 32
      %s9748 = smul.addr %s9747, 8
      %s9749 = scalar_lea.vmem %s12, %s9748
      // Predicated region
      $region69: #{residual_block_forward.1} parent=67 // pred_check
        %p9750 = pneg %p303
      $region70: #{residual_block_forward.1} parent=67 // pred_check_branch
        %9752 = sbr.rel (%p9750) target = $region72
      $region71: #{residual_block_forward.1} parent=67 // pred_region
        _
      $region72: #{residual_block_forward.1} parent=67 // pred_fallthru
        _
    $region68: #{residual_block_forward.1} parent=5 // pred_fallthru
      _
    %p9753 = scmp.le.s32.totalorder 2, %s18
    // Predicated region
    $region73: #{residual_block_forward.1} parent=5 // pred_check
      %p9754 = pneg %p9753
    $region74: #{residual_block_forward.1} parent=5 // pred_check_branch
      %9756 = sbr.rel (%p9754) target = $region76
    $region75: #{residual_block_forward.1} parent=5 // pred_region
      %s9757 = ssub.s32 %s18, 2
      // Predicated region
      $region77: #{residual_block_forward.1} parent=75 // pred_check
        %p9758 = pneg %p309
      $region78: #{residual_block_forward.1} parent=75 // pred_check_branch
        %9760 = sbr.rel (%p9758) target = $region80
      $region79: #{residual_block_forward.1} parent=75 // pred_region
        %p9761 = scmp.lt.s32.totalorder %s24, 1
        %s9762 = scalar_select %p9761, %s24, 1
        %s9763 = smul.addr %s9762, 32
        %s9764 = smul.addr %s9763, 8
        %s9765 = scalar_lea.vmem %s12, %s9764
      $region80: #{residual_block_forward.1} parent=75 // pred_fallthru
        _
    $region76: #{residual_block_forward.1} parent=5 // pred_fallthru
      _
  $region6: #{residual_block_forward.1} parent=0 // loop_footer
    %s22 = sadd.s32 1, %s18
  $region7: #{residual_block_forward.1} parent=0 // loop_footer_branch
    %17 = sbr.rel target = $region3
  $region8: #{residual_block_forward.1} parent=0 // loop_exit
    _

</llo_original>
